<compile_context>
chip_gen: v6e
topology: v6e:2x2x1
jax: 0.10.0
libtpu: 0.0.40
codegen_flags: <defaults>
</compile_context>

<pallas_src>
import functools

import jax
import jax.numpy as jnp
from jax.experimental import pallas as pl
from jax.experimental.pallas import tpu as pltpu

EPS = 1e-5  # nn.BatchNorm1d default eps


# ---------------------------------------------------------------------------
# Kernel 1: streamed conv-as-GEMM stem + global-average-pool accumulation.
#   grid = (n_par, n_hw)
#     axis 0 "parallel"  : spatial partitions (feeds both v7x TensorCores)
#     axis 1 "arbitrary" : spatial tiles inside a partition (pool reduction)
#   patches tile : [1, 1, t_hw*B_pad, K_pad] bf16, rows interleaved (t, b)
#   wc / bc      : resident conv weight / bias (single-buffered)
#   partial      : [1, B_pad, F_pad] f32 output block; its block index depends
#                  only on the parallel axis, so it stays resident in VMEM
#                  across the reduction axis and doubles as the accumulator.
# ---------------------------------------------------------------------------
def stem_kernel(patches_ref, wc_ref, bc_ref, partial_ref, *, t_hw, b_pad):
    h = pl.program_id(1)

    @pl.when(h == 0)
    def _init():
        partial_ref[...] = jnp.zeros_like(partial_ref)

    x = patches_ref[0, 0]                             # [t_hw*b_pad, K_pad] bf16
    y = jnp.dot(x, wc_ref[...], preferred_element_type=jnp.float32)
    # bias + ReLU + pool accumulation stay in f32 (v5e has no bf16 VPU).
    y = jnp.maximum(y + bc_ref[...], 0.0)             # [t_hw*b_pad, F_pad] f32
    # rows are interleaved (t, b): regroup so the trailing (B_pad, F_pad) slab
    # is a native (8, 128) vreg tile and the partial pool is pure VPU adds.
    # (Free only because b_pad % 8 == 0 and F_pad % 128 == 0 -- both enforced.)
    y = y.reshape(t_hw, b_pad, y.shape[-1])
    partial_ref[...] += jnp.sum(y, axis=0)[None]


# ---------------------------------------------------------------------------
# Kernel 2: tiny fused head -- combine pool partials, global-average-pool
# scale, Linear(feat_dim, embed_size) in bf16 (f32 accumulation), then
# BatchNorm1d with train-mode batch statistics (centered variance, padded
# batch rows masked out of the statistics).
# ---------------------------------------------------------------------------
def head_kernel(partial_ref, we_ref, be_ref, gamma_ref, beta_ref, out_ref, *,
                real_b, inv_hw):
    feat = jnp.sum(partial_ref[...], axis=0) * inv_hw          # [B_pad, F_pad]
    z = jnp.dot(feat.astype(we_ref.dtype), we_ref[...],
                preferred_element_type=jnp.float32) + be_ref[...]  # [B_pad, E_pad]
    b_pad = z.shape[0]
    if real_b == b_pad:
        mask = None
        zm = z
    else:  # padded batch rows must not pollute the BN statistics
        row = jax.lax.broadcasted_iota(jnp.int32, z.shape, 0)
        mask = row < real_b
        zm = jnp.where(mask, z, 0.0)
    mean = jnp.sum(zm, axis=0, keepdims=True) * (1.0 / real_b)
    zc = z - mean
    zc_stat = zc if mask is None else jnp.where(mask, zc, 0.0)
    var = jnp.sum(zc_stat * zc_stat, axis=0, keepdims=True) * (1.0 / real_b)
    inv = jax.lax.rsqrt(var + EPS)
    out_ref[...] = (zc * inv * gamma_ref[...] + beta_ref[...]).astype(out_ref.dtype)


# ---------------------------------------------------------------------------
# Wrapper-side layout plumbing (plain JAX)
# ---------------------------------------------------------------------------
def im2col_3x3_hw_major(x):
    """[B, C, H, W] -> [H*W, B, C*9] patches (3x3 / stride 1 / pad 1), built
    directly in (hw, b, k) order.  Only the small pre-blow-up image is
    transposed, so the 9x-expanded tensor never needs an HBM transpose."""
    B, C, H, W = x.shape
    xt = jnp.transpose(x, (2, 3, 0, 1))                        # [H, W, B, C]
    xp = jnp.pad(xt, ((1, 1), (1, 1), (0, 0), (0, 0)))
    taps = [xp[i:i + H, j:j + W] for i in range(3) for j in range(3)]
    p = jnp.stack(taps, axis=-1)                               # [H, W, B, C, 9]
    return p.reshape(H * W, B, C * 9)


def _round_up(x, m):
    return ((x + m - 1) // m) * m


def _vmem_budget_bytes():
    """Generation-aware VMEM buffer budget (v7x: 64 MiB/TC; v5e/v6e: 128)."""
    try:
        cap = pltpu.get_tpu_info().vmem_capacity_bytes
    except Exception:                      # conservative v7x-safe fallback
        cap = 64 * 1024 * 1024
    cap = min(max(cap, 64 * 1024 * 1024), 128 * 1024 * 1024)
    return cap * 3 // 4


def _pick_spatial_tile(hw_part, b_pad, k_pad, f_pad, budget, max_rows=8192):
    """Largest multiple-of-8 divisor of hw_part whose GEMM tile fits budget."""
    per_row = 2 * 2 * k_pad + 4 * f_pad      # 2x bf16 patch buffers + f32 GEMM out
    fixed = 2 * k_pad * f_pad + 4 * f_pad + 2 * 4 * b_pad * f_pad
    rows_cap = min(max_rows, max((budget - fixed) // per_row, 8 * b_pad))
    divisors = [d for d in range(8, hw_part + 1, 8) if hw_part % d == 0]
    if not divisors:
        return hw_part
    fitting = [d for d in divisors if d * b_pad <= rows_cap]
    return max(fitting) if fitting else min(divisors)


@jax.jit
def encoder_forward(images, wc, bc, we, be, gamma, beta):
    B, C, H, W = images.shape
    HW = H * W
    K = C * 9
    F = wc.shape[1]
    E = we.shape[1]

    B_pad = _round_up(B, 8)        # sublane-aligned batch
    K_pad = _round_up(K, 16)       # bf16-packing-aligned contraction dim
    F_pad = _round_up(F, 128)      # lane-dense feature dim
    E_pad = _round_up(E, 128)      # lane-dense output (unmasked vst stores)

    # Two-way spatial split: leading "parallel" axis feeds both v7x
    # TensorCores; on single-TC v5e/v6e it just runs sequentially.
    n_par = 2 if HW % 2 == 0 and (HW // 2) % 8 == 0 else 1
    hw_part = HW // n_par

    budget = _vmem_budget_bytes()
    t_hw = _pick_spatial_tile(hw_part, B_pad, K_pad, F_pad, budget)
    n_hw = hw_part // t_hw
    rows = t_hw * B_pad

    # Patches built directly in (hw, b, k) order; bf16 for the dominant stream.
    patches = im2col_3x3_hw_major(images.astype(jnp.bfloat16))
    patches = jnp.pad(patches, ((0, 0), (0, B_pad - B), (0, K_pad - K)))
    patches = patches.reshape(n_par, n_hw, rows, K_pad)   # adjacent-dim merges only

    wc_p = jnp.pad(wc, ((0, K_pad - K), (0, F_pad - F))).astype(jnp.bfloat16)
    bc_p = jnp.pad(bc, ((0, 0), (0, F_pad - F)))
    we_p = jnp.pad(we, ((0, F_pad - F), (0, E_pad - E))).astype(jnp.bfloat16)
    be_p = jnp.pad(be, ((0, 0), (0, E_pad - E)))
    gamma_p = jnp.pad(gamma, ((0, 0), (0, E_pad - E)))
    beta_p = jnp.pad(beta, ((0, 0), (0, E_pad - E)))

    stem = functools.partial(stem_kernel, t_hw=t_hw, b_pad=B_pad)
    partial_feat = pl.pallas_call(
        stem,
        out_shape=jax.ShapeDtypeStruct((n_par, B_pad, F_pad), jnp.float32),
        grid_spec=pltpu.PrefetchScalarGridSpec(
            num_scalar_prefetch=0,
            grid=(n_par, n_hw),
            in_specs=[
                pl.BlockSpec((1, 1, rows, K_pad), lambda p, h: (p, h, 0, 0)),
                # grid-invariant conv params: single-buffer to halve their VMEM
                pl.BlockSpec((K_pad, F_pad), lambda p, h: (0, 0),
                             pipeline_mode=pl.Buffered(1)),
                pl.BlockSpec((1, F_pad), lambda p, h: (0, 0),
                             pipeline_mode=pl.Buffered(1)),
            ],
            out_specs=pl.BlockSpec((1, B_pad, F_pad), lambda p, h: (p, 0, 0)),
        ),
        compiler_params=pltpu.CompilerParams(
            dimension_semantics=("parallel", "arbitrary"),
            vmem_limit_bytes=int(budget),
        ),
    )(patches, wc_p, bc_p)

    # Tiny one-step head; the partial-feature HBM round trip is only
    # n_par * B_pad * F_pad * 4 bytes.
    head = functools.partial(head_kernel, real_b=B, inv_hw=1.0 / HW)
    out = pl.pallas_call(
        head,
        out_shape=jax.ShapeDtypeStruct((B_pad, E_pad), jnp.float32),
        grid=(1,),
        in_specs=[
            pl.BlockSpec((n_par, B_pad, F_pad), lambda i: (0, 0, 0)),
            pl.BlockSpec((F_pad, E_pad), lambda i: (0, 0)),
            pl.BlockSpec((1, E_pad), lambda i: (0, 0)),
            pl.BlockSpec((1, E_pad), lambda i: (0, 0)),
            pl.BlockSpec((1, E_pad), lambda i: (0, 0)),
        ],
        out_specs=pl.BlockSpec((B_pad, E_pad), lambda i: (0, 0)),
    )(partial_feat, we_p, be_p, gamma_p, beta_p)

    return out[:B, :E]


class EncoderCNN:
    """JAX/Pallas re-implementation of the PyTorch EncoderCNN forward pass."""

    def __init__(self, embed_size, feat_dim=256, in_channels=3, key=None):
        if key is None:
            key = jax.random.PRNGKey(0)
        k1, k2, k3, k4 = jax.random.split(key, 4)
        self.feat_dim = feat_dim
        self.embed_size = embed_size
        K = in_channels * 9
        # synthetic backbone conv params (stand-in for the frozen resnet stack)
        self.wc = (0.05 * jax.random.normal(k1, (K, feat_dim))).astype(jnp.float32)
        self.bc = (0.05 * jax.random.normal(k2, (1, feat_dim))).astype(jnp.float32)
        # self.embed = nn.Linear(resnet.fc.in_features, embed_size)
        bound = 1.0 / (feat_dim ** 0.5)
        self.we = jax.random.uniform(k3, (feat_dim, embed_size),
                                     minval=-bound, maxval=bound).astype(jnp.float32)
        self.be = jax.random.uniform(k4, (1, embed_size),
                                     minval=-bound, maxval=bound).astype(jnp.float32)
        # self.bn = nn.BatchNorm1d(embed_size, momentum=0.01): fresh init
        # gamma=1, beta=0; forward uses train-mode batch statistics.
        self.gamma = jnp.ones((1, embed_size), jnp.float32)
        self.beta = jnp.zeros((1, embed_size), jnp.float32)

    def forward(self, images):
        return encoder_forward(images, self.wc, self.bc, self.we, self.be,
                               self.gamma, self.beta)

    # pure-jnp reference mirroring the kernel's bf16 operand choices
    def reference(self, images):
        B, C, H, W = images.shape
        HW = H * W
        p = im2col_3x3_hw_major(images.astype(jnp.bfloat16))        # [HW, B, K]
        y = jnp.dot(p.reshape(HW * B, -1), self.wc.astype(jnp.bfloat16),
                    preferred_element_type=jnp.float32)
        y = jnp.maximum(y + self.bc, 0.0).reshape(HW, B, self.feat_dim)
        feat = jnp.sum(y, axis=0) * (1.0 / HW)                      # [B, F]
        z = jnp.dot(feat.astype(jnp.bfloat16), self.we.astype(jnp.bfloat16),
                    preferred_element_type=jnp.float32) + self.be
        mean = jnp.mean(z, axis=0, keepdims=True)
        var = jnp.mean((z - mean) ** 2, axis=0, keepdims=True)
        return (z - mean) * jax.lax.rsqrt(var + EPS) * self.gamma + self.beta


if __name__ == "__main__":
    key = jax.random.PRNGKey(0)
    k_img, k_param = jax.random.split(key)

    B, C, H, W = 4, 3, 32, 32
    feat_dim, embed_size = 256, 128   # lane-dense stand-ins for (2048, embed_size)

    images = jax.random.normal(k_img, (B, C, H, W), dtype=jnp.float32)

    enc = EncoderCNN(embed_size, feat_dim=feat_dim, in_channels=C, key=k_param)
    out = jax.block_until_ready(enc.forward(images))
    assert out.shape == (B, embed_size), out.shape

    ref = enc.reference(images)
    # Tolerance sized for the bf16 operand paths: a 1-ulp bf16 rounding
    # difference in the pooled features (kernel and reference accumulate the
    # f32 pool in different orders) is amplified by BatchNorm's inverse batch
    # std (bounded by 1/sqrt(eps) ~ 316) on this tiny 4-sample batch.  Real
    # structural bugs produce O(1) errors on the unit-variance output.
    err = float(jnp.max(jnp.abs(out - ref)))
    assert err < 3e-2, f"max abs err {err}"

    print("KERNEL_OK")
</pallas_src>

<mosaic_0001>
module attributes {stable_mosaic.version = 11 : i64} {
  func.func @stem_kernel(%arg0: i32, %arg1: i32, %arg2: memref<1x1x4096x32xbf16, #tpu.memory_space<vmem>>, %arg3: memref<32x256xbf16, #tpu.memory_space<vmem>>, %arg4: memref<1x256xf32, #tpu.memory_space<vmem>>, %arg5: memref<1x8x256xf32, #tpu.memory_space<vmem>>) attributes {dimension_semantics = [#tpu.dimension_semantics<parallel>, #tpu.dimension_semantics<arbitrary>], iteration_bounds = array<i64: 2, 1>, scalar_prefetch = 0 : i64, scratch_operands = 0 : i64, tpu.core_type = #tpu.core_type<tc>, window_params = [{transform_indices = @transform_0, window_bounds = array<i64: 1, 1, 4096, 32>}, {pipeline_mode = #tpu.pipeline_mode<synchronous>, transform_indices = @transform_1, window_bounds = array<i64: 32, 256>}, {pipeline_mode = #tpu.pipeline_mode<synchronous>, transform_indices = @transform_2, window_bounds = array<i64: 1, 256>}, {transform_indices = @transform_3, window_bounds = array<i64: 1, 8, 256>}]} {
    %c0_i32 = arith.constant 0 : i32
    %0 = arith.cmpi eq, %arg1, %c0_i32 : i32
    %1 = arith.extui %0 : i1 to i32
    %c0_i32_0 = arith.constant 0 : i32
    %2 = arith.cmpi ne, %1, %c0_i32_0 : i32
    scf.if %2 {
      %cst_16 = arith.constant 0.000000e+00 : f32
      %18 = vector.broadcast %cst_16 : f32 to vector<1x8x256xf32>
      %c0_17 = arith.constant 0 : index
      %c0_18 = arith.constant 0 : index
      %c0_19 = arith.constant 0 : index
      %19 = vector.load %arg5[%c0_17, %c0_18, %c0_19] : memref<1x8x256xf32, #tpu.memory_space<vmem>>, vector<1x8x256xf32>
      tpu.vector_store %arg5[%c0_17, %c0_18, %c0_19], %18 {strides = array<i32>} : memref<1x8x256xf32, #tpu.memory_space<vmem>>, vector<1x8x256xf32>,
    } else {
    }
    %c0 = arith.constant 0 : index
    %c0_1 = arith.constant 0 : index
    %c0_2 = arith.constant 0 : index
    %c0_3 = arith.constant 0 : index
    %3 = vector.load %arg2[%c0, %c0_1, %c0_2, %c0_3] : memref<1x1x4096x32xbf16, #tpu.memory_space<vmem>>, vector<1x1x4096x32xbf16>
    %4 = vector.shape_cast %3 : vector<1x1x4096x32xbf16> to vector<4096x32xbf16>
    %c0_4 = arith.constant 0 : index
    %c0_5 = arith.constant 0 : index
    %5 = vector.load %arg3[%c0_4, %c0_5] : memref<32x256xbf16, #tpu.memory_space<vmem>>, vector<32x256xbf16>
    %cst = arith.constant dense<0.000000e+00> : vector<4096x256xf32>
    %6 = tpu.matmul %4, %5, %cst {dimension_numbers = #tpu.dot_dimension_numbers<[1], [0], [0], [1], [0, 0, 1, 1], [], []>} : vector<4096x32xbf16>, vector<32x256xbf16>, vector<4096x256xf32> -> vector<4096x256xf32>
    %c0_6 = arith.constant 0 : index
    %c0_7 = arith.constant 0 : index
    %7 = vector.load %arg4[%c0_6, %c0_7] : memref<1x256xf32, #tpu.memory_space<vmem>>, vector<1x256xf32>
    %8 = vector.broadcast %7 : vector<1x256xf32> to vector<4096x256xf32>
    %9 = arith.addf %6, %8 : vector<4096x256xf32>
    %cst_8 = arith.constant 0.000000e+00 : f32
    %10 = vector.broadcast %cst_8 : f32 to vector<4096x256xf32>
    %11 = arith.maximumf %9, %10 : vector<4096x256xf32>
    %12 = vector.shape_cast %11 : vector<4096x256xf32> to vector<512x8x256xf32>
    %c0_9 = arith.constant 0 : index
    %c0_10 = arith.constant 0 : index
    %c0_11 = arith.constant 0 : index
    %13 = vector.load %arg5[%c0_9, %c0_10, %c0_11] : memref<1x8x256xf32, #tpu.memory_space<vmem>>, vector<1x8x256xf32>
    %cst_12 = arith.constant dense<0.000000e+00> : vector<8x256xf32>
    %14 = vector.multi_reduction <add>, %12, %cst_12 [0] : vector<512x8x256xf32> to vector<8x256xf32>
    %15 = vector.shape_cast %14 : vector<8x256xf32> to vector<1x8x256xf32>
    %16 = arith.addf %13, %15 : vector<1x8x256xf32>
    %c0_13 = arith.constant 0 : index
    %c0_14 = arith.constant 0 : index
    %c0_15 = arith.constant 0 : index
    %17 = vector.load %arg5[%c0_13, %c0_14, %c0_15] : memref<1x8x256xf32, #tpu.memory_space<vmem>>, vector<1x8x256xf32>
    tpu.vector_store %arg5[%c0_13, %c0_14, %c0_15], %16 {strides = array<i32>} : memref<1x8x256xf32, #tpu.memory_space<vmem>>, vector<1x8x256xf32>,
    return
  }
  func.func @transform_0(%arg0: i32, %arg1: i32) -> (i32, i32, i32, i32) {
    %c0_i32 = arith.constant 0 : i32
    %c0_i32_0 = arith.constant 0 : i32
    %c0_i32_1 = arith.constant 0 : i32
    return %arg0, %arg1, %c0_i32, %c0_i32_0 : i32, i32, i32, i32
  }
  func.func @transform_1(%arg0: i32, %arg1: i32) -> (i32, i32) {
    %c0_i32 = arith.constant 0 : i32
    %c0_i32_0 = arith.constant 0 : i32
    %c0_i32_1 = arith.constant 0 : i32
    return %c0_i32, %c0_i32_0 : i32, i32
  }
  func.func @transform_2(%arg0: i32, %arg1: i32) -> (i32, i32) {
    %c0_i32 = arith.constant 0 : i32
    %c0_i32_0 = arith.constant 0 : i32
    %c0_i32_1 = arith.constant 0 : i32
    return %c0_i32, %c0_i32_0 : i32, i32
  }
  func.func @transform_3(%arg0: i32, %arg1: i32) -> (i32, i32, i32) {
    %c0_i32 = arith.constant 0 : i32
    %c0_i32_0 = arith.constant 0 : i32
    %c0_i32_1 = arith.constant 0 : i32
    return %arg0, %c0_i32, %c0_i32_0 : i32, i32, i32
  }
}

module attributes {stable_mosaic.version = 11 : i64} {
  func.func @head_kernel(%arg0: i32, %arg1: memref<2x8x256xf32, #tpu.memory_space<vmem>>, %arg2: memref<256x128xbf16, #tpu.memory_space<vmem>>, %arg3: memref<1x128xf32, #tpu.memory_space<vmem>>, %arg4: memref<1x128xf32, #tpu.memory_space<vmem>>, %arg5: memref<1x128xf32, #tpu.memory_space<vmem>>, %arg6: memref<8x128xf32, #tpu.memory_space<vmem>>) attributes {dimension_semantics = [#tpu.dimension_semantics<arbitrary>], iteration_bounds = array<i64: 1>, scalar_prefetch = 0 : i64, scratch_operands = 0 : i64, tpu.core_type = #tpu.core_type<tc>, window_params = [{pipeline_mode = #tpu.pipeline_mode<synchronous>, transform_indices = @transform_0, window_bounds = array<i64: 2, 8, 256>}, {pipeline_mode = #tpu.pipeline_mode<synchronous>, transform_indices = @transform_1, window_bounds = array<i64: 256, 128>}, {pipeline_mode = #tpu.pipeline_mode<synchronous>, transform_indices = @transform_2, window_bounds = array<i64: 1, 128>}, {pipeline_mode = #tpu.pipeline_mode<synchronous>, transform_indices = @transform_3, window_bounds = array<i64: 1, 128>}, {pipeline_mode = #tpu.pipeline_mode<synchronous>, transform_indices = @transform_4, window_bounds = array<i64: 1, 128>}, {pipeline_mode = #tpu.pipeline_mode<synchronous>, transform_indices = @transform_5, window_bounds = array<i64: 8, 128>}]} {
    %c0 = arith.constant 0 : index
    %c0_0 = arith.constant 0 : index
    %c0_1 = arith.constant 0 : index
    %0 = vector.load %arg1[%c0, %c0_0, %c0_1] : memref<2x8x256xf32, #tpu.memory_space<vmem>>, vector<2x8x256xf32>
    %cst = arith.constant dense<0.000000e+00> : vector<8x256xf32>
    %1 = vector.multi_reduction <add>, %0, %cst [0] : vector<2x8x256xf32> to vector<8x256xf32>
    %cst_2 = arith.constant 9.765625E-4 : f32
    %2 = vector.broadcast %cst_2 : f32 to vector<8x256xf32>
    %3 = arith.mulf %1, %2 : vector<8x256xf32>
    %4 = arith.truncf %3 : vector<8x256xf32> to vector<8x256xbf16>
    %c0_3 = arith.constant 0 : index
    %c0_4 = arith.constant 0 : index
    %5 = vector.load %arg2[%c0_3, %c0_4] : memref<256x128xbf16, #tpu.memory_space<vmem>>, vector<256x128xbf16>
    %cst_5 = arith.constant dense<0.000000e+00> : vector<8x128xf32>
    %6 = tpu.matmul %4, %5, %cst_5 {dimension_numbers = #tpu.dot_dimension_numbers<[1], [0], [0], [1], [0, 0, 1, 1], [], []>} : vector<8x256xbf16>, vector<256x128xbf16>, vector<8x128xf32> -> vector<8x128xf32>
    %c0_6 = arith.constant 0 : index
    %c0_7 = arith.constant 0 : index
    %7 = vector.load %arg3[%c0_6, %c0_7] : memref<1x128xf32, #tpu.memory_space<vmem>>, vector<1x128xf32>
    %8 = vector.broadcast %7 : vector<1x128xf32> to vector<8x128xf32>
    %9 = arith.addf %6, %8 : vector<8x128xf32>
    %10 = tpu.iota {dimensions = array<i32: 0>} : vector<8x128xi32>
    %c4_i32 = arith.constant 4 : i32
    %11 = vector.broadcast %c4_i32 : i32 to vector<8x128xi32>
    %12 = arith.cmpi slt, %10, %11 : vector<8x128xi32>
    %cst_8 = arith.constant 0.000000e+00 : f32
    %13 = vector.broadcast %cst_8 : f32 to vector<8x128xf32>
    %14 = arith.select %12, %9, %13 : vector<8x128xi1>, vector<8x128xf32>
    %cst_9 = arith.constant dense<0.000000e+00> : vector<128xf32>
    %15 = vector.multi_reduction <add>, %14, %cst_9 [0] : vector<8x128xf32> to vector<128xf32>
    %16 = vector.shape_cast %15 : vector<128xf32> to vector<1x128xf32>
    %cst_10 = arith.constant 2.500000e-01 : f32
    %17 = vector.broadcast %cst_10 : f32 to vector<1x128xf32>
    %18 = arith.mulf %16, %17 : vector<1x128xf32>
    %19 = vector.broadcast %18 : vector<1x128xf32> to vector<8x128xf32>
    %20 = arith.subf %9, %19 : vector<8x128xf32>
    %cst_11 = arith.constant 0.000000e+00 : f32
    %21 = vector.broadcast %cst_11 : f32 to vector<8x128xf32>
    %22 = arith.select %12, %20, %21 : vector<8x128xi1>, vector<8x128xf32>
    %23 = arith.mulf %22, %22 : vector<8x128xf32>
    %cst_12 = arith.constant dense<0.000000e+00> : vector<128xf32>
    %24 = vector.multi_reduction <add>, %23, %cst_12 [0] : vector<8x128xf32> to vector<128xf32>
    %25 = vector.shape_cast %24 : vector<128xf32> to vector<1x128xf32>
    %cst_13 = arith.constant 2.500000e-01 : f32
    %26 = vector.broadcast %cst_13 : f32 to vector<1x128xf32>
    %27 = arith.mulf %25, %26 : vector<1x128xf32>
    %cst_14 = arith.constant 9.99999974E-6 : f32
    %28 = vector.broadcast %cst_14 : f32 to vector<1x128xf32>
    %29 = arith.addf %27, %28 : vector<1x128xf32>
    %30 = math.rsqrt %29 : vector<1x128xf32>
    %31 = vector.broadcast %30 : vector<1x128xf32> to vector<8x128xf32>
    %32 = arith.mulf %20, %31 : vector<8x128xf32>
    %c0_15 = arith.constant 0 : index
    %c0_16 = arith.constant 0 : index
    %33 = vector.load %arg4[%c0_15, %c0_16] : memref<1x128xf32, #tpu.memory_space<vmem>>, vector<1x128xf32>
    %34 = vector.broadcast %33 : vector<1x128xf32> to vector<8x128xf32>
    %35 = arith.mulf %32, %34 : vector<8x128xf32>
    %c0_17 = arith.constant 0 : index
    %c0_18 = arith.constant 0 : index
    %36 = vector.load %arg5[%c0_17, %c0_18] : memref<1x128xf32, #tpu.memory_space<vmem>>, vector<1x128xf32>
    %37 = vector.broadcast %36 : vector<1x128xf32> to vector<8x128xf32>
    %38 = arith.addf %35, %37 : vector<8x128xf32>
    %c0_19 = arith.constant 0 : index
    %c0_20 = arith.constant 0 : index
    %39 = vector.load %arg6[%c0_19, %c0_20] : memref<8x128xf32, #tpu.memory_space<vmem>>, vector<8x128xf32>
    tpu.vector_store %arg6[%c0_19, %c0_20], %38 {strides = array<i32>} : memref<8x128xf32, #tpu.memory_space<vmem>>, vector<8x128xf32>,
    return
  }
  func.func @transform_0(%arg0: i32) -> (i32, i32, i32) {
    %c0_i32 = arith.constant 0 : i32
    %c0_i32_0 = arith.constant 0 : i32
    %c0_i32_1 = arith.constant 0 : i32
    %c0_i32_2 = arith.constant 0 : i32
    return %c0_i32, %c0_i32_0, %c0_i32_1 : i32, i32, i32
  }
  func.func @transform_1(%arg0: i32) -> (i32, i32) {
    %c0_i32 = arith.constant 0 : i32
    %c0_i32_0 = arith.constant 0 : i32
    %c0_i32_1 = arith.constant 0 : i32
    return %c0_i32, %c0_i32_0 : i32, i32
  }
  func.func @transform_2(%arg0: i32) -> (i32, i32) {
    %c0_i32 = arith.constant 0 : i32
    %c0_i32_0 = arith.constant 0 : i32
    %c0_i32_1 = arith.constant 0 : i32
    return %c0_i32, %c0_i32_0 : i32, i32
  }
  func.func @transform_3(%arg0: i32) -> (i32, i32) {
    %c0_i32 = arith.constant 0 : i32
    %c0_i32_0 = arith.constant 0 : i32
    %c0_i32_1 = arith.constant 0 : i32
    return %c0_i32, %c0_i32_0 : i32, i32
  }
  func.func @transform_4(%arg0: i32) -> (i32, i32) {
    %c0_i32 = arith.constant 0 : i32
    %c0_i32_0 = arith.constant 0 : i32
    %c0_i32_1 = arith.constant 0 : i32
    return %c0_i32, %c0_i32_0 : i32, i32
  }
  func.func @transform_5(%arg0: i32) -> (i32, i32) {
    %c0_i32 = arith.constant 0 : i32
    %c0_i32_0 = arith.constant 0 : i32
    %c0_i32_1 = arith.constant 0 : i32
    return %c0_i32, %c0_i32_0 : i32, i32
  }
}

</mosaic_0001>

<llo_original>
// kernel: encoder_forward.3
$region0: #{encoder_forward.3}
  #allocation0 [shape = 'u32[]', space=smem, size = 0x4, offset = 0x4, fixed_abs, tag = 'smem constant byte address 0x4 - core index']
  #allocation1 [shape = 'u32[144,128]{1,0:T(1,128)}', space=vmem, size = 0x12000, scoped, tag = 'internal scratch']
  %s0 = inlined_call_operand.vmem [shape: f32[2,8,256], index: 0, kind: input, shape index: {}]
  %s1 = inlined_call_operand.vmem [shape: bf16[256,128], index: 1, kind: input, shape index: {}]
  %s2 = inlined_call_operand.vmem [shape: f32[1,128], index: 2, kind: input, shape index: {}]
  %s3 = inlined_call_operand.vmem [shape: f32[1,128], index: 3, kind: input, shape index: {}]
  %s4 = inlined_call_operand.vmem [shape: f32[1,128], index: 4, kind: input, shape index: {}]
  %s5 = inlined_call_operand.vmem [shape: f32[8,128], index: 5, kind: output, shape index: {}]
  %s6 = sld [smem:[#allocation0]]
  $region30: #{encoder_forward.3} parent=0
    _
  %s8 = ssub.s32 1, %s6
  %s9 = scalar_select 0, %s8, %s6
  // Predicated region
  $region2: #{encoder_forward.3} parent=0 // pred_check
    _
  $region3: #{encoder_forward.3} parent=0 // pred_check_branch
    %11 = sbr.rel (0) target = $region5
  $region4: #{encoder_forward.3} parent=0 // pred_region
    _
  $region5: #{encoder_forward.3} parent=0 // pred_fallthru
    _
  // Predicated region
  $region6: #{encoder_forward.3} parent=0 // pred_check
    _
  $region7: #{encoder_forward.3} parent=0 // pred_check_branch
    %13 = sbr.rel (0) target = $region9
  $region8: #{encoder_forward.3} parent=0 // pred_region
    _
  $region9: #{encoder_forward.3} parent=0 // pred_fallthru
    _
  // Predicated region
  $region10: #{encoder_forward.3} parent=0 // pred_check
    _
  $region11: #{encoder_forward.3} parent=0 // pred_check_branch
    %15 = sbr.rel (0) target = $region13
  $region12: #{encoder_forward.3} parent=0 // pred_region
    _
  $region13: #{encoder_forward.3} parent=0 // pred_fallthru
    _
  // Predicated region
  $region14: #{encoder_forward.3} parent=0 // pred_check
    _
  $region15: #{encoder_forward.3} parent=0 // pred_check_branch
    %17 = sbr.rel (0) target = $region17
  $region16: #{encoder_forward.3} parent=0 // pred_region
    _
  $region17: #{encoder_forward.3} parent=0 // pred_fallthru
    _
  // Predicated region
  $region18: #{encoder_forward.3} parent=0 // pred_check
    _
  $region19: #{encoder_forward.3} parent=0 // pred_check_branch
    %19 = sbr.rel (0) target = $region21
  $region20: #{encoder_forward.3} parent=0 // pred_region
    _
  $region21: #{encoder_forward.3} parent=0 // pred_fallthru
    _
  %v21 = vld [vmem:[%s0] sm:$0xff]
  %v22 = vld [vmem:[%s0 + $0x8] sm:$0xff]
  %v23 = vld [vmem:[%s0 + $0x10] sm:$0xff]
  %v24 = vld [vmem:[%s0 + $0x18] sm:$0xff]
  %v25 = vadd.f32 %v21, %v23
  %v26 = vadd.f32 %v22, %v24
  %v27 = vmul.f32 %v25, 0.0009765625
  %v28 = vmul.f32 %v26, 0.0009765625
  %v29 = vpack.c.bf16 %v27, %v27
  %v30 = vpack.c.bf16 %v28, %v28
  %v31 = vld [vmem:[%s1] sm:$0xf]
  %v32 = vld [vmem:[%s1 + $0x4] sm:$0xf]
  %v33 = vld [vmem:[%s1 + $0x8] sm:$0xf]
  %v34 = vld [vmem:[%s1 + $0xc] sm:$0xf]
  %v35 = vld [vmem:[%s1 + $0x10] sm:$0xf]
  %v36 = vld [vmem:[%s1 + $0x14] sm:$0xf]
  %v37 = vld [vmem:[%s1 + $0x18] sm:$0xf]
  %v38 = vld [vmem:[%s1 + $0x1c] sm:$0xf]
  %v39 = vld [vmem:[%s1 + $0x20] sm:$0xf]
  %v40 = vld [vmem:[%s1 + $0x24] sm:$0xf]
  %v41 = vld [vmem:[%s1 + $0x28] sm:$0xf]
  %v42 = vld [vmem:[%s1 + $0x2c] sm:$0xf]
  %v43 = vld [vmem:[%s1 + $0x30] sm:$0xf]
  %v44 = vld [vmem:[%s1 + $0x34] sm:$0xf]
  %v45 = vld [vmem:[%s1 + $0x38] sm:$0xf]
  %v46 = vld [vmem:[%s1 + $0x3c] sm:$0xf]
  %v47 = vld [vmem:[%s1 + $0x40] sm:$0xf]
  %v48 = vld [vmem:[%s1 + $0x44] sm:$0xf]
  %v49 = vld [vmem:[%s1 + $0x48] sm:$0xf]
  %v50 = vld [vmem:[%s1 + $0x4c] sm:$0xf]
  %v51 = vld [vmem:[%s1 + $0x50] sm:$0xf]
  %v52 = vld [vmem:[%s1 + $0x54] sm:$0xf]
  %v53 = vld [vmem:[%s1 + $0x58] sm:$0xf]
  %v54 = vld [vmem:[%s1 + $0x5c] sm:$0xf]
  %v55 = vld [vmem:[%s1 + $0x60] sm:$0xf]
  %v56 = vld [vmem:[%s1 + $0x64] sm:$0xf]
  %v57 = vld [vmem:[%s1 + $0x68] sm:$0xf]
  %v58 = vld [vmem:[%s1 + $0x6c] sm:$0xf]
  %v59 = vld [vmem:[%s1 + $0x70] sm:$0xf]
  %v60 = vld [vmem:[%s1 + $0x74] sm:$0xf]
  %v61 = vld [vmem:[%s1 + $0x78] sm:$0xf]
  %v62 = vld [vmem:[%s1 + $0x7c] sm:$0xf]
  %v63 = vld [vmem:[%s2] sm:$0x1]
  %v65 = vlaneseq
  %v66 = vshrl.u32 %v65, 7
  %v67 = vsub.s32 0, %v66
  %v68 = vrot.slane %v63, %v67
  %v102 = vunpack.c.l.b16 %v31
  %v103 = vunpack.c.l.b16 %v32
  %v104 = vunpack.c.l.b16 %v33
  %v105 = vunpack.c.l.b16 %v34
  %v106 = vunpack.c.l.b16 %v35
  %v107 = vunpack.c.l.b16 %v36
  %v108 = vunpack.c.l.b16 %v37
  %v109 = vunpack.c.l.b16 %v38
  %v110 = vunpack.c.l.b16 %v39
  %v111 = vunpack.c.l.b16 %v40
  %v112 = vunpack.c.l.b16 %v41
  %v113 = vunpack.c.l.b16 %v42
  %v114 = vunpack.c.l.b16 %v43
  %v115 = vunpack.c.l.b16 %v44
  %v116 = vunpack.c.l.b16 %v45
  %v117 = vunpack.c.l.b16 %v46
  %v118 = vunpack.c.l.b16 %v47
  %v119 = vunpack.c.l.b16 %v48
  %v120 = vunpack.c.l.b16 %v49
  %v121 = vunpack.c.l.b16 %v50
  %v122 = vunpack.c.l.b16 %v51
  %v123 = vunpack.c.l.b16 %v52
  %v124 = vunpack.c.l.b16 %v53
  %v125 = vunpack.c.l.b16 %v54
  %v126 = vunpack.c.l.b16 %v55
  %v127 = vunpack.c.l.b16 %v56
  %v128 = vunpack.c.l.b16 %v57
  %v129 = vunpack.c.l.b16 %v58
  %v130 = vunpack.c.l.b16 %v59
  %v131 = vunpack.c.l.b16 %v60
  %v132 = vunpack.c.l.b16 %v61
  %v133 = vunpack.c.l.b16 %v62
  %v134 = vpack.c.b16 %v103, %v102
  %v135 = vpack.c.b16 %v105, %v104
  %v136 = vpack.c.b16 %v107, %v106
  %v137 = vpack.c.b16 %v109, %v108
  %v138 = vpack.c.b16 %v111, %v110
  %v139 = vpack.c.b16 %v113, %v112
  %v140 = vpack.c.b16 %v115, %v114
  %v141 = vpack.c.b16 %v117, %v116
  %v142 = vpack.c.b16 %v119, %v118
  %v143 = vpack.c.b16 %v121, %v120
  %v144 = vpack.c.b16 %v123, %v122
  %v145 = vpack.c.b16 %v125, %v124
  %v146 = vpack.c.b16 %v127, %v126
  %v147 = vpack.c.b16 %v129, %v128
  %v148 = vpack.c.b16 %v131, %v130
  %v149 = vpack.c.b16 %v133, %v132
  %166 = vmatprep.subr.bf16.mxu0 0
  %167 = vmatpush1.bf16.msra.mxu0 %v141
  %168 = vmatprep.subr.bf16.mxu0 0
  %169 = vmatpush1.bf16.msra.mxu0 %v140
  %170 = vmatprep.subr.bf16.mxu0 0
  %171 = vmatpush1.bf16.msra.mxu0 %v139
  %172 = vmatprep.subr.bf16.mxu0 0
  %173 = vmatpush1.bf16.msra.mxu0 %v138
  %174 = vmatprep.subr.bf16.mxu0 0
  %175 = vmatpush1.bf16.msra.mxu0 %v137
  %176 = vmatprep.subr.bf16.mxu0 0
  %177 = vmatpush1.bf16.msra.mxu0 %v136
  %178 = vmatprep.subr.bf16.mxu0 0
  %179 = vmatpush1.bf16.msra.mxu0 %v135
  %180 = vmatprep.subr.bf16.mxu0 0
  %181 = vmatpush1.bf16.msra.mxu0 %v134
  %182 = vmatprep.subr.bf16.mxu0 0
  %183 = vmatpush2.bf16.msra.mxu0 %v149
  %184 = vmatprep.subr.bf16.mxu0 0
  %185 = vmatpush2.bf16.msra.mxu0 %v148
  %186 = vmatprep.subr.bf16.mxu0 0
  %187 = vmatpush2.bf16.msra.mxu0 %v147
  %188 = vmatprep.subr.bf16.mxu0 0
  %189 = vmatpush2.bf16.msra.mxu0 %v146
  %190 = vmatprep.subr.bf16.mxu0 0
  %191 = vmatpush2.bf16.msra.mxu0 %v145
  %192 = vmatprep.subr.bf16.mxu0 0
  %193 = vmatpush2.bf16.msra.mxu0 %v144
  %194 = vmatprep.subr.bf16.mxu0 0
  %195 = vmatpush2.bf16.msra.mxu0 %v143
  %196 = vmatprep.subr.bf16.mxu0 0
  %197 = vmatpush2.bf16.msra.mxu0 %v142
  %198 = vmatprep.mubr.bf16.mxu0 %v30
  %199 = vmatmul.mubr.bf16.gmra.mxu0 %v29
  %v200 = vpop.f32.mrf.mxu0
  %v201 = vadd.f32 %v68, %v200
  %v202 = vpop.f32.mrf.mxu0
  %v203 = vpop.f32.mrf.mxu0
  %v204 = vpop.f32.mrf.mxu0
  %205 = vdwg.mxu0
  %v206 = vlaneseq
  %v207 = vshrl.u32 %v206, 7
  %vm208 = vcmp.lt.s32.totalorder %v207, 4
  %v209 = vsel %vm208, %v201, 0.0
  %v210 = vrot.slane %v209, 4
  %v211 = vadd.f32 %v209, %v210
  %v212 = vrot.slane %v211, 2
  %v213 = vadd.f32 %v211, %v212
  %v214 = vrot.slane %v213, 1
  %v215 = vadd.f32 %v213, %v214
  %v216 = vmul.f32 %v215, 0.25
  %v217 = vsub.f32 %v201, %v216
  %v218 = vsel %vm208, %v217, 0.0
  %v219 = vmul.f32 %v218, %v218
  %v220 = vrot.slane %v219, 4
  %v221 = vadd.f32 %v219, %v220
  %v222 = vrot.slane %v221, 2
  %v223 = vadd.f32 %v221, %v222
  %v224 = vrot.slane %v223, 1
  %v225 = vadd.f32 %v223, %v224
  %v226 = vmul.f32 %v225, 0.25
  %v227 = vadd.f32 %v226, 1e-05
  %v228 = vrsqrt.pop %v227
  %v229 = vmul.f32 %v217, %v228
  %v230 = vld [vmem:[%s3] sm:$0x1]
  %v232 = vlaneseq
  %v233 = vshrl.u32 %v232, 7
  %v234 = vsub.s32 0, %v233
  %v235 = vrot.slane %v230, %v234
  %v237 = vmul.f32 %v229, %v235
  %v238 = vld [vmem:[%s4] sm:$0x1]
  %v240 = vlaneseq
  %v241 = vshrl.u32 %v240, 7
  %v242 = vsub.s32 0, %v241
  %v243 = vrot.slane %v238, %v242
  %v245 = vadd.f32 %v237, %v243
  %246 = vst [vmem:[%s5] sm:$0xff] %v245
  // Predicated region
  $region22: #{encoder_forward.3} parent=0 // pred_check
    _
  $region23: #{encoder_forward.3} parent=0 // pred_check_branch
    %248 = sbr.rel (0) target = $region25
  $region24: #{encoder_forward.3} parent=0 // pred_region
    _
  $region25: #{encoder_forward.3} parent=0 // pred_fallthru
    _
  // Predicated region
  $region26: #{encoder_forward.3} parent=0 // pred_check
    _
  $region27: #{encoder_forward.3} parent=0 // pred_check_branch
    %250 = sbr.rel (0) target = $region29
  $region28: #{encoder_forward.3} parent=0 // pred_region
    _
  $region29: #{encoder_forward.3} parent=0 // pred_fallthru
    _

// kernel: encoder_forward.2
$region0: #{encoder_forward.2}
  #allocation0 [shape = 'u32[]', space=smem, size = 0x4, offset = 0x4, fixed_abs, tag = 'smem constant byte address 0x4 - core index']
  #allocation1 [shape = 'u32[144,128]{1,0:T(1,128)}', space=vmem, size = 0x12000, scoped, tag = 'internal scratch']
  %s0 = inlined_call_operand.vmem [shape: bf16[2,1,4096,32], index: 0, kind: input, shape index: {}]
  %s1 = inlined_call_operand.vmem [shape: bf16[32,256], index: 1, kind: input, shape index: {}]
  %s2 = inlined_call_operand.vmem [shape: f32[1,256], index: 2, kind: input, shape index: {}]
  %s3 = inlined_call_operand.vmem [shape: f32[2,8,256], index: 3, kind: output, shape index: {}]
  %s4 = sld [smem:[#allocation0]]
  $region49: #{encoder_forward.2} parent=0
    _
  %s6 = ssub.s32 1, %s4
  %s7 = scalar_select 0, %s6, %s4
  loop: start=0, step=1, limit=4
  $region2: #{encoder_forward.2} parent=0 // loop_pre_header
    _
  $region3: #{encoder_forward.2} parent=0 // loop_header
    %s9 = sphi 0, %s13
    %p10 = scmp.ge.s32.totalorder %s9, 4
    %s16 = sphi 0, %s28
    %s17 = sphi 0, %s24
    %s18 = sphi 0, %s16
    %s19 = sphi 0, %s17
    %s20 = sphi 0, %s18
    %s21 = sphi 0, %s19
    %s33 = sphi 0, %s35
    %s36 = sphi 0, %s33
    %s37 = sphi 0, %s36
    %s53 = sphi 0, %s37
    %s57 = sphi 0, %s57
    %s59 = sphi 0, %s57
    %s60 = sphi 0, %s59
    %s74 = sphi 0, %s60
    %s78 = sphi 0, %s78
    %s80 = sphi 0, %s78
    %s81 = sphi 0, %s80
    %s95 = sphi 0, %s81
    %s101 = sphi 0, %s103
    %s104 = sphi 0, %s101
    %s105 = sphi 0, %s104
    %s121 = sphi 0, %s105
  $region4: #{encoder_forward.2} parent=0 // loop_header_branch
    %12 = sbr.rel (%p10) target = $region8
  $region5: #{encoder_forward.2} parent=0 // loop_body
    %s14 = ssub.s32 %s9, 1
    %s15 = ssub.s32 %s9, 2
    %s22 = sadd.s32 1, %s17
    %p23 = scmp.ge.s32.totalorder %s22, 1
    %s24 = scalar_select %p23, 0, %s22
    %s25 = sadd.s32 1, %s16
    %s26 = scalar_select %p23, %s25, %s16
    %p27 = scmp.ge.s32.totalorder %s26, 2
    %s28 = scalar_select %p27, 0, %s26
    %s29 = ssub.s32 %s16, %s28
    %s30 = ssub.s32 %s17, %s24
    %s31 = sor.u32 %s29, %s30
    %p32 = scmp.eq.s32.totalorder %s31, 0
    %s34 = sadd.s32 %s33, 1
    %s35 = scalar_select %p32, %s33, %s34
    %p38 = pneg %p32
    %p39 = scmp.eq.s32.totalorder %s9, 1
    %p40 = por %p38, %p39
    %p41 = scmp.ne.s32.totalorder %s33, %s36
    %p42 = scmp.eq.s32.totalorder %s9, 0
    %p43 = por %p41, %p42
    %p44 = scmp.ne.s32.totalorder %s33, %s36
    %p45 = scmp.eq.s32.totalorder %s14, 1
    %p46 = por %p44, %p45
    %p47 = scmp.ne.s32.totalorder %s36, %s37
    %p48 = scmp.eq.s32.totalorder %s14, 0
    %p49 = por %p47, %p48
    %p50 = scmp.ne.s32.totalorder %s36, %s37
    %p51 = scmp.eq.s32.totalorder %s15, 1
    %p52 = por %p50, %p51
    %p54 = scmp.ne.s32.totalorder %s37, %s53
    %p55 = scmp.eq.s32.totalorder %s15, 0
    %p56 = por %p54, %p55
    %s58 = sadd.s32 %s57, 1
    %p61 = scmp.eq.s32.totalorder %s9, 1
    %p62 = scmp.ne.s32.totalorder %s57, %s59
    %p63 = scmp.eq.s32.totalorder %s9, 0
    %p64 = por %p62, %p63
    %p65 = scmp.ne.s32.totalorder %s57, %s59
    %p66 = scmp.eq.s32.totalorder %s14, 1
    %p67 = por %p65, %p66
    %p68 = scmp.ne.s32.totalorder %s59, %s60
    %p69 = scmp.eq.s32.totalorder %s14, 0
    %p70 = por %p68, %p69
    %p71 = scmp.ne.s32.totalorder %s59, %s60
    %p72 = scmp.eq.s32.totalorder %s15, 1
    %p73 = por %p71, %p72
    %p75 = scmp.ne.s32.totalorder %s60, %s74
    %p76 = scmp.eq.s32.totalorder %s15, 0
    %p77 = por %p75, %p76
    %s79 = sadd.s32 %s78, 1
    %p82 = scmp.eq.s32.totalorder %s9, 1
    %p83 = scmp.ne.s32.totalorder %s78, %s80
    %p84 = scmp.eq.s32.totalorder %s9, 0
    %p85 = por %p83, %p84
    %p86 = scmp.ne.s32.totalorder %s78, %s80
    %p87 = scmp.eq.s32.totalorder %s14, 1
    %p88 = por %p86, %p87
    %p89 = scmp.ne.s32.totalorder %s80, %s81
    %p90 = scmp.eq.s32.totalorder %s14, 0
    %p91 = por %p89, %p90
    %p92 = scmp.ne.s32.totalorder %s80, %s81
    %p93 = scmp.eq.s32.totalorder %s15, 1
    %p94 = por %p92, %p93
    %p96 = scmp.ne.s32.totalorder %s81, %s95
    %p97 = scmp.eq.s32.totalorder %s15, 0
    %p98 = por %p96, %p97
    %s99 = ssub.s32 %s16, %s28
    %p100 = scmp.eq.s32.totalorder %s99, 0
    %s102 = sadd.s32 %s101, 1
    %s103 = scalar_select %p100, %s101, %s102
    %p106 = pneg %p100
    %p107 = scmp.eq.s32.totalorder %s9, 1
    %p108 = por %p106, %p107
    %p109 = scmp.ne.s32.totalorder %s101, %s104
    %p110 = scmp.eq.s32.totalorder %s9, 0
    %p111 = por %p109, %p110
    %p112 = scmp.ne.s32.totalorder %s101, %s104
    %p113 = scmp.eq.s32.totalorder %s14, 1
    %p114 = por %p112, %p113
    %p115 = scmp.ne.s32.totalorder %s104, %s105
    %p116 = scmp.eq.s32.totalorder %s14, 0
    %p117 = por %p115, %p116
    %p118 = scmp.ne.s32.totalorder %s104, %s105
    %p119 = scmp.eq.s32.totalorder %s15, 1
    %p120 = por %p118, %p119
    %p122 = scmp.ne.s32.totalorder %s105, %s121
    %p123 = scmp.eq.s32.totalorder %s15, 0
    %p124 = por %p122, %p123
    %p125 = scmp.le.s32.totalorder 1, %s9
    %p126 = scmp.lt.s32.totalorder %s9, 3
    %p127 = pnand %p125, %p126
    %p128 = pneg %p127
    // Predicated region
    $region9: #{encoder_forward.2} parent=5 // pred_check
      _
    $region10: #{encoder_forward.2} parent=5 // pred_check_branch
      %130 = sbr.rel (%p127) target = $region12
    $region11: #{encoder_forward.2} parent=5 // pred_region
      %s131 = ssub.s32 %s9, 1
      // Predicated region
      $region13: #{encoder_forward.2} parent=11 // pred_check
        %p132 = pneg %p70
      $region14: #{encoder_forward.2} parent=11 // pred_check_branch
        %134 = sbr.rel (%p132) target = $region16
      $region15: #{encoder_forward.2} parent=11 // pred_region
        _
      $region16: #{encoder_forward.2} parent=11 // pred_fallthru
        _
      // Predicated region
      $region17: #{encoder_forward.2} parent=11 // pred_check
        %p135 = pneg %p91
      $region18: #{encoder_forward.2} parent=11 // pred_check_branch
        %137 = sbr.rel (%p135) target = $region20
      $region19: #{encoder_forward.2} parent=11 // pred_region
        _
      $region20: #{encoder_forward.2} parent=11 // pred_fallthru
        _
    $region12: #{encoder_forward.2} parent=5 // pred_fallthru
      _
    %p138 = scmp.lt.s32.totalorder %s9, 2
    // Predicated region
    $region21: #{encoder_forward.2} parent=5 // pred_check
      %p139 = pneg %p138
    $region22: #{encoder_forward.2} parent=5 // pred_check_branch
      %141 = sbr.rel (%p139) target = $region24
    $region23: #{encoder_forward.2} parent=5 // pred_region
      // Predicated region
      $region25: #{encoder_forward.2} parent=23 // pred_check
        %p142 = pneg %p43
      $region26: #{encoder_forward.2} parent=23 // pred_check_branch
        %144 = sbr.rel (%p142) target = $region28
      $region27: #{encoder_forward.2} parent=23 // pred_region
        %p145 = scmp.lt.s32.totalorder %s16, 1
        %s146 = scalar_select %p145, %s16, 1
        %p147 = scmp.lt.s32.totalorder %s17, 0
        %s148 = scalar_select %p147, %s17, 0
        %s149 = smul.addr %s148, 512
        %s150 = smul.addr %s146, 512
        %s151 = sadd.s32 %s149, %s150
        %s152 = smul.addr %s151, 4
        %s153 = scalar_lea.vmem %s0, %s152
      $region28: #{encoder_forward.2} parent=23 // pred_fallthru
        _
    $region24: #{encoder_forward.2} parent=5 // pred_fallthru
      _
    %p154 = scmp.le.s32.totalorder 1, %s9
    %p155 = scmp.lt.s32.totalorder %s9, 3
    %p156 = pnand %p154, %p155
    %p157 = pneg %p156
    // Predicated region
    $region29: #{encoder_forward.2} parent=5 // pred_check
      _
    $region30: #{encoder_forward.2} parent=5 // pred_check_branch
      %159 = sbr.rel (%p156) target = $region32
    $region31: #{encoder_forward.2} parent=5 // pred_region
      %s160 = ssub.s32 %s9, 1
      %p161 = scmp.lt.s32.totalorder %s18, 1
      %s162 = scalar_select %p161, %s18, 1
      %p163 = scmp.lt.s32.totalorder %s19, 0
      %s164 = scalar_select %p163, %s19, 0
      %s165 = smul.addr %s164, 512
      %s166 = smul.addr %s162, 512
      %s167 = sadd.s32 %s165, %s166
      %s168 = smul.addr %s167, 4
      %s169 = scalar_lea.vmem %s0, %s168
      %p170 = pneg %p49
      %p171 = pneg %p46
      %p172 = pneg %p70
      %p173 = pneg %p67
      %p174 = pneg %p91
      %p175 = pneg %p88
      %p176 = pneg %p117
      %p177 = pneg %p114
      %p178 = scmp.lt.s32.totalorder %s18, 1
      %s179 = scalar_select %p178, %s18, 1
      %s180 = smul.addr %s179, 2
      %s181 = smul.addr %s180, 8
      %s182 = scalar_lea.vmem %s3, %s181
      %p183 = scmp.lt.s32.totalorder %s18, 1
      %s184 = scalar_select %p183, %s18, 1
      %p185 = scmp.lt.s32.totalorder %s19, 0
      %s186 = scalar_select %p185, %s19, 0
      %s187 = smul.addr %s186, 512
      %s188 = smul.addr %s184, 512
      %s189 = sadd.s32 %s187, %s188
      %s190 = smul.addr %s189, 4
      %s191 = scalar_lea.vmem %s0, %s190
      %p192 = scmp.lt.s32.totalorder %s18, 1
      %s193 = scalar_select %p192, %s18, 1
      %s194 = smul.addr %s193, 2
      %s195 = smul.addr %s194, 8
      %s196 = scalar_lea.vmem %s3, %s195
      %p198 = scmp.eq.s32.totalorder %s19, 0
      // Predicated region
      $region33: #{encoder_forward.2} parent=31 // pred_check
        %p199 = pneg %p198
      $region34: #{encoder_forward.2} parent=31 // pred_check_branch
        %201 = sbr.rel (%p199) target = $region36
      $region35: #{encoder_forward.2} parent=31 // pred_region
        %202 = vst [vmem:[%s196] sm:$0xff] 0.0
        %203 = vst [vmem:[%s196 + $0x8] sm:$0xff] 0.0
      $region36: #{encoder_forward.2} parent=31 // pred_fallthru
        _
      %v204 = vld [vmem:[%s191] sm:$0xf]
      %v205 = vld [vmem:[%s191 + $0x4] sm:$0xf]
      %v206 = vld [vmem:[%s191 + $0x8] sm:$0xf]
      %v207 = vld [vmem:[%s191 + $0xc] sm:$0xf]
      %v208 = vld [vmem:[%s191 + $0x10] sm:$0xf]
      %v209 = vld [vmem:[%s191 + $0x14] sm:$0xf]
      %v210 = vld [vmem:[%s191 + $0x18] sm:$0xf]
      %v211 = vld [vmem:[%s191 + $0x1c] sm:$0xf]
      %v212 = vld [vmem:[%s191 + $0x20] sm:$0xf]
      %v213 = vld [vmem:[%s191 + $0x24] sm:$0xf]
      %v214 = vld [vmem:[%s191 + $0x28] sm:$0xf]
      %v215 = vld [vmem:[%s191 + $0x2c] sm:$0xf]
      %v216 = vld [vmem:[%s191 + $0x30] sm:$0xf]
      %v217 = vld [vmem:[%s191 + $0x34] sm:$0xf]
      %v218 = vld [vmem:[%s191 + $0x38] sm:$0xf]
      %v219 = vld [vmem:[%s191 + $0x3c] sm:$0xf]
      %v220 = vld [vmem:[%s191 + $0x40] sm:$0xf]
      %v221 = vld [vmem:[%s191 + $0x44] sm:$0xf]
      %v222 = vld [vmem:[%s191 + $0x48] sm:$0xf]
      %v223 = vld [vmem:[%s191 + $0x4c] sm:$0xf]
      %v224 = vld [vmem:[%s191 + $0x50] sm:$0xf]
      %v225 = vld [vmem:[%s191 + $0x54] sm:$0xf]
      %v226 = vld [vmem:[%s191 + $0x58] sm:$0xf]
      %v227 = vld [vmem:[%s191 + $0x5c] sm:$0xf]
      %v228 = vld [vmem:[%s191 + $0x60] sm:$0xf]
      %v229 = vld [vmem:[%s191 + $0x64] sm:$0xf]
      %v230 = vld [vmem:[%s191 + $0x68] sm:$0xf]
      %v231 = vld [vmem:[%s191 + $0x6c] sm:$0xf]
      %v232 = vld [vmem:[%s191 + $0x70] sm:$0xf]
      %v233 = vld [vmem:[%s191 + $0x74] sm:$0xf]
      %v234 = vld [vmem:[%s191 + $0x78] sm:$0xf]
      %v235 = vld [vmem:[%s191 + $0x7c] sm:$0xf]
      %v236 = vld [vmem:[%s191 + $0x80] sm:$0xf]
      %v237 = vld [vmem:[%s191 + $0x84] sm:$0xf]
      %v238 = vld [vmem:[%s191 + $0x88] sm:$0xf]
      %v239 = vld [vmem:[%s191 + $0x8c] sm:$0xf]
      %v240 = vld [vmem:[%s191 + $0x90] sm:$0xf]
      %v241 = vld [vmem:[%s191 + $0x94] sm:$0xf]
      %v242 = vld [vmem:[%s191 + $0x98] sm:$0xf]
      %v243 = vld [vmem:[%s191 + $0x9c] sm:$0xf]
      %v244 = vld [vmem:[%s191 + $0xa0] sm:$0xf]
      %v245 = vld [vmem:[%s191 + $0xa4] sm:$0xf]
      %v246 = vld [vmem:[%s191 + $0xa8] sm:$0xf]
      %v247 = vld [vmem:[%s191 + $0xac] sm:$0xf]
      %v248 = vld [vmem:[%s191 + $0xb0] sm:$0xf]
      %v249 = vld [vmem:[%s191 + $0xb4] sm:$0xf]
      %v250 = vld [vmem:[%s191 + $0xb8] sm:$0xf]
      %v251 = vld [vmem:[%s191 + $0xbc] sm:$0xf]
      %v252 = vld [vmem:[%s191 + $0xc0] sm:$0xf]
      %v253 = vld [vmem:[%s191 + $0xc4] sm:$0xf]
      %v254 = vld [vmem:[%s191 + $0xc8] sm:$0xf]
      %v255 = vld [vmem:[%s191 + $0xcc] sm:$0xf]
      %v256 = vld [vmem:[%s191 + $0xd0] sm:$0xf]
      %v257 = vld [vmem:[%s191 + $0xd4] sm:$0xf]
      %v258 = vld [vmem:[%s191 + $0xd8] sm:$0xf]
      %v259 = vld [vmem:[%s191 + $0xdc] sm:$0xf]
      %v260 = vld [vmem:[%s191 + $0xe0] sm:$0xf]
      %v261 = vld [vmem:[%s191 + $0xe4] sm:$0xf]
      %v262 = vld [vmem:[%s191 + $0xe8] sm:$0xf]
      %v263 = vld [vmem:[%s191 + $0xec] sm:$0xf]
      %v264 = vld [vmem:[%s191 + $0xf0] sm:$0xf]
      %v265 = vld [vmem:[%s191 + $0xf4] sm:$0xf]
      %v266 = vld [vmem:[%s191 + $0xf8] sm:$0xf]
      %v267 = vld [vmem:[%s191 + $0xfc] sm:$0xf]
      %v268 = vld [vmem:[%s191 + $0x100] sm:$0xf]
      %v269 = vld [vmem:[%s191 + $0x104] sm:$0xf]
      %v270 = vld [vmem:[%s191 + $0x108] sm:$0xf]
      %v271 = vld [vmem:[%s191 + $0x10c] sm:$0xf]
      %v272 = vld [vmem:[%s191 + $0x110] sm:$0xf]
      %v273 = vld [vmem:[%s191 + $0x114] sm:$0xf]
      %v274 = vld [vmem:[%s191 + $0x118] sm:$0xf]
      %v275 = vld [vmem:[%s191 + $0x11c] sm:$0xf]
      %v276 = vld [vmem:[%s191 + $0x120] sm:$0xf]
      %v277 = vld [vmem:[%s191 + $0x124] sm:$0xf]
      %v278 = vld [vmem:[%s191 + $0x128] sm:$0xf]
      %v279 = vld [vmem:[%s191 + $0x12c] sm:$0xf]
      %v280 = vld [vmem:[%s191 + $0x130] sm:$0xf]
      %v281 = vld [vmem:[%s191 + $0x134] sm:$0xf]
      %v282 = vld [vmem:[%s191 + $0x138] sm:$0xf]
      %v283 = vld [vmem:[%s191 + $0x13c] sm:$0xf]
      %v284 = vld [vmem:[%s191 + $0x140] sm:$0xf]
      %v285 = vld [vmem:[%s191 + $0x144] sm:$0xf]
      %v286 = vld [vmem:[%s191 + $0x148] sm:$0xf]
      %v287 = vld [vmem:[%s191 + $0x14c] sm:$0xf]
      %v288 = vld [vmem:[%s191 + $0x150] sm:$0xf]
      %v289 = vld [vmem:[%s191 + $0x154] sm:$0xf]
      %v290 = vld [vmem:[%s191 + $0x158] sm:$0xf]
      %v291 = vld [vmem:[%s191 + $0x15c] sm:$0xf]
      %v292 = vld [vmem:[%s191 + $0x160] sm:$0xf]
      %v293 = vld [vmem:[%s191 + $0x164] sm:$0xf]
      %v294 = vld [vmem:[%s191 + $0x168] sm:$0xf]
      %v295 = vld [vmem:[%s191 + $0x16c] sm:$0xf]
      %v296 = vld [vmem:[%s191 + $0x170] sm:$0xf]
      %v297 = vld [vmem:[%s191 + $0x174] sm:$0xf]
      %v298 = vld [vmem:[%s191 + $0x178] sm:$0xf]
      %v299 = vld [vmem:[%s191 + $0x17c] sm:$0xf]
      %v300 = vld [vmem:[%s191 + $0x180] sm:$0xf]
      %v301 = vld [vmem:[%s191 + $0x184] sm:$0xf]
      %v302 = vld [vmem:[%s191 + $0x188] sm:$0xf]
      %v303 = vld [vmem:[%s191 + $0x18c] sm:$0xf]
      %v304 = vld [vmem:[%s191 + $0x190] sm:$0xf]
      %v305 = vld [vmem:[%s191 + $0x194] sm:$0xf]
      %v306 = vld [vmem:[%s191 + $0x198] sm:$0xf]
      %v307 = vld [vmem:[%s191 + $0x19c] sm:$0xf]
      %v308 = vld [vmem:[%s191 + $0x1a0] sm:$0xf]
      %v309 = vld [vmem:[%s191 + $0x1a4] sm:$0xf]
      %v310 = vld [vmem:[%s191 + $0x1a8] sm:$0xf]
      %v311 = vld [vmem:[%s191 + $0x1ac] sm:$0xf]
      %v312 = vld [vmem:[%s191 + $0x1b0] sm:$0xf]
      %v313 = vld [vmem:[%s191 + $0x1b4] sm:$0xf]
      %v314 = vld [vmem:[%s191 + $0x1b8] sm:$0xf]
      %v315 = vld [vmem:[%s191 + $0x1bc] sm:$0xf]
      %v316 = vld [vmem:[%s191 + $0x1c0] sm:$0xf]
      %v317 = vld [vmem:[%s191 + $0x1c4] sm:$0xf]
      %v318 = vld [vmem:[%s191 + $0x1c8] sm:$0xf]
      %v319 = vld [vmem:[%s191 + $0x1cc] sm:$0xf]
      %v320 = vld [vmem:[%s191 + $0x1d0] sm:$0xf]
      %v321 = vld [vmem:[%s191 + $0x1d4] sm:$0xf]
      %v322 = vld [vmem:[%s191 + $0x1d8] sm:$0xf]
      %v323 = vld [vmem:[%s191 + $0x1dc] sm:$0xf]
      %v324 = vld [vmem:[%s191 + $0x1e0] sm:$0xf]
      %v325 = vld [vmem:[%s191 + $0x1e4] sm:$0xf]
      %v326 = vld [vmem:[%s191 + $0x1e8] sm:$0xf]
      %v327 = vld [vmem:[%s191 + $0x1ec] sm:$0xf]
      %v328 = vld [vmem:[%s191 + $0x1f0] sm:$0xf]
      %v329 = vld [vmem:[%s191 + $0x1f4] sm:$0xf]
      %v330 = vld [vmem:[%s191 + $0x1f8] sm:$0xf]
      %v331 = vld [vmem:[%s191 + $0x1fc] sm:$0xf]
      %v332 = vld [vmem:[%s191 + $0x200] sm:$0xf]
      %v333 = vld [vmem:[%s191 + $0x204] sm:$0xf]
      %v334 = vld [vmem:[%s191 + $0x208] sm:$0xf]
      %v335 = vld [vmem:[%s191 + $0x20c] sm:$0xf]
      %v336 = vld [vmem:[%s191 + $0x210] sm:$0xf]
      %v337 = vld [vmem:[%s191 + $0x214] sm:$0xf]
      %v338 = vld [vmem:[%s191 + $0x218] sm:$0xf]
      %v339 = vld [vmem:[%s191 + $0x21c] sm:$0xf]
      %v340 = vld [vmem:[%s191 + $0x220] sm:$0xf]
      %v341 = vld [vmem:[%s191 + $0x224] sm:$0xf]
      %v342 = vld [vmem:[%s191 + $0x228] sm:$0xf]
      %v343 = vld [vmem:[%s191 + $0x22c] sm:$0xf]
      %v344 = vld [vmem:[%s191 + $0x230] sm:$0xf]
      %v345 = vld [vmem:[%s191 + $0x234] sm:$0xf]
      %v346 = vld [vmem:[%s191 + $0x238] sm:$0xf]
      %v347 = vld [vmem:[%s191 + $0x23c] sm:$0xf]
      %v348 = vld [vmem:[%s191 + $0x240] sm:$0xf]
      %v349 = vld [vmem:[%s191 + $0x244] sm:$0xf]
      %v350 = vld [vmem:[%s191 + $0x248] sm:$0xf]
      %v351 = vld [vmem:[%s191 + $0x24c] sm:$0xf]
      %v352 = vld [vmem:[%s191 + $0x250] sm:$0xf]
      %v353 = vld [vmem:[%s191 + $0x254] sm:$0xf]
      %v354 = vld [vmem:[%s191 + $0x258] sm:$0xf]
      %v355 = vld [vmem:[%s191 + $0x25c] sm:$0xf]
      %v356 = vld [vmem:[%s191 + $0x260] sm:$0xf]
      %v357 = vld [vmem:[%s191 + $0x264] sm:$0xf]
      %v358 = vld [vmem:[%s191 + $0x268] sm:$0xf]
      %v359 = vld [vmem:[%s191 + $0x26c] sm:$0xf]
      %v360 = vld [vmem:[%s191 + $0x270] sm:$0xf]
      %v361 = vld [vmem:[%s191 + $0x274] sm:$0xf]
      %v362 = vld [vmem:[%s191 + $0x278] sm:$0xf]
      %v363 = vld [vmem:[%s191 + $0x27c] sm:$0xf]
      %v364 = vld [vmem:[%s191 + $0x280] sm:$0xf]
      %v365 = vld [vmem:[%s191 + $0x284] sm:$0xf]
      %v366 = vld [vmem:[%s191 + $0x288] sm:$0xf]
      %v367 = vld [vmem:[%s191 + $0x28c] sm:$0xf]
      %v368 = vld [vmem:[%s191 + $0x290] sm:$0xf]
      %v369 = vld [vmem:[%s191 + $0x294] sm:$0xf]
      %v370 = vld [vmem:[%s191 + $0x298] sm:$0xf]
      %v371 = vld [vmem:[%s191 + $0x29c] sm:$0xf]
      %v372 = vld [vmem:[%s191 + $0x2a0] sm:$0xf]
      %v373 = vld [vmem:[%s191 + $0x2a4] sm:$0xf]
      %v374 = vld [vmem:[%s191 + $0x2a8] sm:$0xf]
      %v375 = vld [vmem:[%s191 + $0x2ac] sm:$0xf]
      %v376 = vld [vmem:[%s191 + $0x2b0] sm:$0xf]
      %v377 = vld [vmem:[%s191 + $0x2b4] sm:$0xf]
      %v378 = vld [vmem:[%s191 + $0x2b8] sm:$0xf]
      %v379 = vld [vmem:[%s191 + $0x2bc] sm:$0xf]
      %v380 = vld [vmem:[%s191 + $0x2c0] sm:$0xf]
      %v381 = vld [vmem:[%s191 + $0x2c4] sm:$0xf]
      %v382 = vld [vmem:[%s191 + $0x2c8] sm:$0xf]
      %v383 = vld [vmem:[%s191 + $0x2cc] sm:$0xf]
      %v384 = vld [vmem:[%s191 + $0x2d0] sm:$0xf]
      %v385 = vld [vmem:[%s191 + $0x2d4] sm:$0xf]
      %v386 = vld [vmem:[%s191 + $0x2d8] sm:$0xf]
      %v387 = vld [vmem:[%s191 + $0x2dc] sm:$0xf]
      %v388 = vld [vmem:[%s191 + $0x2e0] sm:$0xf]
      %v389 = vld [vmem:[%s191 + $0x2e4] sm:$0xf]
      %v390 = vld [vmem:[%s191 + $0x2e8] sm:$0xf]
      %v391 = vld [vmem:[%s191 + $0x2ec] sm:$0xf]
      %v392 = vld [vmem:[%s191 + $0x2f0] sm:$0xf]
      %v393 = vld [vmem:[%s191 + $0x2f4] sm:$0xf]
      %v394 = vld [vmem:[%s191 + $0x2f8] sm:$0xf]
      %v395 = vld [vmem:[%s191 + $0x2fc] sm:$0xf]
      %v396 = vld [vmem:[%s191 + $0x300] sm:$0xf]
      %v397 = vld [vmem:[%s191 + $0x304] sm:$0xf]
      %v398 = vld [vmem:[%s191 + $0x308] sm:$0xf]
      %v399 = vld [vmem:[%s191 + $0x30c] sm:$0xf]
      %v400 = vld [vmem:[%s191 + $0x310] sm:$0xf]
      %v401 = vld [vmem:[%s191 + $0x314] sm:$0xf]
      %v402 = vld [vmem:[%s191 + $0x318] sm:$0xf]
      %v403 = vld [vmem:[%s191 + $0x31c] sm:$0xf]
      %v404 = vld [vmem:[%s191 + $0x320] sm:$0xf]
      %v405 = vld [vmem:[%s191 + $0x324] sm:$0xf]
      %v406 = vld [vmem:[%s191 + $0x328] sm:$0xf]
      %v407 = vld [vmem:[%s191 + $0x32c] sm:$0xf]
      %v408 = vld [vmem:[%s191 + $0x330] sm:$0xf]
      %v409 = vld [vmem:[%s191 + $0x334] sm:$0xf]
      %v410 = vld [vmem:[%s191 + $0x338] sm:$0xf]
      %v411 = vld [vmem:[%s191 + $0x33c] sm:$0xf]
      %v412 = vld [vmem:[%s191 + $0x340] sm:$0xf]
      %v413 = vld [vmem:[%s191 + $0x344] sm:$0xf]
      %v414 = vld [vmem:[%s191 + $0x348] sm:$0xf]
      %v415 = vld [vmem:[%s191 + $0x34c] sm:$0xf]
      %v416 = vld [vmem:[%s191 + $0x350] sm:$0xf]
      %v417 = vld [vmem:[%s191 + $0x354] sm:$0xf]
      %v418 = vld [vmem:[%s191 + $0x358] sm:$0xf]
      %v419 = vld [vmem:[%s191 + $0x35c] sm:$0xf]
      %v420 = vld [vmem:[%s191 + $0x360] sm:$0xf]
      %v421 = vld [vmem:[%s191 + $0x364] sm:$0xf]
      %v422 = vld [vmem:[%s191 + $0x368] sm:$0xf]
      %v423 = vld [vmem:[%s191 + $0x36c] sm:$0xf]
      %v424 = vld [vmem:[%s191 + $0x370] sm:$0xf]
      %v425 = vld [vmem:[%s191 + $0x374] sm:$0xf]
      %v426 = vld [vmem:[%s191 + $0x378] sm:$0xf]
      %v427 = vld [vmem:[%s191 + $0x37c] sm:$0xf]
      %v428 = vld [vmem:[%s191 + $0x380] sm:$0xf]
      %v429 = vld [vmem:[%s191 + $0x384] sm:$0xf]
      %v430 = vld [vmem:[%s191 + $0x388] sm:$0xf]
      %v431 = vld [vmem:[%s191 + $0x38c] sm:$0xf]
      %v432 = vld [vmem:[%s191 + $0x390] sm:$0xf]
      %v433 = vld [vmem:[%s191 + $0x394] sm:$0xf]
      %v434 = vld [vmem:[%s191 + $0x398] sm:$0xf]
      %v435 = vld [vmem:[%s191 + $0x39c] sm:$0xf]
      %v436 = vld [vmem:[%s191 + $0x3a0] sm:$0xf]
      %v437 = vld [vmem:[%s191 + $0x3a4] sm:$0xf]
      %v438 = vld [vmem:[%s191 + $0x3a8] sm:$0xf]
      %v439 = vld [vmem:[%s191 + $0x3ac] sm:$0xf]
      %v440 = vld [vmem:[%s191 + $0x3b0] sm:$0xf]
      %v441 = vld [vmem:[%s191 + $0x3b4] sm:$0xf]
      %v442 = vld [vmem:[%s191 + $0x3b8] sm:$0xf]
      %v443 = vld [vmem:[%s191 + $0x3bc] sm:$0xf]
      %v444 = vld [vmem:[%s191 + $0x3c0] sm:$0xf]
      %v445 = vld [vmem:[%s191 + $0x3c4] sm:$0xf]
      %v446 = vld [vmem:[%s191 + $0x3c8] sm:$0xf]
      %v447 = vld [vmem:[%s191 + $0x3cc] sm:$0xf]
      %v448 = vld [vmem:[%s191 + $0x3d0] sm:$0xf]
      %v449 = vld [vmem:[%s191 + $0x3d4] sm:$0xf]
      %v450 = vld [vmem:[%s191 + $0x3d8] sm:$0xf]
      %v451 = vld [vmem:[%s191 + $0x3dc] sm:$0xf]
      %v452 = vld [vmem:[%s191 + $0x3e0] sm:$0xf]
      %v453 = vld [vmem:[%s191 + $0x3e4] sm:$0xf]
      %v454 = vld [vmem:[%s191 + $0x3e8] sm:$0xf]
      %v455 = vld [vmem:[%s191 + $0x3ec] sm:$0xf]
      %v456 = vld [vmem:[%s191 + $0x3f0] sm:$0xf]
      %v457 = vld [vmem:[%s191 + $0x3f4] sm:$0xf]
      %v458 = vld [vmem:[%s191 + $0x3f8] sm:$0xf]
      %v459 = vld [vmem:[%s191 + $0x3fc] sm:$0xf]
      %v460 = vld [vmem:[%s191 + $0x400] sm:$0xf]
      %v461 = vld [vmem:[%s191 + $0x404] sm:$0xf]
      %v462 = vld [vmem:[%s191 + $0x408] sm:$0xf]
      %v463 = vld [vmem:[%s191 + $0x40c] sm:$0xf]
      %v464 = vld [vmem:[%s191 + $0x410] sm:$0xf]
      %v465 = vld [vmem:[%s191 + $0x414] sm:$0xf]
      %v466 = vld [vmem:[%s191 + $0x418] sm:$0xf]
      %v467 = vld [vmem:[%s191 + $0x41c] sm:$0xf]
      %v468 = vld [vmem:[%s191 + $0x420] sm:$0xf]
      %v469 = vld [vmem:[%s191 + $0x424] sm:$0xf]
      %v470 = vld [vmem:[%s191 + $0x428] sm:$0xf]
      %v471 = vld [vmem:[%s191 + $0x42c] sm:$0xf]
      %v472 = vld [vmem:[%s191 + $0x430] sm:$0xf]
      %v473 = vld [vmem:[%s191 + $0x434] sm:$0xf]
      %v474 = vld [vmem:[%s191 + $0x438] sm:$0xf]
      %v475 = vld [vmem:[%s191 + $0x43c] sm:$0xf]
      %v476 = vld [vmem:[%s191 + $0x440] sm:$0xf]
      %v477 = vld [vmem:[%s191 + $0x444] sm:$0xf]
      %v478 = vld [vmem:[%s191 + $0x448] sm:$0xf]
      %v479 = vld [vmem:[%s191 + $0x44c] sm:$0xf]
      %v480 = vld [vmem:[%s191 + $0x450] sm:$0xf]
      %v481 = vld [vmem:[%s191 + $0x454] sm:$0xf]
      %v482 = vld [vmem:[%s191 + $0x458] sm:$0xf]
      %v483 = vld [vmem:[%s191 + $0x45c] sm:$0xf]
      %v484 = vld [vmem:[%s191 + $0x460] sm:$0xf]
      %v485 = vld [vmem:[%s191 + $0x464] sm:$0xf]
      %v486 = vld [vmem:[%s191 + $0x468] sm:$0xf]
      %v487 = vld [vmem:[%s191 + $0x46c] sm:$0xf]
      %v488 = vld [vmem:[%s191 + $0x470] sm:$0xf]
      %v489 = vld [vmem:[%s191 + $0x474] sm:$0xf]
      %v490 = vld [vmem:[%s191 + $0x478] sm:$0xf]
      %v491 = vld [vmem:[%s191 + $0x47c] sm:$0xf]
      %v492 = vld [vmem:[%s191 + $0x480] sm:$0xf]
      %v493 = vld [vmem:[%s191 + $0x484] sm:$0xf]
      %v494 = vld [vmem:[%s191 + $0x488] sm:$0xf]
      %v495 = vld [vmem:[%s191 + $0x48c] sm:$0xf]
      %v496 = vld [vmem:[%s191 + $0x490] sm:$0xf]
      %v497 = vld [vmem:[%s191 + $0x494] sm:$0xf]
      %v498 = vld [vmem:[%s191 + $0x498] sm:$0xf]
      %v499 = vld [vmem:[%s191 + $0x49c] sm:$0xf]
      %v500 = vld [vmem:[%s191 + $0x4a0] sm:$0xf]
      %v501 = vld [vmem:[%s191 + $0x4a4] sm:$0xf]
      %v502 = vld [vmem:[%s191 + $0x4a8] sm:$0xf]
      %v503 = vld [vmem:[%s191 + $0x4ac] sm:$0xf]
      %v504 = vld [vmem:[%s191 + $0x4b0] sm:$0xf]
      %v505 = vld [vmem:[%s191 + $0x4b4] sm:$0xf]
      %v506 = vld [vmem:[%s191 + $0x4b8] sm:$0xf]
      %v507 = vld [vmem:[%s191 + $0x4bc] sm:$0xf]
      %v508 = vld [vmem:[%s191 + $0x4c0] sm:$0xf]
      %v509 = vld [vmem:[%s191 + $0x4c4] sm:$0xf]
      %v510 = vld [vmem:[%s191 + $0x4c8] sm:$0xf]
      %v511 = vld [vmem:[%s191 + $0x4cc] sm:$0xf]
      %v512 = vld [vmem:[%s191 + $0x4d0] sm:$0xf]
      %v513 = vld [vmem:[%s191 + $0x4d4] sm:$0xf]
      %v514 = vld [vmem:[%s191 + $0x4d8] sm:$0xf]
      %v515 = vld [vmem:[%s191 + $0x4dc] sm:$0xf]
      %v516 = vld [vmem:[%s191 + $0x4e0] sm:$0xf]
      %v517 = vld [vmem:[%s191 + $0x4e4] sm:$0xf]
      %v518 = vld [vmem:[%s191 + $0x4e8] sm:$0xf]
      %v519 = vld [vmem:[%s191 + $0x4ec] sm:$0xf]
      %v520 = vld [vmem:[%s191 + $0x4f0] sm:$0xf]
      %v521 = vld [vmem:[%s191 + $0x4f4] sm:$0xf]
      %v522 = vld [vmem:[%s191 + $0x4f8] sm:$0xf]
      %v523 = vld [vmem:[%s191 + $0x4fc] sm:$0xf]
      %v524 = vld [vmem:[%s191 + $0x500] sm:$0xf]
      %v525 = vld [vmem:[%s191 + $0x504] sm:$0xf]
      %v526 = vld [vmem:[%s191 + $0x508] sm:$0xf]
      %v527 = vld [vmem:[%s191 + $0x50c] sm:$0xf]
      %v528 = vld [vmem:[%s191 + $0x510] sm:$0xf]
      %v529 = vld [vmem:[%s191 + $0x514] sm:$0xf]
      %v530 = vld [vmem:[%s191 + $0x518] sm:$0xf]
      %v531 = vld [vmem:[%s191 + $0x51c] sm:$0xf]
      %v532 = vld [vmem:[%s191 + $0x520] sm:$0xf]
      %v533 = vld [vmem:[%s191 + $0x524] sm:$0xf]
      %v534 = vld [vmem:[%s191 + $0x528] sm:$0xf]
      %v535 = vld [vmem:[%s191 + $0x52c] sm:$0xf]
      %v536 = vld [vmem:[%s191 + $0x530] sm:$0xf]
      %v537 = vld [vmem:[%s191 + $0x534] sm:$0xf]
      %v538 = vld [vmem:[%s191 + $0x538] sm:$0xf]
      %v539 = vld [vmem:[%s191 + $0x53c] sm:$0xf]
      %v540 = vld [vmem:[%s191 + $0x540] sm:$0xf]
      %v541 = vld [vmem:[%s191 + $0x544] sm:$0xf]
      %v542 = vld [vmem:[%s191 + $0x548] sm:$0xf]
      %v543 = vld [vmem:[%s191 + $0x54c] sm:$0xf]
      %v544 = vld [vmem:[%s191 + $0x550] sm:$0xf]
      %v545 = vld [vmem:[%s191 + $0x554] sm:$0xf]
      %v546 = vld [vmem:[%s191 + $0x558] sm:$0xf]
      %v547 = vld [vmem:[%s191 + $0x55c] sm:$0xf]
      %v548 = vld [vmem:[%s191 + $0x560] sm:$0xf]
      %v549 = vld [vmem:[%s191 + $0x564] sm:$0xf]
      %v550 = vld [vmem:[%s191 + $0x568] sm:$0xf]
      %v551 = vld [vmem:[%s191 + $0x56c] sm:$0xf]
      %v552 = vld [vmem:[%s191 + $0x570] sm:$0xf]
      %v553 = vld [vmem:[%s191 + $0x574] sm:$0xf]
      %v554 = vld [vmem:[%s191 + $0x578] sm:$0xf]
      %v555 = vld [vmem:[%s191 + $0x57c] sm:$0xf]
      %v556 = vld [vmem:[%s191 + $0x580] sm:$0xf]
      %v557 = vld [vmem:[%s191 + $0x584] sm:$0xf]
      %v558 = vld [vmem:[%s191 + $0x588] sm:$0xf]
      %v559 = vld [vmem:[%s191 + $0x58c] sm:$0xf]
      %v560 = vld [vmem:[%s191 + $0x590] sm:$0xf]
      %v561 = vld [vmem:[%s191 + $0x594] sm:$0xf]
      %v562 = vld [vmem:[%s191 + $0x598] sm:$0xf]
      %v563 = vld [vmem:[%s191 + $0x59c] sm:$0xf]
      %v564 = vld [vmem:[%s191 + $0x5a0] sm:$0xf]
      %v565 = vld [vmem:[%s191 + $0x5a4] sm:$0xf]
      %v566 = vld [vmem:[%s191 + $0x5a8] sm:$0xf]
      %v567 = vld [vmem:[%s191 + $0x5ac] sm:$0xf]
      %v568 = vld [vmem:[%s191 + $0x5b0] sm:$0xf]
      %v569 = vld [vmem:[%s191 + $0x5b4] sm:$0xf]
      %v570 = vld [vmem:[%s191 + $0x5b8] sm:$0xf]
      %v571 = vld [vmem:[%s191 + $0x5bc] sm:$0xf]
      %v572 = vld [vmem:[%s191 + $0x5c0] sm:$0xf]
      %v573 = vld [vmem:[%s191 + $0x5c4] sm:$0xf]
      %v574 = vld [vmem:[%s191 + $0x5c8] sm:$0xf]
      %v575 = vld [vmem:[%s191 + $0x5cc] sm:$0xf]
      %v576 = vld [vmem:[%s191 + $0x5d0] sm:$0xf]
      %v577 = vld [vmem:[%s191 + $0x5d4] sm:$0xf]
      %v578 = vld [vmem:[%s191 + $0x5d8] sm:$0xf]
      %v579 = vld [vmem:[%s191 + $0x5dc] sm:$0xf]
      %v580 = vld [vmem:[%s191 + $0x5e0] sm:$0xf]
      %v581 = vld [vmem:[%s191 + $0x5e4] sm:$0xf]
      %v582 = vld [vmem:[%s191 + $0x5e8] sm:$0xf]
      %v583 = vld [vmem:[%s191 + $0x5ec] sm:$0xf]
      %v584 = vld [vmem:[%s191 + $0x5f0] sm:$0xf]
      %v585 = vld [vmem:[%s191 + $0x5f4] sm:$0xf]
      %v586 = vld [vmem:[%s191 + $0x5f8] sm:$0xf]
      %v587 = vld [vmem:[%s191 + $0x5fc] sm:$0xf]
      %v588 = vld [vmem:[%s191 + $0x600] sm:$0xf]
      %v589 = vld [vmem:[%s191 + $0x604] sm:$0xf]
      %v590 = vld [vmem:[%s191 + $0x608] sm:$0xf]
      %v591 = vld [vmem:[%s191 + $0x60c] sm:$0xf]
      %v592 = vld [vmem:[%s191 + $0x610] sm:$0xf]
      %v593 = vld [vmem:[%s191 + $0x614] sm:$0xf]
      %v594 = vld [vmem:[%s191 + $0x618] sm:$0xf]
      %v595 = vld [vmem:[%s191 + $0x61c] sm:$0xf]
      %v596 = vld [vmem:[%s191 + $0x620] sm:$0xf]
      %v597 = vld [vmem:[%s191 + $0x624] sm:$0xf]
      %v598 = vld [vmem:[%s191 + $0x628] sm:$0xf]
      %v599 = vld [vmem:[%s191 + $0x62c] sm:$0xf]
      %v600 = vld [vmem:[%s191 + $0x630] sm:$0xf]
      %v601 = vld [vmem:[%s191 + $0x634] sm:$0xf]
      %v602 = vld [vmem:[%s191 + $0x638] sm:$0xf]
      %v603 = vld [vmem:[%s191 + $0x63c] sm:$0xf]
      %v604 = vld [vmem:[%s191 + $0x640] sm:$0xf]
      %v605 = vld [vmem:[%s191 + $0x644] sm:$0xf]
      %v606 = vld [vmem:[%s191 + $0x648] sm:$0xf]
      %v607 = vld [vmem:[%s191 + $0x64c] sm:$0xf]
      %v608 = vld [vmem:[%s191 + $0x650] sm:$0xf]
      %v609 = vld [vmem:[%s191 + $0x654] sm:$0xf]
      %v610 = vld [vmem:[%s191 + $0x658] sm:$0xf]
      %v611 = vld [vmem:[%s191 + $0x65c] sm:$0xf]
      %v612 = vld [vmem:[%s191 + $0x660] sm:$0xf]
      %v613 = vld [vmem:[%s191 + $0x664] sm:$0xf]
      %v614 = vld [vmem:[%s191 + $0x668] sm:$0xf]
      %v615 = vld [vmem:[%s191 + $0x66c] sm:$0xf]
      %v616 = vld [vmem:[%s191 + $0x670] sm:$0xf]
      %v617 = vld [vmem:[%s191 + $0x674] sm:$0xf]
      %v618 = vld [vmem:[%s191 + $0x678] sm:$0xf]
      %v619 = vld [vmem:[%s191 + $0x67c] sm:$0xf]
      %v620 = vld [vmem:[%s191 + $0x680] sm:$0xf]
      %v621 = vld [vmem:[%s191 + $0x684] sm:$0xf]
      %v622 = vld [vmem:[%s191 + $0x688] sm:$0xf]
      %v623 = vld [vmem:[%s191 + $0x68c] sm:$0xf]
      %v624 = vld [vmem:[%s191 + $0x690] sm:$0xf]
      %v625 = vld [vmem:[%s191 + $0x694] sm:$0xf]
      %v626 = vld [vmem:[%s191 + $0x698] sm:$0xf]
      %v627 = vld [vmem:[%s191 + $0x69c] sm:$0xf]
      %v628 = vld [vmem:[%s191 + $0x6a0] sm:$0xf]
      %v629 = vld [vmem:[%s191 + $0x6a4] sm:$0xf]
      %v630 = vld [vmem:[%s191 + $0x6a8] sm:$0xf]
      %v631 = vld [vmem:[%s191 + $0x6ac] sm:$0xf]
      %v632 = vld [vmem:[%s191 + $0x6b0] sm:$0xf]
      %v633 = vld [vmem:[%s191 + $0x6b4] sm:$0xf]
      %v634 = vld [vmem:[%s191 + $0x6b8] sm:$0xf]
      %v635 = vld [vmem:[%s191 + $0x6bc] sm:$0xf]
      %v636 = vld [vmem:[%s191 + $0x6c0] sm:$0xf]
      %v637 = vld [vmem:[%s191 + $0x6c4] sm:$0xf]
      %v638 = vld [vmem:[%s191 + $0x6c8] sm:$0xf]
      %v639 = vld [vmem:[%s191 + $0x6cc] sm:$0xf]
      %v640 = vld [vmem:[%s191 + $0x6d0] sm:$0xf]
      %v641 = vld [vmem:[%s191 + $0x6d4] sm:$0xf]
      %v642 = vld [vmem:[%s191 + $0x6d8] sm:$0xf]
      %v643 = vld [vmem:[%s191 + $0x6dc] sm:$0xf]
      %v644 = vld [vmem:[%s191 + $0x6e0] sm:$0xf]
      %v645 = vld [vmem:[%s191 + $0x6e4] sm:$0xf]
      %v646 = vld [vmem:[%s191 + $0x6e8] sm:$0xf]
      %v647 = vld [vmem:[%s191 + $0x6ec] sm:$0xf]
      %v648 = vld [vmem:[%s191 + $0x6f0] sm:$0xf]
      %v649 = vld [vmem:[%s191 + $0x6f4] sm:$0xf]
      %v650 = vld [vmem:[%s191 + $0x6f8] sm:$0xf]
      %v651 = vld [vmem:[%s191 + $0x6fc] sm:$0xf]
      %v652 = vld [vmem:[%s191 + $0x700] sm:$0xf]
      %v653 = vld [vmem:[%s191 + $0x704] sm:$0xf]
      %v654 = vld [vmem:[%s191 + $0x708] sm:$0xf]
      %v655 = vld [vmem:[%s191 + $0x70c] sm:$0xf]
      %v656 = vld [vmem:[%s191 + $0x710] sm:$0xf]
      %v657 = vld [vmem:[%s191 + $0x714] sm:$0xf]
      %v658 = vld [vmem:[%s191 + $0x718] sm:$0xf]
      %v659 = vld [vmem:[%s191 + $0x71c] sm:$0xf]
      %v660 = vld [vmem:[%s191 + $0x720] sm:$0xf]
      %v661 = vld [vmem:[%s191 + $0x724] sm:$0xf]
      %v662 = vld [vmem:[%s191 + $0x728] sm:$0xf]
      %v663 = vld [vmem:[%s191 + $0x72c] sm:$0xf]
      %v664 = vld [vmem:[%s191 + $0x730] sm:$0xf]
      %v665 = vld [vmem:[%s191 + $0x734] sm:$0xf]
      %v666 = vld [vmem:[%s191 + $0x738] sm:$0xf]
      %v667 = vld [vmem:[%s191 + $0x73c] sm:$0xf]
      %v668 = vld [vmem:[%s191 + $0x740] sm:$0xf]
      %v669 = vld [vmem:[%s191 + $0x744] sm:$0xf]
      %v670 = vld [vmem:[%s191 + $0x748] sm:$0xf]
      %v671 = vld [vmem:[%s191 + $0x74c] sm:$0xf]
      %v672 = vld [vmem:[%s191 + $0x750] sm:$0xf]
      %v673 = vld [vmem:[%s191 + $0x754] sm:$0xf]
      %v674 = vld [vmem:[%s191 + $0x758] sm:$0xf]
      %v675 = vld [vmem:[%s191 + $0x75c] sm:$0xf]
      %v676 = vld [vmem:[%s191 + $0x760] sm:$0xf]
      %v677 = vld [vmem:[%s191 + $0x764] sm:$0xf]
      %v678 = vld [vmem:[%s191 + $0x768] sm:$0xf]
      %v679 = vld [vmem:[%s191 + $0x76c] sm:$0xf]
      %v680 = vld [vmem:[%s191 + $0x770] sm:$0xf]
      %v681 = vld [vmem:[%s191 + $0x774] sm:$0xf]
      %v682 = vld [vmem:[%s191 + $0x778] sm:$0xf]
      %v683 = vld [vmem:[%s191 + $0x77c] sm:$0xf]
      %v684 = vld [vmem:[%s191 + $0x780] sm:$0xf]
      %v685 = vld [vmem:[%s191 + $0x784] sm:$0xf]
      %v686 = vld [vmem:[%s191 + $0x788] sm:$0xf]
      %v687 = vld [vmem:[%s191 + $0x78c] sm:$0xf]
      %v688 = vld [vmem:[%s191 + $0x790] sm:$0xf]
      %v689 = vld [vmem:[%s191 + $0x794] sm:$0xf]
      %v690 = vld [vmem:[%s191 + $0x798] sm:$0xf]
      %v691 = vld [vmem:[%s191 + $0x79c] sm:$0xf]
      %v692 = vld [vmem:[%s191 + $0x7a0] sm:$0xf]
      %v693 = vld [vmem:[%s191 + $0x7a4] sm:$0xf]
      %v694 = vld [vmem:[%s191 + $0x7a8] sm:$0xf]
      %v695 = vld [vmem:[%s191 + $0x7ac] sm:$0xf]
      %v696 = vld [vmem:[%s191 + $0x7b0] sm:$0xf]
      %v697 = vld [vmem:[%s191 + $0x7b4] sm:$0xf]
      %v698 = vld [vmem:[%s191 + $0x7b8] sm:$0xf]
      %v699 = vld [vmem:[%s191 + $0x7bc] sm:$0xf]
      %v700 = vld [vmem:[%s191 + $0x7c0] sm:$0xf]
      %v701 = vld [vmem:[%s191 + $0x7c4] sm:$0xf]
      %v702 = vld [vmem:[%s191 + $0x7c8] sm:$0xf]
      %v703 = vld [vmem:[%s191 + $0x7cc] sm:$0xf]
      %v704 = vld [vmem:[%s191 + $0x7d0] sm:$0xf]
      %v705 = vld [vmem:[%s191 + $0x7d4] sm:$0xf]
      %v706 = vld [vmem:[%s191 + $0x7d8] sm:$0xf]
      %v707 = vld [vmem:[%s191 + $0x7dc] sm:$0xf]
      %v708 = vld [vmem:[%s191 + $0x7e0] sm:$0xf]
      %v709 = vld [vmem:[%s191 + $0x7e4] sm:$0xf]
      %v710 = vld [vmem:[%s191 + $0x7e8] sm:$0xf]
      %v711 = vld [vmem:[%s191 + $0x7ec] sm:$0xf]
      %v712 = vld [vmem:[%s191 + $0x7f0] sm:$0xf]
      %v713 = vld [vmem:[%s191 + $0x7f4] sm:$0xf]
      %v714 = vld [vmem:[%s191 + $0x7f8] sm:$0xf]
      %v715 = vld [vmem:[%s191 + $0x7fc] sm:$0xf]
      %v716 = vld [vmem:[%s1] sm:$0xff]
      %v717 = vld [vmem:[%s1 + $0x8] sm:$0xff]
      %v718 = vld [vmem:[%s1 + $0x10] sm:$0xff]
      %v719 = vld [vmem:[%s1 + $0x18] sm:$0xff]
      %v720 = vld [vmem:[%s2] sm:$0x3]
      %v722 = vlaneseq
      %v723 = vshrl.u32 %v722, 7
      %v724 = vsub.s32 0, %v723
      %v725 = vrot.slane %v720, %v724
      %v726 = vlaneseq
      %v727 = vshrl.u32 %v726, 7
      %v728 = vsub.s32 1, %v727
      %v729 = vrot.slane %v720, %v728
      %v1244 = vunpack.c.l.b16 %v204
      %v1245 = vunpack.c.l.b16 %v205
      %v1246 = vunpack.c.l.b16 %v206
      %v1247 = vunpack.c.l.b16 %v207
      %v1248 = vunpack.c.l.b16 %v208
      %v1249 = vunpack.c.l.b16 %v209
      %v1250 = vunpack.c.l.b16 %v210
      %v1251 = vunpack.c.l.b16 %v211
      %v1252 = vunpack.c.l.b16 %v212
      %v1253 = vunpack.c.l.b16 %v213
      %v1254 = vunpack.c.l.b16 %v214
      %v1255 = vunpack.c.l.b16 %v215
      %v1256 = vunpack.c.l.b16 %v216
      %v1257 = vunpack.c.l.b16 %v217
      %v1258 = vunpack.c.l.b16 %v218
      %v1259 = vunpack.c.l.b16 %v219
      %v1260 = vunpack.c.l.b16 %v220
      %v1261 = vunpack.c.l.b16 %v221
      %v1262 = vunpack.c.l.b16 %v222
      %v1263 = vunpack.c.l.b16 %v223
      %v1264 = vunpack.c.l.b16 %v224
      %v1265 = vunpack.c.l.b16 %v225
      %v1266 = vunpack.c.l.b16 %v226
      %v1267 = vunpack.c.l.b16 %v227
      %v1268 = vunpack.c.l.b16 %v228
      %v1269 = vunpack.c.l.b16 %v229
      %v1270 = vunpack.c.l.b16 %v230
      %v1271 = vunpack.c.l.b16 %v231
      %v1272 = vunpack.c.l.b16 %v232
      %v1273 = vunpack.c.l.b16 %v233
      %v1274 = vunpack.c.l.b16 %v234
      %v1275 = vunpack.c.l.b16 %v235
      %v1276 = vunpack.c.l.b16 %v236
      %v1277 = vunpack.c.l.b16 %v237
      %v1278 = vunpack.c.l.b16 %v238
      %v1279 = vunpack.c.l.b16 %v239
      %v1280 = vunpack.c.l.b16 %v240
      %v1281 = vunpack.c.l.b16 %v241
      %v1282 = vunpack.c.l.b16 %v242
      %v1283 = vunpack.c.l.b16 %v243
      %v1284 = vunpack.c.l.b16 %v244
      %v1285 = vunpack.c.l.b16 %v245
      %v1286 = vunpack.c.l.b16 %v246
      %v1287 = vunpack.c.l.b16 %v247
      %v1288 = vunpack.c.l.b16 %v248
      %v1289 = vunpack.c.l.b16 %v249
      %v1290 = vunpack.c.l.b16 %v250
      %v1291 = vunpack.c.l.b16 %v251
      %v1292 = vunpack.c.l.b16 %v252
      %v1293 = vunpack.c.l.b16 %v253
      %v1294 = vunpack.c.l.b16 %v254
      %v1295 = vunpack.c.l.b16 %v255
      %v1296 = vunpack.c.l.b16 %v256
      %v1297 = vunpack.c.l.b16 %v257
      %v1298 = vunpack.c.l.b16 %v258
      %v1299 = vunpack.c.l.b16 %v259
      %v1300 = vunpack.c.l.b16 %v260
      %v1301 = vunpack.c.l.b16 %v261
      %v1302 = vunpack.c.l.b16 %v262
      %v1303 = vunpack.c.l.b16 %v263
      %v1304 = vunpack.c.l.b16 %v264
      %v1305 = vunpack.c.l.b16 %v265
      %v1306 = vunpack.c.l.b16 %v266
      %v1307 = vunpack.c.l.b16 %v267
      %v1308 = vunpack.c.l.b16 %v268
      %v1309 = vunpack.c.l.b16 %v269
      %v1310 = vunpack.c.l.b16 %v270
      %v1311 = vunpack.c.l.b16 %v271
      %v1312 = vunpack.c.l.b16 %v272
      %v1313 = vunpack.c.l.b16 %v273
      %v1314 = vunpack.c.l.b16 %v274
      %v1315 = vunpack.c.l.b16 %v275
      %v1316 = vunpack.c.l.b16 %v276
      %v1317 = vunpack.c.l.b16 %v277
      %v1318 = vunpack.c.l.b16 %v278
      %v1319 = vunpack.c.l.b16 %v279
      %v1320 = vunpack.c.l.b16 %v280
      %v1321 = vunpack.c.l.b16 %v281
      %v1322 = vunpack.c.l.b16 %v282
      %v1323 = vunpack.c.l.b16 %v283
      %v1324 = vunpack.c.l.b16 %v284
      %v1325 = vunpack.c.l.b16 %v285
      %v1326 = vunpack.c.l.b16 %v286
      %v1327 = vunpack.c.l.b16 %v287
      %v1328 = vunpack.c.l.b16 %v288
      %v1329 = vunpack.c.l.b16 %v289
      %v1330 = vunpack.c.l.b16 %v290
      %v1331 = vunpack.c.l.b16 %v291
      %v1332 = vunpack.c.l.b16 %v292
      %v1333 = vunpack.c.l.b16 %v293
      %v1334 = vunpack.c.l.b16 %v294
      %v1335 = vunpack.c.l.b16 %v295
      %v1336 = vunpack.c.l.b16 %v296
      %v1337 = vunpack.c.l.b16 %v297
      %v1338 = vunpack.c.l.b16 %v298
      %v1339 = vunpack.c.l.b16 %v299
      %v1340 = vunpack.c.l.b16 %v300
      %v1341 = vunpack.c.l.b16 %v301
      %v1342 = vunpack.c.l.b16 %v302
      %v1343 = vunpack.c.l.b16 %v303
      %v1344 = vunpack.c.l.b16 %v304
      %v1345 = vunpack.c.l.b16 %v305
      %v1346 = vunpack.c.l.b16 %v306
      %v1347 = vunpack.c.l.b16 %v307
      %v1348 = vunpack.c.l.b16 %v308
      %v1349 = vunpack.c.l.b16 %v309
      %v1350 = vunpack.c.l.b16 %v310
      %v1351 = vunpack.c.l.b16 %v311
      %v1352 = vunpack.c.l.b16 %v312
      %v1353 = vunpack.c.l.b16 %v313
      %v1354 = vunpack.c.l.b16 %v314
      %v1355 = vunpack.c.l.b16 %v315
      %v1356 = vunpack.c.l.b16 %v316
      %v1357 = vunpack.c.l.b16 %v317
      %v1358 = vunpack.c.l.b16 %v318
      %v1359 = vunpack.c.l.b16 %v319
      %v1360 = vunpack.c.l.b16 %v320
      %v1361 = vunpack.c.l.b16 %v321
      %v1362 = vunpack.c.l.b16 %v322
      %v1363 = vunpack.c.l.b16 %v323
      %v1364 = vunpack.c.l.b16 %v324
      %v1365 = vunpack.c.l.b16 %v325
      %v1366 = vunpack.c.l.b16 %v326
      %v1367 = vunpack.c.l.b16 %v327
      %v1368 = vunpack.c.l.b16 %v328
      %v1369 = vunpack.c.l.b16 %v329
      %v1370 = vunpack.c.l.b16 %v330
      %v1371 = vunpack.c.l.b16 %v331
      %v1372 = vunpack.c.l.b16 %v332
      %v1373 = vunpack.c.l.b16 %v333
      %v1374 = vunpack.c.l.b16 %v334
      %v1375 = vunpack.c.l.b16 %v335
      %v1376 = vunpack.c.l.b16 %v336
      %v1377 = vunpack.c.l.b16 %v337
      %v1378 = vunpack.c.l.b16 %v338
      %v1379 = vunpack.c.l.b16 %v339
      %v1380 = vunpack.c.l.b16 %v340
      %v1381 = vunpack.c.l.b16 %v341
      %v1382 = vunpack.c.l.b16 %v342
      %v1383 = vunpack.c.l.b16 %v343
      %v1384 = vunpack.c.l.b16 %v344
      %v1385 = vunpack.c.l.b16 %v345
      %v1386 = vunpack.c.l.b16 %v346
      %v1387 = vunpack.c.l.b16 %v347
      %v1388 = vunpack.c.l.b16 %v348
      %v1389 = vunpack.c.l.b16 %v349
      %v1390 = vunpack.c.l.b16 %v350
      %v1391 = vunpack.c.l.b16 %v351
      %v1392 = vunpack.c.l.b16 %v352
      %v1393 = vunpack.c.l.b16 %v353
      %v1394 = vunpack.c.l.b16 %v354
      %v1395 = vunpack.c.l.b16 %v355
      %v1396 = vunpack.c.l.b16 %v356
      %v1397 = vunpack.c.l.b16 %v357
      %v1398 = vunpack.c.l.b16 %v358
      %v1399 = vunpack.c.l.b16 %v359
      %v1400 = vunpack.c.l.b16 %v360
      %v1401 = vunpack.c.l.b16 %v361
      %v1402 = vunpack.c.l.b16 %v362
      %v1403 = vunpack.c.l.b16 %v363
      %v1404 = vunpack.c.l.b16 %v364
      %v1405 = vunpack.c.l.b16 %v365
      %v1406 = vunpack.c.l.b16 %v366
      %v1407 = vunpack.c.l.b16 %v367
      %v1408 = vunpack.c.l.b16 %v368
      %v1409 = vunpack.c.l.b16 %v369
      %v1410 = vunpack.c.l.b16 %v370
      %v1411 = vunpack.c.l.b16 %v371
      %v1412 = vunpack.c.l.b16 %v372
      %v1413 = vunpack.c.l.b16 %v373
      %v1414 = vunpack.c.l.b16 %v374
      %v1415 = vunpack.c.l.b16 %v375
      %v1416 = vunpack.c.l.b16 %v376
      %v1417 = vunpack.c.l.b16 %v377
      %v1418 = vunpack.c.l.b16 %v378
      %v1419 = vunpack.c.l.b16 %v379
      %v1420 = vunpack.c.l.b16 %v380
      %v1421 = vunpack.c.l.b16 %v381
      %v1422 = vunpack.c.l.b16 %v382
      %v1423 = vunpack.c.l.b16 %v383
      %v1424 = vunpack.c.l.b16 %v384
      %v1425 = vunpack.c.l.b16 %v385
      %v1426 = vunpack.c.l.b16 %v386
      %v1427 = vunpack.c.l.b16 %v387
      %v1428 = vunpack.c.l.b16 %v388
      %v1429 = vunpack.c.l.b16 %v389
      %v1430 = vunpack.c.l.b16 %v390
      %v1431 = vunpack.c.l.b16 %v391
      %v1432 = vunpack.c.l.b16 %v392
      %v1433 = vunpack.c.l.b16 %v393
      %v1434 = vunpack.c.l.b16 %v394
      %v1435 = vunpack.c.l.b16 %v395
      %v1436 = vunpack.c.l.b16 %v396
      %v1437 = vunpack.c.l.b16 %v397
      %v1438 = vunpack.c.l.b16 %v398
      %v1439 = vunpack.c.l.b16 %v399
      %v1440 = vunpack.c.l.b16 %v400
      %v1441 = vunpack.c.l.b16 %v401
      %v1442 = vunpack.c.l.b16 %v402
      %v1443 = vunpack.c.l.b16 %v403
      %v1444 = vunpack.c.l.b16 %v404
      %v1445 = vunpack.c.l.b16 %v405
      %v1446 = vunpack.c.l.b16 %v406
      %v1447 = vunpack.c.l.b16 %v407
      %v1448 = vunpack.c.l.b16 %v408
      %v1449 = vunpack.c.l.b16 %v409
      %v1450 = vunpack.c.l.b16 %v410
      %v1451 = vunpack.c.l.b16 %v411
      %v1452 = vunpack.c.l.b16 %v412
      %v1453 = vunpack.c.l.b16 %v413
      %v1454 = vunpack.c.l.b16 %v414
      %v1455 = vunpack.c.l.b16 %v415
      %v1456 = vunpack.c.l.b16 %v416
      %v1457 = vunpack.c.l.b16 %v417
      %v1458 = vunpack.c.l.b16 %v418
      %v1459 = vunpack.c.l.b16 %v419
      %v1460 = vunpack.c.l.b16 %v420
      %v1461 = vunpack.c.l.b16 %v421
      %v1462 = vunpack.c.l.b16 %v422
      %v1463 = vunpack.c.l.b16 %v423
      %v1464 = vunpack.c.l.b16 %v424
      %v1465 = vunpack.c.l.b16 %v425
      %v1466 = vunpack.c.l.b16 %v426
      %v1467 = vunpack.c.l.b16 %v427
      %v1468 = vunpack.c.l.b16 %v428
      %v1469 = vunpack.c.l.b16 %v429
      %v1470 = vunpack.c.l.b16 %v430
      %v1471 = vunpack.c.l.b16 %v431
      %v1472 = vunpack.c.l.b16 %v432
      %v1473 = vunpack.c.l.b16 %v433
      %v1474 = vunpack.c.l.b16 %v434
      %v1475 = vunpack.c.l.b16 %v435
      %v1476 = vunpack.c.l.b16 %v436
      %v1477 = vunpack.c.l.b16 %v437
      %v1478 = vunpack.c.l.b16 %v438
      %v1479 = vunpack.c.l.b16 %v439
      %v1480 = vunpack.c.l.b16 %v440
      %v1481 = vunpack.c.l.b16 %v441
      %v1482 = vunpack.c.l.b16 %v442
      %v1483 = vunpack.c.l.b16 %v443
      %v1484 = vunpack.c.l.b16 %v444
      %v1485 = vunpack.c.l.b16 %v445
      %v1486 = vunpack.c.l.b16 %v446
      %v1487 = vunpack.c.l.b16 %v447
      %v1488 = vunpack.c.l.b16 %v448
      %v1489 = vunpack.c.l.b16 %v449
      %v1490 = vunpack.c.l.b16 %v450
      %v1491 = vunpack.c.l.b16 %v451
      %v1492 = vunpack.c.l.b16 %v452
      %v1493 = vunpack.c.l.b16 %v453
      %v1494 = vunpack.c.l.b16 %v454
      %v1495 = vunpack.c.l.b16 %v455
      %v1496 = vunpack.c.l.b16 %v456
      %v1497 = vunpack.c.l.b16 %v457
      %v1498 = vunpack.c.l.b16 %v458
      %v1499 = vunpack.c.l.b16 %v459
      %v1500 = vunpack.c.l.b16 %v460
      %v1501 = vunpack.c.l.b16 %v461
      %v1502 = vunpack.c.l.b16 %v462
      %v1503 = vunpack.c.l.b16 %v463
      %v1504 = vunpack.c.l.b16 %v464
      %v1505 = vunpack.c.l.b16 %v465
      %v1506 = vunpack.c.l.b16 %v466
      %v1507 = vunpack.c.l.b16 %v467
      %v1508 = vunpack.c.l.b16 %v468
      %v1509 = vunpack.c.l.b16 %v469
      %v1510 = vunpack.c.l.b16 %v470
      %v1511 = vunpack.c.l.b16 %v471
      %v1512 = vunpack.c.l.b16 %v472
      %v1513 = vunpack.c.l.b16 %v473
      %v1514 = vunpack.c.l.b16 %v474
      %v1515 = vunpack.c.l.b16 %v475
      %v1516 = vunpack.c.l.b16 %v476
      %v1517 = vunpack.c.l.b16 %v477
      %v1518 = vunpack.c.l.b16 %v478
      %v1519 = vunpack.c.l.b16 %v479
      %v1520 = vunpack.c.l.b16 %v480
      %v1521 = vunpack.c.l.b16 %v481
      %v1522 = vunpack.c.l.b16 %v482
      %v1523 = vunpack.c.l.b16 %v483
      %v1524 = vunpack.c.l.b16 %v484
      %v1525 = vunpack.c.l.b16 %v485
      %v1526 = vunpack.c.l.b16 %v486
      %v1527 = vunpack.c.l.b16 %v487
      %v1528 = vunpack.c.l.b16 %v488
      %v1529 = vunpack.c.l.b16 %v489
      %v1530 = vunpack.c.l.b16 %v490
      %v1531 = vunpack.c.l.b16 %v491
      %v1532 = vunpack.c.l.b16 %v492
      %v1533 = vunpack.c.l.b16 %v493
      %v1534 = vunpack.c.l.b16 %v494
      %v1535 = vunpack.c.l.b16 %v495
      %v1536 = vunpack.c.l.b16 %v496
      %v1537 = vunpack.c.l.b16 %v497
      %v1538 = vunpack.c.l.b16 %v498
      %v1539 = vunpack.c.l.b16 %v499
      %v1540 = vunpack.c.l.b16 %v500
      %v1541 = vunpack.c.l.b16 %v501
      %v1542 = vunpack.c.l.b16 %v502
      %v1543 = vunpack.c.l.b16 %v503
      %v1544 = vunpack.c.l.b16 %v504
      %v1545 = vunpack.c.l.b16 %v505
      %v1546 = vunpack.c.l.b16 %v506
      %v1547 = vunpack.c.l.b16 %v507
      %v1548 = vunpack.c.l.b16 %v508
      %v1549 = vunpack.c.l.b16 %v509
      %v1550 = vunpack.c.l.b16 %v510
      %v1551 = vunpack.c.l.b16 %v511
      %v1552 = vunpack.c.l.b16 %v512
      %v1553 = vunpack.c.l.b16 %v513
      %v1554 = vunpack.c.l.b16 %v514
      %v1555 = vunpack.c.l.b16 %v515
      %v1556 = vunpack.c.l.b16 %v516
      %v1557 = vunpack.c.l.b16 %v517
      %v1558 = vunpack.c.l.b16 %v518
      %v1559 = vunpack.c.l.b16 %v519
      %v1560 = vunpack.c.l.b16 %v520
      %v1561 = vunpack.c.l.b16 %v521
      %v1562 = vunpack.c.l.b16 %v522
      %v1563 = vunpack.c.l.b16 %v523
      %v1564 = vunpack.c.l.b16 %v524
      %v1565 = vunpack.c.l.b16 %v525
      %v1566 = vunpack.c.l.b16 %v526
      %v1567 = vunpack.c.l.b16 %v527
      %v1568 = vunpack.c.l.b16 %v528
      %v1569 = vunpack.c.l.b16 %v529
      %v1570 = vunpack.c.l.b16 %v530
      %v1571 = vunpack.c.l.b16 %v531
      %v1572 = vunpack.c.l.b16 %v532
      %v1573 = vunpack.c.l.b16 %v533
      %v1574 = vunpack.c.l.b16 %v534
      %v1575 = vunpack.c.l.b16 %v535
      %v1576 = vunpack.c.l.b16 %v536
      %v1577 = vunpack.c.l.b16 %v537
      %v1578 = vunpack.c.l.b16 %v538
      %v1579 = vunpack.c.l.b16 %v539
      %v1580 = vunpack.c.l.b16 %v540
      %v1581 = vunpack.c.l.b16 %v541
      %v1582 = vunpack.c.l.b16 %v542
      %v1583 = vunpack.c.l.b16 %v543
      %v1584 = vunpack.c.l.b16 %v544
      %v1585 = vunpack.c.l.b16 %v545
      %v1586 = vunpack.c.l.b16 %v546
      %v1587 = vunpack.c.l.b16 %v547
      %v1588 = vunpack.c.l.b16 %v548
      %v1589 = vunpack.c.l.b16 %v549
      %v1590 = vunpack.c.l.b16 %v550
      %v1591 = vunpack.c.l.b16 %v551
      %v1592 = vunpack.c.l.b16 %v552
      %v1593 = vunpack.c.l.b16 %v553
      %v1594 = vunpack.c.l.b16 %v554
      %v1595 = vunpack.c.l.b16 %v555
      %v1596 = vunpack.c.l.b16 %v556
      %v1597 = vunpack.c.l.b16 %v557
      %v1598 = vunpack.c.l.b16 %v558
      %v1599 = vunpack.c.l.b16 %v559
      %v1600 = vunpack.c.l.b16 %v560
      %v1601 = vunpack.c.l.b16 %v561
      %v1602 = vunpack.c.l.b16 %v562
      %v1603 = vunpack.c.l.b16 %v563
      %v1604 = vunpack.c.l.b16 %v564
      %v1605 = vunpack.c.l.b16 %v565
      %v1606 = vunpack.c.l.b16 %v566
      %v1607 = vunpack.c.l.b16 %v567
      %v1608 = vunpack.c.l.b16 %v568
      %v1609 = vunpack.c.l.b16 %v569
      %v1610 = vunpack.c.l.b16 %v570
      %v1611 = vunpack.c.l.b16 %v571
      %v1612 = vunpack.c.l.b16 %v572
      %v1613 = vunpack.c.l.b16 %v573
      %v1614 = vunpack.c.l.b16 %v574
      %v1615 = vunpack.c.l.b16 %v575
      %v1616 = vunpack.c.l.b16 %v576
      %v1617 = vunpack.c.l.b16 %v577
      %v1618 = vunpack.c.l.b16 %v578
      %v1619 = vunpack.c.l.b16 %v579
      %v1620 = vunpack.c.l.b16 %v580
      %v1621 = vunpack.c.l.b16 %v581
      %v1622 = vunpack.c.l.b16 %v582
      %v1623 = vunpack.c.l.b16 %v583
      %v1624 = vunpack.c.l.b16 %v584
      %v1625 = vunpack.c.l.b16 %v585
      %v1626 = vunpack.c.l.b16 %v586
      %v1627 = vunpack.c.l.b16 %v587
      %v1628 = vunpack.c.l.b16 %v588
      %v1629 = vunpack.c.l.b16 %v589
      %v1630 = vunpack.c.l.b16 %v590
      %v1631 = vunpack.c.l.b16 %v591
      %v1632 = vunpack.c.l.b16 %v592
      %v1633 = vunpack.c.l.b16 %v593
      %v1634 = vunpack.c.l.b16 %v594
      %v1635 = vunpack.c.l.b16 %v595
      %v1636 = vunpack.c.l.b16 %v596
      %v1637 = vunpack.c.l.b16 %v597
      %v1638 = vunpack.c.l.b16 %v598
      %v1639 = vunpack.c.l.b16 %v599
      %v1640 = vunpack.c.l.b16 %v600
      %v1641 = vunpack.c.l.b16 %v601
      %v1642 = vunpack.c.l.b16 %v602
      %v1643 = vunpack.c.l.b16 %v603
      %v1644 = vunpack.c.l.b16 %v604
      %v1645 = vunpack.c.l.b16 %v605
      %v1646 = vunpack.c.l.b16 %v606
      %v1647 = vunpack.c.l.b16 %v607
      %v1648 = vunpack.c.l.b16 %v608
      %v1649 = vunpack.c.l.b16 %v609
      %v1650 = vunpack.c.l.b16 %v610
      %v1651 = vunpack.c.l.b16 %v611
      %v1652 = vunpack.c.l.b16 %v612
      %v1653 = vunpack.c.l.b16 %v613
      %v1654 = vunpack.c.l.b16 %v614
      %v1655 = vunpack.c.l.b16 %v615
      %v1656 = vunpack.c.l.b16 %v616
      %v1657 = vunpack.c.l.b16 %v617
      %v1658 = vunpack.c.l.b16 %v618
      %v1659 = vunpack.c.l.b16 %v619
      %v1660 = vunpack.c.l.b16 %v620
      %v1661 = vunpack.c.l.b16 %v621
      %v1662 = vunpack.c.l.b16 %v622
      %v1663 = vunpack.c.l.b16 %v623
      %v1664 = vunpack.c.l.b16 %v624
      %v1665 = vunpack.c.l.b16 %v625
      %v1666 = vunpack.c.l.b16 %v626
      %v1667 = vunpack.c.l.b16 %v627
      %v1668 = vunpack.c.l.b16 %v628
      %v1669 = vunpack.c.l.b16 %v629
      %v1670 = vunpack.c.l.b16 %v630
      %v1671 = vunpack.c.l.b16 %v631
      %v1672 = vunpack.c.l.b16 %v632
      %v1673 = vunpack.c.l.b16 %v633
      %v1674 = vunpack.c.l.b16 %v634
      %v1675 = vunpack.c.l.b16 %v635
      %v1676 = vunpack.c.l.b16 %v636
      %v1677 = vunpack.c.l.b16 %v637
      %v1678 = vunpack.c.l.b16 %v638
      %v1679 = vunpack.c.l.b16 %v639
      %v1680 = vunpack.c.l.b16 %v640
      %v1681 = vunpack.c.l.b16 %v641
      %v1682 = vunpack.c.l.b16 %v642
      %v1683 = vunpack.c.l.b16 %v643
      %v1684 = vunpack.c.l.b16 %v644
      %v1685 = vunpack.c.l.b16 %v645
      %v1686 = vunpack.c.l.b16 %v646
      %v1687 = vunpack.c.l.b16 %v647
      %v1688 = vunpack.c.l.b16 %v648
      %v1689 = vunpack.c.l.b16 %v649
      %v1690 = vunpack.c.l.b16 %v650
      %v1691 = vunpack.c.l.b16 %v651
      %v1692 = vunpack.c.l.b16 %v652
      %v1693 = vunpack.c.l.b16 %v653
      %v1694 = vunpack.c.l.b16 %v654
      %v1695 = vunpack.c.l.b16 %v655
      %v1696 = vunpack.c.l.b16 %v656
      %v1697 = vunpack.c.l.b16 %v657
      %v1698 = vunpack.c.l.b16 %v658
      %v1699 = vunpack.c.l.b16 %v659
      %v1700 = vunpack.c.l.b16 %v660
      %v1701 = vunpack.c.l.b16 %v661
      %v1702 = vunpack.c.l.b16 %v662
      %v1703 = vunpack.c.l.b16 %v663
      %v1704 = vunpack.c.l.b16 %v664
      %v1705 = vunpack.c.l.b16 %v665
      %v1706 = vunpack.c.l.b16 %v666
      %v1707 = vunpack.c.l.b16 %v667
      %v1708 = vunpack.c.l.b16 %v668
      %v1709 = vunpack.c.l.b16 %v669
      %v1710 = vunpack.c.l.b16 %v670
      %v1711 = vunpack.c.l.b16 %v671
      %v1712 = vunpack.c.l.b16 %v672
      %v1713 = vunpack.c.l.b16 %v673
      %v1714 = vunpack.c.l.b16 %v674
      %v1715 = vunpack.c.l.b16 %v675
      %v1716 = vunpack.c.l.b16 %v676
      %v1717 = vunpack.c.l.b16 %v677
      %v1718 = vunpack.c.l.b16 %v678
      %v1719 = vunpack.c.l.b16 %v679
      %v1720 = vunpack.c.l.b16 %v680
      %v1721 = vunpack.c.l.b16 %v681
      %v1722 = vunpack.c.l.b16 %v682
      %v1723 = vunpack.c.l.b16 %v683
      %v1724 = vunpack.c.l.b16 %v684
      %v1725 = vunpack.c.l.b16 %v685
      %v1726 = vunpack.c.l.b16 %v686
      %v1727 = vunpack.c.l.b16 %v687
      %v1728 = vunpack.c.l.b16 %v688
      %v1729 = vunpack.c.l.b16 %v689
      %v1730 = vunpack.c.l.b16 %v690
      %v1731 = vunpack.c.l.b16 %v691
      %v1732 = vunpack.c.l.b16 %v692
      %v1733 = vunpack.c.l.b16 %v693
      %v1734 = vunpack.c.l.b16 %v694
      %v1735 = vunpack.c.l.b16 %v695
      %v1736 = vunpack.c.l.b16 %v696
      %v1737 = vunpack.c.l.b16 %v697
      %v1738 = vunpack.c.l.b16 %v698
      %v1739 = vunpack.c.l.b16 %v699
      %v1740 = vunpack.c.l.b16 %v700
      %v1741 = vunpack.c.l.b16 %v701
      %v1742 = vunpack.c.l.b16 %v702
      %v1743 = vunpack.c.l.b16 %v703
      %v1744 = vunpack.c.l.b16 %v704
      %v1745 = vunpack.c.l.b16 %v705
      %v1746 = vunpack.c.l.b16 %v706
      %v1747 = vunpack.c.l.b16 %v707
      %v1748 = vunpack.c.l.b16 %v708
      %v1749 = vunpack.c.l.b16 %v709
      %v1750 = vunpack.c.l.b16 %v710
      %v1751 = vunpack.c.l.b16 %v711
      %v1752 = vunpack.c.l.b16 %v712
      %v1753 = vunpack.c.l.b16 %v713
      %v1754 = vunpack.c.l.b16 %v714
      %v1755 = vunpack.c.l.b16 %v715
      %v1756 = vpack.c.b16 %v1245, %v1244
      %v1757 = vpack.c.b16 %v1247, %v1246
      %v1758 = vpack.c.b16 %v1249, %v1248
      %v1759 = vpack.c.b16 %v1251, %v1250
      %v1760 = vpack.c.b16 %v1253, %v1252
      %v1761 = vpack.c.b16 %v1255, %v1254
      %v1762 = vpack.c.b16 %v1257, %v1256
      %v1763 = vpack.c.b16 %v1259, %v1258
      %v1764 = vpack.c.b16 %v1261, %v1260
      %v1765 = vpack.c.b16 %v1263, %v1262
      %v1766 = vpack.c.b16 %v1265, %v1264
      %v1767 = vpack.c.b16 %v1267, %v1266
      %v1768 = vpack.c.b16 %v1269, %v1268
      %v1769 = vpack.c.b16 %v1271, %v1270
      %v1770 = vpack.c.b16 %v1273, %v1272
      %v1771 = vpack.c.b16 %v1275, %v1274
      %v1772 = vpack.c.b16 %v1277, %v1276
      %v1773 = vpack.c.b16 %v1279, %v1278
      %v1774 = vpack.c.b16 %v1281, %v1280
      %v1775 = vpack.c.b16 %v1283, %v1282
      %v1776 = vpack.c.b16 %v1285, %v1284
      %v1777 = vpack.c.b16 %v1287, %v1286
      %v1778 = vpack.c.b16 %v1289, %v1288
      %v1779 = vpack.c.b16 %v1291, %v1290
      %v1780 = vpack.c.b16 %v1293, %v1292
      %v1781 = vpack.c.b16 %v1295, %v1294
      %v1782 = vpack.c.b16 %v1297, %v1296
      %v1783 = vpack.c.b16 %v1299, %v1298
      %v1784 = vpack.c.b16 %v1301, %v1300
      %v1785 = vpack.c.b16 %v1303, %v1302
      %v1786 = vpack.c.b16 %v1305, %v1304
      %v1787 = vpack.c.b16 %v1307, %v1306
      %v1788 = vpack.c.b16 %v1309, %v1308
      %v1789 = vpack.c.b16 %v1311, %v1310
      %v1790 = vpack.c.b16 %v1313, %v1312
      %v1791 = vpack.c.b16 %v1315, %v1314
      %v1792 = vpack.c.b16 %v1317, %v1316
      %v1793 = vpack.c.b16 %v1319, %v1318
      %v1794 = vpack.c.b16 %v1321, %v1320
      %v1795 = vpack.c.b16 %v1323, %v1322
      %v1796 = vpack.c.b16 %v1325, %v1324
      %v1797 = vpack.c.b16 %v1327, %v1326
      %v1798 = vpack.c.b16 %v1329, %v1328
      %v1799 = vpack.c.b16 %v1331, %v1330
      %v1800 = vpack.c.b16 %v1333, %v1332
      %v1801 = vpack.c.b16 %v1335, %v1334
      %v1802 = vpack.c.b16 %v1337, %v1336
      %v1803 = vpack.c.b16 %v1339, %v1338
      %v1804 = vpack.c.b16 %v1341, %v1340
      %v1805 = vpack.c.b16 %v1343, %v1342
      %v1806 = vpack.c.b16 %v1345, %v1344
      %v1807 = vpack.c.b16 %v1347, %v1346
      %v1808 = vpack.c.b16 %v1349, %v1348
      %v1809 = vpack.c.b16 %v1351, %v1350
      %v1810 = vpack.c.b16 %v1353, %v1352
      %v1811 = vpack.c.b16 %v1355, %v1354
      %v1812 = vpack.c.b16 %v1357, %v1356
      %v1813 = vpack.c.b16 %v1359, %v1358
      %v1814 = vpack.c.b16 %v1361, %v1360
      %v1815 = vpack.c.b16 %v1363, %v1362
      %v1816 = vpack.c.b16 %v1365, %v1364
      %v1817 = vpack.c.b16 %v1367, %v1366
      %v1818 = vpack.c.b16 %v1369, %v1368
      %v1819 = vpack.c.b16 %v1371, %v1370
      %v1820 = vpack.c.b16 %v1373, %v1372
      %v1821 = vpack.c.b16 %v1375, %v1374
      %v1822 = vpack.c.b16 %v1377, %v1376
      %v1823 = vpack.c.b16 %v1379, %v1378
      %v1824 = vpack.c.b16 %v1381, %v1380
      %v1825 = vpack.c.b16 %v1383, %v1382
      %v1826 = vpack.c.b16 %v1385, %v1384
      %v1827 = vpack.c.b16 %v1387, %v1386
      %v1828 = vpack.c.b16 %v1389, %v1388
      %v1829 = vpack.c.b16 %v1391, %v1390
      %v1830 = vpack.c.b16 %v1393, %v1392
      %v1831 = vpack.c.b16 %v1395, %v1394
      %v1832 = vpack.c.b16 %v1397, %v1396
      %v1833 = vpack.c.b16 %v1399, %v1398
      %v1834 = vpack.c.b16 %v1401, %v1400
      %v1835 = vpack.c.b16 %v1403, %v1402
      %v1836 = vpack.c.b16 %v1405, %v1404
      %v1837 = vpack.c.b16 %v1407, %v1406
      %v1838 = vpack.c.b16 %v1409, %v1408
      %v1839 = vpack.c.b16 %v1411, %v1410
      %v1840 = vpack.c.b16 %v1413, %v1412
      %v1841 = vpack.c.b16 %v1415, %v1414
      %v1842 = vpack.c.b16 %v1417, %v1416
      %v1843 = vpack.c.b16 %v1419, %v1418
      %v1844 = vpack.c.b16 %v1421, %v1420
      %v1845 = vpack.c.b16 %v1423, %v1422
      %v1846 = vpack.c.b16 %v1425, %v1424
      %v1847 = vpack.c.b16 %v1427, %v1426
      %v1848 = vpack.c.b16 %v1429, %v1428
      %v1849 = vpack.c.b16 %v1431, %v1430
      %v1850 = vpack.c.b16 %v1433, %v1432
      %v1851 = vpack.c.b16 %v1435, %v1434
      %v1852 = vpack.c.b16 %v1437, %v1436
      %v1853 = vpack.c.b16 %v1439, %v1438
      %v1854 = vpack.c.b16 %v1441, %v1440
      %v1855 = vpack.c.b16 %v1443, %v1442
      %v1856 = vpack.c.b16 %v1445, %v1444
      %v1857 = vpack.c.b16 %v1447, %v1446
      %v1858 = vpack.c.b16 %v1449, %v1448
      %v1859 = vpack.c.b16 %v1451, %v1450
      %v1860 = vpack.c.b16 %v1453, %v1452
      %v1861 = vpack.c.b16 %v1455, %v1454
      %v1862 = vpack.c.b16 %v1457, %v1456
      %v1863 = vpack.c.b16 %v1459, %v1458
      %v1864 = vpack.c.b16 %v1461, %v1460
      %v1865 = vpack.c.b16 %v1463, %v1462
      %v1866 = vpack.c.b16 %v1465, %v1464
      %v1867 = vpack.c.b16 %v1467, %v1466
      %v1868 = vpack.c.b16 %v1469, %v1468
      %v1869 = vpack.c.b16 %v1471, %v1470
      %v1870 = vpack.c.b16 %v1473, %v1472
      %v1871 = vpack.c.b16 %v1475, %v1474
      %v1872 = vpack.c.b16 %v1477, %v1476
      %v1873 = vpack.c.b16 %v1479, %v1478
      %v1874 = vpack.c.b16 %v1481, %v1480
      %v1875 = vpack.c.b16 %v1483, %v1482
      %v1876 = vpack.c.b16 %v1485, %v1484
      %v1877 = vpack.c.b16 %v1487, %v1486
      %v1878 = vpack.c.b16 %v1489, %v1488
      %v1879 = vpack.c.b16 %v1491, %v1490
      %v1880 = vpack.c.b16 %v1493, %v1492
      %v1881 = vpack.c.b16 %v1495, %v1494
      %v1882 = vpack.c.b16 %v1497, %v1496
      %v1883 = vpack.c.b16 %v1499, %v1498
      %v1884 = vpack.c.b16 %v1501, %v1500
      %v1885 = vpack.c.b16 %v1503, %v1502
      %v1886 = vpack.c.b16 %v1505, %v1504
      %v1887 = vpack.c.b16 %v1507, %v1506
      %v1888 = vpack.c.b16 %v1509, %v1508
      %v1889 = vpack.c.b16 %v1511, %v1510
      %v1890 = vpack.c.b16 %v1513, %v1512
      %v1891 = vpack.c.b16 %v1515, %v1514
      %v1892 = vpack.c.b16 %v1517, %v1516
      %v1893 = vpack.c.b16 %v1519, %v1518
      %v1894 = vpack.c.b16 %v1521, %v1520
      %v1895 = vpack.c.b16 %v1523, %v1522
      %v1896 = vpack.c.b16 %v1525, %v1524
      %v1897 = vpack.c.b16 %v1527, %v1526
      %v1898 = vpack.c.b16 %v1529, %v1528
      %v1899 = vpack.c.b16 %v1531, %v1530
      %v1900 = vpack.c.b16 %v1533, %v1532
      %v1901 = vpack.c.b16 %v1535, %v1534
      %v1902 = vpack.c.b16 %v1537, %v1536
      %v1903 = vpack.c.b16 %v1539, %v1538
      %v1904 = vpack.c.b16 %v1541, %v1540
      %v1905 = vpack.c.b16 %v1543, %v1542
      %v1906 = vpack.c.b16 %v1545, %v1544
      %v1907 = vpack.c.b16 %v1547, %v1546
      %v1908 = vpack.c.b16 %v1549, %v1548
      %v1909 = vpack.c.b16 %v1551, %v1550
      %v1910 = vpack.c.b16 %v1553, %v1552
      %v1911 = vpack.c.b16 %v1555, %v1554
      %v1912 = vpack.c.b16 %v1557, %v1556
      %v1913 = vpack.c.b16 %v1559, %v1558
      %v1914 = vpack.c.b16 %v1561, %v1560
      %v1915 = vpack.c.b16 %v1563, %v1562
      %v1916 = vpack.c.b16 %v1565, %v1564
      %v1917 = vpack.c.b16 %v1567, %v1566
      %v1918 = vpack.c.b16 %v1569, %v1568
      %v1919 = vpack.c.b16 %v1571, %v1570
      %v1920 = vpack.c.b16 %v1573, %v1572
      %v1921 = vpack.c.b16 %v1575, %v1574
      %v1922 = vpack.c.b16 %v1577, %v1576
      %v1923 = vpack.c.b16 %v1579, %v1578
      %v1924 = vpack.c.b16 %v1581, %v1580
      %v1925 = vpack.c.b16 %v1583, %v1582
      %v1926 = vpack.c.b16 %v1585, %v1584
      %v1927 = vpack.c.b16 %v1587, %v1586
      %v1928 = vpack.c.b16 %v1589, %v1588
      %v1929 = vpack.c.b16 %v1591, %v1590
      %v1930 = vpack.c.b16 %v1593, %v1592
      %v1931 = vpack.c.b16 %v1595, %v1594
      %v1932 = vpack.c.b16 %v1597, %v1596
      %v1933 = vpack.c.b16 %v1599, %v1598
      %v1934 = vpack.c.b16 %v1601, %v1600
      %v1935 = vpack.c.b16 %v1603, %v1602
      %v1936 = vpack.c.b16 %v1605, %v1604
      %v1937 = vpack.c.b16 %v1607, %v1606
      %v1938 = vpack.c.b16 %v1609, %v1608
      %v1939 = vpack.c.b16 %v1611, %v1610
      %v1940 = vpack.c.b16 %v1613, %v1612
      %v1941 = vpack.c.b16 %v1615, %v1614
      %v1942 = vpack.c.b16 %v1617, %v1616
      %v1943 = vpack.c.b16 %v1619, %v1618
      %v1944 = vpack.c.b16 %v1621, %v1620
      %v1945 = vpack.c.b16 %v1623, %v1622
      %v1946 = vpack.c.b16 %v1625, %v1624
      %v1947 = vpack.c.b16 %v1627, %v1626
      %v1948 = vpack.c.b16 %v1629, %v1628
      %v1949 = vpack.c.b16 %v1631, %v1630
      %v1950 = vpack.c.b16 %v1633, %v1632
      %v1951 = vpack.c.b16 %v1635, %v1634
      %v1952 = vpack.c.b16 %v1637, %v1636
      %v1953 = vpack.c.b16 %v1639, %v1638
      %v1954 = vpack.c.b16 %v1641, %v1640
      %v1955 = vpack.c.b16 %v1643, %v1642
      %v1956 = vpack.c.b16 %v1645, %v1644
      %v1957 = vpack.c.b16 %v1647, %v1646
      %v1958 = vpack.c.b16 %v1649, %v1648
      %v1959 = vpack.c.b16 %v1651, %v1650
      %v1960 = vpack.c.b16 %v1653, %v1652
      %v1961 = vpack.c.b16 %v1655, %v1654
      %v1962 = vpack.c.b16 %v1657, %v1656
      %v1963 = vpack.c.b16 %v1659, %v1658
      %v1964 = vpack.c.b16 %v1661, %v1660
      %v1965 = vpack.c.b16 %v1663, %v1662
      %v1966 = vpack.c.b16 %v1665, %v1664
      %v1967 = vpack.c.b16 %v1667, %v1666
      %v1968 = vpack.c.b16 %v1669, %v1668
      %v1969 = vpack.c.b16 %v1671, %v1670
      %v1970 = vpack.c.b16 %v1673, %v1672
      %v1971 = vpack.c.b16 %v1675, %v1674
      %v1972 = vpack.c.b16 %v1677, %v1676
      %v1973 = vpack.c.b16 %v1679, %v1678
      %v1974 = vpack.c.b16 %v1681, %v1680
      %v1975 = vpack.c.b16 %v1683, %v1682
      %v1976 = vpack.c.b16 %v1685, %v1684
      %v1977 = vpack.c.b16 %v1687, %v1686
      %v1978 = vpack.c.b16 %v1689, %v1688
      %v1979 = vpack.c.b16 %v1691, %v1690
      %v1980 = vpack.c.b16 %v1693, %v1692
      %v1981 = vpack.c.b16 %v1695, %v1694
      %v1982 = vpack.c.b16 %v1697, %v1696
      %v1983 = vpack.c.b16 %v1699, %v1698
      %v1984 = vpack.c.b16 %v1701, %v1700
      %v1985 = vpack.c.b16 %v1703, %v1702
      %v1986 = vpack.c.b16 %v1705, %v1704
      %v1987 = vpack.c.b16 %v1707, %v1706
      %v1988 = vpack.c.b16 %v1709, %v1708
      %v1989 = vpack.c.b16 %v1711, %v1710
      %v1990 = vpack.c.b16 %v1713, %v1712
      %v1991 = vpack.c.b16 %v1715, %v1714
      %v1992 = vpack.c.b16 %v1717, %v1716
      %v1993 = vpack.c.b16 %v1719, %v1718
      %v1994 = vpack.c.b16 %v1721, %v1720
      %v1995 = vpack.c.b16 %v1723, %v1722
      %v1996 = vpack.c.b16 %v1725, %v1724
      %v1997 = vpack.c.b16 %v1727, %v1726
      %v1998 = vpack.c.b16 %v1729, %v1728
      %v1999 = vpack.c.b16 %v1731, %v1730
      %v2000 = vpack.c.b16 %v1733, %v1732
      %v2001 = vpack.c.b16 %v1735, %v1734
      %v2002 = vpack.c.b16 %v1737, %v1736
      %v2003 = vpack.c.b16 %v1739, %v1738
      %v2004 = vpack.c.b16 %v1741, %v1740
      %v2005 = vpack.c.b16 %v1743, %v1742
      %v2006 = vpack.c.b16 %v1745, %v1744
      %v2007 = vpack.c.b16 %v1747, %v1746
      %v2008 = vpack.c.b16 %v1749, %v1748
      %v2009 = vpack.c.b16 %v1751, %v1750
      %v2010 = vpack.c.b16 %v1753, %v1752
      %v2011 = vpack.c.b16 %v1755, %v1754
      %v2016 = vunpack.c.l.b16 %v716
      %v2017 = vunpack.c.h.b16 %v716
      %v2018 = vunpack.c.l.b16 %v717
      %v2019 = vunpack.c.h.b16 %v717
      %v2020 = vunpack.c.l.b16 %v718
      %v2021 = vunpack.c.h.b16 %v718
      %v2022 = vunpack.c.l.b16 %v719
      %v2023 = vunpack.c.h.b16 %v719
      %v2024 = vpack.c.b16 %v2018, %v2016
      %v2025 = vpack.c.b16 %v2019, %v2017
      %v2026 = vpack.c.b16 %v2022, %v2020
      %v2027 = vpack.c.b16 %v2023, %v2021
      %vm2032 = vcmask 261120
      %v2034 = vsel %vm2032, %v1756, 0
      %v2037 = vsel %vm2032, %v1757, 0
      %v2040 = vsel %vm2032, %v1758, 0
      %v2043 = vsel %vm2032, %v1759, 0
      %v2046 = vsel %vm2032, %v1760, 0
      %v2049 = vsel %vm2032, %v1761, 0
      %v2052 = vsel %vm2032, %v1762, 0
      %v2055 = vsel %vm2032, %v1763, 0
      %v2058 = vsel %vm2032, %v1764, 0
      %v2061 = vsel %vm2032, %v1765, 0
      %v2064 = vsel %vm2032, %v1766, 0
      %v2067 = vsel %vm2032, %v1767, 0
      %v2070 = vsel %vm2032, %v1768, 0
      %v2073 = vsel %vm2032, %v1769, 0
      %v2076 = vsel %vm2032, %v1770, 0
      %v2079 = vsel %vm2032, %v1771, 0
      %v2082 = vsel %vm2032, %v1772, 0
      %v2085 = vsel %vm2032, %v1773, 0
      %v2088 = vsel %vm2032, %v1774, 0
      %v2091 = vsel %vm2032, %v1775, 0
      %v2094 = vsel %vm2032, %v1776, 0
      %v2097 = vsel %vm2032, %v1777, 0
      %v2100 = vsel %vm2032, %v1778, 0
      %v2103 = vsel %vm2032, %v1779, 0
      %v2106 = vsel %vm2032, %v1780, 0
      %v2109 = vsel %vm2032, %v1781, 0
      %v2112 = vsel %vm2032, %v1782, 0
      %v2115 = vsel %vm2032, %v1783, 0
      %v2118 = vsel %vm2032, %v1784, 0
      %v2121 = vsel %vm2032, %v1785, 0
      %v2124 = vsel %vm2032, %v1786, 0
      %v2127 = vsel %vm2032, %v1787, 0
      %v2130 = vsel %vm2032, %v1788, 0
      %v2133 = vsel %vm2032, %v1789, 0
      %v2136 = vsel %vm2032, %v1790, 0
      %v2139 = vsel %vm2032, %v1791, 0
      %v2142 = vsel %vm2032, %v1792, 0
      %v2145 = vsel %vm2032, %v1793, 0
      %v2148 = vsel %vm2032, %v1794, 0
      %v2151 = vsel %vm2032, %v1795, 0
      %v2154 = vsel %vm2032, %v1796, 0
      %v2157 = vsel %vm2032, %v1797, 0
      %v2160 = vsel %vm2032, %v1798, 0
      %v2163 = vsel %vm2032, %v1799, 0
      %v2166 = vsel %vm2032, %v1800, 0
      %v2169 = vsel %vm2032, %v1801, 0
      %v2172 = vsel %vm2032, %v1802, 0
      %v2175 = vsel %vm2032, %v1803, 0
      %v2178 = vsel %vm2032, %v1804, 0
      %v2181 = vsel %vm2032, %v1805, 0
      %v2184 = vsel %vm2032, %v1806, 0
      %v2187 = vsel %vm2032, %v1807, 0
      %v2190 = vsel %vm2032, %v1808, 0
      %v2193 = vsel %vm2032, %v1809, 0
      %v2196 = vsel %vm2032, %v1810, 0
      %v2199 = vsel %vm2032, %v1811, 0
      %v2202 = vsel %vm2032, %v1812, 0
      %v2205 = vsel %vm2032, %v1813, 0
      %v2208 = vsel %vm2032, %v1814, 0
      %v2211 = vsel %vm2032, %v1815, 0
      %v2214 = vsel %vm2032, %v1816, 0
      %v2217 = vsel %vm2032, %v1817, 0
      %v2220 = vsel %vm2032, %v1818, 0
      %v2223 = vsel %vm2032, %v1819, 0
      %v2226 = vsel %vm2032, %v1820, 0
      %v2229 = vsel %vm2032, %v1821, 0
      %v2232 = vsel %vm2032, %v1822, 0
      %v2235 = vsel %vm2032, %v1823, 0
      %v2238 = vsel %vm2032, %v1824, 0
      %v2241 = vsel %vm2032, %v1825, 0
      %v2244 = vsel %vm2032, %v1826, 0
      %v2247 = vsel %vm2032, %v1827, 0
      %v2250 = vsel %vm2032, %v1828, 0
      %v2253 = vsel %vm2032, %v1829, 0
      %v2256 = vsel %vm2032, %v1830, 0
      %v2259 = vsel %vm2032, %v1831, 0
      %v2262 = vsel %vm2032, %v1832, 0
      %v2265 = vsel %vm2032, %v1833, 0
      %v2268 = vsel %vm2032, %v1834, 0
      %v2271 = vsel %vm2032, %v1835, 0
      %v2274 = vsel %vm2032, %v1836, 0
      %v2277 = vsel %vm2032, %v1837, 0
      %v2280 = vsel %vm2032, %v1838, 0
      %v2283 = vsel %vm2032, %v1839, 0
      %v2286 = vsel %vm2032, %v1840, 0
      %v2289 = vsel %vm2032, %v1841, 0
      %v2292 = vsel %vm2032, %v1842, 0
      %v2295 = vsel %vm2032, %v1843, 0
      %v2298 = vsel %vm2032, %v1844, 0
      %v2301 = vsel %vm2032, %v1845, 0
      %v2304 = vsel %vm2032, %v1846, 0
      %v2307 = vsel %vm2032, %v1847, 0
      %v2310 = vsel %vm2032, %v1848, 0
      %v2313 = vsel %vm2032, %v1849, 0
      %v2316 = vsel %vm2032, %v1850, 0
      %v2319 = vsel %vm2032, %v1851, 0
      %v2322 = vsel %vm2032, %v1852, 0
      %v2325 = vsel %vm2032, %v1853, 0
      %v2328 = vsel %vm2032, %v1854, 0
      %v2331 = vsel %vm2032, %v1855, 0
      %v2334 = vsel %vm2032, %v1856, 0
      %v2337 = vsel %vm2032, %v1857, 0
      %v2340 = vsel %vm2032, %v1858, 0
      %v2343 = vsel %vm2032, %v1859, 0
      %v2346 = vsel %vm2032, %v1860, 0
      %v2349 = vsel %vm2032, %v1861, 0
      %v2352 = vsel %vm2032, %v1862, 0
      %v2355 = vsel %vm2032, %v1863, 0
      %v2358 = vsel %vm2032, %v1864, 0
      %v2361 = vsel %vm2032, %v1865, 0
      %v2364 = vsel %vm2032, %v1866, 0
      %v2367 = vsel %vm2032, %v1867, 0
      %v2370 = vsel %vm2032, %v1868, 0
      %v2373 = vsel %vm2032, %v1869, 0
      %v2376 = vsel %vm2032, %v1870, 0
      %v2379 = vsel %vm2032, %v1871, 0
      %v2382 = vsel %vm2032, %v1872, 0
      %v2385 = vsel %vm2032, %v1873, 0
      %v2388 = vsel %vm2032, %v1874, 0
      %v2391 = vsel %vm2032, %v1875, 0
      %v2394 = vsel %vm2032, %v1876, 0
      %v2397 = vsel %vm2032, %v1877, 0
      %v2400 = vsel %vm2032, %v1878, 0
      %v2403 = vsel %vm2032, %v1879, 0
      %v2406 = vsel %vm2032, %v1880, 0
      %v2409 = vsel %vm2032, %v1881, 0
      %v2412 = vsel %vm2032, %v1882, 0
      %v2415 = vsel %vm2032, %v1883, 0
      %v2418 = vsel %vm2032, %v1884, 0
      %v2421 = vsel %vm2032, %v1885, 0
      %v2424 = vsel %vm2032, %v1886, 0
      %v2427 = vsel %vm2032, %v1887, 0
      %v2430 = vsel %vm2032, %v1888, 0
      %v2433 = vsel %vm2032, %v1889, 0
      %v2436 = vsel %vm2032, %v1890, 0
      %v2439 = vsel %vm2032, %v1891, 0
      %v2442 = vsel %vm2032, %v1892, 0
      %v2445 = vsel %vm2032, %v1893, 0
      %v2448 = vsel %vm2032, %v1894, 0
      %v2451 = vsel %vm2032, %v1895, 0
      %v2454 = vsel %vm2032, %v1896, 0
      %v2457 = vsel %vm2032, %v1897, 0
      %v2460 = vsel %vm2032, %v1898, 0
      %v2463 = vsel %vm2032, %v1899, 0
      %v2466 = vsel %vm2032, %v1900, 0
      %v2469 = vsel %vm2032, %v1901, 0
      %v2472 = vsel %vm2032, %v1902, 0
      %v2475 = vsel %vm2032, %v1903, 0
      %v2478 = vsel %vm2032, %v1904, 0
      %v2481 = vsel %vm2032, %v1905, 0
      %v2484 = vsel %vm2032, %v1906, 0
      %v2487 = vsel %vm2032, %v1907, 0
      %v2490 = vsel %vm2032, %v1908, 0
      %v2493 = vsel %vm2032, %v1909, 0
      %v2496 = vsel %vm2032, %v1910, 0
      %v2499 = vsel %vm2032, %v1911, 0
      %v2502 = vsel %vm2032, %v1912, 0
      %v2505 = vsel %vm2032, %v1913, 0
      %v2508 = vsel %vm2032, %v1914, 0
      %v2511 = vsel %vm2032, %v1915, 0
      %v2514 = vsel %vm2032, %v1916, 0
      %v2517 = vsel %vm2032, %v1917, 0
      %v2520 = vsel %vm2032, %v1918, 0
      %v2523 = vsel %vm2032, %v1919, 0
      %v2526 = vsel %vm2032, %v1920, 0
      %v2529 = vsel %vm2032, %v1921, 0
      %v2532 = vsel %vm2032, %v1922, 0
      %v2535 = vsel %vm2032, %v1923, 0
      %v2538 = vsel %vm2032, %v1924, 0
      %v2541 = vsel %vm2032, %v1925, 0
      %v2544 = vsel %vm2032, %v1926, 0
      %v2547 = vsel %vm2032, %v1927, 0
      %v2550 = vsel %vm2032, %v1928, 0
      %v2553 = vsel %vm2032, %v1929, 0
      %v2556 = vsel %vm2032, %v1930, 0
      %v2559 = vsel %vm2032, %v1931, 0
      %v2562 = vsel %vm2032, %v1932, 0
      %v2565 = vsel %vm2032, %v1933, 0
      %v2568 = vsel %vm2032, %v1934, 0
      %v2571 = vsel %vm2032, %v1935, 0
      %v2574 = vsel %vm2032, %v1936, 0
      %v2577 = vsel %vm2032, %v1937, 0
      %v2580 = vsel %vm2032, %v1938, 0
      %v2583 = vsel %vm2032, %v1939, 0
      %v2586 = vsel %vm2032, %v1940, 0
      %v2589 = vsel %vm2032, %v1941, 0
      %v2592 = vsel %vm2032, %v1942, 0
      %v2595 = vsel %vm2032, %v1943, 0
      %v2598 = vsel %vm2032, %v1944, 0
      %v2601 = vsel %vm2032, %v1945, 0
      %v2604 = vsel %vm2032, %v1946, 0
      %v2607 = vsel %vm2032, %v1947, 0
      %v2610 = vsel %vm2032, %v1948, 0
      %v2613 = vsel %vm2032, %v1949, 0
      %v2616 = vsel %vm2032, %v1950, 0
      %v2619 = vsel %vm2032, %v1951, 0
      %v2622 = vsel %vm2032, %v1952, 0
      %v2625 = vsel %vm2032, %v1953, 0
      %v2628 = vsel %vm2032, %v1954, 0
      %v2631 = vsel %vm2032, %v1955, 0
      %v2634 = vsel %vm2032, %v1956, 0
      %v2637 = vsel %vm2032, %v1957, 0
      %v2640 = vsel %vm2032, %v1958, 0
      %v2643 = vsel %vm2032, %v1959, 0
      %v2646 = vsel %vm2032, %v1960, 0
      %v2649 = vsel %vm2032, %v1961, 0
      %v2652 = vsel %vm2032, %v1962, 0
      %v2655 = vsel %vm2032, %v1963, 0
      %v2658 = vsel %vm2032, %v1964, 0
      %v2661 = vsel %vm2032, %v1965, 0
      %v2664 = vsel %vm2032, %v1966, 0
      %v2667 = vsel %vm2032, %v1967, 0
      %v2670 = vsel %vm2032, %v1968, 0
      %v2673 = vsel %vm2032, %v1969, 0
      %v2676 = vsel %vm2032, %v1970, 0
      %v2679 = vsel %vm2032, %v1971, 0
      %v2682 = vsel %vm2032, %v1972, 0
      %v2685 = vsel %vm2032, %v1973, 0
      %v2688 = vsel %vm2032, %v1974, 0
      %v2691 = vsel %vm2032, %v1975, 0
      %v2694 = vsel %vm2032, %v1976, 0
      %v2697 = vsel %vm2032, %v1977, 0
      %v2700 = vsel %vm2032, %v1978, 0
      %v2703 = vsel %vm2032, %v1979, 0
      %v2706 = vsel %vm2032, %v1980, 0
      %v2709 = vsel %vm2032, %v1981, 0
      %v2712 = vsel %vm2032, %v1982, 0
      %v2715 = vsel %vm2032, %v1983, 0
      %v2718 = vsel %vm2032, %v1984, 0
      %v2721 = vsel %vm2032, %v1985, 0
      %v2724 = vsel %vm2032, %v1986, 0
      %v2727 = vsel %vm2032, %v1987, 0
      %v2730 = vsel %vm2032, %v1988, 0
      %v2733 = vsel %vm2032, %v1989, 0
      %v2736 = vsel %vm2032, %v1990, 0
      %v2739 = vsel %vm2032, %v1991, 0
      %v2742 = vsel %vm2032, %v1992, 0
      %v2745 = vsel %vm2032, %v1993, 0
      %v2748 = vsel %vm2032, %v1994, 0
      %v2751 = vsel %vm2032, %v1995, 0
      %v2754 = vsel %vm2032, %v1996, 0
      %v2757 = vsel %vm2032, %v1997, 0
      %v2760 = vsel %vm2032, %v1998, 0
      %v2763 = vsel %vm2032, %v1999, 0
      %v2766 = vsel %vm2032, %v2000, 0
      %v2769 = vsel %vm2032, %v2001, 0
      %v2772 = vsel %vm2032, %v2002, 0
      %v2775 = vsel %vm2032, %v2003, 0
      %v2778 = vsel %vm2032, %v2004, 0
      %v2781 = vsel %vm2032, %v2005, 0
      %v2784 = vsel %vm2032, %v2006, 0
      %v2787 = vsel %vm2032, %v2007, 0
      %v2790 = vsel %vm2032, %v2008, 0
      %v2793 = vsel %vm2032, %v2009, 0
      %v2796 = vsel %vm2032, %v2010, 0
      %v2799 = vsel %vm2032, %v2011, 0
      %2801 = vmatprep.subr.bf16.mxu0 0
      %2802 = vmatpush1.bf16.msra.mxu0 0
      %2803 = vmatprep.subr.bf16.mxu0 0
      %2804 = vmatpush1.bf16.msra.mxu0 0
      %2805 = vmatprep.subr.bf16.mxu0 0
      %2806 = vmatpush1.bf16.msra.mxu0 0
      %2807 = vmatprep.subr.bf16.mxu0 0
      %2808 = vmatpush1.bf16.msra.mxu0 0
      %2809 = vmatprep.subr.bf16.mxu0 0
      %2810 = vmatpush1.bf16.msra.mxu0 0
      %2811 = vmatprep.subr.bf16.mxu0 0
      %2812 = vmatpush1.bf16.msra.mxu0 0
      %2813 = vmatprep.subr.bf16.mxu0 %v2027
      %2814 = vmatpush1.bf16.msra.mxu0 %v2026
      %2815 = vmatprep.subr.bf16.mxu0 %v2025
      %2816 = vmatpush1.bf16.msra.mxu0 %v2024
      %2817 = vmatprep.subr.bf16.mxu0 0
      %2818 = vmatpush2.bf16.msra.mxu0 0
      %2819 = vmatprep.subr.bf16.mxu0 0
      %2820 = vmatpush2.bf16.msra.mxu0 0
      %2821 = vmatprep.subr.bf16.mxu0 0
      %2822 = vmatpush2.bf16.msra.mxu0 0
      %2823 = vmatprep.subr.bf16.mxu0 0
      %2824 = vmatpush2.bf16.msra.mxu0 0
      %2825 = vmatprep.subr.bf16.mxu0 0
      %2826 = vmatpush2.bf16.msra.mxu0 0
      %2827 = vmatprep.subr.bf16.mxu0 0
      %2828 = vmatpush2.bf16.msra.mxu0 0
      %2829 = vmatprep.subr.bf16.mxu0 0
      %2830 = vmatpush2.bf16.msra.mxu0 0
      %2831 = vmatprep.subr.bf16.mxu0 0
      %2832 = vmatpush2.bf16.msra.mxu0 0
      %2833 = vmatprep.mubr.bf16.mxu0 0
      %2834 = vmatmul.mubr.bf16.gmra.mxu0 %v2034
      %v2835 = vpop.f32.mrf.mxu0
      %v2836 = vadd.f32 %v725, %v2835
      %v2837 = vpop.f32.mrf.mxu0
      %v2838 = vadd.f32 %v729, %v2837
      %v2839 = vpop.f32.mrf.mxu0
      %v2840 = vadd.f32 %v725, %v2839
      %v2841 = vpop.f32.mrf.mxu0
      %v2842 = vadd.f32 %v729, %v2841
      %2843 = vmatprep.mubr.bf16.mxu0 0
      %2844 = vmatmul.mubr.bf16.gmra.mxu0 %v2037
      %v2845 = vpop.f32.mrf.mxu0
      %v2846 = vadd.f32 %v725, %v2845
      %v2847 = vpop.f32.mrf.mxu0
      %v2848 = vadd.f32 %v729, %v2847
      %v2849 = vpop.f32.mrf.mxu0
      %v2850 = vadd.f32 %v725, %v2849
      %v2851 = vpop.f32.mrf.mxu0
      %v2852 = vadd.f32 %v729, %v2851
      %2853 = vmatprep.mubr.bf16.mxu0 0
      %2854 = vmatmul.mubr.bf16.gmra.mxu0 %v2040
      %v2855 = vpop.f32.mrf.mxu0
      %v2856 = vadd.f32 %v725, %v2855
      %v2857 = vpop.f32.mrf.mxu0
      %v2858 = vadd.f32 %v729, %v2857
      %v2859 = vpop.f32.mrf.mxu0
      %v2860 = vadd.f32 %v725, %v2859
      %v2861 = vpop.f32.mrf.mxu0
      %v2862 = vadd.f32 %v729, %v2861
      %2863 = vmatprep.mubr.bf16.mxu0 0
      %2864 = vmatmul.mubr.bf16.gmra.mxu0 %v2043
      %v2865 = vpop.f32.mrf.mxu0
      %v2866 = vadd.f32 %v725, %v2865
      %v2867 = vpop.f32.mrf.mxu0
      %v2868 = vadd.f32 %v729, %v2867
      %v2869 = vpop.f32.mrf.mxu0
      %v2870 = vadd.f32 %v725, %v2869
      %v2871 = vpop.f32.mrf.mxu0
      %v2872 = vadd.f32 %v729, %v2871
      %2873 = vmatprep.mubr.bf16.mxu0 0
      %2874 = vmatmul.mubr.bf16.gmra.mxu0 %v2046
      %v2875 = vpop.f32.mrf.mxu0
      %v2876 = vadd.f32 %v725, %v2875
      %v2877 = vpop.f32.mrf.mxu0
      %v2878 = vadd.f32 %v729, %v2877
      %v2879 = vpop.f32.mrf.mxu0
      %v2880 = vadd.f32 %v725, %v2879
      %v2881 = vpop.f32.mrf.mxu0
      %v2882 = vadd.f32 %v729, %v2881
      %2883 = vmatprep.mubr.bf16.mxu0 0
      %2884 = vmatmul.mubr.bf16.gmra.mxu0 %v2049
      %v2885 = vpop.f32.mrf.mxu0
      %v2886 = vadd.f32 %v725, %v2885
      %v2887 = vpop.f32.mrf.mxu0
      %v2888 = vadd.f32 %v729, %v2887
      %v2889 = vpop.f32.mrf.mxu0
      %v2890 = vadd.f32 %v725, %v2889
      %v2891 = vpop.f32.mrf.mxu0
      %v2892 = vadd.f32 %v729, %v2891
      %2893 = vmatprep.mubr.bf16.mxu0 0
      %2894 = vmatmul.mubr.bf16.gmra.mxu0 %v2052
      %v2895 = vpop.f32.mrf.mxu0
      %v2896 = vadd.f32 %v725, %v2895
      %v2897 = vpop.f32.mrf.mxu0
      %v2898 = vadd.f32 %v729, %v2897
      %v2899 = vpop.f32.mrf.mxu0
      %v2900 = vadd.f32 %v725, %v2899
      %v2901 = vpop.f32.mrf.mxu0
      %v2902 = vadd.f32 %v729, %v2901
      %2903 = vmatprep.mubr.bf16.mxu0 0
      %2904 = vmatmul.mubr.bf16.gmra.mxu0 %v2055
      %v2905 = vpop.f32.mrf.mxu0
      %v2906 = vadd.f32 %v725, %v2905
      %v2907 = vpop.f32.mrf.mxu0
      %v2908 = vadd.f32 %v729, %v2907
      %v2909 = vpop.f32.mrf.mxu0
      %v2910 = vadd.f32 %v725, %v2909
      %v2911 = vpop.f32.mrf.mxu0
      %v2912 = vadd.f32 %v729, %v2911
      %2913 = vmatprep.mubr.bf16.mxu0 0
      %2914 = vmatmul.mubr.bf16.gmra.mxu0 %v2058
      %v2915 = vpop.f32.mrf.mxu0
      %v2916 = vadd.f32 %v725, %v2915
      %v2917 = vpop.f32.mrf.mxu0
      %v2918 = vadd.f32 %v729, %v2917
      %v2919 = vpop.f32.mrf.mxu0
      %v2920 = vadd.f32 %v725, %v2919
      %v2921 = vpop.f32.mrf.mxu0
      %v2922 = vadd.f32 %v729, %v2921
      %2923 = vmatprep.mubr.bf16.mxu0 0
      %2924 = vmatmul.mubr.bf16.gmra.mxu0 %v2061
      %v2925 = vpop.f32.mrf.mxu0
      %v2926 = vadd.f32 %v725, %v2925
      %v2927 = vpop.f32.mrf.mxu0
      %v2928 = vadd.f32 %v729, %v2927
      %v2929 = vpop.f32.mrf.mxu0
      %v2930 = vadd.f32 %v725, %v2929
      %v2931 = vpop.f32.mrf.mxu0
      %v2932 = vadd.f32 %v729, %v2931
      %2933 = vmatprep.mubr.bf16.mxu0 0
      %2934 = vmatmul.mubr.bf16.gmra.mxu0 %v2064
      %v2935 = vpop.f32.mrf.mxu0
      %v2936 = vadd.f32 %v725, %v2935
      %v2937 = vpop.f32.mrf.mxu0
      %v2938 = vadd.f32 %v729, %v2937
      %v2939 = vpop.f32.mrf.mxu0
      %v2940 = vadd.f32 %v725, %v2939
      %v2941 = vpop.f32.mrf.mxu0
      %v2942 = vadd.f32 %v729, %v2941
      %2943 = vmatprep.mubr.bf16.mxu0 0
      %2944 = vmatmul.mubr.bf16.gmra.mxu0 %v2067
      %v2945 = vpop.f32.mrf.mxu0
      %v2946 = vadd.f32 %v725, %v2945
      %v2947 = vpop.f32.mrf.mxu0
      %v2948 = vadd.f32 %v729, %v2947
      %v2949 = vpop.f32.mrf.mxu0
      %v2950 = vadd.f32 %v725, %v2949
      %v2951 = vpop.f32.mrf.mxu0
      %v2952 = vadd.f32 %v729, %v2951
      %2953 = vmatprep.mubr.bf16.mxu0 0
      %2954 = vmatmul.mubr.bf16.gmra.mxu0 %v2070
      %v2955 = vpop.f32.mrf.mxu0
      %v2956 = vadd.f32 %v725, %v2955
      %v2957 = vpop.f32.mrf.mxu0
      %v2958 = vadd.f32 %v729, %v2957
      %v2959 = vpop.f32.mrf.mxu0
      %v2960 = vadd.f32 %v725, %v2959
      %v2961 = vpop.f32.mrf.mxu0
      %v2962 = vadd.f32 %v729, %v2961
      %2963 = vmatprep.mubr.bf16.mxu0 0
      %2964 = vmatmul.mubr.bf16.gmra.mxu0 %v2073
      %v2965 = vpop.f32.mrf.mxu0
      %v2966 = vadd.f32 %v725, %v2965
      %v2967 = vpop.f32.mrf.mxu0
      %v2968 = vadd.f32 %v729, %v2967
      %v2969 = vpop.f32.mrf.mxu0
      %v2970 = vadd.f32 %v725, %v2969
      %v2971 = vpop.f32.mrf.mxu0
      %v2972 = vadd.f32 %v729, %v2971
      %2973 = vmatprep.mubr.bf16.mxu0 0
      %2974 = vmatmul.mubr.bf16.gmra.mxu0 %v2076
      %v2975 = vpop.f32.mrf.mxu0
      %v2976 = vadd.f32 %v725, %v2975
      %v2977 = vpop.f32.mrf.mxu0
      %v2978 = vadd.f32 %v729, %v2977
      %v2979 = vpop.f32.mrf.mxu0
      %v2980 = vadd.f32 %v725, %v2979
      %v2981 = vpop.f32.mrf.mxu0
      %v2982 = vadd.f32 %v729, %v2981
      %2983 = vmatprep.mubr.bf16.mxu0 0
      %2984 = vmatmul.mubr.bf16.gmra.mxu0 %v2079
      %v2985 = vpop.f32.mrf.mxu0
      %v2986 = vadd.f32 %v725, %v2985
      %v2987 = vpop.f32.mrf.mxu0
      %v2988 = vadd.f32 %v729, %v2987
      %v2989 = vpop.f32.mrf.mxu0
      %v2990 = vadd.f32 %v725, %v2989
      %v2991 = vpop.f32.mrf.mxu0
      %v2992 = vadd.f32 %v729, %v2991
      %2993 = vmatprep.mubr.bf16.mxu0 0
      %2994 = vmatmul.mubr.bf16.gmra.mxu0 %v2082
      %v2995 = vpop.f32.mrf.mxu0
      %v2996 = vadd.f32 %v725, %v2995
      %v2997 = vpop.f32.mrf.mxu0
      %v2998 = vadd.f32 %v729, %v2997
      %v2999 = vpop.f32.mrf.mxu0
      %v3000 = vadd.f32 %v725, %v2999
      %v3001 = vpop.f32.mrf.mxu0
      %v3002 = vadd.f32 %v729, %v3001
      %3003 = vmatprep.mubr.bf16.mxu0 0
      %3004 = vmatmul.mubr.bf16.gmra.mxu0 %v2085
      %v3005 = vpop.f32.mrf.mxu0
      %v3006 = vadd.f32 %v725, %v3005
      %v3007 = vpop.f32.mrf.mxu0
      %v3008 = vadd.f32 %v729, %v3007
      %v3009 = vpop.f32.mrf.mxu0
      %v3010 = vadd.f32 %v725, %v3009
      %v3011 = vpop.f32.mrf.mxu0
      %v3012 = vadd.f32 %v729, %v3011
      %3013 = vmatprep.mubr.bf16.mxu0 0
      %3014 = vmatmul.mubr.bf16.gmra.mxu0 %v2088
      %v3015 = vpop.f32.mrf.mxu0
      %v3016 = vadd.f32 %v725, %v3015
      %v3017 = vpop.f32.mrf.mxu0
      %v3018 = vadd.f32 %v729, %v3017
      %v3019 = vpop.f32.mrf.mxu0
      %v3020 = vadd.f32 %v725, %v3019
      %v3021 = vpop.f32.mrf.mxu0
      %v3022 = vadd.f32 %v729, %v3021
      %3023 = vmatprep.mubr.bf16.mxu0 0
      %3024 = vmatmul.mubr.bf16.gmra.mxu0 %v2091
      %v3025 = vpop.f32.mrf.mxu0
      %v3026 = vadd.f32 %v725, %v3025
      %v3027 = vpop.f32.mrf.mxu0
      %v3028 = vadd.f32 %v729, %v3027
      %v3029 = vpop.f32.mrf.mxu0
      %v3030 = vadd.f32 %v725, %v3029
      %v3031 = vpop.f32.mrf.mxu0
      %v3032 = vadd.f32 %v729, %v3031
      %3033 = vmatprep.mubr.bf16.mxu0 0
      %3034 = vmatmul.mubr.bf16.gmra.mxu0 %v2094
      %v3035 = vpop.f32.mrf.mxu0
      %v3036 = vadd.f32 %v725, %v3035
      %v3037 = vpop.f32.mrf.mxu0
      %v3038 = vadd.f32 %v729, %v3037
      %v3039 = vpop.f32.mrf.mxu0
      %v3040 = vadd.f32 %v725, %v3039
      %v3041 = vpop.f32.mrf.mxu0
      %v3042 = vadd.f32 %v729, %v3041
      %3043 = vmatprep.mubr.bf16.mxu0 0
      %3044 = vmatmul.mubr.bf16.gmra.mxu0 %v2097
      %v3045 = vpop.f32.mrf.mxu0
      %v3046 = vadd.f32 %v725, %v3045
      %v3047 = vpop.f32.mrf.mxu0
      %v3048 = vadd.f32 %v729, %v3047
      %v3049 = vpop.f32.mrf.mxu0
      %v3050 = vadd.f32 %v725, %v3049
      %v3051 = vpop.f32.mrf.mxu0
      %v3052 = vadd.f32 %v729, %v3051
      %3053 = vmatprep.mubr.bf16.mxu0 0
      %3054 = vmatmul.mubr.bf16.gmra.mxu0 %v2100
      %v3055 = vpop.f32.mrf.mxu0
      %v3056 = vadd.f32 %v725, %v3055
      %v3057 = vpop.f32.mrf.mxu0
      %v3058 = vadd.f32 %v729, %v3057
      %v3059 = vpop.f32.mrf.mxu0
      %v3060 = vadd.f32 %v725, %v3059
      %v3061 = vpop.f32.mrf.mxu0
      %v3062 = vadd.f32 %v729, %v3061
      %3063 = vmatprep.mubr.bf16.mxu0 0
      %3064 = vmatmul.mubr.bf16.gmra.mxu0 %v2103
      %v3065 = vpop.f32.mrf.mxu0
      %v3066 = vadd.f32 %v725, %v3065
      %v3067 = vpop.f32.mrf.mxu0
      %v3068 = vadd.f32 %v729, %v3067
      %v3069 = vpop.f32.mrf.mxu0
      %v3070 = vadd.f32 %v725, %v3069
      %v3071 = vpop.f32.mrf.mxu0
      %v3072 = vadd.f32 %v729, %v3071
      %3073 = vmatprep.mubr.bf16.mxu0 0
      %3074 = vmatmul.mubr.bf16.gmra.mxu0 %v2106
      %v3075 = vpop.f32.mrf.mxu0
      %v3076 = vadd.f32 %v725, %v3075
      %v3077 = vpop.f32.mrf.mxu0
      %v3078 = vadd.f32 %v729, %v3077
      %v3079 = vpop.f32.mrf.mxu0
      %v3080 = vadd.f32 %v725, %v3079
      %v3081 = vpop.f32.mrf.mxu0
      %v3082 = vadd.f32 %v729, %v3081
      %3083 = vmatprep.mubr.bf16.mxu0 0
      %3084 = vmatmul.mubr.bf16.gmra.mxu0 %v2109
      %v3085 = vpop.f32.mrf.mxu0
      %v3086 = vadd.f32 %v725, %v3085
      %v3087 = vpop.f32.mrf.mxu0
      %v3088 = vadd.f32 %v729, %v3087
      %v3089 = vpop.f32.mrf.mxu0
      %v3090 = vadd.f32 %v725, %v3089
      %v3091 = vpop.f32.mrf.mxu0
      %v3092 = vadd.f32 %v729, %v3091
      %3093 = vmatprep.mubr.bf16.mxu0 0
      %3094 = vmatmul.mubr.bf16.gmra.mxu0 %v2112
      %v3095 = vpop.f32.mrf.mxu0
      %v3096 = vadd.f32 %v725, %v3095
      %v3097 = vpop.f32.mrf.mxu0
      %v3098 = vadd.f32 %v729, %v3097
      %v3099 = vpop.f32.mrf.mxu0
      %v3100 = vadd.f32 %v725, %v3099
      %v3101 = vpop.f32.mrf.mxu0
      %v3102 = vadd.f32 %v729, %v3101
      %3103 = vmatprep.mubr.bf16.mxu0 0
      %3104 = vmatmul.mubr.bf16.gmra.mxu0 %v2115
      %v3105 = vpop.f32.mrf.mxu0
      %v3106 = vadd.f32 %v725, %v3105
      %v3107 = vpop.f32.mrf.mxu0
      %v3108 = vadd.f32 %v729, %v3107
      %v3109 = vpop.f32.mrf.mxu0
      %v3110 = vadd.f32 %v725, %v3109
      %v3111 = vpop.f32.mrf.mxu0
      %v3112 = vadd.f32 %v729, %v3111
      %3113 = vmatprep.mubr.bf16.mxu0 0
      %3114 = vmatmul.mubr.bf16.gmra.mxu0 %v2118
      %v3115 = vpop.f32.mrf.mxu0
      %v3116 = vadd.f32 %v725, %v3115
      %v3117 = vpop.f32.mrf.mxu0
      %v3118 = vadd.f32 %v729, %v3117
      %v3119 = vpop.f32.mrf.mxu0
      %v3120 = vadd.f32 %v725, %v3119
      %v3121 = vpop.f32.mrf.mxu0
      %v3122 = vadd.f32 %v729, %v3121
      %3123 = vmatprep.mubr.bf16.mxu0 0
      %3124 = vmatmul.mubr.bf16.gmra.mxu0 %v2121
      %v3125 = vpop.f32.mrf.mxu0
      %v3126 = vadd.f32 %v725, %v3125
      %v3127 = vpop.f32.mrf.mxu0
      %v3128 = vadd.f32 %v729, %v3127
      %v3129 = vpop.f32.mrf.mxu0
      %v3130 = vadd.f32 %v725, %v3129
      %v3131 = vpop.f32.mrf.mxu0
      %v3132 = vadd.f32 %v729, %v3131
      %3133 = vmatprep.mubr.bf16.mxu0 0
      %3134 = vmatmul.mubr.bf16.gmra.mxu0 %v2124
      %v3135 = vpop.f32.mrf.mxu0
      %v3136 = vadd.f32 %v725, %v3135
      %v3137 = vpop.f32.mrf.mxu0
      %v3138 = vadd.f32 %v729, %v3137
      %v3139 = vpop.f32.mrf.mxu0
      %v3140 = vadd.f32 %v725, %v3139
      %v3141 = vpop.f32.mrf.mxu0
      %v3142 = vadd.f32 %v729, %v3141
      %3143 = vmatprep.mubr.bf16.mxu0 0
      %3144 = vmatmul.mubr.bf16.gmra.mxu0 %v2127
      %v3145 = vpop.f32.mrf.mxu0
      %v3146 = vadd.f32 %v725, %v3145
      %v3147 = vpop.f32.mrf.mxu0
      %v3148 = vadd.f32 %v729, %v3147
      %v3149 = vpop.f32.mrf.mxu0
      %v3150 = vadd.f32 %v725, %v3149
      %v3151 = vpop.f32.mrf.mxu0
      %v3152 = vadd.f32 %v729, %v3151
      %3153 = vmatprep.mubr.bf16.mxu0 0
      %3154 = vmatmul.mubr.bf16.gmra.mxu0 %v2130
      %v3155 = vpop.f32.mrf.mxu0
      %v3156 = vadd.f32 %v725, %v3155
      %v3157 = vpop.f32.mrf.mxu0
      %v3158 = vadd.f32 %v729, %v3157
      %v3159 = vpop.f32.mrf.mxu0
      %v3160 = vadd.f32 %v725, %v3159
      %v3161 = vpop.f32.mrf.mxu0
      %v3162 = vadd.f32 %v729, %v3161
      %3163 = vmatprep.mubr.bf16.mxu0 0
      %3164 = vmatmul.mubr.bf16.gmra.mxu0 %v2133
      %v3165 = vpop.f32.mrf.mxu0
      %v3166 = vadd.f32 %v725, %v3165
      %v3167 = vpop.f32.mrf.mxu0
      %v3168 = vadd.f32 %v729, %v3167
      %v3169 = vpop.f32.mrf.mxu0
      %v3170 = vadd.f32 %v725, %v3169
      %v3171 = vpop.f32.mrf.mxu0
      %v3172 = vadd.f32 %v729, %v3171
      %3173 = vmatprep.mubr.bf16.mxu0 0
      %3174 = vmatmul.mubr.bf16.gmra.mxu0 %v2136
      %v3175 = vpop.f32.mrf.mxu0
      %v3176 = vadd.f32 %v725, %v3175
      %v3177 = vpop.f32.mrf.mxu0
      %v3178 = vadd.f32 %v729, %v3177
      %v3179 = vpop.f32.mrf.mxu0
      %v3180 = vadd.f32 %v725, %v3179
      %v3181 = vpop.f32.mrf.mxu0
      %v3182 = vadd.f32 %v729, %v3181
      %3183 = vmatprep.mubr.bf16.mxu0 0
      %3184 = vmatmul.mubr.bf16.gmra.mxu0 %v2139
      %v3185 = vpop.f32.mrf.mxu0
      %v3186 = vadd.f32 %v725, %v3185
      %v3187 = vpop.f32.mrf.mxu0
      %v3188 = vadd.f32 %v729, %v3187
      %v3189 = vpop.f32.mrf.mxu0
      %v3190 = vadd.f32 %v725, %v3189
      %v3191 = vpop.f32.mrf.mxu0
      %v3192 = vadd.f32 %v729, %v3191
      %3193 = vmatprep.mubr.bf16.mxu0 0
      %3194 = vmatmul.mubr.bf16.gmra.mxu0 %v2142
      %v3195 = vpop.f32.mrf.mxu0
      %v3196 = vadd.f32 %v725, %v3195
      %v3197 = vpop.f32.mrf.mxu0
      %v3198 = vadd.f32 %v729, %v3197
      %v3199 = vpop.f32.mrf.mxu0
      %v3200 = vadd.f32 %v725, %v3199
      %v3201 = vpop.f32.mrf.mxu0
      %v3202 = vadd.f32 %v729, %v3201
      %3203 = vmatprep.mubr.bf16.mxu0 0
      %3204 = vmatmul.mubr.bf16.gmra.mxu0 %v2145
      %v3205 = vpop.f32.mrf.mxu0
      %v3206 = vadd.f32 %v725, %v3205
      %v3207 = vpop.f32.mrf.mxu0
      %v3208 = vadd.f32 %v729, %v3207
      %v3209 = vpop.f32.mrf.mxu0
      %v3210 = vadd.f32 %v725, %v3209
      %v3211 = vpop.f32.mrf.mxu0
      %v3212 = vadd.f32 %v729, %v3211
      %3213 = vmatprep.mubr.bf16.mxu0 0
      %3214 = vmatmul.mubr.bf16.gmra.mxu0 %v2148
      %v3215 = vpop.f32.mrf.mxu0
      %v3216 = vadd.f32 %v725, %v3215
      %v3217 = vpop.f32.mrf.mxu0
      %v3218 = vadd.f32 %v729, %v3217
      %v3219 = vpop.f32.mrf.mxu0
      %v3220 = vadd.f32 %v725, %v3219
      %v3221 = vpop.f32.mrf.mxu0
      %v3222 = vadd.f32 %v729, %v3221
      %3223 = vmatprep.mubr.bf16.mxu0 0
      %3224 = vmatmul.mubr.bf16.gmra.mxu0 %v2151
      %v3225 = vpop.f32.mrf.mxu0
      %v3226 = vadd.f32 %v725, %v3225
      %v3227 = vpop.f32.mrf.mxu0
      %v3228 = vadd.f32 %v729, %v3227
      %v3229 = vpop.f32.mrf.mxu0
      %v3230 = vadd.f32 %v725, %v3229
      %v3231 = vpop.f32.mrf.mxu0
      %v3232 = vadd.f32 %v729, %v3231
      %3233 = vmatprep.mubr.bf16.mxu0 0
      %3234 = vmatmul.mubr.bf16.gmra.mxu0 %v2154
      %v3235 = vpop.f32.mrf.mxu0
      %v3236 = vadd.f32 %v725, %v3235
      %v3237 = vpop.f32.mrf.mxu0
      %v3238 = vadd.f32 %v729, %v3237
      %v3239 = vpop.f32.mrf.mxu0
      %v3240 = vadd.f32 %v725, %v3239
      %v3241 = vpop.f32.mrf.mxu0
      %v3242 = vadd.f32 %v729, %v3241
      %3243 = vmatprep.mubr.bf16.mxu0 0
      %3244 = vmatmul.mubr.bf16.gmra.mxu0 %v2157
      %v3245 = vpop.f32.mrf.mxu0
      %v3246 = vadd.f32 %v725, %v3245
      %v3247 = vpop.f32.mrf.mxu0
      %v3248 = vadd.f32 %v729, %v3247
      %v3249 = vpop.f32.mrf.mxu0
      %v3250 = vadd.f32 %v725, %v3249
      %v3251 = vpop.f32.mrf.mxu0
      %v3252 = vadd.f32 %v729, %v3251
      %3253 = vmatprep.mubr.bf16.mxu0 0
      %3254 = vmatmul.mubr.bf16.gmra.mxu0 %v2160
      %v3255 = vpop.f32.mrf.mxu0
      %v3256 = vadd.f32 %v725, %v3255
      %v3257 = vpop.f32.mrf.mxu0
      %v3258 = vadd.f32 %v729, %v3257
      %v3259 = vpop.f32.mrf.mxu0
      %v3260 = vadd.f32 %v725, %v3259
      %v3261 = vpop.f32.mrf.mxu0
      %v3262 = vadd.f32 %v729, %v3261
      %3263 = vmatprep.mubr.bf16.mxu0 0
      %3264 = vmatmul.mubr.bf16.gmra.mxu0 %v2163
      %v3265 = vpop.f32.mrf.mxu0
      %v3266 = vadd.f32 %v725, %v3265
      %v3267 = vpop.f32.mrf.mxu0
      %v3268 = vadd.f32 %v729, %v3267
      %v3269 = vpop.f32.mrf.mxu0
      %v3270 = vadd.f32 %v725, %v3269
      %v3271 = vpop.f32.mrf.mxu0
      %v3272 = vadd.f32 %v729, %v3271
      %3273 = vmatprep.mubr.bf16.mxu0 0
      %3274 = vmatmul.mubr.bf16.gmra.mxu0 %v2166
      %v3275 = vpop.f32.mrf.mxu0
      %v3276 = vadd.f32 %v725, %v3275
      %v3277 = vpop.f32.mrf.mxu0
      %v3278 = vadd.f32 %v729, %v3277
      %v3279 = vpop.f32.mrf.mxu0
      %v3280 = vadd.f32 %v725, %v3279
      %v3281 = vpop.f32.mrf.mxu0
      %v3282 = vadd.f32 %v729, %v3281
      %3283 = vmatprep.mubr.bf16.mxu0 0
      %3284 = vmatmul.mubr.bf16.gmra.mxu0 %v2169
      %v3285 = vpop.f32.mrf.mxu0
      %v3286 = vadd.f32 %v725, %v3285
      %v3287 = vpop.f32.mrf.mxu0
      %v3288 = vadd.f32 %v729, %v3287
      %v3289 = vpop.f32.mrf.mxu0
      %v3290 = vadd.f32 %v725, %v3289
      %v3291 = vpop.f32.mrf.mxu0
      %v3292 = vadd.f32 %v729, %v3291
      %3293 = vmatprep.mubr.bf16.mxu0 0
      %3294 = vmatmul.mubr.bf16.gmra.mxu0 %v2172
      %v3295 = vpop.f32.mrf.mxu0
      %v3296 = vadd.f32 %v725, %v3295
      %v3297 = vpop.f32.mrf.mxu0
      %v3298 = vadd.f32 %v729, %v3297
      %v3299 = vpop.f32.mrf.mxu0
      %v3300 = vadd.f32 %v725, %v3299
      %v3301 = vpop.f32.mrf.mxu0
      %v3302 = vadd.f32 %v729, %v3301
      %3303 = vmatprep.mubr.bf16.mxu0 0
      %3304 = vmatmul.mubr.bf16.gmra.mxu0 %v2175
      %v3305 = vpop.f32.mrf.mxu0
      %v3306 = vadd.f32 %v725, %v3305
      %v3307 = vpop.f32.mrf.mxu0
      %v3308 = vadd.f32 %v729, %v3307
      %v3309 = vpop.f32.mrf.mxu0
      %v3310 = vadd.f32 %v725, %v3309
      %v3311 = vpop.f32.mrf.mxu0
      %v3312 = vadd.f32 %v729, %v3311
      %3313 = vmatprep.mubr.bf16.mxu0 0
      %3314 = vmatmul.mubr.bf16.gmra.mxu0 %v2178
      %v3315 = vpop.f32.mrf.mxu0
      %v3316 = vadd.f32 %v725, %v3315
      %v3317 = vpop.f32.mrf.mxu0
      %v3318 = vadd.f32 %v729, %v3317
      %v3319 = vpop.f32.mrf.mxu0
      %v3320 = vadd.f32 %v725, %v3319
      %v3321 = vpop.f32.mrf.mxu0
      %v3322 = vadd.f32 %v729, %v3321
      %3323 = vmatprep.mubr.bf16.mxu0 0
      %3324 = vmatmul.mubr.bf16.gmra.mxu0 %v2181
      %v3325 = vpop.f32.mrf.mxu0
      %v3326 = vadd.f32 %v725, %v3325
      %v3327 = vpop.f32.mrf.mxu0
      %v3328 = vadd.f32 %v729, %v3327
      %v3329 = vpop.f32.mrf.mxu0
      %v3330 = vadd.f32 %v725, %v3329
      %v3331 = vpop.f32.mrf.mxu0
      %v3332 = vadd.f32 %v729, %v3331
      %3333 = vmatprep.mubr.bf16.mxu0 0
      %3334 = vmatmul.mubr.bf16.gmra.mxu0 %v2184
      %v3335 = vpop.f32.mrf.mxu0
      %v3336 = vadd.f32 %v725, %v3335
      %v3337 = vpop.f32.mrf.mxu0
      %v3338 = vadd.f32 %v729, %v3337
      %v3339 = vpop.f32.mrf.mxu0
      %v3340 = vadd.f32 %v725, %v3339
      %v3341 = vpop.f32.mrf.mxu0
      %v3342 = vadd.f32 %v729, %v3341
      %3343 = vmatprep.mubr.bf16.mxu0 0
      %3344 = vmatmul.mubr.bf16.gmra.mxu0 %v2187
      %v3345 = vpop.f32.mrf.mxu0
      %v3346 = vadd.f32 %v725, %v3345
      %v3347 = vpop.f32.mrf.mxu0
      %v3348 = vadd.f32 %v729, %v3347
      %v3349 = vpop.f32.mrf.mxu0
      %v3350 = vadd.f32 %v725, %v3349
      %v3351 = vpop.f32.mrf.mxu0
      %v3352 = vadd.f32 %v729, %v3351
      %3353 = vmatprep.mubr.bf16.mxu0 0
      %3354 = vmatmul.mubr.bf16.gmra.mxu0 %v2190
      %v3355 = vpop.f32.mrf.mxu0
      %v3356 = vadd.f32 %v725, %v3355
      %v3357 = vpop.f32.mrf.mxu0
      %v3358 = vadd.f32 %v729, %v3357
      %v3359 = vpop.f32.mrf.mxu0
      %v3360 = vadd.f32 %v725, %v3359
      %v3361 = vpop.f32.mrf.mxu0
      %v3362 = vadd.f32 %v729, %v3361
      %3363 = vmatprep.mubr.bf16.mxu0 0
      %3364 = vmatmul.mubr.bf16.gmra.mxu0 %v2193
      %v3365 = vpop.f32.mrf.mxu0
      %v3366 = vadd.f32 %v725, %v3365
      %v3367 = vpop.f32.mrf.mxu0
      %v3368 = vadd.f32 %v729, %v3367
      %v3369 = vpop.f32.mrf.mxu0
      %v3370 = vadd.f32 %v725, %v3369
      %v3371 = vpop.f32.mrf.mxu0
      %v3372 = vadd.f32 %v729, %v3371
      %3373 = vmatprep.mubr.bf16.mxu0 0
      %3374 = vmatmul.mubr.bf16.gmra.mxu0 %v2196
      %v3375 = vpop.f32.mrf.mxu0
      %v3376 = vadd.f32 %v725, %v3375
      %v3377 = vpop.f32.mrf.mxu0
      %v3378 = vadd.f32 %v729, %v3377
      %v3379 = vpop.f32.mrf.mxu0
      %v3380 = vadd.f32 %v725, %v3379
      %v3381 = vpop.f32.mrf.mxu0
      %v3382 = vadd.f32 %v729, %v3381
      %3383 = vmatprep.mubr.bf16.mxu0 0
      %3384 = vmatmul.mubr.bf16.gmra.mxu0 %v2199
      %v3385 = vpop.f32.mrf.mxu0
      %v3386 = vadd.f32 %v725, %v3385
      %v3387 = vpop.f32.mrf.mxu0
      %v3388 = vadd.f32 %v729, %v3387
      %v3389 = vpop.f32.mrf.mxu0
      %v3390 = vadd.f32 %v725, %v3389
      %v3391 = vpop.f32.mrf.mxu0
      %v3392 = vadd.f32 %v729, %v3391
      %3393 = vmatprep.mubr.bf16.mxu0 0
      %3394 = vmatmul.mubr.bf16.gmra.mxu0 %v2202
      %v3395 = vpop.f32.mrf.mxu0
      %v3396 = vadd.f32 %v725, %v3395
      %v3397 = vpop.f32.mrf.mxu0
      %v3398 = vadd.f32 %v729, %v3397
      %v3399 = vpop.f32.mrf.mxu0
      %v3400 = vadd.f32 %v725, %v3399
      %v3401 = vpop.f32.mrf.mxu0
      %v3402 = vadd.f32 %v729, %v3401
      %3403 = vmatprep.mubr.bf16.mxu0 0
      %3404 = vmatmul.mubr.bf16.gmra.mxu0 %v2205
      %v3405 = vpop.f32.mrf.mxu0
      %v3406 = vadd.f32 %v725, %v3405
      %v3407 = vpop.f32.mrf.mxu0
      %v3408 = vadd.f32 %v729, %v3407
      %v3409 = vpop.f32.mrf.mxu0
      %v3410 = vadd.f32 %v725, %v3409
      %v3411 = vpop.f32.mrf.mxu0
      %v3412 = vadd.f32 %v729, %v3411
      %3413 = vmatprep.mubr.bf16.mxu0 0
      %3414 = vmatmul.mubr.bf16.gmra.mxu0 %v2208
      %v3415 = vpop.f32.mrf.mxu0
      %v3416 = vadd.f32 %v725, %v3415
      %v3417 = vpop.f32.mrf.mxu0
      %v3418 = vadd.f32 %v729, %v3417
      %v3419 = vpop.f32.mrf.mxu0
      %v3420 = vadd.f32 %v725, %v3419
      %v3421 = vpop.f32.mrf.mxu0
      %v3422 = vadd.f32 %v729, %v3421
      %3423 = vmatprep.mubr.bf16.mxu0 0
      %3424 = vmatmul.mubr.bf16.gmra.mxu0 %v2211
      %v3425 = vpop.f32.mrf.mxu0
      %v3426 = vadd.f32 %v725, %v3425
      %v3427 = vpop.f32.mrf.mxu0
      %v3428 = vadd.f32 %v729, %v3427
      %v3429 = vpop.f32.mrf.mxu0
      %v3430 = vadd.f32 %v725, %v3429
      %v3431 = vpop.f32.mrf.mxu0
      %v3432 = vadd.f32 %v729, %v3431
      %3433 = vmatprep.mubr.bf16.mxu0 0
      %3434 = vmatmul.mubr.bf16.gmra.mxu0 %v2214
      %v3435 = vpop.f32.mrf.mxu0
      %v3436 = vadd.f32 %v725, %v3435
      %v3437 = vpop.f32.mrf.mxu0
      %v3438 = vadd.f32 %v729, %v3437
      %v3439 = vpop.f32.mrf.mxu0
      %v3440 = vadd.f32 %v725, %v3439
      %v3441 = vpop.f32.mrf.mxu0
      %v3442 = vadd.f32 %v729, %v3441
      %3443 = vmatprep.mubr.bf16.mxu0 0
      %3444 = vmatmul.mubr.bf16.gmra.mxu0 %v2217
      %v3445 = vpop.f32.mrf.mxu0
      %v3446 = vadd.f32 %v725, %v3445
      %v3447 = vpop.f32.mrf.mxu0
      %v3448 = vadd.f32 %v729, %v3447
      %v3449 = vpop.f32.mrf.mxu0
      %v3450 = vadd.f32 %v725, %v3449
      %v3451 = vpop.f32.mrf.mxu0
      %v3452 = vadd.f32 %v729, %v3451
      %3453 = vmatprep.mubr.bf16.mxu0 0
      %3454 = vmatmul.mubr.bf16.gmra.mxu0 %v2220
      %v3455 = vpop.f32.mrf.mxu0
      %v3456 = vadd.f32 %v725, %v3455
      %v3457 = vpop.f32.mrf.mxu0
      %v3458 = vadd.f32 %v729, %v3457
      %v3459 = vpop.f32.mrf.mxu0
      %v3460 = vadd.f32 %v725, %v3459
      %v3461 = vpop.f32.mrf.mxu0
      %v3462 = vadd.f32 %v729, %v3461
      %3463 = vmatprep.mubr.bf16.mxu0 0
      %3464 = vmatmul.mubr.bf16.gmra.mxu0 %v2223
      %v3465 = vpop.f32.mrf.mxu0
      %v3466 = vadd.f32 %v725, %v3465
      %v3467 = vpop.f32.mrf.mxu0
      %v3468 = vadd.f32 %v729, %v3467
      %v3469 = vpop.f32.mrf.mxu0
      %v3470 = vadd.f32 %v725, %v3469
      %v3471 = vpop.f32.mrf.mxu0
      %v3472 = vadd.f32 %v729, %v3471
      %3473 = vmatprep.mubr.bf16.mxu0 0
      %3474 = vmatmul.mubr.bf16.gmra.mxu0 %v2226
      %v3475 = vpop.f32.mrf.mxu0
      %v3476 = vadd.f32 %v725, %v3475
      %v3477 = vpop.f32.mrf.mxu0
      %v3478 = vadd.f32 %v729, %v3477
      %v3479 = vpop.f32.mrf.mxu0
      %v3480 = vadd.f32 %v725, %v3479
      %v3481 = vpop.f32.mrf.mxu0
      %v3482 = vadd.f32 %v729, %v3481
      %3483 = vmatprep.mubr.bf16.mxu0 0
      %3484 = vmatmul.mubr.bf16.gmra.mxu0 %v2229
      %v3485 = vpop.f32.mrf.mxu0
      %v3486 = vadd.f32 %v725, %v3485
      %v3487 = vpop.f32.mrf.mxu0
      %v3488 = vadd.f32 %v729, %v3487
      %v3489 = vpop.f32.mrf.mxu0
      %v3490 = vadd.f32 %v725, %v3489
      %v3491 = vpop.f32.mrf.mxu0
      %v3492 = vadd.f32 %v729, %v3491
      %3493 = vmatprep.mubr.bf16.mxu0 0
      %3494 = vmatmul.mubr.bf16.gmra.mxu0 %v2232
      %v3495 = vpop.f32.mrf.mxu0
      %v3496 = vadd.f32 %v725, %v3495
      %v3497 = vpop.f32.mrf.mxu0
      %v3498 = vadd.f32 %v729, %v3497
      %v3499 = vpop.f32.mrf.mxu0
      %v3500 = vadd.f32 %v725, %v3499
      %v3501 = vpop.f32.mrf.mxu0
      %v3502 = vadd.f32 %v729, %v3501
      %3503 = vmatprep.mubr.bf16.mxu0 0
      %3504 = vmatmul.mubr.bf16.gmra.mxu0 %v2235
      %v3505 = vpop.f32.mrf.mxu0
      %v3506 = vadd.f32 %v725, %v3505
      %v3507 = vpop.f32.mrf.mxu0
      %v3508 = vadd.f32 %v729, %v3507
      %v3509 = vpop.f32.mrf.mxu0
      %v3510 = vadd.f32 %v725, %v3509
      %v3511 = vpop.f32.mrf.mxu0
      %v3512 = vadd.f32 %v729, %v3511
      %3513 = vmatprep.mubr.bf16.mxu0 0
      %3514 = vmatmul.mubr.bf16.gmra.mxu0 %v2238
      %v3515 = vpop.f32.mrf.mxu0
      %v3516 = vadd.f32 %v725, %v3515
      %v3517 = vpop.f32.mrf.mxu0
      %v3518 = vadd.f32 %v729, %v3517
      %v3519 = vpop.f32.mrf.mxu0
      %v3520 = vadd.f32 %v725, %v3519
      %v3521 = vpop.f32.mrf.mxu0
      %v3522 = vadd.f32 %v729, %v3521
      %3523 = vmatprep.mubr.bf16.mxu0 0
      %3524 = vmatmul.mubr.bf16.gmra.mxu0 %v2241
      %v3525 = vpop.f32.mrf.mxu0
      %v3526 = vadd.f32 %v725, %v3525
      %v3527 = vpop.f32.mrf.mxu0
      %v3528 = vadd.f32 %v729, %v3527
      %v3529 = vpop.f32.mrf.mxu0
      %v3530 = vadd.f32 %v725, %v3529
      %v3531 = vpop.f32.mrf.mxu0
      %v3532 = vadd.f32 %v729, %v3531
      %3533 = vmatprep.mubr.bf16.mxu0 0
      %3534 = vmatmul.mubr.bf16.gmra.mxu0 %v2244
      %v3535 = vpop.f32.mrf.mxu0
      %v3536 = vadd.f32 %v725, %v3535
      %v3537 = vpop.f32.mrf.mxu0
      %v3538 = vadd.f32 %v729, %v3537
      %v3539 = vpop.f32.mrf.mxu0
      %v3540 = vadd.f32 %v725, %v3539
      %v3541 = vpop.f32.mrf.mxu0
      %v3542 = vadd.f32 %v729, %v3541
      %3543 = vmatprep.mubr.bf16.mxu0 0
      %3544 = vmatmul.mubr.bf16.gmra.mxu0 %v2247
      %v3545 = vpop.f32.mrf.mxu0
      %v3546 = vadd.f32 %v725, %v3545
      %v3547 = vpop.f32.mrf.mxu0
      %v3548 = vadd.f32 %v729, %v3547
      %v3549 = vpop.f32.mrf.mxu0
      %v3550 = vadd.f32 %v725, %v3549
      %v3551 = vpop.f32.mrf.mxu0
      %v3552 = vadd.f32 %v729, %v3551
      %3553 = vmatprep.mubr.bf16.mxu0 0
      %3554 = vmatmul.mubr.bf16.gmra.mxu0 %v2250
      %v3555 = vpop.f32.mrf.mxu0
      %v3556 = vadd.f32 %v725, %v3555
      %v3557 = vpop.f32.mrf.mxu0
      %v3558 = vadd.f32 %v729, %v3557
      %v3559 = vpop.f32.mrf.mxu0
      %v3560 = vadd.f32 %v725, %v3559
      %v3561 = vpop.f32.mrf.mxu0
      %v3562 = vadd.f32 %v729, %v3561
      %3563 = vmatprep.mubr.bf16.mxu0 0
      %3564 = vmatmul.mubr.bf16.gmra.mxu0 %v2253
      %v3565 = vpop.f32.mrf.mxu0
      %v3566 = vadd.f32 %v725, %v3565
      %v3567 = vpop.f32.mrf.mxu0
      %v3568 = vadd.f32 %v729, %v3567
      %v3569 = vpop.f32.mrf.mxu0
      %v3570 = vadd.f32 %v725, %v3569
      %v3571 = vpop.f32.mrf.mxu0
      %v3572 = vadd.f32 %v729, %v3571
      %3573 = vmatprep.mubr.bf16.mxu0 0
      %3574 = vmatmul.mubr.bf16.gmra.mxu0 %v2256
      %v3575 = vpop.f32.mrf.mxu0
      %v3576 = vadd.f32 %v725, %v3575
      %v3577 = vpop.f32.mrf.mxu0
      %v3578 = vadd.f32 %v729, %v3577
      %v3579 = vpop.f32.mrf.mxu0
      %v3580 = vadd.f32 %v725, %v3579
      %v3581 = vpop.f32.mrf.mxu0
      %v3582 = vadd.f32 %v729, %v3581
      %3583 = vmatprep.mubr.bf16.mxu0 0
      %3584 = vmatmul.mubr.bf16.gmra.mxu0 %v2259
      %v3585 = vpop.f32.mrf.mxu0
      %v3586 = vadd.f32 %v725, %v3585
      %v3587 = vpop.f32.mrf.mxu0
      %v3588 = vadd.f32 %v729, %v3587
      %v3589 = vpop.f32.mrf.mxu0
      %v3590 = vadd.f32 %v725, %v3589
      %v3591 = vpop.f32.mrf.mxu0
      %v3592 = vadd.f32 %v729, %v3591
      %3593 = vmatprep.mubr.bf16.mxu0 0
      %3594 = vmatmul.mubr.bf16.gmra.mxu0 %v2262
      %v3595 = vpop.f32.mrf.mxu0
      %v3596 = vadd.f32 %v725, %v3595
      %v3597 = vpop.f32.mrf.mxu0
      %v3598 = vadd.f32 %v729, %v3597
      %v3599 = vpop.f32.mrf.mxu0
      %v3600 = vadd.f32 %v725, %v3599
      %v3601 = vpop.f32.mrf.mxu0
      %v3602 = vadd.f32 %v729, %v3601
      %3603 = vmatprep.mubr.bf16.mxu0 0
      %3604 = vmatmul.mubr.bf16.gmra.mxu0 %v2265
      %v3605 = vpop.f32.mrf.mxu0
      %v3606 = vadd.f32 %v725, %v3605
      %v3607 = vpop.f32.mrf.mxu0
      %v3608 = vadd.f32 %v729, %v3607
      %v3609 = vpop.f32.mrf.mxu0
      %v3610 = vadd.f32 %v725, %v3609
      %v3611 = vpop.f32.mrf.mxu0
      %v3612 = vadd.f32 %v729, %v3611
      %3613 = vmatprep.mubr.bf16.mxu0 0
      %3614 = vmatmul.mubr.bf16.gmra.mxu0 %v2268
      %v3615 = vpop.f32.mrf.mxu0
      %v3616 = vadd.f32 %v725, %v3615
      %v3617 = vpop.f32.mrf.mxu0
      %v3618 = vadd.f32 %v729, %v3617
      %v3619 = vpop.f32.mrf.mxu0
      %v3620 = vadd.f32 %v725, %v3619
      %v3621 = vpop.f32.mrf.mxu0
      %v3622 = vadd.f32 %v729, %v3621
      %3623 = vmatprep.mubr.bf16.mxu0 0
      %3624 = vmatmul.mubr.bf16.gmra.mxu0 %v2271
      %v3625 = vpop.f32.mrf.mxu0
      %v3626 = vadd.f32 %v725, %v3625
      %v3627 = vpop.f32.mrf.mxu0
      %v3628 = vadd.f32 %v729, %v3627
      %v3629 = vpop.f32.mrf.mxu0
      %v3630 = vadd.f32 %v725, %v3629
      %v3631 = vpop.f32.mrf.mxu0
      %v3632 = vadd.f32 %v729, %v3631
      %3633 = vmatprep.mubr.bf16.mxu0 0
      %3634 = vmatmul.mubr.bf16.gmra.mxu0 %v2274
      %v3635 = vpop.f32.mrf.mxu0
      %v3636 = vadd.f32 %v725, %v3635
      %v3637 = vpop.f32.mrf.mxu0
      %v3638 = vadd.f32 %v729, %v3637
      %v3639 = vpop.f32.mrf.mxu0
      %v3640 = vadd.f32 %v725, %v3639
      %v3641 = vpop.f32.mrf.mxu0
      %v3642 = vadd.f32 %v729, %v3641
      %3643 = vmatprep.mubr.bf16.mxu0 0
      %3644 = vmatmul.mubr.bf16.gmra.mxu0 %v2277
      %v3645 = vpop.f32.mrf.mxu0
      %v3646 = vadd.f32 %v725, %v3645
      %v3647 = vpop.f32.mrf.mxu0
      %v3648 = vadd.f32 %v729, %v3647
      %v3649 = vpop.f32.mrf.mxu0
      %v3650 = vadd.f32 %v725, %v3649
      %v3651 = vpop.f32.mrf.mxu0
      %v3652 = vadd.f32 %v729, %v3651
      %3653 = vmatprep.mubr.bf16.mxu0 0
      %3654 = vmatmul.mubr.bf16.gmra.mxu0 %v2280
      %v3655 = vpop.f32.mrf.mxu0
      %v3656 = vadd.f32 %v725, %v3655
      %v3657 = vpop.f32.mrf.mxu0
      %v3658 = vadd.f32 %v729, %v3657
      %v3659 = vpop.f32.mrf.mxu0
      %v3660 = vadd.f32 %v725, %v3659
      %v3661 = vpop.f32.mrf.mxu0
      %v3662 = vadd.f32 %v729, %v3661
      %3663 = vmatprep.mubr.bf16.mxu0 0
      %3664 = vmatmul.mubr.bf16.gmra.mxu0 %v2283
      %v3665 = vpop.f32.mrf.mxu0
      %v3666 = vadd.f32 %v725, %v3665
      %v3667 = vpop.f32.mrf.mxu0
      %v3668 = vadd.f32 %v729, %v3667
      %v3669 = vpop.f32.mrf.mxu0
      %v3670 = vadd.f32 %v725, %v3669
      %v3671 = vpop.f32.mrf.mxu0
      %v3672 = vadd.f32 %v729, %v3671
      %3673 = vmatprep.mubr.bf16.mxu0 0
      %3674 = vmatmul.mubr.bf16.gmra.mxu0 %v2286
      %v3675 = vpop.f32.mrf.mxu0
      %v3676 = vadd.f32 %v725, %v3675
      %v3677 = vpop.f32.mrf.mxu0
      %v3678 = vadd.f32 %v729, %v3677
      %v3679 = vpop.f32.mrf.mxu0
      %v3680 = vadd.f32 %v725, %v3679
      %v3681 = vpop.f32.mrf.mxu0
      %v3682 = vadd.f32 %v729, %v3681
      %3683 = vmatprep.mubr.bf16.mxu0 0
      %3684 = vmatmul.mubr.bf16.gmra.mxu0 %v2289
      %v3685 = vpop.f32.mrf.mxu0
      %v3686 = vadd.f32 %v725, %v3685
      %v3687 = vpop.f32.mrf.mxu0
      %v3688 = vadd.f32 %v729, %v3687
      %v3689 = vpop.f32.mrf.mxu0
      %v3690 = vadd.f32 %v725, %v3689
      %v3691 = vpop.f32.mrf.mxu0
      %v3692 = vadd.f32 %v729, %v3691
      %3693 = vmatprep.mubr.bf16.mxu0 0
      %3694 = vmatmul.mubr.bf16.gmra.mxu0 %v2292
      %v3695 = vpop.f32.mrf.mxu0
      %v3696 = vadd.f32 %v725, %v3695
      %v3697 = vpop.f32.mrf.mxu0
      %v3698 = vadd.f32 %v729, %v3697
      %v3699 = vpop.f32.mrf.mxu0
      %v3700 = vadd.f32 %v725, %v3699
      %v3701 = vpop.f32.mrf.mxu0
      %v3702 = vadd.f32 %v729, %v3701
      %3703 = vmatprep.mubr.bf16.mxu0 0
      %3704 = vmatmul.mubr.bf16.gmra.mxu0 %v2295
      %v3705 = vpop.f32.mrf.mxu0
      %v3706 = vadd.f32 %v725, %v3705
      %v3707 = vpop.f32.mrf.mxu0
      %v3708 = vadd.f32 %v729, %v3707
      %v3709 = vpop.f32.mrf.mxu0
      %v3710 = vadd.f32 %v725, %v3709
      %v3711 = vpop.f32.mrf.mxu0
      %v3712 = vadd.f32 %v729, %v3711
      %3713 = vmatprep.mubr.bf16.mxu0 0
      %3714 = vmatmul.mubr.bf16.gmra.mxu0 %v2298
      %v3715 = vpop.f32.mrf.mxu0
      %v3716 = vadd.f32 %v725, %v3715
      %v3717 = vpop.f32.mrf.mxu0
      %v3718 = vadd.f32 %v729, %v3717
      %v3719 = vpop.f32.mrf.mxu0
      %v3720 = vadd.f32 %v725, %v3719
      %v3721 = vpop.f32.mrf.mxu0
      %v3722 = vadd.f32 %v729, %v3721
      %3723 = vmatprep.mubr.bf16.mxu0 0
      %3724 = vmatmul.mubr.bf16.gmra.mxu0 %v2301
      %v3725 = vpop.f32.mrf.mxu0
      %v3726 = vadd.f32 %v725, %v3725
      %v3727 = vpop.f32.mrf.mxu0
      %v3728 = vadd.f32 %v729, %v3727
      %v3729 = vpop.f32.mrf.mxu0
      %v3730 = vadd.f32 %v725, %v3729
      %v3731 = vpop.f32.mrf.mxu0
      %v3732 = vadd.f32 %v729, %v3731
      %3733 = vmatprep.mubr.bf16.mxu0 0
      %3734 = vmatmul.mubr.bf16.gmra.mxu0 %v2304
      %v3735 = vpop.f32.mrf.mxu0
      %v3736 = vadd.f32 %v725, %v3735
      %v3737 = vpop.f32.mrf.mxu0
      %v3738 = vadd.f32 %v729, %v3737
      %v3739 = vpop.f32.mrf.mxu0
      %v3740 = vadd.f32 %v725, %v3739
      %v3741 = vpop.f32.mrf.mxu0
      %v3742 = vadd.f32 %v729, %v3741
      %3743 = vmatprep.mubr.bf16.mxu0 0
      %3744 = vmatmul.mubr.bf16.gmra.mxu0 %v2307
      %v3745 = vpop.f32.mrf.mxu0
      %v3746 = vadd.f32 %v725, %v3745
      %v3747 = vpop.f32.mrf.mxu0
      %v3748 = vadd.f32 %v729, %v3747
      %v3749 = vpop.f32.mrf.mxu0
      %v3750 = vadd.f32 %v725, %v3749
      %v3751 = vpop.f32.mrf.mxu0
      %v3752 = vadd.f32 %v729, %v3751
      %3753 = vmatprep.mubr.bf16.mxu0 0
      %3754 = vmatmul.mubr.bf16.gmra.mxu0 %v2310
      %v3755 = vpop.f32.mrf.mxu0
      %v3756 = vadd.f32 %v725, %v3755
      %v3757 = vpop.f32.mrf.mxu0
      %v3758 = vadd.f32 %v729, %v3757
      %v3759 = vpop.f32.mrf.mxu0
      %v3760 = vadd.f32 %v725, %v3759
      %v3761 = vpop.f32.mrf.mxu0
      %v3762 = vadd.f32 %v729, %v3761
      %3763 = vmatprep.mubr.bf16.mxu0 0
      %3764 = vmatmul.mubr.bf16.gmra.mxu0 %v2313
      %v3765 = vpop.f32.mrf.mxu0
      %v3766 = vadd.f32 %v725, %v3765
      %v3767 = vpop.f32.mrf.mxu0
      %v3768 = vadd.f32 %v729, %v3767
      %v3769 = vpop.f32.mrf.mxu0
      %v3770 = vadd.f32 %v725, %v3769
      %v3771 = vpop.f32.mrf.mxu0
      %v3772 = vadd.f32 %v729, %v3771
      %3773 = vmatprep.mubr.bf16.mxu0 0
      %3774 = vmatmul.mubr.bf16.gmra.mxu0 %v2316
      %v3775 = vpop.f32.mrf.mxu0
      %v3776 = vadd.f32 %v725, %v3775
      %v3777 = vpop.f32.mrf.mxu0
      %v3778 = vadd.f32 %v729, %v3777
      %v3779 = vpop.f32.mrf.mxu0
      %v3780 = vadd.f32 %v725, %v3779
      %v3781 = vpop.f32.mrf.mxu0
      %v3782 = vadd.f32 %v729, %v3781
      %3783 = vmatprep.mubr.bf16.mxu0 0
      %3784 = vmatmul.mubr.bf16.gmra.mxu0 %v2319
      %v3785 = vpop.f32.mrf.mxu0
      %v3786 = vadd.f32 %v725, %v3785
      %v3787 = vpop.f32.mrf.mxu0
      %v3788 = vadd.f32 %v729, %v3787
      %v3789 = vpop.f32.mrf.mxu0
      %v3790 = vadd.f32 %v725, %v3789
      %v3791 = vpop.f32.mrf.mxu0
      %v3792 = vadd.f32 %v729, %v3791
      %3793 = vmatprep.mubr.bf16.mxu0 0
      %3794 = vmatmul.mubr.bf16.gmra.mxu0 %v2322
      %v3795 = vpop.f32.mrf.mxu0
      %v3796 = vadd.f32 %v725, %v3795
      %v3797 = vpop.f32.mrf.mxu0
      %v3798 = vadd.f32 %v729, %v3797
      %v3799 = vpop.f32.mrf.mxu0
      %v3800 = vadd.f32 %v725, %v3799
      %v3801 = vpop.f32.mrf.mxu0
      %v3802 = vadd.f32 %v729, %v3801
      %3803 = vmatprep.mubr.bf16.mxu0 0
      %3804 = vmatmul.mubr.bf16.gmra.mxu0 %v2325
      %v3805 = vpop.f32.mrf.mxu0
      %v3806 = vadd.f32 %v725, %v3805
      %v3807 = vpop.f32.mrf.mxu0
      %v3808 = vadd.f32 %v729, %v3807
      %v3809 = vpop.f32.mrf.mxu0
      %v3810 = vadd.f32 %v725, %v3809
      %v3811 = vpop.f32.mrf.mxu0
      %v3812 = vadd.f32 %v729, %v3811
      %3813 = vmatprep.mubr.bf16.mxu0 0
      %3814 = vmatmul.mubr.bf16.gmra.mxu0 %v2328
      %v3815 = vpop.f32.mrf.mxu0
      %v3816 = vadd.f32 %v725, %v3815
      %v3817 = vpop.f32.mrf.mxu0
      %v3818 = vadd.f32 %v729, %v3817
      %v3819 = vpop.f32.mrf.mxu0
      %v3820 = vadd.f32 %v725, %v3819
      %v3821 = vpop.f32.mrf.mxu0
      %v3822 = vadd.f32 %v729, %v3821
      %3823 = vmatprep.mubr.bf16.mxu0 0
      %3824 = vmatmul.mubr.bf16.gmra.mxu0 %v2331
      %v3825 = vpop.f32.mrf.mxu0
      %v3826 = vadd.f32 %v725, %v3825
      %v3827 = vpop.f32.mrf.mxu0
      %v3828 = vadd.f32 %v729, %v3827
      %v3829 = vpop.f32.mrf.mxu0
      %v3830 = vadd.f32 %v725, %v3829
      %v3831 = vpop.f32.mrf.mxu0
      %v3832 = vadd.f32 %v729, %v3831
      %3833 = vmatprep.mubr.bf16.mxu0 0
      %3834 = vmatmul.mubr.bf16.gmra.mxu0 %v2334
      %v3835 = vpop.f32.mrf.mxu0
      %v3836 = vadd.f32 %v725, %v3835
      %v3837 = vpop.f32.mrf.mxu0
      %v3838 = vadd.f32 %v729, %v3837
      %v3839 = vpop.f32.mrf.mxu0
      %v3840 = vadd.f32 %v725, %v3839
      %v3841 = vpop.f32.mrf.mxu0
      %v3842 = vadd.f32 %v729, %v3841
      %3843 = vmatprep.mubr.bf16.mxu0 0
      %3844 = vmatmul.mubr.bf16.gmra.mxu0 %v2337
      %v3845 = vpop.f32.mrf.mxu0
      %v3846 = vadd.f32 %v725, %v3845
      %v3847 = vpop.f32.mrf.mxu0
      %v3848 = vadd.f32 %v729, %v3847
      %v3849 = vpop.f32.mrf.mxu0
      %v3850 = vadd.f32 %v725, %v3849
      %v3851 = vpop.f32.mrf.mxu0
      %v3852 = vadd.f32 %v729, %v3851
      %3853 = vmatprep.mubr.bf16.mxu0 0
      %3854 = vmatmul.mubr.bf16.gmra.mxu0 %v2340
      %v3855 = vpop.f32.mrf.mxu0
      %v3856 = vadd.f32 %v725, %v3855
      %v3857 = vpop.f32.mrf.mxu0
      %v3858 = vadd.f32 %v729, %v3857
      %v3859 = vpop.f32.mrf.mxu0
      %v3860 = vadd.f32 %v725, %v3859
      %v3861 = vpop.f32.mrf.mxu0
      %v3862 = vadd.f32 %v729, %v3861
      %3863 = vmatprep.mubr.bf16.mxu0 0
      %3864 = vmatmul.mubr.bf16.gmra.mxu0 %v2343
      %v3865 = vpop.f32.mrf.mxu0
      %v3866 = vadd.f32 %v725, %v3865
      %v3867 = vpop.f32.mrf.mxu0
      %v3868 = vadd.f32 %v729, %v3867
      %v3869 = vpop.f32.mrf.mxu0
      %v3870 = vadd.f32 %v725, %v3869
      %v3871 = vpop.f32.mrf.mxu0
      %v3872 = vadd.f32 %v729, %v3871
      %3873 = vmatprep.mubr.bf16.mxu0 0
      %3874 = vmatmul.mubr.bf16.gmra.mxu0 %v2346
      %v3875 = vpop.f32.mrf.mxu0
      %v3876 = vadd.f32 %v725, %v3875
      %v3877 = vpop.f32.mrf.mxu0
      %v3878 = vadd.f32 %v729, %v3877
      %v3879 = vpop.f32.mrf.mxu0
      %v3880 = vadd.f32 %v725, %v3879
      %v3881 = vpop.f32.mrf.mxu0
      %v3882 = vadd.f32 %v729, %v3881
      %3883 = vmatprep.mubr.bf16.mxu0 0
      %3884 = vmatmul.mubr.bf16.gmra.mxu0 %v2349
      %v3885 = vpop.f32.mrf.mxu0
      %v3886 = vadd.f32 %v725, %v3885
      %v3887 = vpop.f32.mrf.mxu0
      %v3888 = vadd.f32 %v729, %v3887
      %v3889 = vpop.f32.mrf.mxu0
      %v3890 = vadd.f32 %v725, %v3889
      %v3891 = vpop.f32.mrf.mxu0
      %v3892 = vadd.f32 %v729, %v3891
      %3893 = vmatprep.mubr.bf16.mxu0 0
      %3894 = vmatmul.mubr.bf16.gmra.mxu0 %v2352
      %v3895 = vpop.f32.mrf.mxu0
      %v3896 = vadd.f32 %v725, %v3895
      %v3897 = vpop.f32.mrf.mxu0
      %v3898 = vadd.f32 %v729, %v3897
      %v3899 = vpop.f32.mrf.mxu0
      %v3900 = vadd.f32 %v725, %v3899
      %v3901 = vpop.f32.mrf.mxu0
      %v3902 = vadd.f32 %v729, %v3901
      %3903 = vmatprep.mubr.bf16.mxu0 0
      %3904 = vmatmul.mubr.bf16.gmra.mxu0 %v2355
      %v3905 = vpop.f32.mrf.mxu0
      %v3906 = vadd.f32 %v725, %v3905
      %v3907 = vpop.f32.mrf.mxu0
      %v3908 = vadd.f32 %v729, %v3907
      %v3909 = vpop.f32.mrf.mxu0
      %v3910 = vadd.f32 %v725, %v3909
      %v3911 = vpop.f32.mrf.mxu0
      %v3912 = vadd.f32 %v729, %v3911
      %3913 = vmatprep.mubr.bf16.mxu0 0
      %3914 = vmatmul.mubr.bf16.gmra.mxu0 %v2358
      %v3915 = vpop.f32.mrf.mxu0
      %v3916 = vadd.f32 %v725, %v3915
      %v3917 = vpop.f32.mrf.mxu0
      %v3918 = vadd.f32 %v729, %v3917
      %v3919 = vpop.f32.mrf.mxu0
      %v3920 = vadd.f32 %v725, %v3919
      %v3921 = vpop.f32.mrf.mxu0
      %v3922 = vadd.f32 %v729, %v3921
      %3923 = vmatprep.mubr.bf16.mxu0 0
      %3924 = vmatmul.mubr.bf16.gmra.mxu0 %v2361
      %v3925 = vpop.f32.mrf.mxu0
      %v3926 = vadd.f32 %v725, %v3925
      %v3927 = vpop.f32.mrf.mxu0
      %v3928 = vadd.f32 %v729, %v3927
      %v3929 = vpop.f32.mrf.mxu0
      %v3930 = vadd.f32 %v725, %v3929
      %v3931 = vpop.f32.mrf.mxu0
      %v3932 = vadd.f32 %v729, %v3931
      %3933 = vmatprep.mubr.bf16.mxu0 0
      %3934 = vmatmul.mubr.bf16.gmra.mxu0 %v2364
      %v3935 = vpop.f32.mrf.mxu0
      %v3936 = vadd.f32 %v725, %v3935
      %v3937 = vpop.f32.mrf.mxu0
      %v3938 = vadd.f32 %v729, %v3937
      %v3939 = vpop.f32.mrf.mxu0
      %v3940 = vadd.f32 %v725, %v3939
      %v3941 = vpop.f32.mrf.mxu0
      %v3942 = vadd.f32 %v729, %v3941
      %3943 = vmatprep.mubr.bf16.mxu0 0
      %3944 = vmatmul.mubr.bf16.gmra.mxu0 %v2367
      %v3945 = vpop.f32.mrf.mxu0
      %v3946 = vadd.f32 %v725, %v3945
      %v3947 = vpop.f32.mrf.mxu0
      %v3948 = vadd.f32 %v729, %v3947
      %v3949 = vpop.f32.mrf.mxu0
      %v3950 = vadd.f32 %v725, %v3949
      %v3951 = vpop.f32.mrf.mxu0
      %v3952 = vadd.f32 %v729, %v3951
      %3953 = vmatprep.mubr.bf16.mxu0 0
      %3954 = vmatmul.mubr.bf16.gmra.mxu0 %v2370
      %v3955 = vpop.f32.mrf.mxu0
      %v3956 = vadd.f32 %v725, %v3955
      %v3957 = vpop.f32.mrf.mxu0
      %v3958 = vadd.f32 %v729, %v3957
      %v3959 = vpop.f32.mrf.mxu0
      %v3960 = vadd.f32 %v725, %v3959
      %v3961 = vpop.f32.mrf.mxu0
      %v3962 = vadd.f32 %v729, %v3961
      %3963 = vmatprep.mubr.bf16.mxu0 0
      %3964 = vmatmul.mubr.bf16.gmra.mxu0 %v2373
      %v3965 = vpop.f32.mrf.mxu0
      %v3966 = vadd.f32 %v725, %v3965
      %v3967 = vpop.f32.mrf.mxu0
      %v3968 = vadd.f32 %v729, %v3967
      %v3969 = vpop.f32.mrf.mxu0
      %v3970 = vadd.f32 %v725, %v3969
      %v3971 = vpop.f32.mrf.mxu0
      %v3972 = vadd.f32 %v729, %v3971
      %3973 = vmatprep.mubr.bf16.mxu0 0
      %3974 = vmatmul.mubr.bf16.gmra.mxu0 %v2376
      %v3975 = vpop.f32.mrf.mxu0
      %v3976 = vadd.f32 %v725, %v3975
      %v3977 = vpop.f32.mrf.mxu0
      %v3978 = vadd.f32 %v729, %v3977
      %v3979 = vpop.f32.mrf.mxu0
      %v3980 = vadd.f32 %v725, %v3979
      %v3981 = vpop.f32.mrf.mxu0
      %v3982 = vadd.f32 %v729, %v3981
      %3983 = vmatprep.mubr.bf16.mxu0 0
      %3984 = vmatmul.mubr.bf16.gmra.mxu0 %v2379
      %v3985 = vpop.f32.mrf.mxu0
      %v3986 = vadd.f32 %v725, %v3985
      %v3987 = vpop.f32.mrf.mxu0
      %v3988 = vadd.f32 %v729, %v3987
      %v3989 = vpop.f32.mrf.mxu0
      %v3990 = vadd.f32 %v725, %v3989
      %v3991 = vpop.f32.mrf.mxu0
      %v3992 = vadd.f32 %v729, %v3991
      %3993 = vmatprep.mubr.bf16.mxu0 0
      %3994 = vmatmul.mubr.bf16.gmra.mxu0 %v2382
      %v3995 = vpop.f32.mrf.mxu0
      %v3996 = vadd.f32 %v725, %v3995
      %v3997 = vpop.f32.mrf.mxu0
      %v3998 = vadd.f32 %v729, %v3997
      %v3999 = vpop.f32.mrf.mxu0
      %v4000 = vadd.f32 %v725, %v3999
      %v4001 = vpop.f32.mrf.mxu0
      %v4002 = vadd.f32 %v729, %v4001
      %4003 = vmatprep.mubr.bf16.mxu0 0
      %4004 = vmatmul.mubr.bf16.gmra.mxu0 %v2385
      %v4005 = vpop.f32.mrf.mxu0
      %v4006 = vadd.f32 %v725, %v4005
      %v4007 = vpop.f32.mrf.mxu0
      %v4008 = vadd.f32 %v729, %v4007
      %v4009 = vpop.f32.mrf.mxu0
      %v4010 = vadd.f32 %v725, %v4009
      %v4011 = vpop.f32.mrf.mxu0
      %v4012 = vadd.f32 %v729, %v4011
      %4013 = vmatprep.mubr.bf16.mxu0 0
      %4014 = vmatmul.mubr.bf16.gmra.mxu0 %v2388
      %v4015 = vpop.f32.mrf.mxu0
      %v4016 = vadd.f32 %v725, %v4015
      %v4017 = vpop.f32.mrf.mxu0
      %v4018 = vadd.f32 %v729, %v4017
      %v4019 = vpop.f32.mrf.mxu0
      %v4020 = vadd.f32 %v725, %v4019
      %v4021 = vpop.f32.mrf.mxu0
      %v4022 = vadd.f32 %v729, %v4021
      %4023 = vmatprep.mubr.bf16.mxu0 0
      %4024 = vmatmul.mubr.bf16.gmra.mxu0 %v2391
      %v4025 = vpop.f32.mrf.mxu0
      %v4026 = vadd.f32 %v725, %v4025
      %v4027 = vpop.f32.mrf.mxu0
      %v4028 = vadd.f32 %v729, %v4027
      %v4029 = vpop.f32.mrf.mxu0
      %v4030 = vadd.f32 %v725, %v4029
      %v4031 = vpop.f32.mrf.mxu0
      %v4032 = vadd.f32 %v729, %v4031
      %4033 = vmatprep.mubr.bf16.mxu0 0
      %4034 = vmatmul.mubr.bf16.gmra.mxu0 %v2394
      %v4035 = vpop.f32.mrf.mxu0
      %v4036 = vadd.f32 %v725, %v4035
      %v4037 = vpop.f32.mrf.mxu0
      %v4038 = vadd.f32 %v729, %v4037
      %v4039 = vpop.f32.mrf.mxu0
      %v4040 = vadd.f32 %v725, %v4039
      %v4041 = vpop.f32.mrf.mxu0
      %v4042 = vadd.f32 %v729, %v4041
      %4043 = vmatprep.mubr.bf16.mxu0 0
      %4044 = vmatmul.mubr.bf16.gmra.mxu0 %v2397
      %v4045 = vpop.f32.mrf.mxu0
      %v4046 = vadd.f32 %v725, %v4045
      %v4047 = vpop.f32.mrf.mxu0
      %v4048 = vadd.f32 %v729, %v4047
      %v4049 = vpop.f32.mrf.mxu0
      %v4050 = vadd.f32 %v725, %v4049
      %v4051 = vpop.f32.mrf.mxu0
      %v4052 = vadd.f32 %v729, %v4051
      %4053 = vmatprep.mubr.bf16.mxu0 0
      %4054 = vmatmul.mubr.bf16.gmra.mxu0 %v2400
      %v4055 = vpop.f32.mrf.mxu0
      %v4056 = vadd.f32 %v725, %v4055
      %v4057 = vpop.f32.mrf.mxu0
      %v4058 = vadd.f32 %v729, %v4057
      %v4059 = vpop.f32.mrf.mxu0
      %v4060 = vadd.f32 %v725, %v4059
      %v4061 = vpop.f32.mrf.mxu0
      %v4062 = vadd.f32 %v729, %v4061
      %4063 = vmatprep.mubr.bf16.mxu0 0
      %4064 = vmatmul.mubr.bf16.gmra.mxu0 %v2403
      %v4065 = vpop.f32.mrf.mxu0
      %v4066 = vadd.f32 %v725, %v4065
      %v4067 = vpop.f32.mrf.mxu0
      %v4068 = vadd.f32 %v729, %v4067
      %v4069 = vpop.f32.mrf.mxu0
      %v4070 = vadd.f32 %v725, %v4069
      %v4071 = vpop.f32.mrf.mxu0
      %v4072 = vadd.f32 %v729, %v4071
      %4073 = vmatprep.mubr.bf16.mxu0 0
      %4074 = vmatmul.mubr.bf16.gmra.mxu0 %v2406
      %v4075 = vpop.f32.mrf.mxu0
      %v4076 = vadd.f32 %v725, %v4075
      %v4077 = vpop.f32.mrf.mxu0
      %v4078 = vadd.f32 %v729, %v4077
      %v4079 = vpop.f32.mrf.mxu0
      %v4080 = vadd.f32 %v725, %v4079
      %v4081 = vpop.f32.mrf.mxu0
      %v4082 = vadd.f32 %v729, %v4081
      %4083 = vmatprep.mubr.bf16.mxu0 0
      %4084 = vmatmul.mubr.bf16.gmra.mxu0 %v2409
      %v4085 = vpop.f32.mrf.mxu0
      %v4086 = vadd.f32 %v725, %v4085
      %v4087 = vpop.f32.mrf.mxu0
      %v4088 = vadd.f32 %v729, %v4087
      %v4089 = vpop.f32.mrf.mxu0
      %v4090 = vadd.f32 %v725, %v4089
      %v4091 = vpop.f32.mrf.mxu0
      %v4092 = vadd.f32 %v729, %v4091
      %4093 = vmatprep.mubr.bf16.mxu0 0
      %4094 = vmatmul.mubr.bf16.gmra.mxu0 %v2412
      %v4095 = vpop.f32.mrf.mxu0
      %v4096 = vadd.f32 %v725, %v4095
      %v4097 = vpop.f32.mrf.mxu0
      %v4098 = vadd.f32 %v729, %v4097
      %v4099 = vpop.f32.mrf.mxu0
      %v4100 = vadd.f32 %v725, %v4099
      %v4101 = vpop.f32.mrf.mxu0
      %v4102 = vadd.f32 %v729, %v4101
      %4103 = vmatprep.mubr.bf16.mxu0 0
      %4104 = vmatmul.mubr.bf16.gmra.mxu0 %v2415
      %v4105 = vpop.f32.mrf.mxu0
      %v4106 = vadd.f32 %v725, %v4105
      %v4107 = vpop.f32.mrf.mxu0
      %v4108 = vadd.f32 %v729, %v4107
      %v4109 = vpop.f32.mrf.mxu0
      %v4110 = vadd.f32 %v725, %v4109
      %v4111 = vpop.f32.mrf.mxu0
      %v4112 = vadd.f32 %v729, %v4111
      %4113 = vmatprep.mubr.bf16.mxu0 0
      %4114 = vmatmul.mubr.bf16.gmra.mxu0 %v2418
      %v4115 = vpop.f32.mrf.mxu0
      %v4116 = vadd.f32 %v725, %v4115
      %v4117 = vpop.f32.mrf.mxu0
      %v4118 = vadd.f32 %v729, %v4117
      %v4119 = vpop.f32.mrf.mxu0
      %v4120 = vadd.f32 %v725, %v4119
      %v4121 = vpop.f32.mrf.mxu0
      %v4122 = vadd.f32 %v729, %v4121
      %4123 = vmatprep.mubr.bf16.mxu0 0
      %4124 = vmatmul.mubr.bf16.gmra.mxu0 %v2421
      %v4125 = vpop.f32.mrf.mxu0
      %v4126 = vadd.f32 %v725, %v4125
      %v4127 = vpop.f32.mrf.mxu0
      %v4128 = vadd.f32 %v729, %v4127
      %v4129 = vpop.f32.mrf.mxu0
      %v4130 = vadd.f32 %v725, %v4129
      %v4131 = vpop.f32.mrf.mxu0
      %v4132 = vadd.f32 %v729, %v4131
      %4133 = vmatprep.mubr.bf16.mxu0 0
      %4134 = vmatmul.mubr.bf16.gmra.mxu0 %v2424
      %v4135 = vpop.f32.mrf.mxu0
      %v4136 = vadd.f32 %v725, %v4135
      %v4137 = vpop.f32.mrf.mxu0
      %v4138 = vadd.f32 %v729, %v4137
      %v4139 = vpop.f32.mrf.mxu0
      %v4140 = vadd.f32 %v725, %v4139
      %v4141 = vpop.f32.mrf.mxu0
      %v4142 = vadd.f32 %v729, %v4141
      %4143 = vmatprep.mubr.bf16.mxu0 0
      %4144 = vmatmul.mubr.bf16.gmra.mxu0 %v2427
      %v4145 = vpop.f32.mrf.mxu0
      %v4146 = vadd.f32 %v725, %v4145
      %v4147 = vpop.f32.mrf.mxu0
      %v4148 = vadd.f32 %v729, %v4147
      %v4149 = vpop.f32.mrf.mxu0
      %v4150 = vadd.f32 %v725, %v4149
      %v4151 = vpop.f32.mrf.mxu0
      %v4152 = vadd.f32 %v729, %v4151
      %4153 = vmatprep.mubr.bf16.mxu0 0
      %4154 = vmatmul.mubr.bf16.gmra.mxu0 %v2430
      %v4155 = vpop.f32.mrf.mxu0
      %v4156 = vadd.f32 %v725, %v4155
      %v4157 = vpop.f32.mrf.mxu0
      %v4158 = vadd.f32 %v729, %v4157
      %v4159 = vpop.f32.mrf.mxu0
      %v4160 = vadd.f32 %v725, %v4159
      %v4161 = vpop.f32.mrf.mxu0
      %v4162 = vadd.f32 %v729, %v4161
      %4163 = vmatprep.mubr.bf16.mxu0 0
      %4164 = vmatmul.mubr.bf16.gmra.mxu0 %v2433
      %v4165 = vpop.f32.mrf.mxu0
      %v4166 = vadd.f32 %v725, %v4165
      %v4167 = vpop.f32.mrf.mxu0
      %v4168 = vadd.f32 %v729, %v4167
      %v4169 = vpop.f32.mrf.mxu0
      %v4170 = vadd.f32 %v725, %v4169
      %v4171 = vpop.f32.mrf.mxu0
      %v4172 = vadd.f32 %v729, %v4171
      %4173 = vmatprep.mubr.bf16.mxu0 0
      %4174 = vmatmul.mubr.bf16.gmra.mxu0 %v2436
      %v4175 = vpop.f32.mrf.mxu0
      %v4176 = vadd.f32 %v725, %v4175
      %v4177 = vpop.f32.mrf.mxu0
      %v4178 = vadd.f32 %v729, %v4177
      %v4179 = vpop.f32.mrf.mxu0
      %v4180 = vadd.f32 %v725, %v4179
      %v4181 = vpop.f32.mrf.mxu0
      %v4182 = vadd.f32 %v729, %v4181
      %4183 = vmatprep.mubr.bf16.mxu0 0
      %4184 = vmatmul.mubr.bf16.gmra.mxu0 %v2439
      %v4185 = vpop.f32.mrf.mxu0
      %v4186 = vadd.f32 %v725, %v4185
      %v4187 = vpop.f32.mrf.mxu0
      %v4188 = vadd.f32 %v729, %v4187
      %v4189 = vpop.f32.mrf.mxu0
      %v4190 = vadd.f32 %v725, %v4189
      %v4191 = vpop.f32.mrf.mxu0
      %v4192 = vadd.f32 %v729, %v4191
      %4193 = vmatprep.mubr.bf16.mxu0 0
      %4194 = vmatmul.mubr.bf16.gmra.mxu0 %v2442
      %v4195 = vpop.f32.mrf.mxu0
      %v4196 = vadd.f32 %v725, %v4195
      %v4197 = vpop.f32.mrf.mxu0
      %v4198 = vadd.f32 %v729, %v4197
      %v4199 = vpop.f32.mrf.mxu0
      %v4200 = vadd.f32 %v725, %v4199
      %v4201 = vpop.f32.mrf.mxu0
      %v4202 = vadd.f32 %v729, %v4201
      %4203 = vmatprep.mubr.bf16.mxu0 0
      %4204 = vmatmul.mubr.bf16.gmra.mxu0 %v2445
      %v4205 = vpop.f32.mrf.mxu0
      %v4206 = vadd.f32 %v725, %v4205
      %v4207 = vpop.f32.mrf.mxu0
      %v4208 = vadd.f32 %v729, %v4207
      %v4209 = vpop.f32.mrf.mxu0
      %v4210 = vadd.f32 %v725, %v4209
      %v4211 = vpop.f32.mrf.mxu0
      %v4212 = vadd.f32 %v729, %v4211
      %4213 = vmatprep.mubr.bf16.mxu0 0
      %4214 = vmatmul.mubr.bf16.gmra.mxu0 %v2448
      %v4215 = vpop.f32.mrf.mxu0
      %v4216 = vadd.f32 %v725, %v4215
      %v4217 = vpop.f32.mrf.mxu0
      %v4218 = vadd.f32 %v729, %v4217
      %v4219 = vpop.f32.mrf.mxu0
      %v4220 = vadd.f32 %v725, %v4219
      %v4221 = vpop.f32.mrf.mxu0
      %v4222 = vadd.f32 %v729, %v4221
      %4223 = vmatprep.mubr.bf16.mxu0 0
      %4224 = vmatmul.mubr.bf16.gmra.mxu0 %v2451
      %v4225 = vpop.f32.mrf.mxu0
      %v4226 = vadd.f32 %v725, %v4225
      %v4227 = vpop.f32.mrf.mxu0
      %v4228 = vadd.f32 %v729, %v4227
      %v4229 = vpop.f32.mrf.mxu0
      %v4230 = vadd.f32 %v725, %v4229
      %v4231 = vpop.f32.mrf.mxu0
      %v4232 = vadd.f32 %v729, %v4231
      %4233 = vmatprep.mubr.bf16.mxu0 0
      %4234 = vmatmul.mubr.bf16.gmra.mxu0 %v2454
      %v4235 = vpop.f32.mrf.mxu0
      %v4236 = vadd.f32 %v725, %v4235
      %v4237 = vpop.f32.mrf.mxu0
      %v4238 = vadd.f32 %v729, %v4237
      %v4239 = vpop.f32.mrf.mxu0
      %v4240 = vadd.f32 %v725, %v4239
      %v4241 = vpop.f32.mrf.mxu0
      %v4242 = vadd.f32 %v729, %v4241
      %4243 = vmatprep.mubr.bf16.mxu0 0
      %4244 = vmatmul.mubr.bf16.gmra.mxu0 %v2457
      %v4245 = vpop.f32.mrf.mxu0
      %v4246 = vadd.f32 %v725, %v4245
      %v4247 = vpop.f32.mrf.mxu0
      %v4248 = vadd.f32 %v729, %v4247
      %v4249 = vpop.f32.mrf.mxu0
      %v4250 = vadd.f32 %v725, %v4249
      %v4251 = vpop.f32.mrf.mxu0
      %v4252 = vadd.f32 %v729, %v4251
      %4253 = vmatprep.mubr.bf16.mxu0 0
      %4254 = vmatmul.mubr.bf16.gmra.mxu0 %v2460
      %v4255 = vpop.f32.mrf.mxu0
      %v4256 = vadd.f32 %v725, %v4255
      %v4257 = vpop.f32.mrf.mxu0
      %v4258 = vadd.f32 %v729, %v4257
      %v4259 = vpop.f32.mrf.mxu0
      %v4260 = vadd.f32 %v725, %v4259
      %v4261 = vpop.f32.mrf.mxu0
      %v4262 = vadd.f32 %v729, %v4261
      %4263 = vmatprep.mubr.bf16.mxu0 0
      %4264 = vmatmul.mubr.bf16.gmra.mxu0 %v2463
      %v4265 = vpop.f32.mrf.mxu0
      %v4266 = vadd.f32 %v725, %v4265
      %v4267 = vpop.f32.mrf.mxu0
      %v4268 = vadd.f32 %v729, %v4267
      %v4269 = vpop.f32.mrf.mxu0
      %v4270 = vadd.f32 %v725, %v4269
      %v4271 = vpop.f32.mrf.mxu0
      %v4272 = vadd.f32 %v729, %v4271
      %4273 = vmatprep.mubr.bf16.mxu0 0
      %4274 = vmatmul.mubr.bf16.gmra.mxu0 %v2466
      %v4275 = vpop.f32.mrf.mxu0
      %v4276 = vadd.f32 %v725, %v4275
      %v4277 = vpop.f32.mrf.mxu0
      %v4278 = vadd.f32 %v729, %v4277
      %v4279 = vpop.f32.mrf.mxu0
      %v4280 = vadd.f32 %v725, %v4279
      %v4281 = vpop.f32.mrf.mxu0
      %v4282 = vadd.f32 %v729, %v4281
      %4283 = vmatprep.mubr.bf16.mxu0 0
      %4284 = vmatmul.mubr.bf16.gmra.mxu0 %v2469
      %v4285 = vpop.f32.mrf.mxu0
      %v4286 = vadd.f32 %v725, %v4285
      %v4287 = vpop.f32.mrf.mxu0
      %v4288 = vadd.f32 %v729, %v4287
      %v4289 = vpop.f32.mrf.mxu0
      %v4290 = vadd.f32 %v725, %v4289
      %v4291 = vpop.f32.mrf.mxu0
      %v4292 = vadd.f32 %v729, %v4291
      %4293 = vmatprep.mubr.bf16.mxu0 0
      %4294 = vmatmul.mubr.bf16.gmra.mxu0 %v2472
      %v4295 = vpop.f32.mrf.mxu0
      %v4296 = vadd.f32 %v725, %v4295
      %v4297 = vpop.f32.mrf.mxu0
      %v4298 = vadd.f32 %v729, %v4297
      %v4299 = vpop.f32.mrf.mxu0
      %v4300 = vadd.f32 %v725, %v4299
      %v4301 = vpop.f32.mrf.mxu0
      %v4302 = vadd.f32 %v729, %v4301
      %4303 = vmatprep.mubr.bf16.mxu0 0
      %4304 = vmatmul.mubr.bf16.gmra.mxu0 %v2475
      %v4305 = vpop.f32.mrf.mxu0
      %v4306 = vadd.f32 %v725, %v4305
      %v4307 = vpop.f32.mrf.mxu0
      %v4308 = vadd.f32 %v729, %v4307
      %v4309 = vpop.f32.mrf.mxu0
      %v4310 = vadd.f32 %v725, %v4309
      %v4311 = vpop.f32.mrf.mxu0
      %v4312 = vadd.f32 %v729, %v4311
      %4313 = vmatprep.mubr.bf16.mxu0 0
      %4314 = vmatmul.mubr.bf16.gmra.mxu0 %v2478
      %v4315 = vpop.f32.mrf.mxu0
      %v4316 = vadd.f32 %v725, %v4315
      %v4317 = vpop.f32.mrf.mxu0
      %v4318 = vadd.f32 %v729, %v4317
      %v4319 = vpop.f32.mrf.mxu0
      %v4320 = vadd.f32 %v725, %v4319
      %v4321 = vpop.f32.mrf.mxu0
      %v4322 = vadd.f32 %v729, %v4321
      %4323 = vmatprep.mubr.bf16.mxu0 0
      %4324 = vmatmul.mubr.bf16.gmra.mxu0 %v2481
      %v4325 = vpop.f32.mrf.mxu0
      %v4326 = vadd.f32 %v725, %v4325
      %v4327 = vpop.f32.mrf.mxu0
      %v4328 = vadd.f32 %v729, %v4327
      %v4329 = vpop.f32.mrf.mxu0
      %v4330 = vadd.f32 %v725, %v4329
      %v4331 = vpop.f32.mrf.mxu0
      %v4332 = vadd.f32 %v729, %v4331
      %4333 = vmatprep.mubr.bf16.mxu0 0
      %4334 = vmatmul.mubr.bf16.gmra.mxu0 %v2484
      %v4335 = vpop.f32.mrf.mxu0
      %v4336 = vadd.f32 %v725, %v4335
      %v4337 = vpop.f32.mrf.mxu0
      %v4338 = vadd.f32 %v729, %v4337
      %v4339 = vpop.f32.mrf.mxu0
      %v4340 = vadd.f32 %v725, %v4339
      %v4341 = vpop.f32.mrf.mxu0
      %v4342 = vadd.f32 %v729, %v4341
      %4343 = vmatprep.mubr.bf16.mxu0 0
      %4344 = vmatmul.mubr.bf16.gmra.mxu0 %v2487
      %v4345 = vpop.f32.mrf.mxu0
      %v4346 = vadd.f32 %v725, %v4345
      %v4347 = vpop.f32.mrf.mxu0
      %v4348 = vadd.f32 %v729, %v4347
      %v4349 = vpop.f32.mrf.mxu0
      %v4350 = vadd.f32 %v725, %v4349
      %v4351 = vpop.f32.mrf.mxu0
      %v4352 = vadd.f32 %v729, %v4351
      %4353 = vmatprep.mubr.bf16.mxu0 0
      %4354 = vmatmul.mubr.bf16.gmra.mxu0 %v2490
      %v4355 = vpop.f32.mrf.mxu0
      %v4356 = vadd.f32 %v725, %v4355
      %v4357 = vpop.f32.mrf.mxu0
      %v4358 = vadd.f32 %v729, %v4357
      %v4359 = vpop.f32.mrf.mxu0
      %v4360 = vadd.f32 %v725, %v4359
      %v4361 = vpop.f32.mrf.mxu0
      %v4362 = vadd.f32 %v729, %v4361
      %4363 = vmatprep.mubr.bf16.mxu0 0
      %4364 = vmatmul.mubr.bf16.gmra.mxu0 %v2493
      %v4365 = vpop.f32.mrf.mxu0
      %v4366 = vadd.f32 %v725, %v4365
      %v4367 = vpop.f32.mrf.mxu0
      %v4368 = vadd.f32 %v729, %v4367
      %v4369 = vpop.f32.mrf.mxu0
      %v4370 = vadd.f32 %v725, %v4369
      %v4371 = vpop.f32.mrf.mxu0
      %v4372 = vadd.f32 %v729, %v4371
      %4373 = vmatprep.mubr.bf16.mxu0 0
      %4374 = vmatmul.mubr.bf16.gmra.mxu0 %v2496
      %v4375 = vpop.f32.mrf.mxu0
      %v4376 = vadd.f32 %v725, %v4375
      %v4377 = vpop.f32.mrf.mxu0
      %v4378 = vadd.f32 %v729, %v4377
      %v4379 = vpop.f32.mrf.mxu0
      %v4380 = vadd.f32 %v725, %v4379
      %v4381 = vpop.f32.mrf.mxu0
      %v4382 = vadd.f32 %v729, %v4381
      %4383 = vmatprep.mubr.bf16.mxu0 0
      %4384 = vmatmul.mubr.bf16.gmra.mxu0 %v2499
      %v4385 = vpop.f32.mrf.mxu0
      %v4386 = vadd.f32 %v725, %v4385
      %v4387 = vpop.f32.mrf.mxu0
      %v4388 = vadd.f32 %v729, %v4387
      %v4389 = vpop.f32.mrf.mxu0
      %v4390 = vadd.f32 %v725, %v4389
      %v4391 = vpop.f32.mrf.mxu0
      %v4392 = vadd.f32 %v729, %v4391
      %4393 = vmatprep.mubr.bf16.mxu0 0
      %4394 = vmatmul.mubr.bf16.gmra.mxu0 %v2502
      %v4395 = vpop.f32.mrf.mxu0
      %v4396 = vadd.f32 %v725, %v4395
      %v4397 = vpop.f32.mrf.mxu0
      %v4398 = vadd.f32 %v729, %v4397
      %v4399 = vpop.f32.mrf.mxu0
      %v4400 = vadd.f32 %v725, %v4399
      %v4401 = vpop.f32.mrf.mxu0
      %v4402 = vadd.f32 %v729, %v4401
      %4403 = vmatprep.mubr.bf16.mxu0 0
      %4404 = vmatmul.mubr.bf16.gmra.mxu0 %v2505
      %v4405 = vpop.f32.mrf.mxu0
      %v4406 = vadd.f32 %v725, %v4405
      %v4407 = vpop.f32.mrf.mxu0
      %v4408 = vadd.f32 %v729, %v4407
      %v4409 = vpop.f32.mrf.mxu0
      %v4410 = vadd.f32 %v725, %v4409
      %v4411 = vpop.f32.mrf.mxu0
      %v4412 = vadd.f32 %v729, %v4411
      %4413 = vmatprep.mubr.bf16.mxu0 0
      %4414 = vmatmul.mubr.bf16.gmra.mxu0 %v2508
      %v4415 = vpop.f32.mrf.mxu0
      %v4416 = vadd.f32 %v725, %v4415
      %v4417 = vpop.f32.mrf.mxu0
      %v4418 = vadd.f32 %v729, %v4417
      %v4419 = vpop.f32.mrf.mxu0
      %v4420 = vadd.f32 %v725, %v4419
      %v4421 = vpop.f32.mrf.mxu0
      %v4422 = vadd.f32 %v729, %v4421
      %4423 = vmatprep.mubr.bf16.mxu0 0
      %4424 = vmatmul.mubr.bf16.gmra.mxu0 %v2511
      %v4425 = vpop.f32.mrf.mxu0
      %v4426 = vadd.f32 %v725, %v4425
      %v4427 = vpop.f32.mrf.mxu0
      %v4428 = vadd.f32 %v729, %v4427
      %v4429 = vpop.f32.mrf.mxu0
      %v4430 = vadd.f32 %v725, %v4429
      %v4431 = vpop.f32.mrf.mxu0
      %v4432 = vadd.f32 %v729, %v4431
      %4433 = vmatprep.mubr.bf16.mxu0 0
      %4434 = vmatmul.mubr.bf16.gmra.mxu0 %v2514
      %v4435 = vpop.f32.mrf.mxu0
      %v4436 = vadd.f32 %v725, %v4435
      %v4437 = vpop.f32.mrf.mxu0
      %v4438 = vadd.f32 %v729, %v4437
      %v4439 = vpop.f32.mrf.mxu0
      %v4440 = vadd.f32 %v725, %v4439
      %v4441 = vpop.f32.mrf.mxu0
      %v4442 = vadd.f32 %v729, %v4441
      %4443 = vmatprep.mubr.bf16.mxu0 0
      %4444 = vmatmul.mubr.bf16.gmra.mxu0 %v2517
      %v4445 = vpop.f32.mrf.mxu0
      %v4446 = vadd.f32 %v725, %v4445
      %v4447 = vpop.f32.mrf.mxu0
      %v4448 = vadd.f32 %v729, %v4447
      %v4449 = vpop.f32.mrf.mxu0
      %v4450 = vadd.f32 %v725, %v4449
      %v4451 = vpop.f32.mrf.mxu0
      %v4452 = vadd.f32 %v729, %v4451
      %4453 = vmatprep.mubr.bf16.mxu0 0
      %4454 = vmatmul.mubr.bf16.gmra.mxu0 %v2520
      %v4455 = vpop.f32.mrf.mxu0
      %v4456 = vadd.f32 %v725, %v4455
      %v4457 = vpop.f32.mrf.mxu0
      %v4458 = vadd.f32 %v729, %v4457
      %v4459 = vpop.f32.mrf.mxu0
      %v4460 = vadd.f32 %v725, %v4459
      %v4461 = vpop.f32.mrf.mxu0
      %v4462 = vadd.f32 %v729, %v4461
      %4463 = vmatprep.mubr.bf16.mxu0 0
      %4464 = vmatmul.mubr.bf16.gmra.mxu0 %v2523
      %v4465 = vpop.f32.mrf.mxu0
      %v4466 = vadd.f32 %v725, %v4465
      %v4467 = vpop.f32.mrf.mxu0
      %v4468 = vadd.f32 %v729, %v4467
      %v4469 = vpop.f32.mrf.mxu0
      %v4470 = vadd.f32 %v725, %v4469
      %v4471 = vpop.f32.mrf.mxu0
      %v4472 = vadd.f32 %v729, %v4471
      %4473 = vmatprep.mubr.bf16.mxu0 0
      %4474 = vmatmul.mubr.bf16.gmra.mxu0 %v2526
      %v4475 = vpop.f32.mrf.mxu0
      %v4476 = vadd.f32 %v725, %v4475
      %v4477 = vpop.f32.mrf.mxu0
      %v4478 = vadd.f32 %v729, %v4477
      %v4479 = vpop.f32.mrf.mxu0
      %v4480 = vadd.f32 %v725, %v4479
      %v4481 = vpop.f32.mrf.mxu0
      %v4482 = vadd.f32 %v729, %v4481
      %4483 = vmatprep.mubr.bf16.mxu0 0
      %4484 = vmatmul.mubr.bf16.gmra.mxu0 %v2529
      %v4485 = vpop.f32.mrf.mxu0
      %v4486 = vadd.f32 %v725, %v4485
      %v4487 = vpop.f32.mrf.mxu0
      %v4488 = vadd.f32 %v729, %v4487
      %v4489 = vpop.f32.mrf.mxu0
      %v4490 = vadd.f32 %v725, %v4489
      %v4491 = vpop.f32.mrf.mxu0
      %v4492 = vadd.f32 %v729, %v4491
      %4493 = vmatprep.mubr.bf16.mxu0 0
      %4494 = vmatmul.mubr.bf16.gmra.mxu0 %v2532
      %v4495 = vpop.f32.mrf.mxu0
      %v4496 = vadd.f32 %v725, %v4495
      %v4497 = vpop.f32.mrf.mxu0
      %v4498 = vadd.f32 %v729, %v4497
      %v4499 = vpop.f32.mrf.mxu0
      %v4500 = vadd.f32 %v725, %v4499
      %v4501 = vpop.f32.mrf.mxu0
      %v4502 = vadd.f32 %v729, %v4501
      %4503 = vmatprep.mubr.bf16.mxu0 0
      %4504 = vmatmul.mubr.bf16.gmra.mxu0 %v2535
      %v4505 = vpop.f32.mrf.mxu0
      %v4506 = vadd.f32 %v725, %v4505
      %v4507 = vpop.f32.mrf.mxu0
      %v4508 = vadd.f32 %v729, %v4507
      %v4509 = vpop.f32.mrf.mxu0
      %v4510 = vadd.f32 %v725, %v4509
      %v4511 = vpop.f32.mrf.mxu0
      %v4512 = vadd.f32 %v729, %v4511
      %4513 = vmatprep.mubr.bf16.mxu0 0
      %4514 = vmatmul.mubr.bf16.gmra.mxu0 %v2538
      %v4515 = vpop.f32.mrf.mxu0
      %v4516 = vadd.f32 %v725, %v4515
      %v4517 = vpop.f32.mrf.mxu0
      %v4518 = vadd.f32 %v729, %v4517
      %v4519 = vpop.f32.mrf.mxu0
      %v4520 = vadd.f32 %v725, %v4519
      %v4521 = vpop.f32.mrf.mxu0
      %v4522 = vadd.f32 %v729, %v4521
      %4523 = vmatprep.mubr.bf16.mxu0 0
      %4524 = vmatmul.mubr.bf16.gmra.mxu0 %v2541
      %v4525 = vpop.f32.mrf.mxu0
      %v4526 = vadd.f32 %v725, %v4525
      %v4527 = vpop.f32.mrf.mxu0
      %v4528 = vadd.f32 %v729, %v4527
      %v4529 = vpop.f32.mrf.mxu0
      %v4530 = vadd.f32 %v725, %v4529
      %v4531 = vpop.f32.mrf.mxu0
      %v4532 = vadd.f32 %v729, %v4531
      %4533 = vmatprep.mubr.bf16.mxu0 0
      %4534 = vmatmul.mubr.bf16.gmra.mxu0 %v2544
      %v4535 = vpop.f32.mrf.mxu0
      %v4536 = vadd.f32 %v725, %v4535
      %v4537 = vpop.f32.mrf.mxu0
      %v4538 = vadd.f32 %v729, %v4537
      %v4539 = vpop.f32.mrf.mxu0
      %v4540 = vadd.f32 %v725, %v4539
      %v4541 = vpop.f32.mrf.mxu0
      %v4542 = vadd.f32 %v729, %v4541
      %4543 = vmatprep.mubr.bf16.mxu0 0
      %4544 = vmatmul.mubr.bf16.gmra.mxu0 %v2547
      %v4545 = vpop.f32.mrf.mxu0
      %v4546 = vadd.f32 %v725, %v4545
      %v4547 = vpop.f32.mrf.mxu0
      %v4548 = vadd.f32 %v729, %v4547
      %v4549 = vpop.f32.mrf.mxu0
      %v4550 = vadd.f32 %v725, %v4549
      %v4551 = vpop.f32.mrf.mxu0
      %v4552 = vadd.f32 %v729, %v4551
      %4553 = vmatprep.mubr.bf16.mxu0 0
      %4554 = vmatmul.mubr.bf16.gmra.mxu0 %v2550
      %v4555 = vpop.f32.mrf.mxu0
      %v4556 = vadd.f32 %v725, %v4555
      %v4557 = vpop.f32.mrf.mxu0
      %v4558 = vadd.f32 %v729, %v4557
      %v4559 = vpop.f32.mrf.mxu0
      %v4560 = vadd.f32 %v725, %v4559
      %v4561 = vpop.f32.mrf.mxu0
      %v4562 = vadd.f32 %v729, %v4561
      %4563 = vmatprep.mubr.bf16.mxu0 0
      %4564 = vmatmul.mubr.bf16.gmra.mxu0 %v2553
      %v4565 = vpop.f32.mrf.mxu0
      %v4566 = vadd.f32 %v725, %v4565
      %v4567 = vpop.f32.mrf.mxu0
      %v4568 = vadd.f32 %v729, %v4567
      %v4569 = vpop.f32.mrf.mxu0
      %v4570 = vadd.f32 %v725, %v4569
      %v4571 = vpop.f32.mrf.mxu0
      %v4572 = vadd.f32 %v729, %v4571
      %4573 = vmatprep.mubr.bf16.mxu0 0
      %4574 = vmatmul.mubr.bf16.gmra.mxu0 %v2556
      %v4575 = vpop.f32.mrf.mxu0
      %v4576 = vadd.f32 %v725, %v4575
      %v4577 = vpop.f32.mrf.mxu0
      %v4578 = vadd.f32 %v729, %v4577
      %v4579 = vpop.f32.mrf.mxu0
      %v4580 = vadd.f32 %v725, %v4579
      %v4581 = vpop.f32.mrf.mxu0
      %v4582 = vadd.f32 %v729, %v4581
      %4583 = vmatprep.mubr.bf16.mxu0 0
      %4584 = vmatmul.mubr.bf16.gmra.mxu0 %v2559
      %v4585 = vpop.f32.mrf.mxu0
      %v4586 = vadd.f32 %v725, %v4585
      %v4587 = vpop.f32.mrf.mxu0
      %v4588 = vadd.f32 %v729, %v4587
      %v4589 = vpop.f32.mrf.mxu0
      %v4590 = vadd.f32 %v725, %v4589
      %v4591 = vpop.f32.mrf.mxu0
      %v4592 = vadd.f32 %v729, %v4591
      %4593 = vmatprep.mubr.bf16.mxu0 0
      %4594 = vmatmul.mubr.bf16.gmra.mxu0 %v2562
      %v4595 = vpop.f32.mrf.mxu0
      %v4596 = vadd.f32 %v725, %v4595
      %v4597 = vpop.f32.mrf.mxu0
      %v4598 = vadd.f32 %v729, %v4597
      %v4599 = vpop.f32.mrf.mxu0
      %v4600 = vadd.f32 %v725, %v4599
      %v4601 = vpop.f32.mrf.mxu0
      %v4602 = vadd.f32 %v729, %v4601
      %4603 = vmatprep.mubr.bf16.mxu0 0
      %4604 = vmatmul.mubr.bf16.gmra.mxu0 %v2565
      %v4605 = vpop.f32.mrf.mxu0
      %v4606 = vadd.f32 %v725, %v4605
      %v4607 = vpop.f32.mrf.mxu0
      %v4608 = vadd.f32 %v729, %v4607
      %v4609 = vpop.f32.mrf.mxu0
      %v4610 = vadd.f32 %v725, %v4609
      %v4611 = vpop.f32.mrf.mxu0
      %v4612 = vadd.f32 %v729, %v4611
      %4613 = vmatprep.mubr.bf16.mxu0 0
      %4614 = vmatmul.mubr.bf16.gmra.mxu0 %v2568
      %v4615 = vpop.f32.mrf.mxu0
      %v4616 = vadd.f32 %v725, %v4615
      %v4617 = vpop.f32.mrf.mxu0
      %v4618 = vadd.f32 %v729, %v4617
      %v4619 = vpop.f32.mrf.mxu0
      %v4620 = vadd.f32 %v725, %v4619
      %v4621 = vpop.f32.mrf.mxu0
      %v4622 = vadd.f32 %v729, %v4621
      %4623 = vmatprep.mubr.bf16.mxu0 0
      %4624 = vmatmul.mubr.bf16.gmra.mxu0 %v2571
      %v4625 = vpop.f32.mrf.mxu0
      %v4626 = vadd.f32 %v725, %v4625
      %v4627 = vpop.f32.mrf.mxu0
      %v4628 = vadd.f32 %v729, %v4627
      %v4629 = vpop.f32.mrf.mxu0
      %v4630 = vadd.f32 %v725, %v4629
      %v4631 = vpop.f32.mrf.mxu0
      %v4632 = vadd.f32 %v729, %v4631
      %4633 = vmatprep.mubr.bf16.mxu0 0
      %4634 = vmatmul.mubr.bf16.gmra.mxu0 %v2574
      %v4635 = vpop.f32.mrf.mxu0
      %v4636 = vadd.f32 %v725, %v4635
      %v4637 = vpop.f32.mrf.mxu0
      %v4638 = vadd.f32 %v729, %v4637
      %v4639 = vpop.f32.mrf.mxu0
      %v4640 = vadd.f32 %v725, %v4639
      %v4641 = vpop.f32.mrf.mxu0
      %v4642 = vadd.f32 %v729, %v4641
      %4643 = vmatprep.mubr.bf16.mxu0 0
      %4644 = vmatmul.mubr.bf16.gmra.mxu0 %v2577
      %v4645 = vpop.f32.mrf.mxu0
      %v4646 = vadd.f32 %v725, %v4645
      %v4647 = vpop.f32.mrf.mxu0
      %v4648 = vadd.f32 %v729, %v4647
      %v4649 = vpop.f32.mrf.mxu0
      %v4650 = vadd.f32 %v725, %v4649
      %v4651 = vpop.f32.mrf.mxu0
      %v4652 = vadd.f32 %v729, %v4651
      %4653 = vmatprep.mubr.bf16.mxu0 0
      %4654 = vmatmul.mubr.bf16.gmra.mxu0 %v2580
      %v4655 = vpop.f32.mrf.mxu0
      %v4656 = vadd.f32 %v725, %v4655
      %v4657 = vpop.f32.mrf.mxu0
      %v4658 = vadd.f32 %v729, %v4657
      %v4659 = vpop.f32.mrf.mxu0
      %v4660 = vadd.f32 %v725, %v4659
      %v4661 = vpop.f32.mrf.mxu0
      %v4662 = vadd.f32 %v729, %v4661
      %4663 = vmatprep.mubr.bf16.mxu0 0
      %4664 = vmatmul.mubr.bf16.gmra.mxu0 %v2583
      %v4665 = vpop.f32.mrf.mxu0
      %v4666 = vadd.f32 %v725, %v4665
      %v4667 = vpop.f32.mrf.mxu0
      %v4668 = vadd.f32 %v729, %v4667
      %v4669 = vpop.f32.mrf.mxu0
      %v4670 = vadd.f32 %v725, %v4669
      %v4671 = vpop.f32.mrf.mxu0
      %v4672 = vadd.f32 %v729, %v4671
      %4673 = vmatprep.mubr.bf16.mxu0 0
      %4674 = vmatmul.mubr.bf16.gmra.mxu0 %v2586
      %v4675 = vpop.f32.mrf.mxu0
      %v4676 = vadd.f32 %v725, %v4675
      %v4677 = vpop.f32.mrf.mxu0
      %v4678 = vadd.f32 %v729, %v4677
      %v4679 = vpop.f32.mrf.mxu0
      %v4680 = vadd.f32 %v725, %v4679
      %v4681 = vpop.f32.mrf.mxu0
      %v4682 = vadd.f32 %v729, %v4681
      %4683 = vmatprep.mubr.bf16.mxu0 0
      %4684 = vmatmul.mubr.bf16.gmra.mxu0 %v2589
      %v4685 = vpop.f32.mrf.mxu0
      %v4686 = vadd.f32 %v725, %v4685
      %v4687 = vpop.f32.mrf.mxu0
      %v4688 = vadd.f32 %v729, %v4687
      %v4689 = vpop.f32.mrf.mxu0
      %v4690 = vadd.f32 %v725, %v4689
      %v4691 = vpop.f32.mrf.mxu0
      %v4692 = vadd.f32 %v729, %v4691
      %4693 = vmatprep.mubr.bf16.mxu0 0
      %4694 = vmatmul.mubr.bf16.gmra.mxu0 %v2592
      %v4695 = vpop.f32.mrf.mxu0
      %v4696 = vadd.f32 %v725, %v4695
      %v4697 = vpop.f32.mrf.mxu0
      %v4698 = vadd.f32 %v729, %v4697
      %v4699 = vpop.f32.mrf.mxu0
      %v4700 = vadd.f32 %v725, %v4699
      %v4701 = vpop.f32.mrf.mxu0
      %v4702 = vadd.f32 %v729, %v4701
      %4703 = vmatprep.mubr.bf16.mxu0 0
      %4704 = vmatmul.mubr.bf16.gmra.mxu0 %v2595
      %v4705 = vpop.f32.mrf.mxu0
      %v4706 = vadd.f32 %v725, %v4705
      %v4707 = vpop.f32.mrf.mxu0
      %v4708 = vadd.f32 %v729, %v4707
      %v4709 = vpop.f32.mrf.mxu0
      %v4710 = vadd.f32 %v725, %v4709
      %v4711 = vpop.f32.mrf.mxu0
      %v4712 = vadd.f32 %v729, %v4711
      %4713 = vmatprep.mubr.bf16.mxu0 0
      %4714 = vmatmul.mubr.bf16.gmra.mxu0 %v2598
      %v4715 = vpop.f32.mrf.mxu0
      %v4716 = vadd.f32 %v725, %v4715
      %v4717 = vpop.f32.mrf.mxu0
      %v4718 = vadd.f32 %v729, %v4717
      %v4719 = vpop.f32.mrf.mxu0
      %v4720 = vadd.f32 %v725, %v4719
      %v4721 = vpop.f32.mrf.mxu0
      %v4722 = vadd.f32 %v729, %v4721
      %4723 = vmatprep.mubr.bf16.mxu0 0
      %4724 = vmatmul.mubr.bf16.gmra.mxu0 %v2601
      %v4725 = vpop.f32.mrf.mxu0
      %v4726 = vadd.f32 %v725, %v4725
      %v4727 = vpop.f32.mrf.mxu0
      %v4728 = vadd.f32 %v729, %v4727
      %v4729 = vpop.f32.mrf.mxu0
      %v4730 = vadd.f32 %v725, %v4729
      %v4731 = vpop.f32.mrf.mxu0
      %v4732 = vadd.f32 %v729, %v4731
      %4733 = vmatprep.mubr.bf16.mxu0 0
      %4734 = vmatmul.mubr.bf16.gmra.mxu0 %v2604
      %v4735 = vpop.f32.mrf.mxu0
      %v4736 = vadd.f32 %v725, %v4735
      %v4737 = vpop.f32.mrf.mxu0
      %v4738 = vadd.f32 %v729, %v4737
      %v4739 = vpop.f32.mrf.mxu0
      %v4740 = vadd.f32 %v725, %v4739
      %v4741 = vpop.f32.mrf.mxu0
      %v4742 = vadd.f32 %v729, %v4741
      %4743 = vmatprep.mubr.bf16.mxu0 0
      %4744 = vmatmul.mubr.bf16.gmra.mxu0 %v2607
      %v4745 = vpop.f32.mrf.mxu0
      %v4746 = vadd.f32 %v725, %v4745
      %v4747 = vpop.f32.mrf.mxu0
      %v4748 = vadd.f32 %v729, %v4747
      %v4749 = vpop.f32.mrf.mxu0
      %v4750 = vadd.f32 %v725, %v4749
      %v4751 = vpop.f32.mrf.mxu0
      %v4752 = vadd.f32 %v729, %v4751
      %4753 = vmatprep.mubr.bf16.mxu0 0
      %4754 = vmatmul.mubr.bf16.gmra.mxu0 %v2610
      %v4755 = vpop.f32.mrf.mxu0
      %v4756 = vadd.f32 %v725, %v4755
      %v4757 = vpop.f32.mrf.mxu0
      %v4758 = vadd.f32 %v729, %v4757
      %v4759 = vpop.f32.mrf.mxu0
      %v4760 = vadd.f32 %v725, %v4759
      %v4761 = vpop.f32.mrf.mxu0
      %v4762 = vadd.f32 %v729, %v4761
      %4763 = vmatprep.mubr.bf16.mxu0 0
      %4764 = vmatmul.mubr.bf16.gmra.mxu0 %v2613
      %v4765 = vpop.f32.mrf.mxu0
      %v4766 = vadd.f32 %v725, %v4765
      %v4767 = vpop.f32.mrf.mxu0
      %v4768 = vadd.f32 %v729, %v4767
      %v4769 = vpop.f32.mrf.mxu0
      %v4770 = vadd.f32 %v725, %v4769
      %v4771 = vpop.f32.mrf.mxu0
      %v4772 = vadd.f32 %v729, %v4771
      %4773 = vmatprep.mubr.bf16.mxu0 0
      %4774 = vmatmul.mubr.bf16.gmra.mxu0 %v2616
      %v4775 = vpop.f32.mrf.mxu0
      %v4776 = vadd.f32 %v725, %v4775
      %v4777 = vpop.f32.mrf.mxu0
      %v4778 = vadd.f32 %v729, %v4777
      %v4779 = vpop.f32.mrf.mxu0
      %v4780 = vadd.f32 %v725, %v4779
      %v4781 = vpop.f32.mrf.mxu0
      %v4782 = vadd.f32 %v729, %v4781
      %4783 = vmatprep.mubr.bf16.mxu0 0
      %4784 = vmatmul.mubr.bf16.gmra.mxu0 %v2619
      %v4785 = vpop.f32.mrf.mxu0
      %v4786 = vadd.f32 %v725, %v4785
      %v4787 = vpop.f32.mrf.mxu0
      %v4788 = vadd.f32 %v729, %v4787
      %v4789 = vpop.f32.mrf.mxu0
      %v4790 = vadd.f32 %v725, %v4789
      %v4791 = vpop.f32.mrf.mxu0
      %v4792 = vadd.f32 %v729, %v4791
      %4793 = vmatprep.mubr.bf16.mxu0 0
      %4794 = vmatmul.mubr.bf16.gmra.mxu0 %v2622
      %v4795 = vpop.f32.mrf.mxu0
      %v4796 = vadd.f32 %v725, %v4795
      %v4797 = vpop.f32.mrf.mxu0
      %v4798 = vadd.f32 %v729, %v4797
      %v4799 = vpop.f32.mrf.mxu0
      %v4800 = vadd.f32 %v725, %v4799
      %v4801 = vpop.f32.mrf.mxu0
      %v4802 = vadd.f32 %v729, %v4801
      %4803 = vmatprep.mubr.bf16.mxu0 0
      %4804 = vmatmul.mubr.bf16.gmra.mxu0 %v2625
      %v4805 = vpop.f32.mrf.mxu0
      %v4806 = vadd.f32 %v725, %v4805
      %v4807 = vpop.f32.mrf.mxu0
      %v4808 = vadd.f32 %v729, %v4807
      %v4809 = vpop.f32.mrf.mxu0
      %v4810 = vadd.f32 %v725, %v4809
      %v4811 = vpop.f32.mrf.mxu0
      %v4812 = vadd.f32 %v729, %v4811
      %4813 = vmatprep.mubr.bf16.mxu0 0
      %4814 = vmatmul.mubr.bf16.gmra.mxu0 %v2628
      %v4815 = vpop.f32.mrf.mxu0
      %v4816 = vadd.f32 %v725, %v4815
      %v4817 = vpop.f32.mrf.mxu0
      %v4818 = vadd.f32 %v729, %v4817
      %v4819 = vpop.f32.mrf.mxu0
      %v4820 = vadd.f32 %v725, %v4819
      %v4821 = vpop.f32.mrf.mxu0
      %v4822 = vadd.f32 %v729, %v4821
      %4823 = vmatprep.mubr.bf16.mxu0 0
      %4824 = vmatmul.mubr.bf16.gmra.mxu0 %v2631
      %v4825 = vpop.f32.mrf.mxu0
      %v4826 = vadd.f32 %v725, %v4825
      %v4827 = vpop.f32.mrf.mxu0
      %v4828 = vadd.f32 %v729, %v4827
      %v4829 = vpop.f32.mrf.mxu0
      %v4830 = vadd.f32 %v725, %v4829
      %v4831 = vpop.f32.mrf.mxu0
      %v4832 = vadd.f32 %v729, %v4831
      %4833 = vmatprep.mubr.bf16.mxu0 0
      %4834 = vmatmul.mubr.bf16.gmra.mxu0 %v2634
      %v4835 = vpop.f32.mrf.mxu0
      %v4836 = vadd.f32 %v725, %v4835
      %v4837 = vpop.f32.mrf.mxu0
      %v4838 = vadd.f32 %v729, %v4837
      %v4839 = vpop.f32.mrf.mxu0
      %v4840 = vadd.f32 %v725, %v4839
      %v4841 = vpop.f32.mrf.mxu0
      %v4842 = vadd.f32 %v729, %v4841
      %4843 = vmatprep.mubr.bf16.mxu0 0
      %4844 = vmatmul.mubr.bf16.gmra.mxu0 %v2637
      %v4845 = vpop.f32.mrf.mxu0
      %v4846 = vadd.f32 %v725, %v4845
      %v4847 = vpop.f32.mrf.mxu0
      %v4848 = vadd.f32 %v729, %v4847
      %v4849 = vpop.f32.mrf.mxu0
      %v4850 = vadd.f32 %v725, %v4849
      %v4851 = vpop.f32.mrf.mxu0
      %v4852 = vadd.f32 %v729, %v4851
      %4853 = vmatprep.mubr.bf16.mxu0 0
      %4854 = vmatmul.mubr.bf16.gmra.mxu0 %v2640
      %v4855 = vpop.f32.mrf.mxu0
      %v4856 = vadd.f32 %v725, %v4855
      %v4857 = vpop.f32.mrf.mxu0
      %v4858 = vadd.f32 %v729, %v4857
      %v4859 = vpop.f32.mrf.mxu0
      %v4860 = vadd.f32 %v725, %v4859
      %v4861 = vpop.f32.mrf.mxu0
      %v4862 = vadd.f32 %v729, %v4861
      %4863 = vmatprep.mubr.bf16.mxu0 0
      %4864 = vmatmul.mubr.bf16.gmra.mxu0 %v2643
      %v4865 = vpop.f32.mrf.mxu0
      %v4866 = vadd.f32 %v725, %v4865
      %v4867 = vpop.f32.mrf.mxu0
      %v4868 = vadd.f32 %v729, %v4867
      %v4869 = vpop.f32.mrf.mxu0
      %v4870 = vadd.f32 %v725, %v4869
      %v4871 = vpop.f32.mrf.mxu0
      %v4872 = vadd.f32 %v729, %v4871
      %4873 = vmatprep.mubr.bf16.mxu0 0
      %4874 = vmatmul.mubr.bf16.gmra.mxu0 %v2646
      %v4875 = vpop.f32.mrf.mxu0
      %v4876 = vadd.f32 %v725, %v4875
      %v4877 = vpop.f32.mrf.mxu0
      %v4878 = vadd.f32 %v729, %v4877
      %v4879 = vpop.f32.mrf.mxu0
      %v4880 = vadd.f32 %v725, %v4879
      %v4881 = vpop.f32.mrf.mxu0
      %v4882 = vadd.f32 %v729, %v4881
      %4883 = vmatprep.mubr.bf16.mxu0 0
      %4884 = vmatmul.mubr.bf16.gmra.mxu0 %v2649
      %v4885 = vpop.f32.mrf.mxu0
      %v4886 = vadd.f32 %v725, %v4885
      %v4887 = vpop.f32.mrf.mxu0
      %v4888 = vadd.f32 %v729, %v4887
      %v4889 = vpop.f32.mrf.mxu0
      %v4890 = vadd.f32 %v725, %v4889
      %v4891 = vpop.f32.mrf.mxu0
      %v4892 = vadd.f32 %v729, %v4891
      %4893 = vmatprep.mubr.bf16.mxu0 0
      %4894 = vmatmul.mubr.bf16.gmra.mxu0 %v2652
      %v4895 = vpop.f32.mrf.mxu0
      %v4896 = vadd.f32 %v725, %v4895
      %v4897 = vpop.f32.mrf.mxu0
      %v4898 = vadd.f32 %v729, %v4897
      %v4899 = vpop.f32.mrf.mxu0
      %v4900 = vadd.f32 %v725, %v4899
      %v4901 = vpop.f32.mrf.mxu0
      %v4902 = vadd.f32 %v729, %v4901
      %4903 = vmatprep.mubr.bf16.mxu0 0
      %4904 = vmatmul.mubr.bf16.gmra.mxu0 %v2655
      %v4905 = vpop.f32.mrf.mxu0
      %v4906 = vadd.f32 %v725, %v4905
      %v4907 = vpop.f32.mrf.mxu0
      %v4908 = vadd.f32 %v729, %v4907
      %v4909 = vpop.f32.mrf.mxu0
      %v4910 = vadd.f32 %v725, %v4909
      %v4911 = vpop.f32.mrf.mxu0
      %v4912 = vadd.f32 %v729, %v4911
      %4913 = vmatprep.mubr.bf16.mxu0 0
      %4914 = vmatmul.mubr.bf16.gmra.mxu0 %v2658
      %v4915 = vpop.f32.mrf.mxu0
      %v4916 = vadd.f32 %v725, %v4915
      %v4917 = vpop.f32.mrf.mxu0
      %v4918 = vadd.f32 %v729, %v4917
      %v4919 = vpop.f32.mrf.mxu0
      %v4920 = vadd.f32 %v725, %v4919
      %v4921 = vpop.f32.mrf.mxu0
      %v4922 = vadd.f32 %v729, %v4921
      %4923 = vmatprep.mubr.bf16.mxu0 0
      %4924 = vmatmul.mubr.bf16.gmra.mxu0 %v2661
      %v4925 = vpop.f32.mrf.mxu0
      %v4926 = vadd.f32 %v725, %v4925
      %v4927 = vpop.f32.mrf.mxu0
      %v4928 = vadd.f32 %v729, %v4927
      %v4929 = vpop.f32.mrf.mxu0
      %v4930 = vadd.f32 %v725, %v4929
      %v4931 = vpop.f32.mrf.mxu0
      %v4932 = vadd.f32 %v729, %v4931
      %4933 = vmatprep.mubr.bf16.mxu0 0
      %4934 = vmatmul.mubr.bf16.gmra.mxu0 %v2664
      %v4935 = vpop.f32.mrf.mxu0
      %v4936 = vadd.f32 %v725, %v4935
      %v4937 = vpop.f32.mrf.mxu0
      %v4938 = vadd.f32 %v729, %v4937
      %v4939 = vpop.f32.mrf.mxu0
      %v4940 = vadd.f32 %v725, %v4939
      %v4941 = vpop.f32.mrf.mxu0
      %v4942 = vadd.f32 %v729, %v4941
      %4943 = vmatprep.mubr.bf16.mxu0 0
      %4944 = vmatmul.mubr.bf16.gmra.mxu0 %v2667
      %v4945 = vpop.f32.mrf.mxu0
      %v4946 = vadd.f32 %v725, %v4945
      %v4947 = vpop.f32.mrf.mxu0
      %v4948 = vadd.f32 %v729, %v4947
      %v4949 = vpop.f32.mrf.mxu0
      %v4950 = vadd.f32 %v725, %v4949
      %v4951 = vpop.f32.mrf.mxu0
      %v4952 = vadd.f32 %v729, %v4951
      %4953 = vmatprep.mubr.bf16.mxu0 0
      %4954 = vmatmul.mubr.bf16.gmra.mxu0 %v2670
      %v4955 = vpop.f32.mrf.mxu0
      %v4956 = vadd.f32 %v725, %v4955
      %v4957 = vpop.f32.mrf.mxu0
      %v4958 = vadd.f32 %v729, %v4957
      %v4959 = vpop.f32.mrf.mxu0
      %v4960 = vadd.f32 %v725, %v4959
      %v4961 = vpop.f32.mrf.mxu0
      %v4962 = vadd.f32 %v729, %v4961
      %4963 = vmatprep.mubr.bf16.mxu0 0
      %4964 = vmatmul.mubr.bf16.gmra.mxu0 %v2673
      %v4965 = vpop.f32.mrf.mxu0
      %v4966 = vadd.f32 %v725, %v4965
      %v4967 = vpop.f32.mrf.mxu0
      %v4968 = vadd.f32 %v729, %v4967
      %v4969 = vpop.f32.mrf.mxu0
      %v4970 = vadd.f32 %v725, %v4969
      %v4971 = vpop.f32.mrf.mxu0
      %v4972 = vadd.f32 %v729, %v4971
      %4973 = vmatprep.mubr.bf16.mxu0 0
      %4974 = vmatmul.mubr.bf16.gmra.mxu0 %v2676
      %v4975 = vpop.f32.mrf.mxu0
      %v4976 = vadd.f32 %v725, %v4975
      %v4977 = vpop.f32.mrf.mxu0
      %v4978 = vadd.f32 %v729, %v4977
      %v4979 = vpop.f32.mrf.mxu0
      %v4980 = vadd.f32 %v725, %v4979
      %v4981 = vpop.f32.mrf.mxu0
      %v4982 = vadd.f32 %v729, %v4981
      %4983 = vmatprep.mubr.bf16.mxu0 0
      %4984 = vmatmul.mubr.bf16.gmra.mxu0 %v2679
      %v4985 = vpop.f32.mrf.mxu0
      %v4986 = vadd.f32 %v725, %v4985
      %v4987 = vpop.f32.mrf.mxu0
      %v4988 = vadd.f32 %v729, %v4987
      %v4989 = vpop.f32.mrf.mxu0
      %v4990 = vadd.f32 %v725, %v4989
      %v4991 = vpop.f32.mrf.mxu0
      %v4992 = vadd.f32 %v729, %v4991
      %4993 = vmatprep.mubr.bf16.mxu0 0
      %4994 = vmatmul.mubr.bf16.gmra.mxu0 %v2682
      %v4995 = vpop.f32.mrf.mxu0
      %v4996 = vadd.f32 %v725, %v4995
      %v4997 = vpop.f32.mrf.mxu0
      %v4998 = vadd.f32 %v729, %v4997
      %v4999 = vpop.f32.mrf.mxu0
      %v5000 = vadd.f32 %v725, %v4999
      %v5001 = vpop.f32.mrf.mxu0
      %v5002 = vadd.f32 %v729, %v5001
      %5003 = vmatprep.mubr.bf16.mxu0 0
      %5004 = vmatmul.mubr.bf16.gmra.mxu0 %v2685
      %v5005 = vpop.f32.mrf.mxu0
      %v5006 = vadd.f32 %v725, %v5005
      %v5007 = vpop.f32.mrf.mxu0
      %v5008 = vadd.f32 %v729, %v5007
      %v5009 = vpop.f32.mrf.mxu0
      %v5010 = vadd.f32 %v725, %v5009
      %v5011 = vpop.f32.mrf.mxu0
      %v5012 = vadd.f32 %v729, %v5011
      %5013 = vmatprep.mubr.bf16.mxu0 0
      %5014 = vmatmul.mubr.bf16.gmra.mxu0 %v2688
      %v5015 = vpop.f32.mrf.mxu0
      %v5016 = vadd.f32 %v725, %v5015
      %v5017 = vpop.f32.mrf.mxu0
      %v5018 = vadd.f32 %v729, %v5017
      %v5019 = vpop.f32.mrf.mxu0
      %v5020 = vadd.f32 %v725, %v5019
      %v5021 = vpop.f32.mrf.mxu0
      %v5022 = vadd.f32 %v729, %v5021
      %5023 = vmatprep.mubr.bf16.mxu0 0
      %5024 = vmatmul.mubr.bf16.gmra.mxu0 %v2691
      %v5025 = vpop.f32.mrf.mxu0
      %v5026 = vadd.f32 %v725, %v5025
      %v5027 = vpop.f32.mrf.mxu0
      %v5028 = vadd.f32 %v729, %v5027
      %v5029 = vpop.f32.mrf.mxu0
      %v5030 = vadd.f32 %v725, %v5029
      %v5031 = vpop.f32.mrf.mxu0
      %v5032 = vadd.f32 %v729, %v5031
      %5033 = vmatprep.mubr.bf16.mxu0 0
      %5034 = vmatmul.mubr.bf16.gmra.mxu0 %v2694
      %v5035 = vpop.f32.mrf.mxu0
      %v5036 = vadd.f32 %v725, %v5035
      %v5037 = vpop.f32.mrf.mxu0
      %v5038 = vadd.f32 %v729, %v5037
      %v5039 = vpop.f32.mrf.mxu0
      %v5040 = vadd.f32 %v725, %v5039
      %v5041 = vpop.f32.mrf.mxu0
      %v5042 = vadd.f32 %v729, %v5041
      %5043 = vmatprep.mubr.bf16.mxu0 0
      %5044 = vmatmul.mubr.bf16.gmra.mxu0 %v2697
      %v5045 = vpop.f32.mrf.mxu0
      %v5046 = vadd.f32 %v725, %v5045
      %v5047 = vpop.f32.mrf.mxu0
      %v5048 = vadd.f32 %v729, %v5047
      %v5049 = vpop.f32.mrf.mxu0
      %v5050 = vadd.f32 %v725, %v5049
      %v5051 = vpop.f32.mrf.mxu0
      %v5052 = vadd.f32 %v729, %v5051
      %5053 = vmatprep.mubr.bf16.mxu0 0
      %5054 = vmatmul.mubr.bf16.gmra.mxu0 %v2700
      %v5055 = vpop.f32.mrf.mxu0
      %v5056 = vadd.f32 %v725, %v5055
      %v5057 = vpop.f32.mrf.mxu0
      %v5058 = vadd.f32 %v729, %v5057
      %v5059 = vpop.f32.mrf.mxu0
      %v5060 = vadd.f32 %v725, %v5059
      %v5061 = vpop.f32.mrf.mxu0
      %v5062 = vadd.f32 %v729, %v5061
      %5063 = vmatprep.mubr.bf16.mxu0 0
      %5064 = vmatmul.mubr.bf16.gmra.mxu0 %v2703
      %v5065 = vpop.f32.mrf.mxu0
      %v5066 = vadd.f32 %v725, %v5065
      %v5067 = vpop.f32.mrf.mxu0
      %v5068 = vadd.f32 %v729, %v5067
      %v5069 = vpop.f32.mrf.mxu0
      %v5070 = vadd.f32 %v725, %v5069
      %v5071 = vpop.f32.mrf.mxu0
      %v5072 = vadd.f32 %v729, %v5071
      %5073 = vmatprep.mubr.bf16.mxu0 0
      %5074 = vmatmul.mubr.bf16.gmra.mxu0 %v2706
      %v5075 = vpop.f32.mrf.mxu0
      %v5076 = vadd.f32 %v725, %v5075
      %v5077 = vpop.f32.mrf.mxu0
      %v5078 = vadd.f32 %v729, %v5077
      %v5079 = vpop.f32.mrf.mxu0
      %v5080 = vadd.f32 %v725, %v5079
      %v5081 = vpop.f32.mrf.mxu0
      %v5082 = vadd.f32 %v729, %v5081
      %5083 = vmatprep.mubr.bf16.mxu0 0
      %5084 = vmatmul.mubr.bf16.gmra.mxu0 %v2709
      %v5085 = vpop.f32.mrf.mxu0
      %v5086 = vadd.f32 %v725, %v5085
      %v5087 = vpop.f32.mrf.mxu0
      %v5088 = vadd.f32 %v729, %v5087
      %v5089 = vpop.f32.mrf.mxu0
      %v5090 = vadd.f32 %v725, %v5089
      %v5091 = vpop.f32.mrf.mxu0
      %v5092 = vadd.f32 %v729, %v5091
      %5093 = vmatprep.mubr.bf16.mxu0 0
      %5094 = vmatmul.mubr.bf16.gmra.mxu0 %v2712
      %v5095 = vpop.f32.mrf.mxu0
      %v5096 = vadd.f32 %v725, %v5095
      %v5097 = vpop.f32.mrf.mxu0
      %v5098 = vadd.f32 %v729, %v5097
      %v5099 = vpop.f32.mrf.mxu0
      %v5100 = vadd.f32 %v725, %v5099
      %v5101 = vpop.f32.mrf.mxu0
      %v5102 = vadd.f32 %v729, %v5101
      %5103 = vmatprep.mubr.bf16.mxu0 0
      %5104 = vmatmul.mubr.bf16.gmra.mxu0 %v2715
      %v5105 = vpop.f32.mrf.mxu0
      %v5106 = vadd.f32 %v725, %v5105
      %v5107 = vpop.f32.mrf.mxu0
      %v5108 = vadd.f32 %v729, %v5107
      %v5109 = vpop.f32.mrf.mxu0
      %v5110 = vadd.f32 %v725, %v5109
      %v5111 = vpop.f32.mrf.mxu0
      %v5112 = vadd.f32 %v729, %v5111
      %5113 = vmatprep.mubr.bf16.mxu0 0
      %5114 = vmatmul.mubr.bf16.gmra.mxu0 %v2718
      %v5115 = vpop.f32.mrf.mxu0
      %v5116 = vadd.f32 %v725, %v5115
      %v5117 = vpop.f32.mrf.mxu0
      %v5118 = vadd.f32 %v729, %v5117
      %v5119 = vpop.f32.mrf.mxu0
      %v5120 = vadd.f32 %v725, %v5119
      %v5121 = vpop.f32.mrf.mxu0
      %v5122 = vadd.f32 %v729, %v5121
      %5123 = vmatprep.mubr.bf16.mxu0 0
      %5124 = vmatmul.mubr.bf16.gmra.mxu0 %v2721
      %v5125 = vpop.f32.mrf.mxu0
      %v5126 = vadd.f32 %v725, %v5125
      %v5127 = vpop.f32.mrf.mxu0
      %v5128 = vadd.f32 %v729, %v5127
      %v5129 = vpop.f32.mrf.mxu0
      %v5130 = vadd.f32 %v725, %v5129
      %v5131 = vpop.f32.mrf.mxu0
      %v5132 = vadd.f32 %v729, %v5131
      %5133 = vmatprep.mubr.bf16.mxu0 0
      %5134 = vmatmul.mubr.bf16.gmra.mxu0 %v2724
      %v5135 = vpop.f32.mrf.mxu0
      %v5136 = vadd.f32 %v725, %v5135
      %v5137 = vpop.f32.mrf.mxu0
      %v5138 = vadd.f32 %v729, %v5137
      %v5139 = vpop.f32.mrf.mxu0
      %v5140 = vadd.f32 %v725, %v5139
      %v5141 = vpop.f32.mrf.mxu0
      %v5142 = vadd.f32 %v729, %v5141
      %5143 = vmatprep.mubr.bf16.mxu0 0
      %5144 = vmatmul.mubr.bf16.gmra.mxu0 %v2727
      %v5145 = vpop.f32.mrf.mxu0
      %v5146 = vadd.f32 %v725, %v5145
      %v5147 = vpop.f32.mrf.mxu0
      %v5148 = vadd.f32 %v729, %v5147
      %v5149 = vpop.f32.mrf.mxu0
      %v5150 = vadd.f32 %v725, %v5149
      %v5151 = vpop.f32.mrf.mxu0
      %v5152 = vadd.f32 %v729, %v5151
      %5153 = vmatprep.mubr.bf16.mxu0 0
      %5154 = vmatmul.mubr.bf16.gmra.mxu0 %v2730
      %v5155 = vpop.f32.mrf.mxu0
      %v5156 = vadd.f32 %v725, %v5155
      %v5157 = vpop.f32.mrf.mxu0
      %v5158 = vadd.f32 %v729, %v5157
      %v5159 = vpop.f32.mrf.mxu0
      %v5160 = vadd.f32 %v725, %v5159
      %v5161 = vpop.f32.mrf.mxu0
      %v5162 = vadd.f32 %v729, %v5161
      %5163 = vmatprep.mubr.bf16.mxu0 0
      %5164 = vmatmul.mubr.bf16.gmra.mxu0 %v2733
      %v5165 = vpop.f32.mrf.mxu0
      %v5166 = vadd.f32 %v725, %v5165
      %v5167 = vpop.f32.mrf.mxu0
      %v5168 = vadd.f32 %v729, %v5167
      %v5169 = vpop.f32.mrf.mxu0
      %v5170 = vadd.f32 %v725, %v5169
      %v5171 = vpop.f32.mrf.mxu0
      %v5172 = vadd.f32 %v729, %v5171
      %5173 = vmatprep.mubr.bf16.mxu0 0
      %5174 = vmatmul.mubr.bf16.gmra.mxu0 %v2736
      %v5175 = vpop.f32.mrf.mxu0
      %v5176 = vadd.f32 %v725, %v5175
      %v5177 = vpop.f32.mrf.mxu0
      %v5178 = vadd.f32 %v729, %v5177
      %v5179 = vpop.f32.mrf.mxu0
      %v5180 = vadd.f32 %v725, %v5179
      %v5181 = vpop.f32.mrf.mxu0
      %v5182 = vadd.f32 %v729, %v5181
      %5183 = vmatprep.mubr.bf16.mxu0 0
      %5184 = vmatmul.mubr.bf16.gmra.mxu0 %v2739
      %v5185 = vpop.f32.mrf.mxu0
      %v5186 = vadd.f32 %v725, %v5185
      %v5187 = vpop.f32.mrf.mxu0
      %v5188 = vadd.f32 %v729, %v5187
      %v5189 = vpop.f32.mrf.mxu0
      %v5190 = vadd.f32 %v725, %v5189
      %v5191 = vpop.f32.mrf.mxu0
      %v5192 = vadd.f32 %v729, %v5191
      %5193 = vmatprep.mubr.bf16.mxu0 0
      %5194 = vmatmul.mubr.bf16.gmra.mxu0 %v2742
      %v5195 = vpop.f32.mrf.mxu0
      %v5196 = vadd.f32 %v725, %v5195
      %v5197 = vpop.f32.mrf.mxu0
      %v5198 = vadd.f32 %v729, %v5197
      %v5199 = vpop.f32.mrf.mxu0
      %v5200 = vadd.f32 %v725, %v5199
      %v5201 = vpop.f32.mrf.mxu0
      %v5202 = vadd.f32 %v729, %v5201
      %5203 = vmatprep.mubr.bf16.mxu0 0
      %5204 = vmatmul.mubr.bf16.gmra.mxu0 %v2745
      %v5205 = vpop.f32.mrf.mxu0
      %v5206 = vadd.f32 %v725, %v5205
      %v5207 = vpop.f32.mrf.mxu0
      %v5208 = vadd.f32 %v729, %v5207
      %v5209 = vpop.f32.mrf.mxu0
      %v5210 = vadd.f32 %v725, %v5209
      %v5211 = vpop.f32.mrf.mxu0
      %v5212 = vadd.f32 %v729, %v5211
      %5213 = vmatprep.mubr.bf16.mxu0 0
      %5214 = vmatmul.mubr.bf16.gmra.mxu0 %v2748
      %v5215 = vpop.f32.mrf.mxu0
      %v5216 = vadd.f32 %v725, %v5215
      %v5217 = vpop.f32.mrf.mxu0
      %v5218 = vadd.f32 %v729, %v5217
      %v5219 = vpop.f32.mrf.mxu0
      %v5220 = vadd.f32 %v725, %v5219
      %v5221 = vpop.f32.mrf.mxu0
      %v5222 = vadd.f32 %v729, %v5221
      %5223 = vmatprep.mubr.bf16.mxu0 0
      %5224 = vmatmul.mubr.bf16.gmra.mxu0 %v2751
      %v5225 = vpop.f32.mrf.mxu0
      %v5226 = vadd.f32 %v725, %v5225
      %v5227 = vpop.f32.mrf.mxu0
      %v5228 = vadd.f32 %v729, %v5227
      %v5229 = vpop.f32.mrf.mxu0
      %v5230 = vadd.f32 %v725, %v5229
      %v5231 = vpop.f32.mrf.mxu0
      %v5232 = vadd.f32 %v729, %v5231
      %5233 = vmatprep.mubr.bf16.mxu0 0
      %5234 = vmatmul.mubr.bf16.gmra.mxu0 %v2754
      %v5235 = vpop.f32.mrf.mxu0
      %v5236 = vadd.f32 %v725, %v5235
      %v5237 = vpop.f32.mrf.mxu0
      %v5238 = vadd.f32 %v729, %v5237
      %v5239 = vpop.f32.mrf.mxu0
      %v5240 = vadd.f32 %v725, %v5239
      %v5241 = vpop.f32.mrf.mxu0
      %v5242 = vadd.f32 %v729, %v5241
      %5243 = vmatprep.mubr.bf16.mxu0 0
      %5244 = vmatmul.mubr.bf16.gmra.mxu0 %v2757
      %v5245 = vpop.f32.mrf.mxu0
      %v5246 = vadd.f32 %v725, %v5245
      %v5247 = vpop.f32.mrf.mxu0
      %v5248 = vadd.f32 %v729, %v5247
      %v5249 = vpop.f32.mrf.mxu0
      %v5250 = vadd.f32 %v725, %v5249
      %v5251 = vpop.f32.mrf.mxu0
      %v5252 = vadd.f32 %v729, %v5251
      %5253 = vmatprep.mubr.bf16.mxu0 0
      %5254 = vmatmul.mubr.bf16.gmra.mxu0 %v2760
      %v5255 = vpop.f32.mrf.mxu0
      %v5256 = vadd.f32 %v725, %v5255
      %v5257 = vpop.f32.mrf.mxu0
      %v5258 = vadd.f32 %v729, %v5257
      %v5259 = vpop.f32.mrf.mxu0
      %v5260 = vadd.f32 %v725, %v5259
      %v5261 = vpop.f32.mrf.mxu0
      %v5262 = vadd.f32 %v729, %v5261
      %5263 = vmatprep.mubr.bf16.mxu0 0
      %5264 = vmatmul.mubr.bf16.gmra.mxu0 %v2763
      %v5265 = vpop.f32.mrf.mxu0
      %v5266 = vadd.f32 %v725, %v5265
      %v5267 = vpop.f32.mrf.mxu0
      %v5268 = vadd.f32 %v729, %v5267
      %v5269 = vpop.f32.mrf.mxu0
      %v5270 = vadd.f32 %v725, %v5269
      %v5271 = vpop.f32.mrf.mxu0
      %v5272 = vadd.f32 %v729, %v5271
      %5273 = vmatprep.mubr.bf16.mxu0 0
      %5274 = vmatmul.mubr.bf16.gmra.mxu0 %v2766
      %v5275 = vpop.f32.mrf.mxu0
      %v5276 = vadd.f32 %v725, %v5275
      %v5277 = vpop.f32.mrf.mxu0
      %v5278 = vadd.f32 %v729, %v5277
      %v5279 = vpop.f32.mrf.mxu0
      %v5280 = vadd.f32 %v725, %v5279
      %v5281 = vpop.f32.mrf.mxu0
      %v5282 = vadd.f32 %v729, %v5281
      %5283 = vmatprep.mubr.bf16.mxu0 0
      %5284 = vmatmul.mubr.bf16.gmra.mxu0 %v2769
      %v5285 = vpop.f32.mrf.mxu0
      %v5286 = vadd.f32 %v725, %v5285
      %v5287 = vpop.f32.mrf.mxu0
      %v5288 = vadd.f32 %v729, %v5287
      %v5289 = vpop.f32.mrf.mxu0
      %v5290 = vadd.f32 %v725, %v5289
      %v5291 = vpop.f32.mrf.mxu0
      %v5292 = vadd.f32 %v729, %v5291
      %5293 = vmatprep.mubr.bf16.mxu0 0
      %5294 = vmatmul.mubr.bf16.gmra.mxu0 %v2772
      %v5295 = vpop.f32.mrf.mxu0
      %v5296 = vadd.f32 %v725, %v5295
      %v5297 = vpop.f32.mrf.mxu0
      %v5298 = vadd.f32 %v729, %v5297
      %v5299 = vpop.f32.mrf.mxu0
      %v5300 = vadd.f32 %v725, %v5299
      %v5301 = vpop.f32.mrf.mxu0
      %v5302 = vadd.f32 %v729, %v5301
      %5303 = vmatprep.mubr.bf16.mxu0 0
      %5304 = vmatmul.mubr.bf16.gmra.mxu0 %v2775
      %v5305 = vpop.f32.mrf.mxu0
      %v5306 = vadd.f32 %v725, %v5305
      %v5307 = vpop.f32.mrf.mxu0
      %v5308 = vadd.f32 %v729, %v5307
      %v5309 = vpop.f32.mrf.mxu0
      %v5310 = vadd.f32 %v725, %v5309
      %v5311 = vpop.f32.mrf.mxu0
      %v5312 = vadd.f32 %v729, %v5311
      %5313 = vmatprep.mubr.bf16.mxu0 0
      %5314 = vmatmul.mubr.bf16.gmra.mxu0 %v2778
      %v5315 = vpop.f32.mrf.mxu0
      %v5316 = vadd.f32 %v725, %v5315
      %v5317 = vpop.f32.mrf.mxu0
      %v5318 = vadd.f32 %v729, %v5317
      %v5319 = vpop.f32.mrf.mxu0
      %v5320 = vadd.f32 %v725, %v5319
      %v5321 = vpop.f32.mrf.mxu0
      %v5322 = vadd.f32 %v729, %v5321
      %5323 = vmatprep.mubr.bf16.mxu0 0
      %5324 = vmatmul.mubr.bf16.gmra.mxu0 %v2781
      %v5325 = vpop.f32.mrf.mxu0
      %v5326 = vadd.f32 %v725, %v5325
      %v5327 = vpop.f32.mrf.mxu0
      %v5328 = vadd.f32 %v729, %v5327
      %v5329 = vpop.f32.mrf.mxu0
      %v5330 = vadd.f32 %v725, %v5329
      %v5331 = vpop.f32.mrf.mxu0
      %v5332 = vadd.f32 %v729, %v5331
      %5333 = vmatprep.mubr.bf16.mxu0 0
      %5334 = vmatmul.mubr.bf16.gmra.mxu0 %v2784
      %v5335 = vpop.f32.mrf.mxu0
      %v5336 = vadd.f32 %v725, %v5335
      %v5337 = vpop.f32.mrf.mxu0
      %v5338 = vadd.f32 %v729, %v5337
      %v5339 = vpop.f32.mrf.mxu0
      %v5340 = vadd.f32 %v725, %v5339
      %v5341 = vpop.f32.mrf.mxu0
      %v5342 = vadd.f32 %v729, %v5341
      %5343 = vmatprep.mubr.bf16.mxu0 0
      %5344 = vmatmul.mubr.bf16.gmra.mxu0 %v2787
      %v5345 = vpop.f32.mrf.mxu0
      %v5346 = vadd.f32 %v725, %v5345
      %v5347 = vpop.f32.mrf.mxu0
      %v5348 = vadd.f32 %v729, %v5347
      %v5349 = vpop.f32.mrf.mxu0
      %v5350 = vadd.f32 %v725, %v5349
      %v5351 = vpop.f32.mrf.mxu0
      %v5352 = vadd.f32 %v729, %v5351
      %5353 = vmatprep.mubr.bf16.mxu0 0
      %5354 = vmatmul.mubr.bf16.gmra.mxu0 %v2790
      %v5355 = vpop.f32.mrf.mxu0
      %v5356 = vadd.f32 %v725, %v5355
      %v5357 = vpop.f32.mrf.mxu0
      %v5358 = vadd.f32 %v729, %v5357
      %v5359 = vpop.f32.mrf.mxu0
      %v5360 = vadd.f32 %v725, %v5359
      %v5361 = vpop.f32.mrf.mxu0
      %v5362 = vadd.f32 %v729, %v5361
      %5363 = vmatprep.mubr.bf16.mxu0 0
      %5364 = vmatmul.mubr.bf16.gmra.mxu0 %v2793
      %v5365 = vpop.f32.mrf.mxu0
      %v5366 = vadd.f32 %v725, %v5365
      %v5367 = vpop.f32.mrf.mxu0
      %v5368 = vadd.f32 %v729, %v5367
      %v5369 = vpop.f32.mrf.mxu0
      %v5370 = vadd.f32 %v725, %v5369
      %v5371 = vpop.f32.mrf.mxu0
      %v5372 = vadd.f32 %v729, %v5371
      %5373 = vmatprep.mubr.bf16.mxu0 0
      %5374 = vmatmul.mubr.bf16.gmra.mxu0 %v2796
      %v5375 = vpop.f32.mrf.mxu0
      %v5376 = vadd.f32 %v725, %v5375
      %v5377 = vpop.f32.mrf.mxu0
      %v5378 = vadd.f32 %v729, %v5377
      %v5379 = vpop.f32.mrf.mxu0
      %v5380 = vadd.f32 %v725, %v5379
      %v5381 = vpop.f32.mrf.mxu0
      %v5382 = vadd.f32 %v729, %v5381
      %5383 = vmatprep.mubr.bf16.mxu0 0
      %5384 = vmatmul.mubr.bf16.gmra.mxu0 %v2799
      %v5385 = vpop.f32.mrf.mxu0
      %v5386 = vadd.f32 %v725, %v5385
      %v5387 = vpop.f32.mrf.mxu0
      %v5388 = vadd.f32 %v729, %v5387
      %v5389 = vpop.f32.mrf.mxu0
      %v5390 = vadd.f32 %v725, %v5389
      %v5391 = vpop.f32.mrf.mxu0
      %v5392 = vadd.f32 %v729, %v5391
      %5393 = vdwg.mxu0
      %v5394 = vmax.f32 %v2836, 0.0
      %v5395 = vmax.f32 %v2838, 0.0
      %v5396 = vmax.f32 %v2840, 0.0
      %v5397 = vmax.f32 %v2842, 0.0
      %v5398 = vmax.f32 %v2846, 0.0
      %v5399 = vmax.f32 %v2848, 0.0
      %v5400 = vmax.f32 %v2850, 0.0
      %v5401 = vmax.f32 %v2852, 0.0
      %v5402 = vmax.f32 %v2856, 0.0
      %v5403 = vmax.f32 %v2858, 0.0
      %v5404 = vmax.f32 %v2860, 0.0
      %v5405 = vmax.f32 %v2862, 0.0
      %v5406 = vmax.f32 %v2866, 0.0
      %v5407 = vmax.f32 %v2868, 0.0
      %v5408 = vmax.f32 %v2870, 0.0
      %v5409 = vmax.f32 %v2872, 0.0
      %v5410 = vmax.f32 %v2876, 0.0
      %v5411 = vmax.f32 %v2878, 0.0
      %v5412 = vmax.f32 %v2880, 0.0
      %v5413 = vmax.f32 %v2882, 0.0
      %v5414 = vmax.f32 %v2886, 0.0
      %v5415 = vmax.f32 %v2888, 0.0
      %v5416 = vmax.f32 %v2890, 0.0
      %v5417 = vmax.f32 %v2892, 0.0
      %v5418 = vmax.f32 %v2896, 0.0
      %v5419 = vmax.f32 %v2898, 0.0
      %v5420 = vmax.f32 %v2900, 0.0
      %v5421 = vmax.f32 %v2902, 0.0
      %v5422 = vmax.f32 %v2906, 0.0
      %v5423 = vmax.f32 %v2908, 0.0
      %v5424 = vmax.f32 %v2910, 0.0
      %v5425 = vmax.f32 %v2912, 0.0
      %v5426 = vmax.f32 %v2916, 0.0
      %v5427 = vmax.f32 %v2918, 0.0
      %v5428 = vmax.f32 %v2920, 0.0
      %v5429 = vmax.f32 %v2922, 0.0
      %v5430 = vmax.f32 %v2926, 0.0
      %v5431 = vmax.f32 %v2928, 0.0
      %v5432 = vmax.f32 %v2930, 0.0
      %v5433 = vmax.f32 %v2932, 0.0
      %v5434 = vmax.f32 %v2936, 0.0
      %v5435 = vmax.f32 %v2938, 0.0
      %v5436 = vmax.f32 %v2940, 0.0
      %v5437 = vmax.f32 %v2942, 0.0
      %v5438 = vmax.f32 %v2946, 0.0
      %v5439 = vmax.f32 %v2948, 0.0
      %v5440 = vmax.f32 %v2950, 0.0
      %v5441 = vmax.f32 %v2952, 0.0
      %v5442 = vmax.f32 %v2956, 0.0
      %v5443 = vmax.f32 %v2958, 0.0
      %v5444 = vmax.f32 %v2960, 0.0
      %v5445 = vmax.f32 %v2962, 0.0
      %v5446 = vmax.f32 %v2966, 0.0
      %v5447 = vmax.f32 %v2968, 0.0
      %v5448 = vmax.f32 %v2970, 0.0
      %v5449 = vmax.f32 %v2972, 0.0
      %v5450 = vmax.f32 %v2976, 0.0
      %v5451 = vmax.f32 %v2978, 0.0
      %v5452 = vmax.f32 %v2980, 0.0
      %v5453 = vmax.f32 %v2982, 0.0
      %v5454 = vmax.f32 %v2986, 0.0
      %v5455 = vmax.f32 %v2988, 0.0
      %v5456 = vmax.f32 %v2990, 0.0
      %v5457 = vmax.f32 %v2992, 0.0
      %v5458 = vmax.f32 %v2996, 0.0
      %v5459 = vmax.f32 %v2998, 0.0
      %v5460 = vmax.f32 %v3000, 0.0
      %v5461 = vmax.f32 %v3002, 0.0
      %v5462 = vmax.f32 %v3006, 0.0
      %v5463 = vmax.f32 %v3008, 0.0
      %v5464 = vmax.f32 %v3010, 0.0
      %v5465 = vmax.f32 %v3012, 0.0
      %v5466 = vmax.f32 %v3016, 0.0
      %v5467 = vmax.f32 %v3018, 0.0
      %v5468 = vmax.f32 %v3020, 0.0
      %v5469 = vmax.f32 %v3022, 0.0
      %v5470 = vmax.f32 %v3026, 0.0
      %v5471 = vmax.f32 %v3028, 0.0
      %v5472 = vmax.f32 %v3030, 0.0
      %v5473 = vmax.f32 %v3032, 0.0
      %v5474 = vmax.f32 %v3036, 0.0
      %v5475 = vmax.f32 %v3038, 0.0
      %v5476 = vmax.f32 %v3040, 0.0
      %v5477 = vmax.f32 %v3042, 0.0
      %v5478 = vmax.f32 %v3046, 0.0
      %v5479 = vmax.f32 %v3048, 0.0
      %v5480 = vmax.f32 %v3050, 0.0
      %v5481 = vmax.f32 %v3052, 0.0
      %v5482 = vmax.f32 %v3056, 0.0
      %v5483 = vmax.f32 %v3058, 0.0
      %v5484 = vmax.f32 %v3060, 0.0
      %v5485 = vmax.f32 %v3062, 0.0
      %v5486 = vmax.f32 %v3066, 0.0
      %v5487 = vmax.f32 %v3068, 0.0
      %v5488 = vmax.f32 %v3070, 0.0
      %v5489 = vmax.f32 %v3072, 0.0
      %v5490 = vmax.f32 %v3076, 0.0
      %v5491 = vmax.f32 %v3078, 0.0
      %v5492 = vmax.f32 %v3080, 0.0
      %v5493 = vmax.f32 %v3082, 0.0
      %v5494 = vmax.f32 %v3086, 0.0
      %v5495 = vmax.f32 %v3088, 0.0
      %v5496 = vmax.f32 %v3090, 0.0
      %v5497 = vmax.f32 %v3092, 0.0
      %v5498 = vmax.f32 %v3096, 0.0
      %v5499 = vmax.f32 %v3098, 0.0
      %v5500 = vmax.f32 %v3100, 0.0
      %v5501 = vmax.f32 %v3102, 0.0
      %v5502 = vmax.f32 %v3106, 0.0
      %v5503 = vmax.f32 %v3108, 0.0
      %v5504 = vmax.f32 %v3110, 0.0
      %v5505 = vmax.f32 %v3112, 0.0
      %v5506 = vmax.f32 %v3116, 0.0
      %v5507 = vmax.f32 %v3118, 0.0
      %v5508 = vmax.f32 %v3120, 0.0
      %v5509 = vmax.f32 %v3122, 0.0
      %v5510 = vmax.f32 %v3126, 0.0
      %v5511 = vmax.f32 %v3128, 0.0
      %v5512 = vmax.f32 %v3130, 0.0
      %v5513 = vmax.f32 %v3132, 0.0
      %v5514 = vmax.f32 %v3136, 0.0
      %v5515 = vmax.f32 %v3138, 0.0
      %v5516 = vmax.f32 %v3140, 0.0
      %v5517 = vmax.f32 %v3142, 0.0
      %v5518 = vmax.f32 %v3146, 0.0
      %v5519 = vmax.f32 %v3148, 0.0
      %v5520 = vmax.f32 %v3150, 0.0
      %v5521 = vmax.f32 %v3152, 0.0
      %v5522 = vmax.f32 %v3156, 0.0
      %v5523 = vmax.f32 %v3158, 0.0
      %v5524 = vmax.f32 %v3160, 0.0
      %v5525 = vmax.f32 %v3162, 0.0
      %v5526 = vmax.f32 %v3166, 0.0
      %v5527 = vmax.f32 %v3168, 0.0
      %v5528 = vmax.f32 %v3170, 0.0
      %v5529 = vmax.f32 %v3172, 0.0
      %v5530 = vmax.f32 %v3176, 0.0
      %v5531 = vmax.f32 %v3178, 0.0
      %v5532 = vmax.f32 %v3180, 0.0
      %v5533 = vmax.f32 %v3182, 0.0
      %v5534 = vmax.f32 %v3186, 0.0
      %v5535 = vmax.f32 %v3188, 0.0
      %v5536 = vmax.f32 %v3190, 0.0
      %v5537 = vmax.f32 %v3192, 0.0
      %v5538 = vmax.f32 %v3196, 0.0
      %v5539 = vmax.f32 %v3198, 0.0
      %v5540 = vmax.f32 %v3200, 0.0
      %v5541 = vmax.f32 %v3202, 0.0
      %v5542 = vmax.f32 %v3206, 0.0
      %v5543 = vmax.f32 %v3208, 0.0
      %v5544 = vmax.f32 %v3210, 0.0
      %v5545 = vmax.f32 %v3212, 0.0
      %v5546 = vmax.f32 %v3216, 0.0
      %v5547 = vmax.f32 %v3218, 0.0
      %v5548 = vmax.f32 %v3220, 0.0
      %v5549 = vmax.f32 %v3222, 0.0
      %v5550 = vmax.f32 %v3226, 0.0
      %v5551 = vmax.f32 %v3228, 0.0
      %v5552 = vmax.f32 %v3230, 0.0
      %v5553 = vmax.f32 %v3232, 0.0
      %v5554 = vmax.f32 %v3236, 0.0
      %v5555 = vmax.f32 %v3238, 0.0
      %v5556 = vmax.f32 %v3240, 0.0
      %v5557 = vmax.f32 %v3242, 0.0
      %v5558 = vmax.f32 %v3246, 0.0
      %v5559 = vmax.f32 %v3248, 0.0
      %v5560 = vmax.f32 %v3250, 0.0
      %v5561 = vmax.f32 %v3252, 0.0
      %v5562 = vmax.f32 %v3256, 0.0
      %v5563 = vmax.f32 %v3258, 0.0
      %v5564 = vmax.f32 %v3260, 0.0
      %v5565 = vmax.f32 %v3262, 0.0
      %v5566 = vmax.f32 %v3266, 0.0
      %v5567 = vmax.f32 %v3268, 0.0
      %v5568 = vmax.f32 %v3270, 0.0
      %v5569 = vmax.f32 %v3272, 0.0
      %v5570 = vmax.f32 %v3276, 0.0
      %v5571 = vmax.f32 %v3278, 0.0
      %v5572 = vmax.f32 %v3280, 0.0
      %v5573 = vmax.f32 %v3282, 0.0
      %v5574 = vmax.f32 %v3286, 0.0
      %v5575 = vmax.f32 %v3288, 0.0
      %v5576 = vmax.f32 %v3290, 0.0
      %v5577 = vmax.f32 %v3292, 0.0
      %v5578 = vmax.f32 %v3296, 0.0
      %v5579 = vmax.f32 %v3298, 0.0
      %v5580 = vmax.f32 %v3300, 0.0
      %v5581 = vmax.f32 %v3302, 0.0
      %v5582 = vmax.f32 %v3306, 0.0
      %v5583 = vmax.f32 %v3308, 0.0
      %v5584 = vmax.f32 %v3310, 0.0
      %v5585 = vmax.f32 %v3312, 0.0
      %v5586 = vmax.f32 %v3316, 0.0
      %v5587 = vmax.f32 %v3318, 0.0
      %v5588 = vmax.f32 %v3320, 0.0
      %v5589 = vmax.f32 %v3322, 0.0
      %v5590 = vmax.f32 %v3326, 0.0
      %v5591 = vmax.f32 %v3328, 0.0
      %v5592 = vmax.f32 %v3330, 0.0
      %v5593 = vmax.f32 %v3332, 0.0
      %v5594 = vmax.f32 %v3336, 0.0
      %v5595 = vmax.f32 %v3338, 0.0
      %v5596 = vmax.f32 %v3340, 0.0
      %v5597 = vmax.f32 %v3342, 0.0
      %v5598 = vmax.f32 %v3346, 0.0
      %v5599 = vmax.f32 %v3348, 0.0
      %v5600 = vmax.f32 %v3350, 0.0
      %v5601 = vmax.f32 %v3352, 0.0
      %v5602 = vmax.f32 %v3356, 0.0
      %v5603 = vmax.f32 %v3358, 0.0
      %v5604 = vmax.f32 %v3360, 0.0
      %v5605 = vmax.f32 %v3362, 0.0
      %v5606 = vmax.f32 %v3366, 0.0
      %v5607 = vmax.f32 %v3368, 0.0
      %v5608 = vmax.f32 %v3370, 0.0
      %v5609 = vmax.f32 %v3372, 0.0
      %v5610 = vmax.f32 %v3376, 0.0
      %v5611 = vmax.f32 %v3378, 0.0
      %v5612 = vmax.f32 %v3380, 0.0
      %v5613 = vmax.f32 %v3382, 0.0
      %v5614 = vmax.f32 %v3386, 0.0
      %v5615 = vmax.f32 %v3388, 0.0
      %v5616 = vmax.f32 %v3390, 0.0
      %v5617 = vmax.f32 %v3392, 0.0
      %v5618 = vmax.f32 %v3396, 0.0
      %v5619 = vmax.f32 %v3398, 0.0
      %v5620 = vmax.f32 %v3400, 0.0
      %v5621 = vmax.f32 %v3402, 0.0
      %v5622 = vmax.f32 %v3406, 0.0
      %v5623 = vmax.f32 %v3408, 0.0
      %v5624 = vmax.f32 %v3410, 0.0
      %v5625 = vmax.f32 %v3412, 0.0
      %v5626 = vmax.f32 %v3416, 0.0
      %v5627 = vmax.f32 %v3418, 0.0
      %v5628 = vmax.f32 %v3420, 0.0
      %v5629 = vmax.f32 %v3422, 0.0
      %v5630 = vmax.f32 %v3426, 0.0
      %v5631 = vmax.f32 %v3428, 0.0
      %v5632 = vmax.f32 %v3430, 0.0
      %v5633 = vmax.f32 %v3432, 0.0
      %v5634 = vmax.f32 %v3436, 0.0
      %v5635 = vmax.f32 %v3438, 0.0
      %v5636 = vmax.f32 %v3440, 0.0
      %v5637 = vmax.f32 %v3442, 0.0
      %v5638 = vmax.f32 %v3446, 0.0
      %v5639 = vmax.f32 %v3448, 0.0
      %v5640 = vmax.f32 %v3450, 0.0
      %v5641 = vmax.f32 %v3452, 0.0
      %v5642 = vmax.f32 %v3456, 0.0
      %v5643 = vmax.f32 %v3458, 0.0
      %v5644 = vmax.f32 %v3460, 0.0
      %v5645 = vmax.f32 %v3462, 0.0
      %v5646 = vmax.f32 %v3466, 0.0
      %v5647 = vmax.f32 %v3468, 0.0
      %v5648 = vmax.f32 %v3470, 0.0
      %v5649 = vmax.f32 %v3472, 0.0
      %v5650 = vmax.f32 %v3476, 0.0
      %v5651 = vmax.f32 %v3478, 0.0
      %v5652 = vmax.f32 %v3480, 0.0
      %v5653 = vmax.f32 %v3482, 0.0
      %v5654 = vmax.f32 %v3486, 0.0
      %v5655 = vmax.f32 %v3488, 0.0
      %v5656 = vmax.f32 %v3490, 0.0
      %v5657 = vmax.f32 %v3492, 0.0
      %v5658 = vmax.f32 %v3496, 0.0
      %v5659 = vmax.f32 %v3498, 0.0
      %v5660 = vmax.f32 %v3500, 0.0
      %v5661 = vmax.f32 %v3502, 0.0
      %v5662 = vmax.f32 %v3506, 0.0
      %v5663 = vmax.f32 %v3508, 0.0
      %v5664 = vmax.f32 %v3510, 0.0
      %v5665 = vmax.f32 %v3512, 0.0
      %v5666 = vmax.f32 %v3516, 0.0
      %v5667 = vmax.f32 %v3518, 0.0
      %v5668 = vmax.f32 %v3520, 0.0
      %v5669 = vmax.f32 %v3522, 0.0
      %v5670 = vmax.f32 %v3526, 0.0
      %v5671 = vmax.f32 %v3528, 0.0
      %v5672 = vmax.f32 %v3530, 0.0
      %v5673 = vmax.f32 %v3532, 0.0
      %v5674 = vmax.f32 %v3536, 0.0
      %v5675 = vmax.f32 %v3538, 0.0
      %v5676 = vmax.f32 %v3540, 0.0
      %v5677 = vmax.f32 %v3542, 0.0
      %v5678 = vmax.f32 %v3546, 0.0
      %v5679 = vmax.f32 %v3548, 0.0
      %v5680 = vmax.f32 %v3550, 0.0
      %v5681 = vmax.f32 %v3552, 0.0
      %v5682 = vmax.f32 %v3556, 0.0
      %v5683 = vmax.f32 %v3558, 0.0
      %v5684 = vmax.f32 %v3560, 0.0
      %v5685 = vmax.f32 %v3562, 0.0
      %v5686 = vmax.f32 %v3566, 0.0
      %v5687 = vmax.f32 %v3568, 0.0
      %v5688 = vmax.f32 %v3570, 0.0
      %v5689 = vmax.f32 %v3572, 0.0
      %v5690 = vmax.f32 %v3576, 0.0
      %v5691 = vmax.f32 %v3578, 0.0
      %v5692 = vmax.f32 %v3580, 0.0
      %v5693 = vmax.f32 %v3582, 0.0
      %v5694 = vmax.f32 %v3586, 0.0
      %v5695 = vmax.f32 %v3588, 0.0
      %v5696 = vmax.f32 %v3590, 0.0
      %v5697 = vmax.f32 %v3592, 0.0
      %v5698 = vmax.f32 %v3596, 0.0
      %v5699 = vmax.f32 %v3598, 0.0
      %v5700 = vmax.f32 %v3600, 0.0
      %v5701 = vmax.f32 %v3602, 0.0
      %v5702 = vmax.f32 %v3606, 0.0
      %v5703 = vmax.f32 %v3608, 0.0
      %v5704 = vmax.f32 %v3610, 0.0
      %v5705 = vmax.f32 %v3612, 0.0
      %v5706 = vmax.f32 %v3616, 0.0
      %v5707 = vmax.f32 %v3618, 0.0
      %v5708 = vmax.f32 %v3620, 0.0
      %v5709 = vmax.f32 %v3622, 0.0
      %v5710 = vmax.f32 %v3626, 0.0
      %v5711 = vmax.f32 %v3628, 0.0
      %v5712 = vmax.f32 %v3630, 0.0
      %v5713 = vmax.f32 %v3632, 0.0
      %v5714 = vmax.f32 %v3636, 0.0
      %v5715 = vmax.f32 %v3638, 0.0
      %v5716 = vmax.f32 %v3640, 0.0
      %v5717 = vmax.f32 %v3642, 0.0
      %v5718 = vmax.f32 %v3646, 0.0
      %v5719 = vmax.f32 %v3648, 0.0
      %v5720 = vmax.f32 %v3650, 0.0
      %v5721 = vmax.f32 %v3652, 0.0
      %v5722 = vmax.f32 %v3656, 0.0
      %v5723 = vmax.f32 %v3658, 0.0
      %v5724 = vmax.f32 %v3660, 0.0
      %v5725 = vmax.f32 %v3662, 0.0
      %v5726 = vmax.f32 %v3666, 0.0
      %v5727 = vmax.f32 %v3668, 0.0
      %v5728 = vmax.f32 %v3670, 0.0
      %v5729 = vmax.f32 %v3672, 0.0
      %v5730 = vmax.f32 %v3676, 0.0
      %v5731 = vmax.f32 %v3678, 0.0
      %v5732 = vmax.f32 %v3680, 0.0
      %v5733 = vmax.f32 %v3682, 0.0
      %v5734 = vmax.f32 %v3686, 0.0
      %v5735 = vmax.f32 %v3688, 0.0
      %v5736 = vmax.f32 %v3690, 0.0
      %v5737 = vmax.f32 %v3692, 0.0
      %v5738 = vmax.f32 %v3696, 0.0
      %v5739 = vmax.f32 %v3698, 0.0
      %v5740 = vmax.f32 %v3700, 0.0
      %v5741 = vmax.f32 %v3702, 0.0
      %v5742 = vmax.f32 %v3706, 0.0
      %v5743 = vmax.f32 %v3708, 0.0
      %v5744 = vmax.f32 %v3710, 0.0
      %v5745 = vmax.f32 %v3712, 0.0
      %v5746 = vmax.f32 %v3716, 0.0
      %v5747 = vmax.f32 %v3718, 0.0
      %v5748 = vmax.f32 %v3720, 0.0
      %v5749 = vmax.f32 %v3722, 0.0
      %v5750 = vmax.f32 %v3726, 0.0
      %v5751 = vmax.f32 %v3728, 0.0
      %v5752 = vmax.f32 %v3730, 0.0
      %v5753 = vmax.f32 %v3732, 0.0
      %v5754 = vmax.f32 %v3736, 0.0
      %v5755 = vmax.f32 %v3738, 0.0
      %v5756 = vmax.f32 %v3740, 0.0
      %v5757 = vmax.f32 %v3742, 0.0
      %v5758 = vmax.f32 %v3746, 0.0
      %v5759 = vmax.f32 %v3748, 0.0
      %v5760 = vmax.f32 %v3750, 0.0
      %v5761 = vmax.f32 %v3752, 0.0
      %v5762 = vmax.f32 %v3756, 0.0
      %v5763 = vmax.f32 %v3758, 0.0
      %v5764 = vmax.f32 %v3760, 0.0
      %v5765 = vmax.f32 %v3762, 0.0
      %v5766 = vmax.f32 %v3766, 0.0
      %v5767 = vmax.f32 %v3768, 0.0
      %v5768 = vmax.f32 %v3770, 0.0
      %v5769 = vmax.f32 %v3772, 0.0
      %v5770 = vmax.f32 %v3776, 0.0
      %v5771 = vmax.f32 %v3778, 0.0
      %v5772 = vmax.f32 %v3780, 0.0
      %v5773 = vmax.f32 %v3782, 0.0
      %v5774 = vmax.f32 %v3786, 0.0
      %v5775 = vmax.f32 %v3788, 0.0
      %v5776 = vmax.f32 %v3790, 0.0
      %v5777 = vmax.f32 %v3792, 0.0
      %v5778 = vmax.f32 %v3796, 0.0
      %v5779 = vmax.f32 %v3798, 0.0
      %v5780 = vmax.f32 %v3800, 0.0
      %v5781 = vmax.f32 %v3802, 0.0
      %v5782 = vmax.f32 %v3806, 0.0
      %v5783 = vmax.f32 %v3808, 0.0
      %v5784 = vmax.f32 %v3810, 0.0
      %v5785 = vmax.f32 %v3812, 0.0
      %v5786 = vmax.f32 %v3816, 0.0
      %v5787 = vmax.f32 %v3818, 0.0
      %v5788 = vmax.f32 %v3820, 0.0
      %v5789 = vmax.f32 %v3822, 0.0
      %v5790 = vmax.f32 %v3826, 0.0
      %v5791 = vmax.f32 %v3828, 0.0
      %v5792 = vmax.f32 %v3830, 0.0
      %v5793 = vmax.f32 %v3832, 0.0
      %v5794 = vmax.f32 %v3836, 0.0
      %v5795 = vmax.f32 %v3838, 0.0
      %v5796 = vmax.f32 %v3840, 0.0
      %v5797 = vmax.f32 %v3842, 0.0
      %v5798 = vmax.f32 %v3846, 0.0
      %v5799 = vmax.f32 %v3848, 0.0
      %v5800 = vmax.f32 %v3850, 0.0
      %v5801 = vmax.f32 %v3852, 0.0
      %v5802 = vmax.f32 %v3856, 0.0
      %v5803 = vmax.f32 %v3858, 0.0
      %v5804 = vmax.f32 %v3860, 0.0
      %v5805 = vmax.f32 %v3862, 0.0
      %v5806 = vmax.f32 %v3866, 0.0
      %v5807 = vmax.f32 %v3868, 0.0
      %v5808 = vmax.f32 %v3870, 0.0
      %v5809 = vmax.f32 %v3872, 0.0
      %v5810 = vmax.f32 %v3876, 0.0
      %v5811 = vmax.f32 %v3878, 0.0
      %v5812 = vmax.f32 %v3880, 0.0
      %v5813 = vmax.f32 %v3882, 0.0
      %v5814 = vmax.f32 %v3886, 0.0
      %v5815 = vmax.f32 %v3888, 0.0
      %v5816 = vmax.f32 %v3890, 0.0
      %v5817 = vmax.f32 %v3892, 0.0
      %v5818 = vmax.f32 %v3896, 0.0
      %v5819 = vmax.f32 %v3898, 0.0
      %v5820 = vmax.f32 %v3900, 0.0
      %v5821 = vmax.f32 %v3902, 0.0
      %v5822 = vmax.f32 %v3906, 0.0
      %v5823 = vmax.f32 %v3908, 0.0
      %v5824 = vmax.f32 %v3910, 0.0
      %v5825 = vmax.f32 %v3912, 0.0
      %v5826 = vmax.f32 %v3916, 0.0
      %v5827 = vmax.f32 %v3918, 0.0
      %v5828 = vmax.f32 %v3920, 0.0
      %v5829 = vmax.f32 %v3922, 0.0
      %v5830 = vmax.f32 %v3926, 0.0
      %v5831 = vmax.f32 %v3928, 0.0
      %v5832 = vmax.f32 %v3930, 0.0
      %v5833 = vmax.f32 %v3932, 0.0
      %v5834 = vmax.f32 %v3936, 0.0
      %v5835 = vmax.f32 %v3938, 0.0
      %v5836 = vmax.f32 %v3940, 0.0
      %v5837 = vmax.f32 %v3942, 0.0
      %v5838 = vmax.f32 %v3946, 0.0
      %v5839 = vmax.f32 %v3948, 0.0
      %v5840 = vmax.f32 %v3950, 0.0
      %v5841 = vmax.f32 %v3952, 0.0
      %v5842 = vmax.f32 %v3956, 0.0
      %v5843 = vmax.f32 %v3958, 0.0
      %v5844 = vmax.f32 %v3960, 0.0
      %v5845 = vmax.f32 %v3962, 0.0
      %v5846 = vmax.f32 %v3966, 0.0
      %v5847 = vmax.f32 %v3968, 0.0
      %v5848 = vmax.f32 %v3970, 0.0
      %v5849 = vmax.f32 %v3972, 0.0
      %v5850 = vmax.f32 %v3976, 0.0
      %v5851 = vmax.f32 %v3978, 0.0
      %v5852 = vmax.f32 %v3980, 0.0
      %v5853 = vmax.f32 %v3982, 0.0
      %v5854 = vmax.f32 %v3986, 0.0
      %v5855 = vmax.f32 %v3988, 0.0
      %v5856 = vmax.f32 %v3990, 0.0
      %v5857 = vmax.f32 %v3992, 0.0
      %v5858 = vmax.f32 %v3996, 0.0
      %v5859 = vmax.f32 %v3998, 0.0
      %v5860 = vmax.f32 %v4000, 0.0
      %v5861 = vmax.f32 %v4002, 0.0
      %v5862 = vmax.f32 %v4006, 0.0
      %v5863 = vmax.f32 %v4008, 0.0
      %v5864 = vmax.f32 %v4010, 0.0
      %v5865 = vmax.f32 %v4012, 0.0
      %v5866 = vmax.f32 %v4016, 0.0
      %v5867 = vmax.f32 %v4018, 0.0
      %v5868 = vmax.f32 %v4020, 0.0
      %v5869 = vmax.f32 %v4022, 0.0
      %v5870 = vmax.f32 %v4026, 0.0
      %v5871 = vmax.f32 %v4028, 0.0
      %v5872 = vmax.f32 %v4030, 0.0
      %v5873 = vmax.f32 %v4032, 0.0
      %v5874 = vmax.f32 %v4036, 0.0
      %v5875 = vmax.f32 %v4038, 0.0
      %v5876 = vmax.f32 %v4040, 0.0
      %v5877 = vmax.f32 %v4042, 0.0
      %v5878 = vmax.f32 %v4046, 0.0
      %v5879 = vmax.f32 %v4048, 0.0
      %v5880 = vmax.f32 %v4050, 0.0
      %v5881 = vmax.f32 %v4052, 0.0
      %v5882 = vmax.f32 %v4056, 0.0
      %v5883 = vmax.f32 %v4058, 0.0
      %v5884 = vmax.f32 %v4060, 0.0
      %v5885 = vmax.f32 %v4062, 0.0
      %v5886 = vmax.f32 %v4066, 0.0
      %v5887 = vmax.f32 %v4068, 0.0
      %v5888 = vmax.f32 %v4070, 0.0
      %v5889 = vmax.f32 %v4072, 0.0
      %v5890 = vmax.f32 %v4076, 0.0
      %v5891 = vmax.f32 %v4078, 0.0
      %v5892 = vmax.f32 %v4080, 0.0
      %v5893 = vmax.f32 %v4082, 0.0
      %v5894 = vmax.f32 %v4086, 0.0
      %v5895 = vmax.f32 %v4088, 0.0
      %v5896 = vmax.f32 %v4090, 0.0
      %v5897 = vmax.f32 %v4092, 0.0
      %v5898 = vmax.f32 %v4096, 0.0
      %v5899 = vmax.f32 %v4098, 0.0
      %v5900 = vmax.f32 %v4100, 0.0
      %v5901 = vmax.f32 %v4102, 0.0
      %v5902 = vmax.f32 %v4106, 0.0
      %v5903 = vmax.f32 %v4108, 0.0
      %v5904 = vmax.f32 %v4110, 0.0
      %v5905 = vmax.f32 %v4112, 0.0
      %v5906 = vmax.f32 %v4116, 0.0
      %v5907 = vmax.f32 %v4118, 0.0
      %v5908 = vmax.f32 %v4120, 0.0
      %v5909 = vmax.f32 %v4122, 0.0
      %v5910 = vmax.f32 %v4126, 0.0
      %v5911 = vmax.f32 %v4128, 0.0
      %v5912 = vmax.f32 %v4130, 0.0
      %v5913 = vmax.f32 %v4132, 0.0
      %v5914 = vmax.f32 %v4136, 0.0
      %v5915 = vmax.f32 %v4138, 0.0
      %v5916 = vmax.f32 %v4140, 0.0
      %v5917 = vmax.f32 %v4142, 0.0
      %v5918 = vmax.f32 %v4146, 0.0
      %v5919 = vmax.f32 %v4148, 0.0
      %v5920 = vmax.f32 %v4150, 0.0
      %v5921 = vmax.f32 %v4152, 0.0
      %v5922 = vmax.f32 %v4156, 0.0
      %v5923 = vmax.f32 %v4158, 0.0
      %v5924 = vmax.f32 %v4160, 0.0
      %v5925 = vmax.f32 %v4162, 0.0
      %v5926 = vmax.f32 %v4166, 0.0
      %v5927 = vmax.f32 %v4168, 0.0
      %v5928 = vmax.f32 %v4170, 0.0
      %v5929 = vmax.f32 %v4172, 0.0
      %v5930 = vmax.f32 %v4176, 0.0
      %v5931 = vmax.f32 %v4178, 0.0
      %v5932 = vmax.f32 %v4180, 0.0
      %v5933 = vmax.f32 %v4182, 0.0
      %v5934 = vmax.f32 %v4186, 0.0
      %v5935 = vmax.f32 %v4188, 0.0
      %v5936 = vmax.f32 %v4190, 0.0
      %v5937 = vmax.f32 %v4192, 0.0
      %v5938 = vmax.f32 %v4196, 0.0
      %v5939 = vmax.f32 %v4198, 0.0
      %v5940 = vmax.f32 %v4200, 0.0
      %v5941 = vmax.f32 %v4202, 0.0
      %v5942 = vmax.f32 %v4206, 0.0
      %v5943 = vmax.f32 %v4208, 0.0
      %v5944 = vmax.f32 %v4210, 0.0
      %v5945 = vmax.f32 %v4212, 0.0
      %v5946 = vmax.f32 %v4216, 0.0
      %v5947 = vmax.f32 %v4218, 0.0
      %v5948 = vmax.f32 %v4220, 0.0
      %v5949 = vmax.f32 %v4222, 0.0
      %v5950 = vmax.f32 %v4226, 0.0
      %v5951 = vmax.f32 %v4228, 0.0
      %v5952 = vmax.f32 %v4230, 0.0
      %v5953 = vmax.f32 %v4232, 0.0
      %v5954 = vmax.f32 %v4236, 0.0
      %v5955 = vmax.f32 %v4238, 0.0
      %v5956 = vmax.f32 %v4240, 0.0
      %v5957 = vmax.f32 %v4242, 0.0
      %v5958 = vmax.f32 %v4246, 0.0
      %v5959 = vmax.f32 %v4248, 0.0
      %v5960 = vmax.f32 %v4250, 0.0
      %v5961 = vmax.f32 %v4252, 0.0
      %v5962 = vmax.f32 %v4256, 0.0
      %v5963 = vmax.f32 %v4258, 0.0
      %v5964 = vmax.f32 %v4260, 0.0
      %v5965 = vmax.f32 %v4262, 0.0
      %v5966 = vmax.f32 %v4266, 0.0
      %v5967 = vmax.f32 %v4268, 0.0
      %v5968 = vmax.f32 %v4270, 0.0
      %v5969 = vmax.f32 %v4272, 0.0
      %v5970 = vmax.f32 %v4276, 0.0
      %v5971 = vmax.f32 %v4278, 0.0
      %v5972 = vmax.f32 %v4280, 0.0
      %v5973 = vmax.f32 %v4282, 0.0
      %v5974 = vmax.f32 %v4286, 0.0
      %v5975 = vmax.f32 %v4288, 0.0
      %v5976 = vmax.f32 %v4290, 0.0
      %v5977 = vmax.f32 %v4292, 0.0
      %v5978 = vmax.f32 %v4296, 0.0
      %v5979 = vmax.f32 %v4298, 0.0
      %v5980 = vmax.f32 %v4300, 0.0
      %v5981 = vmax.f32 %v4302, 0.0
      %v5982 = vmax.f32 %v4306, 0.0
      %v5983 = vmax.f32 %v4308, 0.0
      %v5984 = vmax.f32 %v4310, 0.0
      %v5985 = vmax.f32 %v4312, 0.0
      %v5986 = vmax.f32 %v4316, 0.0
      %v5987 = vmax.f32 %v4318, 0.0
      %v5988 = vmax.f32 %v4320, 0.0
      %v5989 = vmax.f32 %v4322, 0.0
      %v5990 = vmax.f32 %v4326, 0.0
      %v5991 = vmax.f32 %v4328, 0.0
      %v5992 = vmax.f32 %v4330, 0.0
      %v5993 = vmax.f32 %v4332, 0.0
      %v5994 = vmax.f32 %v4336, 0.0
      %v5995 = vmax.f32 %v4338, 0.0
      %v5996 = vmax.f32 %v4340, 0.0
      %v5997 = vmax.f32 %v4342, 0.0
      %v5998 = vmax.f32 %v4346, 0.0
      %v5999 = vmax.f32 %v4348, 0.0
      %v6000 = vmax.f32 %v4350, 0.0
      %v6001 = vmax.f32 %v4352, 0.0
      %v6002 = vmax.f32 %v4356, 0.0
      %v6003 = vmax.f32 %v4358, 0.0
      %v6004 = vmax.f32 %v4360, 0.0
      %v6005 = vmax.f32 %v4362, 0.0
      %v6006 = vmax.f32 %v4366, 0.0
      %v6007 = vmax.f32 %v4368, 0.0
      %v6008 = vmax.f32 %v4370, 0.0
      %v6009 = vmax.f32 %v4372, 0.0
      %v6010 = vmax.f32 %v4376, 0.0
      %v6011 = vmax.f32 %v4378, 0.0
      %v6012 = vmax.f32 %v4380, 0.0
      %v6013 = vmax.f32 %v4382, 0.0
      %v6014 = vmax.f32 %v4386, 0.0
      %v6015 = vmax.f32 %v4388, 0.0
      %v6016 = vmax.f32 %v4390, 0.0
      %v6017 = vmax.f32 %v4392, 0.0
      %v6018 = vmax.f32 %v4396, 0.0
      %v6019 = vmax.f32 %v4398, 0.0
      %v6020 = vmax.f32 %v4400, 0.0
      %v6021 = vmax.f32 %v4402, 0.0
      %v6022 = vmax.f32 %v4406, 0.0
      %v6023 = vmax.f32 %v4408, 0.0
      %v6024 = vmax.f32 %v4410, 0.0
      %v6025 = vmax.f32 %v4412, 0.0
      %v6026 = vmax.f32 %v4416, 0.0
      %v6027 = vmax.f32 %v4418, 0.0
      %v6028 = vmax.f32 %v4420, 0.0
      %v6029 = vmax.f32 %v4422, 0.0
      %v6030 = vmax.f32 %v4426, 0.0
      %v6031 = vmax.f32 %v4428, 0.0
      %v6032 = vmax.f32 %v4430, 0.0
      %v6033 = vmax.f32 %v4432, 0.0
      %v6034 = vmax.f32 %v4436, 0.0
      %v6035 = vmax.f32 %v4438, 0.0
      %v6036 = vmax.f32 %v4440, 0.0
      %v6037 = vmax.f32 %v4442, 0.0
      %v6038 = vmax.f32 %v4446, 0.0
      %v6039 = vmax.f32 %v4448, 0.0
      %v6040 = vmax.f32 %v4450, 0.0
      %v6041 = vmax.f32 %v4452, 0.0
      %v6042 = vmax.f32 %v4456, 0.0
      %v6043 = vmax.f32 %v4458, 0.0
      %v6044 = vmax.f32 %v4460, 0.0
      %v6045 = vmax.f32 %v4462, 0.0
      %v6046 = vmax.f32 %v4466, 0.0
      %v6047 = vmax.f32 %v4468, 0.0
      %v6048 = vmax.f32 %v4470, 0.0
      %v6049 = vmax.f32 %v4472, 0.0
      %v6050 = vmax.f32 %v4476, 0.0
      %v6051 = vmax.f32 %v4478, 0.0
      %v6052 = vmax.f32 %v4480, 0.0
      %v6053 = vmax.f32 %v4482, 0.0
      %v6054 = vmax.f32 %v4486, 0.0
      %v6055 = vmax.f32 %v4488, 0.0
      %v6056 = vmax.f32 %v4490, 0.0
      %v6057 = vmax.f32 %v4492, 0.0
      %v6058 = vmax.f32 %v4496, 0.0
      %v6059 = vmax.f32 %v4498, 0.0
      %v6060 = vmax.f32 %v4500, 0.0
      %v6061 = vmax.f32 %v4502, 0.0
      %v6062 = vmax.f32 %v4506, 0.0
      %v6063 = vmax.f32 %v4508, 0.0
      %v6064 = vmax.f32 %v4510, 0.0
      %v6065 = vmax.f32 %v4512, 0.0
      %v6066 = vmax.f32 %v4516, 0.0
      %v6067 = vmax.f32 %v4518, 0.0
      %v6068 = vmax.f32 %v4520, 0.0
      %v6069 = vmax.f32 %v4522, 0.0
      %v6070 = vmax.f32 %v4526, 0.0
      %v6071 = vmax.f32 %v4528, 0.0
      %v6072 = vmax.f32 %v4530, 0.0
      %v6073 = vmax.f32 %v4532, 0.0
      %v6074 = vmax.f32 %v4536, 0.0
      %v6075 = vmax.f32 %v4538, 0.0
      %v6076 = vmax.f32 %v4540, 0.0
      %v6077 = vmax.f32 %v4542, 0.0
      %v6078 = vmax.f32 %v4546, 0.0
      %v6079 = vmax.f32 %v4548, 0.0
      %v6080 = vmax.f32 %v4550, 0.0
      %v6081 = vmax.f32 %v4552, 0.0
      %v6082 = vmax.f32 %v4556, 0.0
      %v6083 = vmax.f32 %v4558, 0.0
      %v6084 = vmax.f32 %v4560, 0.0
      %v6085 = vmax.f32 %v4562, 0.0
      %v6086 = vmax.f32 %v4566, 0.0
      %v6087 = vmax.f32 %v4568, 0.0
      %v6088 = vmax.f32 %v4570, 0.0
      %v6089 = vmax.f32 %v4572, 0.0
      %v6090 = vmax.f32 %v4576, 0.0
      %v6091 = vmax.f32 %v4578, 0.0
      %v6092 = vmax.f32 %v4580, 0.0
      %v6093 = vmax.f32 %v4582, 0.0
      %v6094 = vmax.f32 %v4586, 0.0
      %v6095 = vmax.f32 %v4588, 0.0
      %v6096 = vmax.f32 %v4590, 0.0
      %v6097 = vmax.f32 %v4592, 0.0
      %v6098 = vmax.f32 %v4596, 0.0
      %v6099 = vmax.f32 %v4598, 0.0
      %v6100 = vmax.f32 %v4600, 0.0
      %v6101 = vmax.f32 %v4602, 0.0
      %v6102 = vmax.f32 %v4606, 0.0
      %v6103 = vmax.f32 %v4608, 0.0
      %v6104 = vmax.f32 %v4610, 0.0
      %v6105 = vmax.f32 %v4612, 0.0
      %v6106 = vmax.f32 %v4616, 0.0
      %v6107 = vmax.f32 %v4618, 0.0
      %v6108 = vmax.f32 %v4620, 0.0
      %v6109 = vmax.f32 %v4622, 0.0
      %v6110 = vmax.f32 %v4626, 0.0
      %v6111 = vmax.f32 %v4628, 0.0
      %v6112 = vmax.f32 %v4630, 0.0
      %v6113 = vmax.f32 %v4632, 0.0
      %v6114 = vmax.f32 %v4636, 0.0
      %v6115 = vmax.f32 %v4638, 0.0
      %v6116 = vmax.f32 %v4640, 0.0
      %v6117 = vmax.f32 %v4642, 0.0
      %v6118 = vmax.f32 %v4646, 0.0
      %v6119 = vmax.f32 %v4648, 0.0
      %v6120 = vmax.f32 %v4650, 0.0
      %v6121 = vmax.f32 %v4652, 0.0
      %v6122 = vmax.f32 %v4656, 0.0
      %v6123 = vmax.f32 %v4658, 0.0
      %v6124 = vmax.f32 %v4660, 0.0
      %v6125 = vmax.f32 %v4662, 0.0
      %v6126 = vmax.f32 %v4666, 0.0
      %v6127 = vmax.f32 %v4668, 0.0
      %v6128 = vmax.f32 %v4670, 0.0
      %v6129 = vmax.f32 %v4672, 0.0
      %v6130 = vmax.f32 %v4676, 0.0
      %v6131 = vmax.f32 %v4678, 0.0
      %v6132 = vmax.f32 %v4680, 0.0
      %v6133 = vmax.f32 %v4682, 0.0
      %v6134 = vmax.f32 %v4686, 0.0
      %v6135 = vmax.f32 %v4688, 0.0
      %v6136 = vmax.f32 %v4690, 0.0
      %v6137 = vmax.f32 %v4692, 0.0
      %v6138 = vmax.f32 %v4696, 0.0
      %v6139 = vmax.f32 %v4698, 0.0
      %v6140 = vmax.f32 %v4700, 0.0
      %v6141 = vmax.f32 %v4702, 0.0
      %v6142 = vmax.f32 %v4706, 0.0
      %v6143 = vmax.f32 %v4708, 0.0
      %v6144 = vmax.f32 %v4710, 0.0
      %v6145 = vmax.f32 %v4712, 0.0
      %v6146 = vmax.f32 %v4716, 0.0
      %v6147 = vmax.f32 %v4718, 0.0
      %v6148 = vmax.f32 %v4720, 0.0
      %v6149 = vmax.f32 %v4722, 0.0
      %v6150 = vmax.f32 %v4726, 0.0
      %v6151 = vmax.f32 %v4728, 0.0
      %v6152 = vmax.f32 %v4730, 0.0
      %v6153 = vmax.f32 %v4732, 0.0
      %v6154 = vmax.f32 %v4736, 0.0
      %v6155 = vmax.f32 %v4738, 0.0
      %v6156 = vmax.f32 %v4740, 0.0
      %v6157 = vmax.f32 %v4742, 0.0
      %v6158 = vmax.f32 %v4746, 0.0
      %v6159 = vmax.f32 %v4748, 0.0
      %v6160 = vmax.f32 %v4750, 0.0
      %v6161 = vmax.f32 %v4752, 0.0
      %v6162 = vmax.f32 %v4756, 0.0
      %v6163 = vmax.f32 %v4758, 0.0
      %v6164 = vmax.f32 %v4760, 0.0
      %v6165 = vmax.f32 %v4762, 0.0
      %v6166 = vmax.f32 %v4766, 0.0
      %v6167 = vmax.f32 %v4768, 0.0
      %v6168 = vmax.f32 %v4770, 0.0
      %v6169 = vmax.f32 %v4772, 0.0
      %v6170 = vmax.f32 %v4776, 0.0
      %v6171 = vmax.f32 %v4778, 0.0
      %v6172 = vmax.f32 %v4780, 0.0
      %v6173 = vmax.f32 %v4782, 0.0
      %v6174 = vmax.f32 %v4786, 0.0
      %v6175 = vmax.f32 %v4788, 0.0
      %v6176 = vmax.f32 %v4790, 0.0
      %v6177 = vmax.f32 %v4792, 0.0
      %v6178 = vmax.f32 %v4796, 0.0
      %v6179 = vmax.f32 %v4798, 0.0
      %v6180 = vmax.f32 %v4800, 0.0
      %v6181 = vmax.f32 %v4802, 0.0
      %v6182 = vmax.f32 %v4806, 0.0
      %v6183 = vmax.f32 %v4808, 0.0
      %v6184 = vmax.f32 %v4810, 0.0
      %v6185 = vmax.f32 %v4812, 0.0
      %v6186 = vmax.f32 %v4816, 0.0
      %v6187 = vmax.f32 %v4818, 0.0
      %v6188 = vmax.f32 %v4820, 0.0
      %v6189 = vmax.f32 %v4822, 0.0
      %v6190 = vmax.f32 %v4826, 0.0
      %v6191 = vmax.f32 %v4828, 0.0
      %v6192 = vmax.f32 %v4830, 0.0
      %v6193 = vmax.f32 %v4832, 0.0
      %v6194 = vmax.f32 %v4836, 0.0
      %v6195 = vmax.f32 %v4838, 0.0
      %v6196 = vmax.f32 %v4840, 0.0
      %v6197 = vmax.f32 %v4842, 0.0
      %v6198 = vmax.f32 %v4846, 0.0
      %v6199 = vmax.f32 %v4848, 0.0
      %v6200 = vmax.f32 %v4850, 0.0
      %v6201 = vmax.f32 %v4852, 0.0
      %v6202 = vmax.f32 %v4856, 0.0
      %v6203 = vmax.f32 %v4858, 0.0
      %v6204 = vmax.f32 %v4860, 0.0
      %v6205 = vmax.f32 %v4862, 0.0
      %v6206 = vmax.f32 %v4866, 0.0
      %v6207 = vmax.f32 %v4868, 0.0
      %v6208 = vmax.f32 %v4870, 0.0
      %v6209 = vmax.f32 %v4872, 0.0
      %v6210 = vmax.f32 %v4876, 0.0
      %v6211 = vmax.f32 %v4878, 0.0
      %v6212 = vmax.f32 %v4880, 0.0
      %v6213 = vmax.f32 %v4882, 0.0
      %v6214 = vmax.f32 %v4886, 0.0
      %v6215 = vmax.f32 %v4888, 0.0
      %v6216 = vmax.f32 %v4890, 0.0
      %v6217 = vmax.f32 %v4892, 0.0
      %v6218 = vmax.f32 %v4896, 0.0
      %v6219 = vmax.f32 %v4898, 0.0
      %v6220 = vmax.f32 %v4900, 0.0
      %v6221 = vmax.f32 %v4902, 0.0
      %v6222 = vmax.f32 %v4906, 0.0
      %v6223 = vmax.f32 %v4908, 0.0
      %v6224 = vmax.f32 %v4910, 0.0
      %v6225 = vmax.f32 %v4912, 0.0
      %v6226 = vmax.f32 %v4916, 0.0
      %v6227 = vmax.f32 %v4918, 0.0
      %v6228 = vmax.f32 %v4920, 0.0
      %v6229 = vmax.f32 %v4922, 0.0
      %v6230 = vmax.f32 %v4926, 0.0
      %v6231 = vmax.f32 %v4928, 0.0
      %v6232 = vmax.f32 %v4930, 0.0
      %v6233 = vmax.f32 %v4932, 0.0
      %v6234 = vmax.f32 %v4936, 0.0
      %v6235 = vmax.f32 %v4938, 0.0
      %v6236 = vmax.f32 %v4940, 0.0
      %v6237 = vmax.f32 %v4942, 0.0
      %v6238 = vmax.f32 %v4946, 0.0
      %v6239 = vmax.f32 %v4948, 0.0
      %v6240 = vmax.f32 %v4950, 0.0
      %v6241 = vmax.f32 %v4952, 0.0
      %v6242 = vmax.f32 %v4956, 0.0
      %v6243 = vmax.f32 %v4958, 0.0
      %v6244 = vmax.f32 %v4960, 0.0
      %v6245 = vmax.f32 %v4962, 0.0
      %v6246 = vmax.f32 %v4966, 0.0
      %v6247 = vmax.f32 %v4968, 0.0
      %v6248 = vmax.f32 %v4970, 0.0
      %v6249 = vmax.f32 %v4972, 0.0
      %v6250 = vmax.f32 %v4976, 0.0
      %v6251 = vmax.f32 %v4978, 0.0
      %v6252 = vmax.f32 %v4980, 0.0
      %v6253 = vmax.f32 %v4982, 0.0
      %v6254 = vmax.f32 %v4986, 0.0
      %v6255 = vmax.f32 %v4988, 0.0
      %v6256 = vmax.f32 %v4990, 0.0
      %v6257 = vmax.f32 %v4992, 0.0
      %v6258 = vmax.f32 %v4996, 0.0
      %v6259 = vmax.f32 %v4998, 0.0
      %v6260 = vmax.f32 %v5000, 0.0
      %v6261 = vmax.f32 %v5002, 0.0
      %v6262 = vmax.f32 %v5006, 0.0
      %v6263 = vmax.f32 %v5008, 0.0
      %v6264 = vmax.f32 %v5010, 0.0
      %v6265 = vmax.f32 %v5012, 0.0
      %v6266 = vmax.f32 %v5016, 0.0
      %v6267 = vmax.f32 %v5018, 0.0
      %v6268 = vmax.f32 %v5020, 0.0
      %v6269 = vmax.f32 %v5022, 0.0
      %v6270 = vmax.f32 %v5026, 0.0
      %v6271 = vmax.f32 %v5028, 0.0
      %v6272 = vmax.f32 %v5030, 0.0
      %v6273 = vmax.f32 %v5032, 0.0
      %v6274 = vmax.f32 %v5036, 0.0
      %v6275 = vmax.f32 %v5038, 0.0
      %v6276 = vmax.f32 %v5040, 0.0
      %v6277 = vmax.f32 %v5042, 0.0
      %v6278 = vmax.f32 %v5046, 0.0
      %v6279 = vmax.f32 %v5048, 0.0
      %v6280 = vmax.f32 %v5050, 0.0
      %v6281 = vmax.f32 %v5052, 0.0
      %v6282 = vmax.f32 %v5056, 0.0
      %v6283 = vmax.f32 %v5058, 0.0
      %v6284 = vmax.f32 %v5060, 0.0
      %v6285 = vmax.f32 %v5062, 0.0
      %v6286 = vmax.f32 %v5066, 0.0
      %v6287 = vmax.f32 %v5068, 0.0
      %v6288 = vmax.f32 %v5070, 0.0
      %v6289 = vmax.f32 %v5072, 0.0
      %v6290 = vmax.f32 %v5076, 0.0
      %v6291 = vmax.f32 %v5078, 0.0
      %v6292 = vmax.f32 %v5080, 0.0
      %v6293 = vmax.f32 %v5082, 0.0
      %v6294 = vmax.f32 %v5086, 0.0
      %v6295 = vmax.f32 %v5088, 0.0
      %v6296 = vmax.f32 %v5090, 0.0
      %v6297 = vmax.f32 %v5092, 0.0
      %v6298 = vmax.f32 %v5096, 0.0
      %v6299 = vmax.f32 %v5098, 0.0
      %v6300 = vmax.f32 %v5100, 0.0
      %v6301 = vmax.f32 %v5102, 0.0
      %v6302 = vmax.f32 %v5106, 0.0
      %v6303 = vmax.f32 %v5108, 0.0
      %v6304 = vmax.f32 %v5110, 0.0
      %v6305 = vmax.f32 %v5112, 0.0
      %v6306 = vmax.f32 %v5116, 0.0
      %v6307 = vmax.f32 %v5118, 0.0
      %v6308 = vmax.f32 %v5120, 0.0
      %v6309 = vmax.f32 %v5122, 0.0
      %v6310 = vmax.f32 %v5126, 0.0
      %v6311 = vmax.f32 %v5128, 0.0
      %v6312 = vmax.f32 %v5130, 0.0
      %v6313 = vmax.f32 %v5132, 0.0
      %v6314 = vmax.f32 %v5136, 0.0
      %v6315 = vmax.f32 %v5138, 0.0
      %v6316 = vmax.f32 %v5140, 0.0
      %v6317 = vmax.f32 %v5142, 0.0
      %v6318 = vmax.f32 %v5146, 0.0
      %v6319 = vmax.f32 %v5148, 0.0
      %v6320 = vmax.f32 %v5150, 0.0
      %v6321 = vmax.f32 %v5152, 0.0
      %v6322 = vmax.f32 %v5156, 0.0
      %v6323 = vmax.f32 %v5158, 0.0
      %v6324 = vmax.f32 %v5160, 0.0
      %v6325 = vmax.f32 %v5162, 0.0
      %v6326 = vmax.f32 %v5166, 0.0
      %v6327 = vmax.f32 %v5168, 0.0
      %v6328 = vmax.f32 %v5170, 0.0
      %v6329 = vmax.f32 %v5172, 0.0
      %v6330 = vmax.f32 %v5176, 0.0
      %v6331 = vmax.f32 %v5178, 0.0
      %v6332 = vmax.f32 %v5180, 0.0
      %v6333 = vmax.f32 %v5182, 0.0
      %v6334 = vmax.f32 %v5186, 0.0
      %v6335 = vmax.f32 %v5188, 0.0
      %v6336 = vmax.f32 %v5190, 0.0
      %v6337 = vmax.f32 %v5192, 0.0
      %v6338 = vmax.f32 %v5196, 0.0
      %v6339 = vmax.f32 %v5198, 0.0
      %v6340 = vmax.f32 %v5200, 0.0
      %v6341 = vmax.f32 %v5202, 0.0
      %v6342 = vmax.f32 %v5206, 0.0
      %v6343 = vmax.f32 %v5208, 0.0
      %v6344 = vmax.f32 %v5210, 0.0
      %v6345 = vmax.f32 %v5212, 0.0
      %v6346 = vmax.f32 %v5216, 0.0
      %v6347 = vmax.f32 %v5218, 0.0
      %v6348 = vmax.f32 %v5220, 0.0
      %v6349 = vmax.f32 %v5222, 0.0
      %v6350 = vmax.f32 %v5226, 0.0
      %v6351 = vmax.f32 %v5228, 0.0
      %v6352 = vmax.f32 %v5230, 0.0
      %v6353 = vmax.f32 %v5232, 0.0
      %v6354 = vmax.f32 %v5236, 0.0
      %v6355 = vmax.f32 %v5238, 0.0
      %v6356 = vmax.f32 %v5240, 0.0
      %v6357 = vmax.f32 %v5242, 0.0
      %v6358 = vmax.f32 %v5246, 0.0
      %v6359 = vmax.f32 %v5248, 0.0
      %v6360 = vmax.f32 %v5250, 0.0
      %v6361 = vmax.f32 %v5252, 0.0
      %v6362 = vmax.f32 %v5256, 0.0
      %v6363 = vmax.f32 %v5258, 0.0
      %v6364 = vmax.f32 %v5260, 0.0
      %v6365 = vmax.f32 %v5262, 0.0
      %v6366 = vmax.f32 %v5266, 0.0
      %v6367 = vmax.f32 %v5268, 0.0
      %v6368 = vmax.f32 %v5270, 0.0
      %v6369 = vmax.f32 %v5272, 0.0
      %v6370 = vmax.f32 %v5276, 0.0
      %v6371 = vmax.f32 %v5278, 0.0
      %v6372 = vmax.f32 %v5280, 0.0
      %v6373 = vmax.f32 %v5282, 0.0
      %v6374 = vmax.f32 %v5286, 0.0
      %v6375 = vmax.f32 %v5288, 0.0
      %v6376 = vmax.f32 %v5290, 0.0
      %v6377 = vmax.f32 %v5292, 0.0
      %v6378 = vmax.f32 %v5296, 0.0
      %v6379 = vmax.f32 %v5298, 0.0
      %v6380 = vmax.f32 %v5300, 0.0
      %v6381 = vmax.f32 %v5302, 0.0
      %v6382 = vmax.f32 %v5306, 0.0
      %v6383 = vmax.f32 %v5308, 0.0
      %v6384 = vmax.f32 %v5310, 0.0
      %v6385 = vmax.f32 %v5312, 0.0
      %v6386 = vmax.f32 %v5316, 0.0
      %v6387 = vmax.f32 %v5318, 0.0
      %v6388 = vmax.f32 %v5320, 0.0
      %v6389 = vmax.f32 %v5322, 0.0
      %v6390 = vmax.f32 %v5326, 0.0
      %v6391 = vmax.f32 %v5328, 0.0
      %v6392 = vmax.f32 %v5330, 0.0
      %v6393 = vmax.f32 %v5332, 0.0
      %v6394 = vmax.f32 %v5336, 0.0
      %v6395 = vmax.f32 %v5338, 0.0
      %v6396 = vmax.f32 %v5340, 0.0
      %v6397 = vmax.f32 %v5342, 0.0
      %v6398 = vmax.f32 %v5346, 0.0
      %v6399 = vmax.f32 %v5348, 0.0
      %v6400 = vmax.f32 %v5350, 0.0
      %v6401 = vmax.f32 %v5352, 0.0
      %v6402 = vmax.f32 %v5356, 0.0
      %v6403 = vmax.f32 %v5358, 0.0
      %v6404 = vmax.f32 %v5360, 0.0
      %v6405 = vmax.f32 %v5362, 0.0
      %v6406 = vmax.f32 %v5366, 0.0
      %v6407 = vmax.f32 %v5368, 0.0
      %v6408 = vmax.f32 %v5370, 0.0
      %v6409 = vmax.f32 %v5372, 0.0
      %v6410 = vmax.f32 %v5376, 0.0
      %v6411 = vmax.f32 %v5378, 0.0
      %v6412 = vmax.f32 %v5380, 0.0
      %v6413 = vmax.f32 %v5382, 0.0
      %v6414 = vmax.f32 %v5386, 0.0
      %v6415 = vmax.f32 %v5388, 0.0
      %v6416 = vmax.f32 %v5390, 0.0
      %v6417 = vmax.f32 %v5392, 0.0
      %v6418 = vld [vmem:[%s196] sm:$0xff]
      %v6419 = vld [vmem:[%s196 + $0x8] sm:$0xff]
      %v6420 = vadd.f32 %v5394, %v5396
      %v6421 = vadd.f32 %v6420, %v5398
      %v6422 = vadd.f32 %v6421, %v5400
      %v6423 = vadd.f32 %v6422, %v5402
      %v6424 = vadd.f32 %v6423, %v5404
      %v6425 = vadd.f32 %v6424, %v5406
      %v6426 = vadd.f32 %v6425, %v5408
      %v6427 = vadd.f32 %v6426, %v5410
      %v6428 = vadd.f32 %v6427, %v5412
      %v6429 = vadd.f32 %v6428, %v5414
      %v6430 = vadd.f32 %v6429, %v5416
      %v6431 = vadd.f32 %v6430, %v5418
      %v6432 = vadd.f32 %v6431, %v5420
      %v6433 = vadd.f32 %v6432, %v5422
      %v6434 = vadd.f32 %v6433, %v5424
      %v6435 = vadd.f32 %v6434, %v5426
      %v6436 = vadd.f32 %v6435, %v5428
      %v6437 = vadd.f32 %v6436, %v5430
      %v6438 = vadd.f32 %v6437, %v5432
      %v6439 = vadd.f32 %v6438, %v5434
      %v6440 = vadd.f32 %v6439, %v5436
      %v6441 = vadd.f32 %v6440, %v5438
      %v6442 = vadd.f32 %v6441, %v5440
      %v6443 = vadd.f32 %v6442, %v5442
      %v6444 = vadd.f32 %v6443, %v5444
      %v6445 = vadd.f32 %v6444, %v5446
      %v6446 = vadd.f32 %v6445, %v5448
      %v6447 = vadd.f32 %v6446, %v5450
      %v6448 = vadd.f32 %v6447, %v5452
      %v6449 = vadd.f32 %v6448, %v5454
      %v6450 = vadd.f32 %v6449, %v5456
      %v6451 = vadd.f32 %v6450, %v5458
      %v6452 = vadd.f32 %v6451, %v5460
      %v6453 = vadd.f32 %v6452, %v5462
      %v6454 = vadd.f32 %v6453, %v5464
      %v6455 = vadd.f32 %v6454, %v5466
      %v6456 = vadd.f32 %v6455, %v5468
      %v6457 = vadd.f32 %v6456, %v5470
      %v6458 = vadd.f32 %v6457, %v5472
      %v6459 = vadd.f32 %v6458, %v5474
      %v6460 = vadd.f32 %v6459, %v5476
      %v6461 = vadd.f32 %v6460, %v5478
      %v6462 = vadd.f32 %v6461, %v5480
      %v6463 = vadd.f32 %v6462, %v5482
      %v6464 = vadd.f32 %v6463, %v5484
      %v6465 = vadd.f32 %v6464, %v5486
      %v6466 = vadd.f32 %v6465, %v5488
      %v6467 = vadd.f32 %v6466, %v5490
      %v6468 = vadd.f32 %v6467, %v5492
      %v6469 = vadd.f32 %v6468, %v5494
      %v6470 = vadd.f32 %v6469, %v5496
      %v6471 = vadd.f32 %v6470, %v5498
      %v6472 = vadd.f32 %v6471, %v5500
      %v6473 = vadd.f32 %v6472, %v5502
      %v6474 = vadd.f32 %v6473, %v5504
      %v6475 = vadd.f32 %v6474, %v5506
      %v6476 = vadd.f32 %v6475, %v5508
      %v6477 = vadd.f32 %v6476, %v5510
      %v6478 = vadd.f32 %v6477, %v5512
      %v6479 = vadd.f32 %v6478, %v5514
      %v6480 = vadd.f32 %v6479, %v5516
      %v6481 = vadd.f32 %v6480, %v5518
      %v6482 = vadd.f32 %v6481, %v5520
      %v6483 = vadd.f32 %v6482, %v5522
      %v6484 = vadd.f32 %v6483, %v5524
      %v6485 = vadd.f32 %v6484, %v5526
      %v6486 = vadd.f32 %v6485, %v5528
      %v6487 = vadd.f32 %v6486, %v5530
      %v6488 = vadd.f32 %v6487, %v5532
      %v6489 = vadd.f32 %v6488, %v5534
      %v6490 = vadd.f32 %v6489, %v5536
      %v6491 = vadd.f32 %v6490, %v5538
      %v6492 = vadd.f32 %v6491, %v5540
      %v6493 = vadd.f32 %v6492, %v5542
      %v6494 = vadd.f32 %v6493, %v5544
      %v6495 = vadd.f32 %v6494, %v5546
      %v6496 = vadd.f32 %v6495, %v5548
      %v6497 = vadd.f32 %v6496, %v5550
      %v6498 = vadd.f32 %v6497, %v5552
      %v6499 = vadd.f32 %v6498, %v5554
      %v6500 = vadd.f32 %v6499, %v5556
      %v6501 = vadd.f32 %v6500, %v5558
      %v6502 = vadd.f32 %v6501, %v5560
      %v6503 = vadd.f32 %v6502, %v5562
      %v6504 = vadd.f32 %v6503, %v5564
      %v6505 = vadd.f32 %v6504, %v5566
      %v6506 = vadd.f32 %v6505, %v5568
      %v6507 = vadd.f32 %v6506, %v5570
      %v6508 = vadd.f32 %v6507, %v5572
      %v6509 = vadd.f32 %v6508, %v5574
      %v6510 = vadd.f32 %v6509, %v5576
      %v6511 = vadd.f32 %v6510, %v5578
      %v6512 = vadd.f32 %v6511, %v5580
      %v6513 = vadd.f32 %v6512, %v5582
      %v6514 = vadd.f32 %v6513, %v5584
      %v6515 = vadd.f32 %v6514, %v5586
      %v6516 = vadd.f32 %v6515, %v5588
      %v6517 = vadd.f32 %v6516, %v5590
      %v6518 = vadd.f32 %v6517, %v5592
      %v6519 = vadd.f32 %v6518, %v5594
      %v6520 = vadd.f32 %v6519, %v5596
      %v6521 = vadd.f32 %v6520, %v5598
      %v6522 = vadd.f32 %v6521, %v5600
      %v6523 = vadd.f32 %v6522, %v5602
      %v6524 = vadd.f32 %v6523, %v5604
      %v6525 = vadd.f32 %v6524, %v5606
      %v6526 = vadd.f32 %v6525, %v5608
      %v6527 = vadd.f32 %v6526, %v5610
      %v6528 = vadd.f32 %v6527, %v5612
      %v6529 = vadd.f32 %v6528, %v5614
      %v6530 = vadd.f32 %v6529, %v5616
      %v6531 = vadd.f32 %v6530, %v5618
      %v6532 = vadd.f32 %v6531, %v5620
      %v6533 = vadd.f32 %v6532, %v5622
      %v6534 = vadd.f32 %v6533, %v5624
      %v6535 = vadd.f32 %v6534, %v5626
      %v6536 = vadd.f32 %v6535, %v5628
      %v6537 = vadd.f32 %v6536, %v5630
      %v6538 = vadd.f32 %v6537, %v5632
      %v6539 = vadd.f32 %v6538, %v5634
      %v6540 = vadd.f32 %v6539, %v5636
      %v6541 = vadd.f32 %v6540, %v5638
      %v6542 = vadd.f32 %v6541, %v5640
      %v6543 = vadd.f32 %v6542, %v5642
      %v6544 = vadd.f32 %v6543, %v5644
      %v6545 = vadd.f32 %v6544, %v5646
      %v6546 = vadd.f32 %v6545, %v5648
      %v6547 = vadd.f32 %v6546, %v5650
      %v6548 = vadd.f32 %v6547, %v5652
      %v6549 = vadd.f32 %v6548, %v5654
      %v6550 = vadd.f32 %v6549, %v5656
      %v6551 = vadd.f32 %v6550, %v5658
      %v6552 = vadd.f32 %v6551, %v5660
      %v6553 = vadd.f32 %v6552, %v5662
      %v6554 = vadd.f32 %v6553, %v5664
      %v6555 = vadd.f32 %v6554, %v5666
      %v6556 = vadd.f32 %v6555, %v5668
      %v6557 = vadd.f32 %v6556, %v5670
      %v6558 = vadd.f32 %v6557, %v5672
      %v6559 = vadd.f32 %v6558, %v5674
      %v6560 = vadd.f32 %v6559, %v5676
      %v6561 = vadd.f32 %v6560, %v5678
      %v6562 = vadd.f32 %v6561, %v5680
      %v6563 = vadd.f32 %v6562, %v5682
      %v6564 = vadd.f32 %v6563, %v5684
      %v6565 = vadd.f32 %v6564, %v5686
      %v6566 = vadd.f32 %v6565, %v5688
      %v6567 = vadd.f32 %v6566, %v5690
      %v6568 = vadd.f32 %v6567, %v5692
      %v6569 = vadd.f32 %v6568, %v5694
      %v6570 = vadd.f32 %v6569, %v5696
      %v6571 = vadd.f32 %v6570, %v5698
      %v6572 = vadd.f32 %v6571, %v5700
      %v6573 = vadd.f32 %v6572, %v5702
      %v6574 = vadd.f32 %v6573, %v5704
      %v6575 = vadd.f32 %v6574, %v5706
      %v6576 = vadd.f32 %v6575, %v5708
      %v6577 = vadd.f32 %v6576, %v5710
      %v6578 = vadd.f32 %v6577, %v5712
      %v6579 = vadd.f32 %v6578, %v5714
      %v6580 = vadd.f32 %v6579, %v5716
      %v6581 = vadd.f32 %v6580, %v5718
      %v6582 = vadd.f32 %v6581, %v5720
      %v6583 = vadd.f32 %v6582, %v5722
      %v6584 = vadd.f32 %v6583, %v5724
      %v6585 = vadd.f32 %v6584, %v5726
      %v6586 = vadd.f32 %v6585, %v5728
      %v6587 = vadd.f32 %v6586, %v5730
      %v6588 = vadd.f32 %v6587, %v5732
      %v6589 = vadd.f32 %v6588, %v5734
      %v6590 = vadd.f32 %v6589, %v5736
      %v6591 = vadd.f32 %v6590, %v5738
      %v6592 = vadd.f32 %v6591, %v5740
      %v6593 = vadd.f32 %v6592, %v5742
      %v6594 = vadd.f32 %v6593, %v5744
      %v6595 = vadd.f32 %v6594, %v5746
      %v6596 = vadd.f32 %v6595, %v5748
      %v6597 = vadd.f32 %v6596, %v5750
      %v6598 = vadd.f32 %v6597, %v5752
      %v6599 = vadd.f32 %v6598, %v5754
      %v6600 = vadd.f32 %v6599, %v5756
      %v6601 = vadd.f32 %v6600, %v5758
      %v6602 = vadd.f32 %v6601, %v5760
      %v6603 = vadd.f32 %v6602, %v5762
      %v6604 = vadd.f32 %v6603, %v5764
      %v6605 = vadd.f32 %v6604, %v5766
      %v6606 = vadd.f32 %v6605, %v5768
      %v6607 = vadd.f32 %v6606, %v5770
      %v6608 = vadd.f32 %v6607, %v5772
      %v6609 = vadd.f32 %v6608, %v5774
      %v6610 = vadd.f32 %v6609, %v5776
      %v6611 = vadd.f32 %v6610, %v5778
      %v6612 = vadd.f32 %v6611, %v5780
      %v6613 = vadd.f32 %v6612, %v5782
      %v6614 = vadd.f32 %v6613, %v5784
      %v6615 = vadd.f32 %v6614, %v5786
      %v6616 = vadd.f32 %v6615, %v5788
      %v6617 = vadd.f32 %v6616, %v5790
      %v6618 = vadd.f32 %v6617, %v5792
      %v6619 = vadd.f32 %v6618, %v5794
      %v6620 = vadd.f32 %v6619, %v5796
      %v6621 = vadd.f32 %v6620, %v5798
      %v6622 = vadd.f32 %v6621, %v5800
      %v6623 = vadd.f32 %v6622, %v5802
      %v6624 = vadd.f32 %v6623, %v5804
      %v6625 = vadd.f32 %v6624, %v5806
      %v6626 = vadd.f32 %v6625, %v5808
      %v6627 = vadd.f32 %v6626, %v5810
      %v6628 = vadd.f32 %v6627, %v5812
      %v6629 = vadd.f32 %v6628, %v5814
      %v6630 = vadd.f32 %v6629, %v5816
      %v6631 = vadd.f32 %v6630, %v5818
      %v6632 = vadd.f32 %v6631, %v5820
      %v6633 = vadd.f32 %v6632, %v5822
      %v6634 = vadd.f32 %v6633, %v5824
      %v6635 = vadd.f32 %v6634, %v5826
      %v6636 = vadd.f32 %v6635, %v5828
      %v6637 = vadd.f32 %v6636, %v5830
      %v6638 = vadd.f32 %v6637, %v5832
      %v6639 = vadd.f32 %v6638, %v5834
      %v6640 = vadd.f32 %v6639, %v5836
      %v6641 = vadd.f32 %v6640, %v5838
      %v6642 = vadd.f32 %v6641, %v5840
      %v6643 = vadd.f32 %v6642, %v5842
      %v6644 = vadd.f32 %v6643, %v5844
      %v6645 = vadd.f32 %v6644, %v5846
      %v6646 = vadd.f32 %v6645, %v5848
      %v6647 = vadd.f32 %v6646, %v5850
      %v6648 = vadd.f32 %v6647, %v5852
      %v6649 = vadd.f32 %v6648, %v5854
      %v6650 = vadd.f32 %v6649, %v5856
      %v6651 = vadd.f32 %v6650, %v5858
      %v6652 = vadd.f32 %v6651, %v5860
      %v6653 = vadd.f32 %v6652, %v5862
      %v6654 = vadd.f32 %v6653, %v5864
      %v6655 = vadd.f32 %v6654, %v5866
      %v6656 = vadd.f32 %v6655, %v5868
      %v6657 = vadd.f32 %v6656, %v5870
      %v6658 = vadd.f32 %v6657, %v5872
      %v6659 = vadd.f32 %v6658, %v5874
      %v6660 = vadd.f32 %v6659, %v5876
      %v6661 = vadd.f32 %v6660, %v5878
      %v6662 = vadd.f32 %v6661, %v5880
      %v6663 = vadd.f32 %v6662, %v5882
      %v6664 = vadd.f32 %v6663, %v5884
      %v6665 = vadd.f32 %v6664, %v5886
      %v6666 = vadd.f32 %v6665, %v5888
      %v6667 = vadd.f32 %v6666, %v5890
      %v6668 = vadd.f32 %v6667, %v5892
      %v6669 = vadd.f32 %v6668, %v5894
      %v6670 = vadd.f32 %v6669, %v5896
      %v6671 = vadd.f32 %v6670, %v5898
      %v6672 = vadd.f32 %v6671, %v5900
      %v6673 = vadd.f32 %v6672, %v5902
      %v6674 = vadd.f32 %v6673, %v5904
      %v6675 = vadd.f32 %v6674, %v5906
      %v6676 = vadd.f32 %v6675, %v5908
      %v6677 = vadd.f32 %v6676, %v5910
      %v6678 = vadd.f32 %v6677, %v5912
      %v6679 = vadd.f32 %v6678, %v5914
      %v6680 = vadd.f32 %v6679, %v5916
      %v6681 = vadd.f32 %v6680, %v5918
      %v6682 = vadd.f32 %v6681, %v5920
      %v6683 = vadd.f32 %v6682, %v5922
      %v6684 = vadd.f32 %v6683, %v5924
      %v6685 = vadd.f32 %v6684, %v5926
      %v6686 = vadd.f32 %v6685, %v5928
      %v6687 = vadd.f32 %v6686, %v5930
      %v6688 = vadd.f32 %v6687, %v5932
      %v6689 = vadd.f32 %v6688, %v5934
      %v6690 = vadd.f32 %v6689, %v5936
      %v6691 = vadd.f32 %v6690, %v5938
      %v6692 = vadd.f32 %v6691, %v5940
      %v6693 = vadd.f32 %v6692, %v5942
      %v6694 = vadd.f32 %v6693, %v5944
      %v6695 = vadd.f32 %v6694, %v5946
      %v6696 = vadd.f32 %v6695, %v5948
      %v6697 = vadd.f32 %v6696, %v5950
      %v6698 = vadd.f32 %v6697, %v5952
      %v6699 = vadd.f32 %v6698, %v5954
      %v6700 = vadd.f32 %v6699, %v5956
      %v6701 = vadd.f32 %v6700, %v5958
      %v6702 = vadd.f32 %v6701, %v5960
      %v6703 = vadd.f32 %v6702, %v5962
      %v6704 = vadd.f32 %v6703, %v5964
      %v6705 = vadd.f32 %v6704, %v5966
      %v6706 = vadd.f32 %v6705, %v5968
      %v6707 = vadd.f32 %v6706, %v5970
      %v6708 = vadd.f32 %v6707, %v5972
      %v6709 = vadd.f32 %v6708, %v5974
      %v6710 = vadd.f32 %v6709, %v5976
      %v6711 = vadd.f32 %v6710, %v5978
      %v6712 = vadd.f32 %v6711, %v5980
      %v6713 = vadd.f32 %v6712, %v5982
      %v6714 = vadd.f32 %v6713, %v5984
      %v6715 = vadd.f32 %v6714, %v5986
      %v6716 = vadd.f32 %v6715, %v5988
      %v6717 = vadd.f32 %v6716, %v5990
      %v6718 = vadd.f32 %v6717, %v5992
      %v6719 = vadd.f32 %v6718, %v5994
      %v6720 = vadd.f32 %v6719, %v5996
      %v6721 = vadd.f32 %v6720, %v5998
      %v6722 = vadd.f32 %v6721, %v6000
      %v6723 = vadd.f32 %v6722, %v6002
      %v6724 = vadd.f32 %v6723, %v6004
      %v6725 = vadd.f32 %v6724, %v6006
      %v6726 = vadd.f32 %v6725, %v6008
      %v6727 = vadd.f32 %v6726, %v6010
      %v6728 = vadd.f32 %v6727, %v6012
      %v6729 = vadd.f32 %v6728, %v6014
      %v6730 = vadd.f32 %v6729, %v6016
      %v6731 = vadd.f32 %v6730, %v6018
      %v6732 = vadd.f32 %v6731, %v6020
      %v6733 = vadd.f32 %v6732, %v6022
      %v6734 = vadd.f32 %v6733, %v6024
      %v6735 = vadd.f32 %v6734, %v6026
      %v6736 = vadd.f32 %v6735, %v6028
      %v6737 = vadd.f32 %v6736, %v6030
      %v6738 = vadd.f32 %v6737, %v6032
      %v6739 = vadd.f32 %v6738, %v6034
      %v6740 = vadd.f32 %v6739, %v6036
      %v6741 = vadd.f32 %v6740, %v6038
      %v6742 = vadd.f32 %v6741, %v6040
      %v6743 = vadd.f32 %v6742, %v6042
      %v6744 = vadd.f32 %v6743, %v6044
      %v6745 = vadd.f32 %v6744, %v6046
      %v6746 = vadd.f32 %v6745, %v6048
      %v6747 = vadd.f32 %v6746, %v6050
      %v6748 = vadd.f32 %v6747, %v6052
      %v6749 = vadd.f32 %v6748, %v6054
      %v6750 = vadd.f32 %v6749, %v6056
      %v6751 = vadd.f32 %v6750, %v6058
      %v6752 = vadd.f32 %v6751, %v6060
      %v6753 = vadd.f32 %v6752, %v6062
      %v6754 = vadd.f32 %v6753, %v6064
      %v6755 = vadd.f32 %v6754, %v6066
      %v6756 = vadd.f32 %v6755, %v6068
      %v6757 = vadd.f32 %v6756, %v6070
      %v6758 = vadd.f32 %v6757, %v6072
      %v6759 = vadd.f32 %v6758, %v6074
      %v6760 = vadd.f32 %v6759, %v6076
      %v6761 = vadd.f32 %v6760, %v6078
      %v6762 = vadd.f32 %v6761, %v6080
      %v6763 = vadd.f32 %v6762, %v6082
      %v6764 = vadd.f32 %v6763, %v6084
      %v6765 = vadd.f32 %v6764, %v6086
      %v6766 = vadd.f32 %v6765, %v6088
      %v6767 = vadd.f32 %v6766, %v6090
      %v6768 = vadd.f32 %v6767, %v6092
      %v6769 = vadd.f32 %v6768, %v6094
      %v6770 = vadd.f32 %v6769, %v6096
      %v6771 = vadd.f32 %v6770, %v6098
      %v6772 = vadd.f32 %v6771, %v6100
      %v6773 = vadd.f32 %v6772, %v6102
      %v6774 = vadd.f32 %v6773, %v6104
      %v6775 = vadd.f32 %v6774, %v6106
      %v6776 = vadd.f32 %v6775, %v6108
      %v6777 = vadd.f32 %v6776, %v6110
      %v6778 = vadd.f32 %v6777, %v6112
      %v6779 = vadd.f32 %v6778, %v6114
      %v6780 = vadd.f32 %v6779, %v6116
      %v6781 = vadd.f32 %v6780, %v6118
      %v6782 = vadd.f32 %v6781, %v6120
      %v6783 = vadd.f32 %v6782, %v6122
      %v6784 = vadd.f32 %v6783, %v6124
      %v6785 = vadd.f32 %v6784, %v6126
      %v6786 = vadd.f32 %v6785, %v6128
      %v6787 = vadd.f32 %v6786, %v6130
      %v6788 = vadd.f32 %v6787, %v6132
      %v6789 = vadd.f32 %v6788, %v6134
      %v6790 = vadd.f32 %v6789, %v6136
      %v6791 = vadd.f32 %v6790, %v6138
      %v6792 = vadd.f32 %v6791, %v6140
      %v6793 = vadd.f32 %v6792, %v6142
      %v6794 = vadd.f32 %v6793, %v6144
      %v6795 = vadd.f32 %v6794, %v6146
      %v6796 = vadd.f32 %v6795, %v6148
      %v6797 = vadd.f32 %v6796, %v6150
      %v6798 = vadd.f32 %v6797, %v6152
      %v6799 = vadd.f32 %v6798, %v6154
      %v6800 = vadd.f32 %v6799, %v6156
      %v6801 = vadd.f32 %v6800, %v6158
      %v6802 = vadd.f32 %v6801, %v6160
      %v6803 = vadd.f32 %v6802, %v6162
      %v6804 = vadd.f32 %v6803, %v6164
      %v6805 = vadd.f32 %v6804, %v6166
      %v6806 = vadd.f32 %v6805, %v6168
      %v6807 = vadd.f32 %v6806, %v6170
      %v6808 = vadd.f32 %v6807, %v6172
      %v6809 = vadd.f32 %v6808, %v6174
      %v6810 = vadd.f32 %v6809, %v6176
      %v6811 = vadd.f32 %v6810, %v6178
      %v6812 = vadd.f32 %v6811, %v6180
      %v6813 = vadd.f32 %v6812, %v6182
      %v6814 = vadd.f32 %v6813, %v6184
      %v6815 = vadd.f32 %v6814, %v6186
      %v6816 = vadd.f32 %v6815, %v6188
      %v6817 = vadd.f32 %v6816, %v6190
      %v6818 = vadd.f32 %v6817, %v6192
      %v6819 = vadd.f32 %v6818, %v6194
      %v6820 = vadd.f32 %v6819, %v6196
      %v6821 = vadd.f32 %v6820, %v6198
      %v6822 = vadd.f32 %v6821, %v6200
      %v6823 = vadd.f32 %v6822, %v6202
      %v6824 = vadd.f32 %v6823, %v6204
      %v6825 = vadd.f32 %v6824, %v6206
      %v6826 = vadd.f32 %v6825, %v6208
      %v6827 = vadd.f32 %v6826, %v6210
      %v6828 = vadd.f32 %v6827, %v6212
      %v6829 = vadd.f32 %v6828, %v6214
      %v6830 = vadd.f32 %v6829, %v6216
      %v6831 = vadd.f32 %v6830, %v6218
      %v6832 = vadd.f32 %v6831, %v6220
      %v6833 = vadd.f32 %v6832, %v6222
      %v6834 = vadd.f32 %v6833, %v6224
      %v6835 = vadd.f32 %v6834, %v6226
      %v6836 = vadd.f32 %v6835, %v6228
      %v6837 = vadd.f32 %v6836, %v6230
      %v6838 = vadd.f32 %v6837, %v6232
      %v6839 = vadd.f32 %v6838, %v6234
      %v6840 = vadd.f32 %v6839, %v6236
      %v6841 = vadd.f32 %v6840, %v6238
      %v6842 = vadd.f32 %v6841, %v6240
      %v6843 = vadd.f32 %v6842, %v6242
      %v6844 = vadd.f32 %v6843, %v6244
      %v6845 = vadd.f32 %v6844, %v6246
      %v6846 = vadd.f32 %v6845, %v6248
      %v6847 = vadd.f32 %v6846, %v6250
      %v6848 = vadd.f32 %v6847, %v6252
      %v6849 = vadd.f32 %v6848, %v6254
      %v6850 = vadd.f32 %v6849, %v6256
      %v6851 = vadd.f32 %v6850, %v6258
      %v6852 = vadd.f32 %v6851, %v6260
      %v6853 = vadd.f32 %v6852, %v6262
      %v6854 = vadd.f32 %v6853, %v6264
      %v6855 = vadd.f32 %v6854, %v6266
      %v6856 = vadd.f32 %v6855, %v6268
      %v6857 = vadd.f32 %v6856, %v6270
      %v6858 = vadd.f32 %v6857, %v6272
      %v6859 = vadd.f32 %v6858, %v6274
      %v6860 = vadd.f32 %v6859, %v6276
      %v6861 = vadd.f32 %v6860, %v6278
      %v6862 = vadd.f32 %v6861, %v6280
      %v6863 = vadd.f32 %v6862, %v6282
      %v6864 = vadd.f32 %v6863, %v6284
      %v6865 = vadd.f32 %v6864, %v6286
      %v6866 = vadd.f32 %v6865, %v6288
      %v6867 = vadd.f32 %v6866, %v6290
      %v6868 = vadd.f32 %v6867, %v6292
      %v6869 = vadd.f32 %v6868, %v6294
      %v6870 = vadd.f32 %v6869, %v6296
      %v6871 = vadd.f32 %v6870, %v6298
      %v6872 = vadd.f32 %v6871, %v6300
      %v6873 = vadd.f32 %v6872, %v6302
      %v6874 = vadd.f32 %v6873, %v6304
      %v6875 = vadd.f32 %v6874, %v6306
      %v6876 = vadd.f32 %v6875, %v6308
      %v6877 = vadd.f32 %v6876, %v6310
      %v6878 = vadd.f32 %v6877, %v6312
      %v6879 = vadd.f32 %v6878, %v6314
      %v6880 = vadd.f32 %v6879, %v6316
      %v6881 = vadd.f32 %v6880, %v6318
      %v6882 = vadd.f32 %v6881, %v6320
      %v6883 = vadd.f32 %v6882, %v6322
      %v6884 = vadd.f32 %v6883, %v6324
      %v6885 = vadd.f32 %v6884, %v6326
      %v6886 = vadd.f32 %v6885, %v6328
      %v6887 = vadd.f32 %v6886, %v6330
      %v6888 = vadd.f32 %v6887, %v6332
      %v6889 = vadd.f32 %v6888, %v6334
      %v6890 = vadd.f32 %v6889, %v6336
      %v6891 = vadd.f32 %v6890, %v6338
      %v6892 = vadd.f32 %v6891, %v6340
      %v6893 = vadd.f32 %v6892, %v6342
      %v6894 = vadd.f32 %v6893, %v6344
      %v6895 = vadd.f32 %v6894, %v6346
      %v6896 = vadd.f32 %v6895, %v6348
      %v6897 = vadd.f32 %v6896, %v6350
      %v6898 = vadd.f32 %v6897, %v6352
      %v6899 = vadd.f32 %v6898, %v6354
      %v6900 = vadd.f32 %v6899, %v6356
      %v6901 = vadd.f32 %v6900, %v6358
      %v6902 = vadd.f32 %v6901, %v6360
      %v6903 = vadd.f32 %v6902, %v6362
      %v6904 = vadd.f32 %v6903, %v6364
      %v6905 = vadd.f32 %v6904, %v6366
      %v6906 = vadd.f32 %v6905, %v6368
      %v6907 = vadd.f32 %v6906, %v6370
      %v6908 = vadd.f32 %v6907, %v6372
      %v6909 = vadd.f32 %v6908, %v6374
      %v6910 = vadd.f32 %v6909, %v6376
      %v6911 = vadd.f32 %v6910, %v6378
      %v6912 = vadd.f32 %v6911, %v6380
      %v6913 = vadd.f32 %v6912, %v6382
      %v6914 = vadd.f32 %v6913, %v6384
      %v6915 = vadd.f32 %v6914, %v6386
      %v6916 = vadd.f32 %v6915, %v6388
      %v6917 = vadd.f32 %v6916, %v6390
      %v6918 = vadd.f32 %v6917, %v6392
      %v6919 = vadd.f32 %v6918, %v6394
      %v6920 = vadd.f32 %v6919, %v6396
      %v6921 = vadd.f32 %v6920, %v6398
      %v6922 = vadd.f32 %v6921, %v6400
      %v6923 = vadd.f32 %v6922, %v6402
      %v6924 = vadd.f32 %v6923, %v6404
      %v6925 = vadd.f32 %v6924, %v6406
      %v6926 = vadd.f32 %v6925, %v6408
      %v6927 = vadd.f32 %v6926, %v6410
      %v6928 = vadd.f32 %v6927, %v6412
      %v6929 = vadd.f32 %v6928, %v6414
      %v6930 = vadd.f32 %v6929, %v6416
      %v6931 = vadd.f32 %v5395, %v5397
      %v6932 = vadd.f32 %v6931, %v5399
      %v6933 = vadd.f32 %v6932, %v5401
      %v6934 = vadd.f32 %v6933, %v5403
      %v6935 = vadd.f32 %v6934, %v5405
      %v6936 = vadd.f32 %v6935, %v5407
      %v6937 = vadd.f32 %v6936, %v5409
      %v6938 = vadd.f32 %v6937, %v5411
      %v6939 = vadd.f32 %v6938, %v5413
      %v6940 = vadd.f32 %v6939, %v5415
      %v6941 = vadd.f32 %v6940, %v5417
      %v6942 = vadd.f32 %v6941, %v5419
      %v6943 = vadd.f32 %v6942, %v5421
      %v6944 = vadd.f32 %v6943, %v5423
      %v6945 = vadd.f32 %v6944, %v5425
      %v6946 = vadd.f32 %v6945, %v5427
      %v6947 = vadd.f32 %v6946, %v5429
      %v6948 = vadd.f32 %v6947, %v5431
      %v6949 = vadd.f32 %v6948, %v5433
      %v6950 = vadd.f32 %v6949, %v5435
      %v6951 = vadd.f32 %v6950, %v5437
      %v6952 = vadd.f32 %v6951, %v5439
      %v6953 = vadd.f32 %v6952, %v5441
      %v6954 = vadd.f32 %v6953, %v5443
      %v6955 = vadd.f32 %v6954, %v5445
      %v6956 = vadd.f32 %v6955, %v5447
      %v6957 = vadd.f32 %v6956, %v5449
      %v6958 = vadd.f32 %v6957, %v5451
      %v6959 = vadd.f32 %v6958, %v5453
      %v6960 = vadd.f32 %v6959, %v5455
      %v6961 = vadd.f32 %v6960, %v5457
      %v6962 = vadd.f32 %v6961, %v5459
      %v6963 = vadd.f32 %v6962, %v5461
      %v6964 = vadd.f32 %v6963, %v5463
      %v6965 = vadd.f32 %v6964, %v5465
      %v6966 = vadd.f32 %v6965, %v5467
      %v6967 = vadd.f32 %v6966, %v5469
      %v6968 = vadd.f32 %v6967, %v5471
      %v6969 = vadd.f32 %v6968, %v5473
      %v6970 = vadd.f32 %v6969, %v5475
      %v6971 = vadd.f32 %v6970, %v5477
      %v6972 = vadd.f32 %v6971, %v5479
      %v6973 = vadd.f32 %v6972, %v5481
      %v6974 = vadd.f32 %v6973, %v5483
      %v6975 = vadd.f32 %v6974, %v5485
      %v6976 = vadd.f32 %v6975, %v5487
      %v6977 = vadd.f32 %v6976, %v5489
      %v6978 = vadd.f32 %v6977, %v5491
      %v6979 = vadd.f32 %v6978, %v5493
      %v6980 = vadd.f32 %v6979, %v5495
      %v6981 = vadd.f32 %v6980, %v5497
      %v6982 = vadd.f32 %v6981, %v5499
      %v6983 = vadd.f32 %v6982, %v5501
      %v6984 = vadd.f32 %v6983, %v5503
      %v6985 = vadd.f32 %v6984, %v5505
      %v6986 = vadd.f32 %v6985, %v5507
      %v6987 = vadd.f32 %v6986, %v5509
      %v6988 = vadd.f32 %v6987, %v5511
      %v6989 = vadd.f32 %v6988, %v5513
      %v6990 = vadd.f32 %v6989, %v5515
      %v6991 = vadd.f32 %v6990, %v5517
      %v6992 = vadd.f32 %v6991, %v5519
      %v6993 = vadd.f32 %v6992, %v5521
      %v6994 = vadd.f32 %v6993, %v5523
      %v6995 = vadd.f32 %v6994, %v5525
      %v6996 = vadd.f32 %v6995, %v5527
      %v6997 = vadd.f32 %v6996, %v5529
      %v6998 = vadd.f32 %v6997, %v5531
      %v6999 = vadd.f32 %v6998, %v5533
      %v7000 = vadd.f32 %v6999, %v5535
      %v7001 = vadd.f32 %v7000, %v5537
      %v7002 = vadd.f32 %v7001, %v5539
      %v7003 = vadd.f32 %v7002, %v5541
      %v7004 = vadd.f32 %v7003, %v5543
      %v7005 = vadd.f32 %v7004, %v5545
      %v7006 = vadd.f32 %v7005, %v5547
      %v7007 = vadd.f32 %v7006, %v5549
      %v7008 = vadd.f32 %v7007, %v5551
      %v7009 = vadd.f32 %v7008, %v5553
      %v7010 = vadd.f32 %v7009, %v5555
      %v7011 = vadd.f32 %v7010, %v5557
      %v7012 = vadd.f32 %v7011, %v5559
      %v7013 = vadd.f32 %v7012, %v5561
      %v7014 = vadd.f32 %v7013, %v5563
      %v7015 = vadd.f32 %v7014, %v5565
      %v7016 = vadd.f32 %v7015, %v5567
      %v7017 = vadd.f32 %v7016, %v5569
      %v7018 = vadd.f32 %v7017, %v5571
      %v7019 = vadd.f32 %v7018, %v5573
      %v7020 = vadd.f32 %v7019, %v5575
      %v7021 = vadd.f32 %v7020, %v5577
      %v7022 = vadd.f32 %v7021, %v5579
      %v7023 = vadd.f32 %v7022, %v5581
      %v7024 = vadd.f32 %v7023, %v5583
      %v7025 = vadd.f32 %v7024, %v5585
      %v7026 = vadd.f32 %v7025, %v5587
      %v7027 = vadd.f32 %v7026, %v5589
      %v7028 = vadd.f32 %v7027, %v5591
      %v7029 = vadd.f32 %v7028, %v5593
      %v7030 = vadd.f32 %v7029, %v5595
      %v7031 = vadd.f32 %v7030, %v5597
      %v7032 = vadd.f32 %v7031, %v5599
      %v7033 = vadd.f32 %v7032, %v5601
      %v7034 = vadd.f32 %v7033, %v5603
      %v7035 = vadd.f32 %v7034, %v5605
      %v7036 = vadd.f32 %v7035, %v5607
      %v7037 = vadd.f32 %v7036, %v5609
      %v7038 = vadd.f32 %v7037, %v5611
      %v7039 = vadd.f32 %v7038, %v5613
      %v7040 = vadd.f32 %v7039, %v5615
      %v7041 = vadd.f32 %v7040, %v5617
      %v7042 = vadd.f32 %v7041, %v5619
      %v7043 = vadd.f32 %v7042, %v5621
      %v7044 = vadd.f32 %v7043, %v5623
      %v7045 = vadd.f32 %v7044, %v5625
      %v7046 = vadd.f32 %v7045, %v5627
      %v7047 = vadd.f32 %v7046, %v5629
      %v7048 = vadd.f32 %v7047, %v5631
      %v7049 = vadd.f32 %v7048, %v5633
      %v7050 = vadd.f32 %v7049, %v5635
      %v7051 = vadd.f32 %v7050, %v5637
      %v7052 = vadd.f32 %v7051, %v5639
      %v7053 = vadd.f32 %v7052, %v5641
      %v7054 = vadd.f32 %v7053, %v5643
      %v7055 = vadd.f32 %v7054, %v5645
      %v7056 = vadd.f32 %v7055, %v5647
      %v7057 = vadd.f32 %v7056, %v5649
      %v7058 = vadd.f32 %v7057, %v5651
      %v7059 = vadd.f32 %v7058, %v5653
      %v7060 = vadd.f32 %v7059, %v5655
      %v7061 = vadd.f32 %v7060, %v5657
      %v7062 = vadd.f32 %v7061, %v5659
      %v7063 = vadd.f32 %v7062, %v5661
      %v7064 = vadd.f32 %v7063, %v5663
      %v7065 = vadd.f32 %v7064, %v5665
      %v7066 = vadd.f32 %v7065, %v5667
      %v7067 = vadd.f32 %v7066, %v5669
      %v7068 = vadd.f32 %v7067, %v5671
      %v7069 = vadd.f32 %v7068, %v5673
      %v7070 = vadd.f32 %v7069, %v5675
      %v7071 = vadd.f32 %v7070, %v5677
      %v7072 = vadd.f32 %v7071, %v5679
      %v7073 = vadd.f32 %v7072, %v5681
      %v7074 = vadd.f32 %v7073, %v5683
      %v7075 = vadd.f32 %v7074, %v5685
      %v7076 = vadd.f32 %v7075, %v5687
      %v7077 = vadd.f32 %v7076, %v5689
      %v7078 = vadd.f32 %v7077, %v5691
      %v7079 = vadd.f32 %v7078, %v5693
      %v7080 = vadd.f32 %v7079, %v5695
      %v7081 = vadd.f32 %v7080, %v5697
      %v7082 = vadd.f32 %v7081, %v5699
      %v7083 = vadd.f32 %v7082, %v5701
      %v7084 = vadd.f32 %v7083, %v5703
      %v7085 = vadd.f32 %v7084, %v5705
      %v7086 = vadd.f32 %v7085, %v5707
      %v7087 = vadd.f32 %v7086, %v5709
      %v7088 = vadd.f32 %v7087, %v5711
      %v7089 = vadd.f32 %v7088, %v5713
      %v7090 = vadd.f32 %v7089, %v5715
      %v7091 = vadd.f32 %v7090, %v5717
      %v7092 = vadd.f32 %v7091, %v5719
      %v7093 = vadd.f32 %v7092, %v5721
      %v7094 = vadd.f32 %v7093, %v5723
      %v7095 = vadd.f32 %v7094, %v5725
      %v7096 = vadd.f32 %v7095, %v5727
      %v7097 = vadd.f32 %v7096, %v5729
      %v7098 = vadd.f32 %v7097, %v5731
      %v7099 = vadd.f32 %v7098, %v5733
      %v7100 = vadd.f32 %v7099, %v5735
      %v7101 = vadd.f32 %v7100, %v5737
      %v7102 = vadd.f32 %v7101, %v5739
      %v7103 = vadd.f32 %v7102, %v5741
      %v7104 = vadd.f32 %v7103, %v5743
      %v7105 = vadd.f32 %v7104, %v5745
      %v7106 = vadd.f32 %v7105, %v5747
      %v7107 = vadd.f32 %v7106, %v5749
      %v7108 = vadd.f32 %v7107, %v5751
      %v7109 = vadd.f32 %v7108, %v5753
      %v7110 = vadd.f32 %v7109, %v5755
      %v7111 = vadd.f32 %v7110, %v5757
      %v7112 = vadd.f32 %v7111, %v5759
      %v7113 = vadd.f32 %v7112, %v5761
      %v7114 = vadd.f32 %v7113, %v5763
      %v7115 = vadd.f32 %v7114, %v5765
      %v7116 = vadd.f32 %v7115, %v5767
      %v7117 = vadd.f32 %v7116, %v5769
      %v7118 = vadd.f32 %v7117, %v5771
      %v7119 = vadd.f32 %v7118, %v5773
      %v7120 = vadd.f32 %v7119, %v5775
      %v7121 = vadd.f32 %v7120, %v5777
      %v7122 = vadd.f32 %v7121, %v5779
      %v7123 = vadd.f32 %v7122, %v5781
      %v7124 = vadd.f32 %v7123, %v5783
      %v7125 = vadd.f32 %v7124, %v5785
      %v7126 = vadd.f32 %v7125, %v5787
      %v7127 = vadd.f32 %v7126, %v5789
      %v7128 = vadd.f32 %v7127, %v5791
      %v7129 = vadd.f32 %v7128, %v5793
      %v7130 = vadd.f32 %v7129, %v5795
      %v7131 = vadd.f32 %v7130, %v5797
      %v7132 = vadd.f32 %v7131, %v5799
      %v7133 = vadd.f32 %v7132, %v5801
      %v7134 = vadd.f32 %v7133, %v5803
      %v7135 = vadd.f32 %v7134, %v5805
      %v7136 = vadd.f32 %v7135, %v5807
      %v7137 = vadd.f32 %v7136, %v5809
      %v7138 = vadd.f32 %v7137, %v5811
      %v7139 = vadd.f32 %v7138, %v5813
      %v7140 = vadd.f32 %v7139, %v5815
      %v7141 = vadd.f32 %v7140, %v5817
      %v7142 = vadd.f32 %v7141, %v5819
      %v7143 = vadd.f32 %v7142, %v5821
      %v7144 = vadd.f32 %v7143, %v5823
      %v7145 = vadd.f32 %v7144, %v5825
      %v7146 = vadd.f32 %v7145, %v5827
      %v7147 = vadd.f32 %v7146, %v5829
      %v7148 = vadd.f32 %v7147, %v5831
      %v7149 = vadd.f32 %v7148, %v5833
      %v7150 = vadd.f32 %v7149, %v5835
      %v7151 = vadd.f32 %v7150, %v5837
      %v7152 = vadd.f32 %v7151, %v5839
      %v7153 = vadd.f32 %v7152, %v5841
      %v7154 = vadd.f32 %v7153, %v5843
      %v7155 = vadd.f32 %v7154, %v5845
      %v7156 = vadd.f32 %v7155, %v5847
      %v7157 = vadd.f32 %v7156, %v5849
      %v7158 = vadd.f32 %v7157, %v5851
      %v7159 = vadd.f32 %v7158, %v5853
      %v7160 = vadd.f32 %v7159, %v5855
      %v7161 = vadd.f32 %v7160, %v5857
      %v7162 = vadd.f32 %v7161, %v5859
      %v7163 = vadd.f32 %v7162, %v5861
      %v7164 = vadd.f32 %v7163, %v5863
      %v7165 = vadd.f32 %v7164, %v5865
      %v7166 = vadd.f32 %v7165, %v5867
      %v7167 = vadd.f32 %v7166, %v5869
      %v7168 = vadd.f32 %v7167, %v5871
      %v7169 = vadd.f32 %v7168, %v5873
      %v7170 = vadd.f32 %v7169, %v5875
      %v7171 = vadd.f32 %v7170, %v5877
      %v7172 = vadd.f32 %v7171, %v5879
      %v7173 = vadd.f32 %v7172, %v5881
      %v7174 = vadd.f32 %v7173, %v5883
      %v7175 = vadd.f32 %v7174, %v5885
      %v7176 = vadd.f32 %v7175, %v5887
      %v7177 = vadd.f32 %v7176, %v5889
      %v7178 = vadd.f32 %v7177, %v5891
      %v7179 = vadd.f32 %v7178, %v5893
      %v7180 = vadd.f32 %v7179, %v5895
      %v7181 = vadd.f32 %v7180, %v5897
      %v7182 = vadd.f32 %v7181, %v5899
      %v7183 = vadd.f32 %v7182, %v5901
      %v7184 = vadd.f32 %v7183, %v5903
      %v7185 = vadd.f32 %v7184, %v5905
      %v7186 = vadd.f32 %v7185, %v5907
      %v7187 = vadd.f32 %v7186, %v5909
      %v7188 = vadd.f32 %v7187, %v5911
      %v7189 = vadd.f32 %v7188, %v5913
      %v7190 = vadd.f32 %v7189, %v5915
      %v7191 = vadd.f32 %v7190, %v5917
      %v7192 = vadd.f32 %v7191, %v5919
      %v7193 = vadd.f32 %v7192, %v5921
      %v7194 = vadd.f32 %v7193, %v5923
      %v7195 = vadd.f32 %v7194, %v5925
      %v7196 = vadd.f32 %v7195, %v5927
      %v7197 = vadd.f32 %v7196, %v5929
      %v7198 = vadd.f32 %v7197, %v5931
      %v7199 = vadd.f32 %v7198, %v5933
      %v7200 = vadd.f32 %v7199, %v5935
      %v7201 = vadd.f32 %v7200, %v5937
      %v7202 = vadd.f32 %v7201, %v5939
      %v7203 = vadd.f32 %v7202, %v5941
      %v7204 = vadd.f32 %v7203, %v5943
      %v7205 = vadd.f32 %v7204, %v5945
      %v7206 = vadd.f32 %v7205, %v5947
      %v7207 = vadd.f32 %v7206, %v5949
      %v7208 = vadd.f32 %v7207, %v5951
      %v7209 = vadd.f32 %v7208, %v5953
      %v7210 = vadd.f32 %v7209, %v5955
      %v7211 = vadd.f32 %v7210, %v5957
      %v7212 = vadd.f32 %v7211, %v5959
      %v7213 = vadd.f32 %v7212, %v5961
      %v7214 = vadd.f32 %v7213, %v5963
      %v7215 = vadd.f32 %v7214, %v5965
      %v7216 = vadd.f32 %v7215, %v5967
      %v7217 = vadd.f32 %v7216, %v5969
      %v7218 = vadd.f32 %v7217, %v5971
      %v7219 = vadd.f32 %v7218, %v5973
      %v7220 = vadd.f32 %v7219, %v5975
      %v7221 = vadd.f32 %v7220, %v5977
      %v7222 = vadd.f32 %v7221, %v5979
      %v7223 = vadd.f32 %v7222, %v5981
      %v7224 = vadd.f32 %v7223, %v5983
      %v7225 = vadd.f32 %v7224, %v5985
      %v7226 = vadd.f32 %v7225, %v5987
      %v7227 = vadd.f32 %v7226, %v5989
      %v7228 = vadd.f32 %v7227, %v5991
      %v7229 = vadd.f32 %v7228, %v5993
      %v7230 = vadd.f32 %v7229, %v5995
      %v7231 = vadd.f32 %v7230, %v5997
      %v7232 = vadd.f32 %v7231, %v5999
      %v7233 = vadd.f32 %v7232, %v6001
      %v7234 = vadd.f32 %v7233, %v6003
      %v7235 = vadd.f32 %v7234, %v6005
      %v7236 = vadd.f32 %v7235, %v6007
      %v7237 = vadd.f32 %v7236, %v6009
      %v7238 = vadd.f32 %v7237, %v6011
      %v7239 = vadd.f32 %v7238, %v6013
      %v7240 = vadd.f32 %v7239, %v6015
      %v7241 = vadd.f32 %v7240, %v6017
      %v7242 = vadd.f32 %v7241, %v6019
      %v7243 = vadd.f32 %v7242, %v6021
      %v7244 = vadd.f32 %v7243, %v6023
      %v7245 = vadd.f32 %v7244, %v6025
      %v7246 = vadd.f32 %v7245, %v6027
      %v7247 = vadd.f32 %v7246, %v6029
      %v7248 = vadd.f32 %v7247, %v6031
      %v7249 = vadd.f32 %v7248, %v6033
      %v7250 = vadd.f32 %v7249, %v6035
      %v7251 = vadd.f32 %v7250, %v6037
      %v7252 = vadd.f32 %v7251, %v6039
      %v7253 = vadd.f32 %v7252, %v6041
      %v7254 = vadd.f32 %v7253, %v6043
      %v7255 = vadd.f32 %v7254, %v6045
      %v7256 = vadd.f32 %v7255, %v6047
      %v7257 = vadd.f32 %v7256, %v6049
      %v7258 = vadd.f32 %v7257, %v6051
      %v7259 = vadd.f32 %v7258, %v6053
      %v7260 = vadd.f32 %v7259, %v6055
      %v7261 = vadd.f32 %v7260, %v6057
      %v7262 = vadd.f32 %v7261, %v6059
      %v7263 = vadd.f32 %v7262, %v6061
      %v7264 = vadd.f32 %v7263, %v6063
      %v7265 = vadd.f32 %v7264, %v6065
      %v7266 = vadd.f32 %v7265, %v6067
      %v7267 = vadd.f32 %v7266, %v6069
      %v7268 = vadd.f32 %v7267, %v6071
      %v7269 = vadd.f32 %v7268, %v6073
      %v7270 = vadd.f32 %v7269, %v6075
      %v7271 = vadd.f32 %v7270, %v6077
      %v7272 = vadd.f32 %v7271, %v6079
      %v7273 = vadd.f32 %v7272, %v6081
      %v7274 = vadd.f32 %v7273, %v6083
      %v7275 = vadd.f32 %v7274, %v6085
      %v7276 = vadd.f32 %v7275, %v6087
      %v7277 = vadd.f32 %v7276, %v6089
      %v7278 = vadd.f32 %v7277, %v6091
      %v7279 = vadd.f32 %v7278, %v6093
      %v7280 = vadd.f32 %v7279, %v6095
      %v7281 = vadd.f32 %v7280, %v6097
      %v7282 = vadd.f32 %v7281, %v6099
      %v7283 = vadd.f32 %v7282, %v6101
      %v7284 = vadd.f32 %v7283, %v6103
      %v7285 = vadd.f32 %v7284, %v6105
      %v7286 = vadd.f32 %v7285, %v6107
      %v7287 = vadd.f32 %v7286, %v6109
      %v7288 = vadd.f32 %v7287, %v6111
      %v7289 = vadd.f32 %v7288, %v6113
      %v7290 = vadd.f32 %v7289, %v6115
      %v7291 = vadd.f32 %v7290, %v6117
      %v7292 = vadd.f32 %v7291, %v6119
      %v7293 = vadd.f32 %v7292, %v6121
      %v7294 = vadd.f32 %v7293, %v6123
      %v7295 = vadd.f32 %v7294, %v6125
      %v7296 = vadd.f32 %v7295, %v6127
      %v7297 = vadd.f32 %v7296, %v6129
      %v7298 = vadd.f32 %v7297, %v6131
      %v7299 = vadd.f32 %v7298, %v6133
      %v7300 = vadd.f32 %v7299, %v6135
      %v7301 = vadd.f32 %v7300, %v6137
      %v7302 = vadd.f32 %v7301, %v6139
      %v7303 = vadd.f32 %v7302, %v6141
      %v7304 = vadd.f32 %v7303, %v6143
      %v7305 = vadd.f32 %v7304, %v6145
      %v7306 = vadd.f32 %v7305, %v6147
      %v7307 = vadd.f32 %v7306, %v6149
      %v7308 = vadd.f32 %v7307, %v6151
      %v7309 = vadd.f32 %v7308, %v6153
      %v7310 = vadd.f32 %v7309, %v6155
      %v7311 = vadd.f32 %v7310, %v6157
      %v7312 = vadd.f32 %v7311, %v6159
      %v7313 = vadd.f32 %v7312, %v6161
      %v7314 = vadd.f32 %v7313, %v6163
      %v7315 = vadd.f32 %v7314, %v6165
      %v7316 = vadd.f32 %v7315, %v6167
      %v7317 = vadd.f32 %v7316, %v6169
      %v7318 = vadd.f32 %v7317, %v6171
      %v7319 = vadd.f32 %v7318, %v6173
      %v7320 = vadd.f32 %v7319, %v6175
      %v7321 = vadd.f32 %v7320, %v6177
      %v7322 = vadd.f32 %v7321, %v6179
      %v7323 = vadd.f32 %v7322, %v6181
      %v7324 = vadd.f32 %v7323, %v6183
      %v7325 = vadd.f32 %v7324, %v6185
      %v7326 = vadd.f32 %v7325, %v6187
      %v7327 = vadd.f32 %v7326, %v6189
      %v7328 = vadd.f32 %v7327, %v6191
      %v7329 = vadd.f32 %v7328, %v6193
      %v7330 = vadd.f32 %v7329, %v6195
      %v7331 = vadd.f32 %v7330, %v6197
      %v7332 = vadd.f32 %v7331, %v6199
      %v7333 = vadd.f32 %v7332, %v6201
      %v7334 = vadd.f32 %v7333, %v6203
      %v7335 = vadd.f32 %v7334, %v6205
      %v7336 = vadd.f32 %v7335, %v6207
      %v7337 = vadd.f32 %v7336, %v6209
      %v7338 = vadd.f32 %v7337, %v6211
      %v7339 = vadd.f32 %v7338, %v6213
      %v7340 = vadd.f32 %v7339, %v6215
      %v7341 = vadd.f32 %v7340, %v6217
      %v7342 = vadd.f32 %v7341, %v6219
      %v7343 = vadd.f32 %v7342, %v6221
      %v7344 = vadd.f32 %v7343, %v6223
      %v7345 = vadd.f32 %v7344, %v6225
      %v7346 = vadd.f32 %v7345, %v6227
      %v7347 = vadd.f32 %v7346, %v6229
      %v7348 = vadd.f32 %v7347, %v6231
      %v7349 = vadd.f32 %v7348, %v6233
      %v7350 = vadd.f32 %v7349, %v6235
      %v7351 = vadd.f32 %v7350, %v6237
      %v7352 = vadd.f32 %v7351, %v6239
      %v7353 = vadd.f32 %v7352, %v6241
      %v7354 = vadd.f32 %v7353, %v6243
      %v7355 = vadd.f32 %v7354, %v6245
      %v7356 = vadd.f32 %v7355, %v6247
      %v7357 = vadd.f32 %v7356, %v6249
      %v7358 = vadd.f32 %v7357, %v6251
      %v7359 = vadd.f32 %v7358, %v6253
      %v7360 = vadd.f32 %v7359, %v6255
      %v7361 = vadd.f32 %v7360, %v6257
      %v7362 = vadd.f32 %v7361, %v6259
      %v7363 = vadd.f32 %v7362, %v6261
      %v7364 = vadd.f32 %v7363, %v6263
      %v7365 = vadd.f32 %v7364, %v6265
      %v7366 = vadd.f32 %v7365, %v6267
      %v7367 = vadd.f32 %v7366, %v6269
      %v7368 = vadd.f32 %v7367, %v6271
      %v7369 = vadd.f32 %v7368, %v6273
      %v7370 = vadd.f32 %v7369, %v6275
      %v7371 = vadd.f32 %v7370, %v6277
      %v7372 = vadd.f32 %v7371, %v6279
      %v7373 = vadd.f32 %v7372, %v6281
      %v7374 = vadd.f32 %v7373, %v6283
      %v7375 = vadd.f32 %v7374, %v6285
      %v7376 = vadd.f32 %v7375, %v6287
      %v7377 = vadd.f32 %v7376, %v6289
      %v7378 = vadd.f32 %v7377, %v6291
      %v7379 = vadd.f32 %v7378, %v6293
      %v7380 = vadd.f32 %v7379, %v6295
      %v7381 = vadd.f32 %v7380, %v6297
      %v7382 = vadd.f32 %v7381, %v6299
      %v7383 = vadd.f32 %v7382, %v6301
      %v7384 = vadd.f32 %v7383, %v6303
      %v7385 = vadd.f32 %v7384, %v6305
      %v7386 = vadd.f32 %v7385, %v6307
      %v7387 = vadd.f32 %v7386, %v6309
      %v7388 = vadd.f32 %v7387, %v6311
      %v7389 = vadd.f32 %v7388, %v6313
      %v7390 = vadd.f32 %v7389, %v6315
      %v7391 = vadd.f32 %v7390, %v6317
      %v7392 = vadd.f32 %v7391, %v6319
      %v7393 = vadd.f32 %v7392, %v6321
      %v7394 = vadd.f32 %v7393, %v6323
      %v7395 = vadd.f32 %v7394, %v6325
      %v7396 = vadd.f32 %v7395, %v6327
      %v7397 = vadd.f32 %v7396, %v6329
      %v7398 = vadd.f32 %v7397, %v6331
      %v7399 = vadd.f32 %v7398, %v6333
      %v7400 = vadd.f32 %v7399, %v6335
      %v7401 = vadd.f32 %v7400, %v6337
      %v7402 = vadd.f32 %v7401, %v6339
      %v7403 = vadd.f32 %v7402, %v6341
      %v7404 = vadd.f32 %v7403, %v6343
      %v7405 = vadd.f32 %v7404, %v6345
      %v7406 = vadd.f32 %v7405, %v6347
      %v7407 = vadd.f32 %v7406, %v6349
      %v7408 = vadd.f32 %v7407, %v6351
      %v7409 = vadd.f32 %v7408, %v6353
      %v7410 = vadd.f32 %v7409, %v6355
      %v7411 = vadd.f32 %v7410, %v6357
      %v7412 = vadd.f32 %v7411, %v6359
      %v7413 = vadd.f32 %v7412, %v6361
      %v7414 = vadd.f32 %v7413, %v6363
      %v7415 = vadd.f32 %v7414, %v6365
      %v7416 = vadd.f32 %v7415, %v6367
      %v7417 = vadd.f32 %v7416, %v6369
      %v7418 = vadd.f32 %v7417, %v6371
      %v7419 = vadd.f32 %v7418, %v6373
      %v7420 = vadd.f32 %v7419, %v6375
      %v7421 = vadd.f32 %v7420, %v6377
      %v7422 = vadd.f32 %v7421, %v6379
      %v7423 = vadd.f32 %v7422, %v6381
      %v7424 = vadd.f32 %v7423, %v6383
      %v7425 = vadd.f32 %v7424, %v6385
      %v7426 = vadd.f32 %v7425, %v6387
      %v7427 = vadd.f32 %v7426, %v6389
      %v7428 = vadd.f32 %v7427, %v6391
      %v7429 = vadd.f32 %v7428, %v6393
      %v7430 = vadd.f32 %v7429, %v6395
      %v7431 = vadd.f32 %v7430, %v6397
      %v7432 = vadd.f32 %v7431, %v6399
      %v7433 = vadd.f32 %v7432, %v6401
      %v7434 = vadd.f32 %v7433, %v6403
      %v7435 = vadd.f32 %v7434, %v6405
      %v7436 = vadd.f32 %v7435, %v6407
      %v7437 = vadd.f32 %v7436, %v6409
      %v7438 = vadd.f32 %v7437, %v6411
      %v7439 = vadd.f32 %v7438, %v6413
      %v7440 = vadd.f32 %v7439, %v6415
      %v7441 = vadd.f32 %v7440, %v6417
      %v7442 = vadd.f32 %v6418, %v6930
      %v7443 = vadd.f32 %v6419, %v7441
      %7444 = vst [vmem:[%s196] sm:$0xff] %v7442
      %7445 = vst [vmem:[%s196 + $0x8] sm:$0xff] %v7443
      %p7446 = scmp.lt.s32.totalorder %s18, 1
      %s7447 = scalar_select %p7446, %s18, 1
      %s7448 = smul.addr %s7447, 2
      %s7449 = smul.addr %s7448, 8
      %s7450 = scalar_lea.vmem %s3, %s7449
      // Predicated region
      $region37: #{encoder_forward.2} parent=31 // pred_check
        %p7451 = pneg %p114
      $region38: #{encoder_forward.2} parent=31 // pred_check_branch
        %7453 = sbr.rel (%p7451) target = $region40
      $region39: #{encoder_forward.2} parent=31 // pred_region
        _
      $region40: #{encoder_forward.2} parent=31 // pred_fallthru
        _
    $region32: #{encoder_forward.2} parent=5 // pred_fallthru
      _
    %p7454 = scmp.le.s32.totalorder 2, %s9
    // Predicated region
    $region41: #{encoder_forward.2} parent=5 // pred_check
      %p7455 = pneg %p7454
    $region42: #{encoder_forward.2} parent=5 // pred_check_branch
      %7457 = sbr.rel (%p7455) target = $region44
    $region43: #{encoder_forward.2} parent=5 // pred_region
      %s7458 = ssub.s32 %s9, 2
      // Predicated region
      $region45: #{encoder_forward.2} parent=43 // pred_check
        %p7459 = pneg %p120
      $region46: #{encoder_forward.2} parent=43 // pred_check_branch
        %7461 = sbr.rel (%p7459) target = $region48
      $region47: #{encoder_forward.2} parent=43 // pred_region
        %p7462 = scmp.lt.s32.totalorder %s20, 1
        %s7463 = scalar_select %p7462, %s20, 1
        %s7464 = smul.addr %s7463, 2
        %s7465 = smul.addr %s7464, 8
        %s7466 = scalar_lea.vmem %s3, %s7465
      $region48: #{encoder_forward.2} parent=43 // pred_fallthru
        _
    $region44: #{encoder_forward.2} parent=5 // pred_fallthru
      _
  $region6: #{encoder_forward.2} parent=0 // loop_footer
    %s13 = sadd.s32 1, %s9
  $region7: #{encoder_forward.2} parent=0 // loop_footer_branch
    %8 = sbr.rel target = $region3
  $region8: #{encoder_forward.2} parent=0 // loop_exit
    _

</llo_original>
